<compile_context>
chip_gen: v7x
topology: tpu7x:2x2x1
jax: 0.10.0
libtpu: 0.0.40
codegen_flags: <defaults>
</compile_context>

<pallas_src>
import functools

import jax
import jax.numpy as jnp
import numpy as np
from jax.experimental import pallas as pl
from jax.experimental.pallas import tpu as pltpu

# Conv matmul operand dtype (accumulation is always f32).  bf16 gives ~2x MXU
# throughput on v6e/v7x and halves slab VMEM; set to jnp.float32 for exact parity
# with the f32 reference.
MATMUL_DTYPE = jnp.bfloat16


# ----------------------------- in-kernel helpers -----------------------------
def _nearest2x(x, sel_ref):
    """Exact nearest-neighbour 2x upsample of an (r, W, cin) f32 strip.

    Column doubling uses a 0/1 selection matmul (sel is a host constant, f32,
    HIGHEST precision -> exact); row doubling is a free leading-dim interleave.
    Returns (2r, 2W, cin) f32.
    """
    r, W, cin = x.shape
    W2 = 2 * W
    xt = jnp.swapaxes(x, 1, 2).reshape(r * cin, W)
    xw = jnp.dot(xt, sel_ref[...],
                 precision=jax.lax.Precision.HIGHEST,
                 preferred_element_type=jnp.float32)               # (r*cin, 2W)
    xw = jnp.swapaxes(xw.reshape(r, cin, W2), 1, 2)                # (r, 2W, cin)
    return jnp.concatenate([xw[:, None], xw[:, None]], axis=1).reshape(2 * r, W2, cin)


def _conv3x3(xpad_ref, w_ref, b_ref, *, nrows, W2, cin, relu):
    """3x3 'same' conv over a zero-padded (nrows+2, W2+2, cin) f32 VMEM scratch.

    w_ref: (3, 3*cin, cout) in MATMUL_DTYPE -- the three dx taps of a kernel row
    grouped on K (good MXU depth on v6e/v7x).  b_ref: (1, cout) f32.
    Returns (nrows*W2, cout) f32 (bias-initialized accumulator, f32 accumulation).
    """
    cout = w_ref.shape[-1]
    acc = jnp.broadcast_to(b_ref[...], (nrows * W2, cout)).astype(jnp.float32)
    for dy in range(3):
        rows = xpad_ref[dy:dy + nrows, :, :]                        # (nrows, W2+2, cin)
        slab = jnp.concatenate(
            [rows[:, dx:dx + W2, :].astype(MATMUL_DTYPE) for dx in range(3)],
            axis=-1)                                                # (nrows, W2, 3cin)
        acc = acc + jnp.dot(slab.reshape(nrows * W2, 3 * cin),
                            w_ref[dy],
                            preferred_element_type=jnp.float32)
    if relu:
        acc = jnp.maximum(acc, 0.0)
    return acc


# --------------------------------- the kernel --------------------------------
def _unet_up_kernel(x1b_ref, x1t_ref, x1o_ref, x2b_ref, x2t_ref, x2o_ref, sel_ref,
                    wup_ref, bup_ref, w1_ref, b1_ref, w2_ref, b2_ref,
                    o_ref, up_pad, cat_pad, h1_pad, *, S1, W, C, nhwc_out):
    C2, S, W2 = 2 * C, 2 * S1, 2 * W
    s = pl.program_id(1)
    last = pl.num_programs(1) - 1
    f32 = jnp.float32

    def zrow(n_rows, ch):
        return jnp.zeros((n_rows, W2 + 2, ch), f32)

    def zcol(n_rows, ch):
        return jnp.zeros((n_rows, 1, ch), f32)

    # ---- stage 1: nearest-2x upsample of the inputs1 strip into up_pad ------
    # (halo columns re-zeroed every step: scratch is per-core, so a program_id
    #  gate would be unsafe under megacore sharding; the cost is a few KB.)
    up_pad[:, 0:1, :] = zcol(S + 6, C2)
    up_pad[:, W2 + 1:W2 + 2, :] = zcol(S + 6, C2)
    up_pad[3:3 + S, 1:1 + W2, :] = _nearest2x(x1b_ref[0], sel_ref)
    up_pad[0:3, 1:1 + W2, :] = _nearest2x(x1t_ref[0], sel_ref)[1:4]
    up_pad[3 + S:6 + S, 1:1 + W2, :] = _nearest2x(x1o_ref[0], sel_ref)[0:3]

    @pl.when(s == 0)                       # rows above the image: 'same' zeros
    def _():
        up_pad[0:3, :, :] = zrow(3, C2)

    @pl.when(s == last)                    # rows below the image: 'same' zeros
    def _():
        up_pad[3 + S:6 + S, :, :] = zrow(3, C2)

    # ---- stage 2: in1_up = Conv3x3(2C->C)(up), written straight into cat_pad
    cat_pad[:, 0:1, :] = zcol(S + 4, C2)
    cat_pad[:, W2 + 1:W2 + 2, :] = zcol(S + 4, C2)
    in1_up = _conv3x3(up_pad, wup_ref, bup_ref, nrows=S + 4, W2=W2, cin=C2,
                      relu=False)
    cat_pad[0:S + 4, 1:1 + W2, 0:C] = in1_up.reshape(S + 4, W2, C)
    # skip connection (inputs2) occupies channels [C:2C]
    cat_pad[2:2 + S, 1:1 + W2, C:C2] = x2b_ref[0]
    cat_pad[0:2, 1:1 + W2, C:C2] = x2t_ref[0]
    cat_pad[2 + S:4 + S, 1:1 + W2, C:C2] = x2o_ref[0]

    @pl.when(s == 0)
    def _():
        cat_pad[0:2, :, :] = zrow(2, C2)

    @pl.when(s == last)
    def _():
        cat_pad[2 + S:4 + S, :, :] = zrow(2, C2)

    # ---- stage 3: h1 = ReLU(Conv3x3(2C->C)(cat)) into h1_pad -----------------
    h1_pad[:, 0:1, :] = zcol(S + 2, C)
    h1_pad[:, W2 + 1:W2 + 2, :] = zcol(S + 2, C)
    h1 = _conv3x3(cat_pad, w1_ref, b1_ref, nrows=S + 2, W2=W2, cin=C2, relu=True)
    h1_pad[0:S + 2, 1:1 + W2, :] = h1.reshape(S + 2, W2, C)

    @pl.when(s == 0)
    def _():
        h1_pad[0:1, :, :] = zrow(1, C)

    @pl.when(s == last)
    def _():
        h1_pad[S + 1:S + 2, :, :] = zrow(1, C)

    # ---- stage 4: out = ReLU(Conv3x3(C->C)(h1)), per-strip store -------------
    h2 = _conv3x3(h1_pad, w2_ref, b2_ref, nrows=S, W2=W2, cin=C, relu=True)
    if nhwc_out:                                   # C >= 128: lane dim already dense
        o_ref[0] = h2.reshape(S, W2, C).astype(o_ref.dtype)
    else:                                          # small C: lane-dense (C, spatial)
        o_ref[0] = h2.T.astype(o_ref.dtype)


# ----------------------------- host-side wrapper -----------------------------
def _default_vmem_limit_bytes():
    # v4/v5e/v5p/v6e: 128 MiB VMEM per TensorCore; v7x (and unknown): 64 MiB -> be
    # conservative and leave headroom for double-buffered blocks + compiler scratch.
    try:
        kind = jax.devices()[0].device_kind.lower()
    except Exception:
        kind = ""
    if any(t in kind for t in ("v4", "v5", "v6")):
        return 100 * 2 ** 20
    return 44 * 2 ** 20


def _vmem_bytes_estimate(S1, W, C):
    S, W2, C2 = 2 * S1, 2 * W, 2 * C
    f32 = 4
    mm = jnp.dtype(MATMUL_DTYPE).itemsize
    pad = W2 + 2
    scratch = ((S + 6) * pad * C2 + (S + 4) * pad * C2 + (S + 2) * pad * C) * f32
    blocks = 2 * f32 * ((S1 + 4) * W * C2 + (S + 4) * W2 * C + S * W2 * C)
    consts = f32 * W * W2 * 2 + 2 * mm * 9 * C * (2 * C2 + C) + 12 * C * f32
    live = (S + 4) * W2 * (3 * C2 * mm + C2 * f32 + C * f32)   # slab + rows + acc
    return scratch + blocks + consts + live


def _pick_strip_rows(H, W, C, nhwc_out, budget_bytes):
    """Largest even divisor of H whose per-strip VMEM footprint fits the budget."""
    W2 = 2 * W
    cands = [d for d in range(H, 1, -1) if H % d == 0 and d % 2 == 0]
    ok = [d for d in cands if nhwc_out or d == H or (2 * d * W2) % 128 == 0]
    for S1 in ok:                                   # largest first
        if _vmem_bytes_estimate(S1, W, C) <= budget_bytes:
            return S1
    return ok[-1]


def unet_up_forward(inputs1_nchw, inputs2_nchw, params, *, strip_rows=None,
                    vmem_limit_bytes=None):
    """UNetUp.forward (nearest-upsample branch). Inputs/outputs are NCHW f32."""
    N, C2, H, W = inputs1_nchw.shape
    if C2 % 2:
        raise ValueError("inputs1 channel count must be 2*out_size")
    C = C2 // 2
    H2, W2 = 2 * H, 2 * W
    if inputs2_nchw.shape[2] != H2 or inputs2_nchw.shape[3] != W2:
        # mirrors `_assert_if_size_mismatch = True`
        raise ValueError(
            f"input2 size ({inputs2_nchw.shape[2:]}) does not match upscaled "
            f"inputs1 size ({(H2, W2)}")
    if inputs2_nchw.shape[0] != N or inputs2_nchw.shape[1] != C:
        raise ValueError("inputs2 must have shape (N, out_size, 2H, 2W)")
    if H % 2:
        # TODO(synk): ragged / odd-height strip handling.
        raise NotImplementedError("kernel requires an even number of inputs1 rows")

    nhwc_out = C >= 128
    if vmem_limit_bytes is None:
        vmem_limit_bytes = _default_vmem_limit_bytes()
    if strip_rows is None:
        S1 = _pick_strip_rows(H, W, C, nhwc_out, int(vmem_limit_bytes * 0.6))
    else:
        S1 = int(strip_rows)
        if S1 % 2 or H % S1:
            raise ValueError("strip_rows must be an even divisor of H")
        if (not nhwc_out) and S1 != H and (2 * S1 * W2) % 128 != 0:
            raise ValueError("strip_rows must give 2*strip_rows*2W % 128 == 0 "
                             "(lane-dense output strips) or cover all rows")
    S = 2 * S1
    num_strips = H // S1

    x1 = jnp.transpose(inputs1_nchw, (0, 2, 3, 1))   # (N, H, W, 2C)
    x2 = jnp.transpose(inputs2_nchw, (0, 2, 3, 1))   # (N, 2H, 2W, C)

    # host-side weight repack: HWIO (3,3,Cin,Cout) -> (3, 3*Cin, Cout) bf16 slabs
    mmdt = MATMUL_DTYPE
    w_up = params["w_up"].reshape(3, 3 * C2, C).astype(mmdt)
    w1 = params["w1"].reshape(3, 3 * C2, C).astype(mmdt)
    w2 = params["w2"].reshape(3, 3 * C, C).astype(mmdt)
    b_up = params["b_up"].reshape(1, C).astype(jnp.float32)
    b1 = params["b1"].reshape(1, C).astype(jnp.float32)
    b2 = params["b2"].reshape(1, C).astype(jnp.float32)

    # 0/1 column-duplication matrix, hoisted out of the kernel (f32, exact).
    sel = (jax.lax.broadcasted_iota(jnp.int32, (W, W2), 1) // 2
           == jax.lax.broadcasted_iota(jnp.int32, (W, W2), 0)).astype(jnp.float32)

    hs = S1 // 2
    nb2_x1 = H // 2 - 1          # last 2-row block index of inputs1
    nb2_x2 = H - 1               # last 2-row block index of inputs2 (2H rows)

    in_specs = [
        # inputs1: body strip + 2-row halos (clamped at the image border; the
        # kernel overwrites border halos with zeros under pl.when).
        pl.BlockSpec((1, S1, W, C2), lambda n, s: (n, s, 0, 0)),
        pl.BlockSpec((1, 2, W, C2),
                     lambda n, s: (n, jnp.maximum(s * hs - 1, 0), 0, 0)),
        pl.BlockSpec((1, 2, W, C2),
                     lambda n, s: (n, jnp.minimum((s + 1) * hs, nb2_x1), 0, 0)),
        # inputs2: body strip + 2-row halos at output resolution.
        pl.BlockSpec((1, S, W2, C), lambda n, s: (n, s, 0, 0)),
        pl.BlockSpec((1, 2, W2, C),
                     lambda n, s: (n, jnp.maximum(s * S1 - 1, 0), 0, 0)),
        pl.BlockSpec((1, 2, W2, C),
                     lambda n, s: (n, jnp.minimum((s + 1) * S1, nb2_x2), 0, 0)),
        # constants
        pl.BlockSpec((W, W2), lambda n, s: (0, 0)),
        pl.BlockSpec((3, 3 * C2, C), lambda n, s: (0, 0, 0)),
        pl.BlockSpec((1, C), lambda n, s: (0, 0)),
        pl.BlockSpec((3, 3 * C2, C), lambda n, s: (0, 0, 0)),
        pl.BlockSpec((1, C), lambda n, s: (0, 0)),
        pl.BlockSpec((3, 3 * C, C), lambda n, s: (0, 0, 0)),
        pl.BlockSpec((1, C), lambda n, s: (0, 0)),
    ]
    if nhwc_out:
        out_shape = jax.ShapeDtypeStruct((N, H2, W2, C), jnp.float32)
        out_spec = pl.BlockSpec((1, S, W2, C), lambda n, s: (n, s, 0, 0))
    else:
        out_shape = jax.ShapeDtypeStruct((N, C, H2 * W2), jnp.float32)
        out_spec = pl.BlockSpec((1, C, S * W2), lambda n, s: (n, 0, s))

    kern = functools.partial(_unet_up_kernel, S1=S1, W=W, C=C, nhwc_out=nhwc_out)
    out = pl.pallas_call(
        kern,
        out_shape=out_shape,
        grid_spec=pltpu.PrefetchScalarGridSpec(
            num_scalar_prefetch=0,
            grid=(N, num_strips),
            in_specs=in_specs,
            out_specs=out_spec,
            scratch_shapes=[
                pltpu.VMEM((S + 6, W2 + 2, C2), jnp.float32),   # up_pad
                pltpu.VMEM((S + 4, W2 + 2, C2), jnp.float32),   # cat_pad
                pltpu.VMEM((S + 2, W2 + 2, C), jnp.float32),    # h1_pad
            ],
        ),
        compiler_params=pltpu.CompilerParams(
            dimension_semantics=("parallel", "parallel"),
            vmem_limit_bytes=int(vmem_limit_bytes)),
    )(x1, x1, x1, x2, x2, x2, sel, w_up, b_up, w1, b1, w2, b2)

    if nhwc_out:
        return jnp.transpose(out, (0, 3, 1, 2))
    # contiguity-preserving (free) reshape back to NCHW
    return out.reshape(N, C, H2, W2)
    # TODO(synk): 'deconv' (ConvTranspose2d) / 'bilinear' upsample branches are not
    # implemented (module config not exercised here).


# ---------------------------- pure-JAX reference -----------------------------
def _conv_ref(x_nhwc, w_hwio, b, relu, operand_dtype):
    xq = x_nhwc.astype(operand_dtype).astype(jnp.float32)
    wq = w_hwio.astype(operand_dtype).astype(jnp.float32)
    y = jax.lax.conv_general_dilated(
        xq, wq, window_strides=(1, 1), padding="SAME",
        dimension_numbers=("NHWC", "HWIO", "NHWC"),
        precision=jax.lax.Precision.HIGHEST)
    y = y + b[None, None, None, :].astype(jnp.float32)
    return jnp.maximum(y, 0.0) if relu else y


def unet_up_reference(inputs1_nchw, inputs2_nchw, params, operand_dtype=jnp.float32):
    x1 = jnp.transpose(inputs1_nchw, (0, 2, 3, 1))
    x2 = jnp.transpose(inputs2_nchw, (0, 2, 3, 1))
    up = jnp.repeat(jnp.repeat(x1, 2, axis=1), 2, axis=2)
    in1_up = _conv_ref(up, params["w_up"], params["b_up"], False, operand_dtype)
    cat = jnp.concatenate([in1_up, x2], axis=-1)
    h1 = _conv_ref(cat, params["w1"], params["b1"], True, operand_dtype)
    h2 = _conv_ref(h1, params["w2"], params["b2"], True, operand_dtype)
    return jnp.transpose(h2, (0, 3, 1, 2))


if __name__ == "__main__":
    key = jax.random.PRNGKey(0)
    C = 4                      # out_size
    N, H, W = 2, 16, 8         # inputs1 spatial; inputs2 is (2H, 2W)

    k1, k2, kw = jax.random.split(key, 3)
    inputs1 = jax.random.normal(k1, (N, 2 * C, H, W), jnp.float32)       # NCHW
    inputs2 = jax.random.normal(k2, (N, C, 2 * H, 2 * W), jnp.float32)   # NCHW

    ks = jax.random.split(kw, 6)
    params = {
        "w_up": 0.1 * jax.random.normal(ks[0], (3, 3, 2 * C, C), jnp.float32),
        "b_up": 0.1 * jax.random.normal(ks[1], (C,), jnp.float32),
        "w1":   0.1 * jax.random.normal(ks[2], (3, 3, 2 * C, C), jnp.float32),
        "b1":   0.1 * jax.random.normal(ks[3], (C,), jnp.float32),
        "w2":   0.1 * jax.random.normal(ks[4], (3, 3, C, C), jnp.float32),
        "b2":   0.1 * jax.random.normal(ks[5], (C,), jnp.float32),
    }

    # multi-strip path (4 strips of 4 inputs1 rows each) -- exercises the halo logic
    fwd = jax.jit(functools.partial(unet_up_forward, strip_rows=4))
    out = jax.block_until_ready(fwd(inputs1, inputs2, params))
    assert out.shape == (N, C, 2 * H, 2 * W), out.shape

    # Structural check: a reference whose conv operands are rounded to the same
    # MATMUL_DTYPE (bf16 products, f32 accumulation) -> tight tolerance.
    ref_mm = jax.block_until_ready(
        unet_up_reference(inputs1, inputs2, params, operand_dtype=MATMUL_DTYPE))
    np.testing.assert_allclose(np.asarray(out), np.asarray(ref_mm),
                               rtol=2e-3, atol=2e-3)

    # Semantic check vs. the exact f32 module: deviation is only the standard
    # bf16-matmul rounding of the three convolutions.
    ref_f32 = jax.block_until_ready(
        unet_up_reference(inputs1, inputs2, params, operand_dtype=jnp.float32))
    np.testing.assert_allclose(np.asarray(out), np.asarray(ref_f32),
                               rtol=5e-2, atol=5e-2)

    # auto strip selection (degenerates to a single strip at this toy size)
    out2 = jax.block_until_ready(jax.jit(unet_up_forward)(inputs1, inputs2, params))
    np.testing.assert_allclose(np.asarray(out2), np.asarray(ref_mm),
                               rtol=2e-3, atol=2e-3)

    print("KERNEL_OK")
</pallas_src>

<mosaic_0001>
module attributes {stable_mosaic.version = 11 : i64} {
  func.func @_unet_up_kernel(%arg0: i32, %arg1: i32, %arg2: memref<1x4x8x8xf32, #tpu.memory_space<vmem>>, %arg3: memref<1x2x8x8xf32, #tpu.memory_space<vmem>>, %arg4: memref<1x2x8x8xf32, #tpu.memory_space<vmem>>, %arg5: memref<1x8x16x4xf32, #tpu.memory_space<vmem>>, %arg6: memref<1x2x16x4xf32, #tpu.memory_space<vmem>>, %arg7: memref<1x2x16x4xf32, #tpu.memory_space<vmem>>, %arg8: memref<8x16xf32, #tpu.memory_space<vmem>>, %arg9: memref<3x24x4xbf16, #tpu.memory_space<vmem>>, %arg10: memref<1x4xf32, #tpu.memory_space<vmem>>, %arg11: memref<3x24x4xbf16, #tpu.memory_space<vmem>>, %arg12: memref<1x4xf32, #tpu.memory_space<vmem>>, %arg13: memref<3x12x4xbf16, #tpu.memory_space<vmem>>, %arg14: memref<1x4xf32, #tpu.memory_space<vmem>>, %arg15: memref<1x4x128xf32, #tpu.memory_space<vmem>>, %arg16: memref<14x18x8xf32, #tpu.memory_space<vmem>>, %arg17: memref<12x18x8xf32, #tpu.memory_space<vmem>>, %arg18: memref<10x18x4xf32, #tpu.memory_space<vmem>>) attributes {dimension_semantics = [#tpu.dimension_semantics<parallel>, #tpu.dimension_semantics<parallel>], iteration_bounds = array<i64: 2, 4>, scalar_prefetch = 0 : i64, scratch_operands = 3 : i64, tpu.core_type = #tpu.core_type<tc>, window_params = [{transform_indices = @transform_0, window_bounds = array<i64: 1, 4, 8, 8>}, {transform_indices = @transform_1, window_bounds = array<i64: 1, 2, 8, 8>}, {transform_indices = @transform_2, window_bounds = array<i64: 1, 2, 8, 8>}, {transform_indices = @transform_3, window_bounds = array<i64: 1, 8, 16, 4>}, {transform_indices = @transform_4, window_bounds = array<i64: 1, 2, 16, 4>}, {transform_indices = @transform_5, window_bounds = array<i64: 1, 2, 16, 4>}, {pipeline_mode = #tpu.pipeline_mode<synchronous>, transform_indices = @transform_6, window_bounds = array<i64: 8, 16>}, {pipeline_mode = #tpu.pipeline_mode<synchronous>, transform_indices = @transform_7, window_bounds = array<i64: 3, 24, 4>}, {pipeline_mode = #tpu.pipeline_mode<synchronous>, transform_indices = @transform_8, window_bounds = array<i64: 1, 4>}, {pipeline_mode = #tpu.pipeline_mode<synchronous>, transform_indices = @transform_9, window_bounds = array<i64: 3, 24, 4>}, {pipeline_mode = #tpu.pipeline_mode<synchronous>, transform_indices = @transform_10, window_bounds = array<i64: 1, 4>}, {pipeline_mode = #tpu.pipeline_mode<synchronous>, transform_indices = @transform_11, window_bounds = array<i64: 3, 12, 4>}, {pipeline_mode = #tpu.pipeline_mode<synchronous>, transform_indices = @transform_12, window_bounds = array<i64: 1, 4>}, {transform_indices = @transform_13, window_bounds = array<i64: 1, 4, 128>}]} {
    %cst = arith.constant 0.000000e+00 : f32
    %0 = vector.broadcast %cst : f32 to vector<14x1x8xf32>
    %c0 = arith.constant 0 : index
    %c0_0 = arith.constant 0 : index
    %c0_1 = arith.constant 0 : index
    %1 = vector.load %arg16[%c0, %c0_0, %c0_1] : memref<14x18x8xf32, #tpu.memory_space<vmem>>, vector<14x1x8xf32>
    tpu.vector_store %arg16[%c0, %c0_0, %c0_1], %0 {strides = array<i32>} : memref<14x18x8xf32, #tpu.memory_space<vmem>>, vector<14x1x8xf32>,
    %cst_2 = arith.constant 0.000000e+00 : f32
    %2 = vector.broadcast %cst_2 : f32 to vector<14x1x8xf32>
    %c0_3 = arith.constant 0 : index
    %c17 = arith.constant 17 : index
    %c0_4 = arith.constant 0 : index
    %3 = vector.load %arg16[%c0_3, %c17, %c0_4] : memref<14x18x8xf32, #tpu.memory_space<vmem>>, vector<14x1x8xf32>
    tpu.vector_store %arg16[%c0_3, %c17, %c0_4], %2 {strides = array<i32>} : memref<14x18x8xf32, #tpu.memory_space<vmem>>, vector<14x1x8xf32>,
    %c0_5 = arith.constant 0 : index
    %c0_6 = arith.constant 0 : index
    %c0_7 = arith.constant 0 : index
    %c0_8 = arith.constant 0 : index
    %4 = vector.load %arg2[%c0_5, %c0_6, %c0_7, %c0_8] : memref<1x4x8x8xf32, #tpu.memory_space<vmem>>, vector<1x4x8x8xf32>
    %5 = vector.shape_cast %4 : vector<1x4x8x8xf32> to vector<4x8x8xf32>
    %6 = tpu.transpose %5, [0, 2, 1] : vector<4x8x8xf32> -> vector<4x8x8xf32>
    %7 = vector.shape_cast %6 : vector<4x8x8xf32> to vector<32x8xf32>
    %c0_9 = arith.constant 0 : index
    %c0_10 = arith.constant 0 : index
    %8 = vector.load %arg8[%c0_9, %c0_10] : memref<8x16xf32, #tpu.memory_space<vmem>>, vector<8x16xf32>
    %cst_11 = arith.constant dense<0.000000e+00> : vector<32x16xf32>
    %9 = tpu.matmul %7, %8, %cst_11 {dimension_numbers = #tpu.dot_dimension_numbers<[1], [0], [0], [1], [0, 0, 1, 1], [], []>, precision = #tpu.contract_precision<fp32>} : vector<32x8xf32>, vector<8x16xf32>, vector<32x16xf32> -> vector<32x16xf32>
    %10 = vector.shape_cast %9 : vector<32x16xf32> to vector<4x8x16xf32>
    %11 = tpu.transpose %10, [0, 2, 1] : vector<4x8x16xf32> -> vector<4x16x8xf32>
    %12 = vector.shape_cast %11 : vector<4x16x8xf32> to vector<4x1x16x8xf32>
    %13 = vector.shape_cast %11 : vector<4x16x8xf32> to vector<4x1x16x8xf32>
    %14 = tpu.concatenate %12, %13 in 1 : vector<4x1x16x8xf32>, vector<4x1x16x8xf32> -> vector<4x2x16x8xf32>
    %15 = vector.shape_cast %14 : vector<4x2x16x8xf32> to vector<8x16x8xf32>
    %c3 = arith.constant 3 : index
    %c1 = arith.constant 1 : index
    %c0_12 = arith.constant 0 : index
    %16 = vector.load %arg16[%c3, %c1, %c0_12] : memref<14x18x8xf32, #tpu.memory_space<vmem>>, vector<8x16x8xf32>
    tpu.vector_store %arg16[%c3, %c1, %c0_12], %15 {strides = array<i32>} : memref<14x18x8xf32, #tpu.memory_space<vmem>>, vector<8x16x8xf32>,
    %c0_13 = arith.constant 0 : index
    %c0_14 = arith.constant 0 : index
    %c0_15 = arith.constant 0 : index
    %c0_16 = arith.constant 0 : index
    %17 = vector.load %arg3[%c0_13, %c0_14, %c0_15, %c0_16] : memref<1x2x8x8xf32, #tpu.memory_space<vmem>>, vector<1x2x8x8xf32>
    %18 = vector.shape_cast %17 : vector<1x2x8x8xf32> to vector<2x8x8xf32>
    %19 = tpu.transpose %18, [0, 2, 1] : vector<2x8x8xf32> -> vector<2x8x8xf32>
    %20 = vector.shape_cast %19 : vector<2x8x8xf32> to vector<16x8xf32>
    %c0_17 = arith.constant 0 : index
    %c0_18 = arith.constant 0 : index
    %21 = vector.load %arg8[%c0_17, %c0_18] : memref<8x16xf32, #tpu.memory_space<vmem>>, vector<8x16xf32>
    %cst_19 = arith.constant dense<0.000000e+00> : vector<16x16xf32>
    %22 = tpu.matmul %20, %21, %cst_19 {dimension_numbers = #tpu.dot_dimension_numbers<[1], [0], [0], [1], [0, 0, 1, 1], [], []>, precision = #tpu.contract_precision<fp32>} : vector<16x8xf32>, vector<8x16xf32>, vector<16x16xf32> -> vector<16x16xf32>
    %23 = vector.shape_cast %22 : vector<16x16xf32> to vector<2x8x16xf32>
    %24 = tpu.transpose %23, [0, 2, 1] : vector<2x8x16xf32> -> vector<2x16x8xf32>
    %25 = vector.shape_cast %24 : vector<2x16x8xf32> to vector<2x1x16x8xf32>
    %26 = vector.shape_cast %24 : vector<2x16x8xf32> to vector<2x1x16x8xf32>
    %27 = tpu.concatenate %25, %26 in 1 : vector<2x1x16x8xf32>, vector<2x1x16x8xf32> -> vector<2x2x16x8xf32>
    %28 = vector.shape_cast %27 : vector<2x2x16x8xf32> to vector<4x16x8xf32>
    %29 = vector.extract_strided_slice %28 {offsets = [1, 0, 0], sizes = [3, 16, 8], strides = [1, 1, 1]} : vector<4x16x8xf32> to vector<3x16x8xf32>
    %c0_20 = arith.constant 0 : index
    %c1_21 = arith.constant 1 : index
    %c0_22 = arith.constant 0 : index
    %30 = vector.load %arg16[%c0_20, %c1_21, %c0_22] : memref<14x18x8xf32, #tpu.memory_space<vmem>>, vector<3x16x8xf32>
    tpu.vector_store %arg16[%c0_20, %c1_21, %c0_22], %29 {strides = array<i32>} : memref<14x18x8xf32, #tpu.memory_space<vmem>>, vector<3x16x8xf32>,
    %c0_23 = arith.constant 0 : index
    %c0_24 = arith.constant 0 : index
    %c0_25 = arith.constant 0 : index
    %c0_26 = arith.constant 0 : index
    %31 = vector.load %arg4[%c0_23, %c0_24, %c0_25, %c0_26] : memref<1x2x8x8xf32, #tpu.memory_space<vmem>>, vector<1x2x8x8xf32>
    %32 = vector.shape_cast %31 : vector<1x2x8x8xf32> to vector<2x8x8xf32>
    %33 = tpu.transpose %32, [0, 2, 1] : vector<2x8x8xf32> -> vector<2x8x8xf32>
    %34 = vector.shape_cast %33 : vector<2x8x8xf32> to vector<16x8xf32>
    %c0_27 = arith.constant 0 : index
    %c0_28 = arith.constant 0 : index
    %35 = vector.load %arg8[%c0_27, %c0_28] : memref<8x16xf32, #tpu.memory_space<vmem>>, vector<8x16xf32>
    %cst_29 = arith.constant dense<0.000000e+00> : vector<16x16xf32>
    %36 = tpu.matmul %34, %35, %cst_29 {dimension_numbers = #tpu.dot_dimension_numbers<[1], [0], [0], [1], [0, 0, 1, 1], [], []>, precision = #tpu.contract_precision<fp32>} : vector<16x8xf32>, vector<8x16xf32>, vector<16x16xf32> -> vector<16x16xf32>
    %37 = vector.shape_cast %36 : vector<16x16xf32> to vector<2x8x16xf32>
    %38 = tpu.transpose %37, [0, 2, 1] : vector<2x8x16xf32> -> vector<2x16x8xf32>
    %39 = vector.shape_cast %38 : vector<2x16x8xf32> to vector<2x1x16x8xf32>
    %40 = vector.shape_cast %38 : vector<2x16x8xf32> to vector<2x1x16x8xf32>
    %41 = tpu.concatenate %39, %40 in 1 : vector<2x1x16x8xf32>, vector<2x1x16x8xf32> -> vector<2x2x16x8xf32>
    %42 = vector.shape_cast %41 : vector<2x2x16x8xf32> to vector<4x16x8xf32>
    %43 = vector.extract_strided_slice %42 {offsets = [0, 0, 0], sizes = [3, 16, 8], strides = [1, 1, 1]} : vector<4x16x8xf32> to vector<3x16x8xf32>
    %c11 = arith.constant 11 : index
    %c1_30 = arith.constant 1 : index
    %c0_31 = arith.constant 0 : index
    %44 = vector.load %arg16[%c11, %c1_30, %c0_31] : memref<14x18x8xf32, #tpu.memory_space<vmem>>, vector<3x16x8xf32>
    tpu.vector_store %arg16[%c11, %c1_30, %c0_31], %43 {strides = array<i32>} : memref<14x18x8xf32, #tpu.memory_space<vmem>>, vector<3x16x8xf32>,
    %c0_i32 = arith.constant 0 : i32
    %45 = arith.cmpi eq, %arg1, %c0_i32 : i32
    %46 = arith.extui %45 : i1 to i32
    %c0_i32_32 = arith.constant 0 : i32
    %47 = arith.cmpi ne, %46, %c0_i32_32 : i32
    scf.if %47 {
      %cst_156 = arith.constant 0.000000e+00 : f32
      %218 = vector.broadcast %cst_156 : f32 to vector<3x18x8xf32>
      %c0_157 = arith.constant 0 : index
      %c0_158 = arith.constant 0 : index
      %c0_159 = arith.constant 0 : index
      %219 = vector.load %arg16[%c0_157, %c0_158, %c0_159] : memref<14x18x8xf32, #tpu.memory_space<vmem>>, vector<3x18x8xf32>
      tpu.vector_store %arg16[%c0_157, %c0_158, %c0_159], %218 {strides = array<i32>} : memref<14x18x8xf32, #tpu.memory_space<vmem>>, vector<3x18x8xf32>,
    } else {
    }
    %c3_i32 = arith.constant 3 : i32
    %48 = arith.cmpi eq, %arg1, %c3_i32 : i32
    %49 = arith.extui %48 : i1 to i32
    %c0_i32_33 = arith.constant 0 : i32
    %50 = arith.cmpi ne, %49, %c0_i32_33 : i32
    scf.if %50 {
      %cst_156 = arith.constant 0.000000e+00 : f32
      %218 = vector.broadcast %cst_156 : f32 to vector<3x18x8xf32>
      %c11_157 = arith.constant 11 : index
      %c0_158 = arith.constant 0 : index
      %c0_159 = arith.constant 0 : index
      %219 = vector.load %arg16[%c11_157, %c0_158, %c0_159] : memref<14x18x8xf32, #tpu.memory_space<vmem>>, vector<3x18x8xf32>
      tpu.vector_store %arg16[%c11_157, %c0_158, %c0_159], %218 {strides = array<i32>} : memref<14x18x8xf32, #tpu.memory_space<vmem>>, vector<3x18x8xf32>,
    } else {
    }
    %cst_34 = arith.constant 0.000000e+00 : f32
    %51 = vector.broadcast %cst_34 : f32 to vector<12x1x8xf32>
    %c0_35 = arith.constant 0 : index
    %c0_36 = arith.constant 0 : index
    %c0_37 = arith.constant 0 : index
    %52 = vector.load %arg17[%c0_35, %c0_36, %c0_37] : memref<12x18x8xf32, #tpu.memory_space<vmem>>, vector<12x1x8xf32>
    tpu.vector_store %arg17[%c0_35, %c0_36, %c0_37], %51 {strides = array<i32>} : memref<12x18x8xf32, #tpu.memory_space<vmem>>, vector<12x1x8xf32>,
    %cst_38 = arith.constant 0.000000e+00 : f32
    %53 = vector.broadcast %cst_38 : f32 to vector<12x1x8xf32>
    %c0_39 = arith.constant 0 : index
    %c17_40 = arith.constant 17 : index
    %c0_41 = arith.constant 0 : index
    %54 = vector.load %arg17[%c0_39, %c17_40, %c0_41] : memref<12x18x8xf32, #tpu.memory_space<vmem>>, vector<12x1x8xf32>
    tpu.vector_store %arg17[%c0_39, %c17_40, %c0_41], %53 {strides = array<i32>} : memref<12x18x8xf32, #tpu.memory_space<vmem>>, vector<12x1x8xf32>,
    %c0_42 = arith.constant 0 : index
    %c0_43 = arith.constant 0 : index
    %55 = vector.load %arg10[%c0_42, %c0_43] : memref<1x4xf32, #tpu.memory_space<vmem>>, vector<1x4xf32>
    %56 = vector.shape_cast %55 : vector<1x4xf32> to vector<1x4xf32>
    %57 = vector.broadcast %56 : vector<1x4xf32> to vector<192x4xf32>
    %c0_44 = arith.constant 0 : index
    %c0_45 = arith.constant 0 : index
    %c0_46 = arith.constant 0 : index
    %58 = vector.load %arg16[%c0_44, %c0_45, %c0_46] : memref<14x18x8xf32, #tpu.memory_space<vmem>>, vector<12x18x8xf32>
    %59 = vector.extract_strided_slice %58 {offsets = [0, 0, 0], sizes = [12, 16, 8], strides = [1, 1, 1]} : vector<12x18x8xf32> to vector<12x16x8xf32>
    %60 = arith.truncf %59 : vector<12x16x8xf32> to vector<12x16x8xbf16>
    %61 = vector.extract_strided_slice %58 {offsets = [0, 1, 0], sizes = [12, 16, 8], strides = [1, 1, 1]} : vector<12x18x8xf32> to vector<12x16x8xf32>
    %62 = arith.truncf %61 : vector<12x16x8xf32> to vector<12x16x8xbf16>
    %63 = vector.extract_strided_slice %58 {offsets = [0, 2, 0], sizes = [12, 16, 8], strides = [1, 1, 1]} : vector<12x18x8xf32> to vector<12x16x8xf32>
    %64 = arith.truncf %63 : vector<12x16x8xf32> to vector<12x16x8xbf16>
    %65 = tpu.concatenate %60, %62, %64 in 2 : vector<12x16x8xbf16>, vector<12x16x8xbf16>, vector<12x16x8xbf16> -> vector<12x16x24xbf16>
    %66 = vector.shape_cast %65 : vector<12x16x24xbf16> to vector<192x24xbf16>
    %c0_47 = arith.constant 0 : index
    %c0_48 = arith.constant 0 : index
    %c0_49 = arith.constant 0 : index
    %67 = vector.load %arg9[%c0_47, %c0_48, %c0_49] : memref<3x24x4xbf16, #tpu.memory_space<vmem>>, vector<1x24x4xbf16>
    %68 = vector.shape_cast %67 : vector<1x24x4xbf16> to vector<24x4xbf16>
    %cst_50 = arith.constant dense<0.000000e+00> : vector<192x4xf32>
    %69 = tpu.matmul %66, %68, %cst_50 {dimension_numbers = #tpu.dot_dimension_numbers<[1], [0], [0], [1], [0, 0, 1, 1], [], []>} : vector<192x24xbf16>, vector<24x4xbf16>, vector<192x4xf32> -> vector<192x4xf32>
    %70 = arith.addf %57, %69 : vector<192x4xf32>
    %c1_51 = arith.constant 1 : index
    %c0_52 = arith.constant 0 : index
    %c0_53 = arith.constant 0 : index
    %71 = vector.load %arg16[%c1_51, %c0_52, %c0_53] : memref<14x18x8xf32, #tpu.memory_space<vmem>>, vector<12x18x8xf32>
    %72 = vector.extract_strided_slice %71 {offsets = [0, 0, 0], sizes = [12, 16, 8], strides = [1, 1, 1]} : vector<12x18x8xf32> to vector<12x16x8xf32>
    %73 = arith.truncf %72 : vector<12x16x8xf32> to vector<12x16x8xbf16>
    %74 = vector.extract_strided_slice %71 {offsets = [0, 1, 0], sizes = [12, 16, 8], strides = [1, 1, 1]} : vector<12x18x8xf32> to vector<12x16x8xf32>
    %75 = arith.truncf %74 : vector<12x16x8xf32> to vector<12x16x8xbf16>
    %76 = vector.extract_strided_slice %71 {offsets = [0, 2, 0], sizes = [12, 16, 8], strides = [1, 1, 1]} : vector<12x18x8xf32> to vector<12x16x8xf32>
    %77 = arith.truncf %76 : vector<12x16x8xf32> to vector<12x16x8xbf16>
    %78 = tpu.concatenate %73, %75, %77 in 2 : vector<12x16x8xbf16>, vector<12x16x8xbf16>, vector<12x16x8xbf16> -> vector<12x16x24xbf16>
    %79 = vector.shape_cast %78 : vector<12x16x24xbf16> to vector<192x24xbf16>
    %c1_54 = arith.constant 1 : index
    %c0_55 = arith.constant 0 : index
    %c0_56 = arith.constant 0 : index
    %80 = vector.load %arg9[%c1_54, %c0_55, %c0_56] : memref<3x24x4xbf16, #tpu.memory_space<vmem>>, vector<1x24x4xbf16>
    %81 = vector.shape_cast %80 : vector<1x24x4xbf16> to vector<24x4xbf16>
    %cst_57 = arith.constant dense<0.000000e+00> : vector<192x4xf32>
    %82 = tpu.matmul %79, %81, %cst_57 {dimension_numbers = #tpu.dot_dimension_numbers<[1], [0], [0], [1], [0, 0, 1, 1], [], []>} : vector<192x24xbf16>, vector<24x4xbf16>, vector<192x4xf32> -> vector<192x4xf32>
    %83 = arith.addf %70, %82 : vector<192x4xf32>
    %c2 = arith.constant 2 : index
    %c0_58 = arith.constant 0 : index
    %c0_59 = arith.constant 0 : index
    %84 = vector.load %arg16[%c2, %c0_58, %c0_59] : memref<14x18x8xf32, #tpu.memory_space<vmem>>, vector<12x18x8xf32>
    %85 = vector.extract_strided_slice %84 {offsets = [0, 0, 0], sizes = [12, 16, 8], strides = [1, 1, 1]} : vector<12x18x8xf32> to vector<12x16x8xf32>
    %86 = arith.truncf %85 : vector<12x16x8xf32> to vector<12x16x8xbf16>
    %87 = vector.extract_strided_slice %84 {offsets = [0, 1, 0], sizes = [12, 16, 8], strides = [1, 1, 1]} : vector<12x18x8xf32> to vector<12x16x8xf32>
    %88 = arith.truncf %87 : vector<12x16x8xf32> to vector<12x16x8xbf16>
    %89 = vector.extract_strided_slice %84 {offsets = [0, 2, 0], sizes = [12, 16, 8], strides = [1, 1, 1]} : vector<12x18x8xf32> to vector<12x16x8xf32>
    %90 = arith.truncf %89 : vector<12x16x8xf32> to vector<12x16x8xbf16>
    %91 = tpu.concatenate %86, %88, %90 in 2 : vector<12x16x8xbf16>, vector<12x16x8xbf16>, vector<12x16x8xbf16> -> vector<12x16x24xbf16>
    %92 = vector.shape_cast %91 : vector<12x16x24xbf16> to vector<192x24xbf16>
    %c2_60 = arith.constant 2 : index
    %c0_61 = arith.constant 0 : index
    %c0_62 = arith.constant 0 : index
    %93 = vector.load %arg9[%c2_60, %c0_61, %c0_62] : memref<3x24x4xbf16, #tpu.memory_space<vmem>>, vector<1x24x4xbf16>
    %94 = vector.shape_cast %93 : vector<1x24x4xbf16> to vector<24x4xbf16>
    %cst_63 = arith.constant dense<0.000000e+00> : vector<192x4xf32>
    %95 = tpu.matmul %92, %94, %cst_63 {dimension_numbers = #tpu.dot_dimension_numbers<[1], [0], [0], [1], [0, 0, 1, 1], [], []>} : vector<192x24xbf16>, vector<24x4xbf16>, vector<192x4xf32> -> vector<192x4xf32>
    %96 = arith.addf %83, %95 : vector<192x4xf32>
    %97 = vector.shape_cast %96 : vector<192x4xf32> to vector<12x16x4xf32>
    %c0_64 = arith.constant 0 : index
    %c1_65 = arith.constant 1 : index
    %c0_66 = arith.constant 0 : index
    %98 = vector.load %arg17[%c0_64, %c1_65, %c0_66] : memref<12x18x8xf32, #tpu.memory_space<vmem>>, vector<12x16x4xf32>
    tpu.vector_store %arg17[%c0_64, %c1_65, %c0_66], %97 {strides = array<i32>} : memref<12x18x8xf32, #tpu.memory_space<vmem>>, vector<12x16x4xf32>,
    %c0_67 = arith.constant 0 : index
    %c0_68 = arith.constant 0 : index
    %c0_69 = arith.constant 0 : index
    %c0_70 = arith.constant 0 : index
    %99 = vector.load %arg5[%c0_67, %c0_68, %c0_69, %c0_70] : memref<1x8x16x4xf32, #tpu.memory_space<vmem>>, vector<1x8x16x4xf32>
    %100 = vector.shape_cast %99 : vector<1x8x16x4xf32> to vector<8x16x4xf32>
    %c2_71 = arith.constant 2 : index
    %c1_72 = arith.constant 1 : index
    %c4 = arith.constant 4 : index
    %101 = vector.load %arg17[%c2_71, %c1_72, %c4] : memref<12x18x8xf32, #tpu.memory_space<vmem>>, vector<8x16x4xf32>
    tpu.vector_store %arg17[%c2_71, %c1_72, %c4], %100 {strides = array<i32>} : memref<12x18x8xf32, #tpu.memory_space<vmem>>, vector<8x16x4xf32>,
    %c0_73 = arith.constant 0 : index
    %c0_74 = arith.constant 0 : index
    %c0_75 = arith.constant 0 : index
    %c0_76 = arith.constant 0 : index
    %102 = vector.load %arg6[%c0_73, %c0_74, %c0_75, %c0_76] : memref<1x2x16x4xf32, #tpu.memory_space<vmem>>, vector<1x2x16x4xf32>
    %103 = vector.shape_cast %102 : vector<1x2x16x4xf32> to vector<2x16x4xf32>
    %c0_77 = arith.constant 0 : index
    %c1_78 = arith.constant 1 : index
    %c4_79 = arith.constant 4 : index
    %104 = vector.load %arg17[%c0_77, %c1_78, %c4_79] : memref<12x18x8xf32, #tpu.memory_space<vmem>>, vector<2x16x4xf32>
    tpu.vector_store %arg17[%c0_77, %c1_78, %c4_79], %103 {strides = array<i32>} : memref<12x18x8xf32, #tpu.memory_space<vmem>>, vector<2x16x4xf32>,
    %c0_80 = arith.constant 0 : index
    %c0_81 = arith.constant 0 : index
    %c0_82 = arith.constant 0 : index
    %c0_83 = arith.constant 0 : index
    %105 = vector.load %arg7[%c0_80, %c0_81, %c0_82, %c0_83] : memref<1x2x16x4xf32, #tpu.memory_space<vmem>>, vector<1x2x16x4xf32>
    %106 = vector.shape_cast %105 : vector<1x2x16x4xf32> to vector<2x16x4xf32>
    %c10 = arith.constant 10 : index
    %c1_84 = arith.constant 1 : index
    %c4_85 = arith.constant 4 : index
    %107 = vector.load %arg17[%c10, %c1_84, %c4_85] : memref<12x18x8xf32, #tpu.memory_space<vmem>>, vector<2x16x4xf32>
    tpu.vector_store %arg17[%c10, %c1_84, %c4_85], %106 {strides = array<i32>} : memref<12x18x8xf32, #tpu.memory_space<vmem>>, vector<2x16x4xf32>,
    %c0_i32_86 = arith.constant 0 : i32
    %108 = arith.cmpi eq, %arg1, %c0_i32_86 : i32
    %109 = arith.extui %108 : i1 to i32
    %c0_i32_87 = arith.constant 0 : i32
    %110 = arith.cmpi ne, %109, %c0_i32_87 : i32
    scf.if %110 {
      %cst_156 = arith.constant 0.000000e+00 : f32
      %218 = vector.broadcast %cst_156 : f32 to vector<2x18x8xf32>
      %c0_157 = arith.constant 0 : index
      %c0_158 = arith.constant 0 : index
      %c0_159 = arith.constant 0 : index
      %219 = vector.load %arg17[%c0_157, %c0_158, %c0_159] : memref<12x18x8xf32, #tpu.memory_space<vmem>>, vector<2x18x8xf32>
      tpu.vector_store %arg17[%c0_157, %c0_158, %c0_159], %218 {strides = array<i32>} : memref<12x18x8xf32, #tpu.memory_space<vmem>>, vector<2x18x8xf32>,
    } else {
    }
    %c3_i32_88 = arith.constant 3 : i32
    %111 = arith.cmpi eq, %arg1, %c3_i32_88 : i32
    %112 = arith.extui %111 : i1 to i32
    %c0_i32_89 = arith.constant 0 : i32
    %113 = arith.cmpi ne, %112, %c0_i32_89 : i32
    scf.if %113 {
      %cst_156 = arith.constant 0.000000e+00 : f32
      %218 = vector.broadcast %cst_156 : f32 to vector<2x18x8xf32>
      %c10_157 = arith.constant 10 : index
      %c0_158 = arith.constant 0 : index
      %c0_159 = arith.constant 0 : index
      %219 = vector.load %arg17[%c10_157, %c0_158, %c0_159] : memref<12x18x8xf32, #tpu.memory_space<vmem>>, vector<2x18x8xf32>
      tpu.vector_store %arg17[%c10_157, %c0_158, %c0_159], %218 {strides = array<i32>} : memref<12x18x8xf32, #tpu.memory_space<vmem>>, vector<2x18x8xf32>,
    } else {
    }
    %cst_90 = arith.constant 0.000000e+00 : f32
    %114 = vector.broadcast %cst_90 : f32 to vector<10x1x4xf32>
    %c0_91 = arith.constant 0 : index
    %c0_92 = arith.constant 0 : index
    %c0_93 = arith.constant 0 : index
    %115 = vector.load %arg18[%c0_91, %c0_92, %c0_93] : memref<10x18x4xf32, #tpu.memory_space<vmem>>, vector<10x1x4xf32>
    tpu.vector_store %arg18[%c0_91, %c0_92, %c0_93], %114 {strides = array<i32>} : memref<10x18x4xf32, #tpu.memory_space<vmem>>, vector<10x1x4xf32>,
    %cst_94 = arith.constant 0.000000e+00 : f32
    %116 = vector.broadcast %cst_94 : f32 to vector<10x1x4xf32>
    %c0_95 = arith.constant 0 : index
    %c17_96 = arith.constant 17 : index
    %c0_97 = arith.constant 0 : index
    %117 = vector.load %arg18[%c0_95, %c17_96, %c0_97] : memref<10x18x4xf32, #tpu.memory_space<vmem>>, vector<10x1x4xf32>
    tpu.vector_store %arg18[%c0_95, %c17_96, %c0_97], %116 {strides = array<i32>} : memref<10x18x4xf32, #tpu.memory_space<vmem>>, vector<10x1x4xf32>,
    %c0_98 = arith.constant 0 : index
    %c0_99 = arith.constant 0 : index
    %118 = vector.load %arg12[%c0_98, %c0_99] : memref<1x4xf32, #tpu.memory_space<vmem>>, vector<1x4xf32>
    %119 = vector.shape_cast %118 : vector<1x4xf32> to vector<1x4xf32>
    %120 = vector.broadcast %119 : vector<1x4xf32> to vector<160x4xf32>
    %c0_100 = arith.constant 0 : index
    %c0_101 = arith.constant 0 : index
    %c0_102 = arith.constant 0 : index
    %121 = vector.load %arg17[%c0_100, %c0_101, %c0_102] : memref<12x18x8xf32, #tpu.memory_space<vmem>>, vector<10x18x8xf32>
    %122 = vector.extract_strided_slice %121 {offsets = [0, 0, 0], sizes = [10, 16, 8], strides = [1, 1, 1]} : vector<10x18x8xf32> to vector<10x16x8xf32>
    %123 = arith.truncf %122 : vector<10x16x8xf32> to vector<10x16x8xbf16>
    %124 = vector.extract_strided_slice %121 {offsets = [0, 1, 0], sizes = [10, 16, 8], strides = [1, 1, 1]} : vector<10x18x8xf32> to vector<10x16x8xf32>
    %125 = arith.truncf %124 : vector<10x16x8xf32> to vector<10x16x8xbf16>
    %126 = vector.extract_strided_slice %121 {offsets = [0, 2, 0], sizes = [10, 16, 8], strides = [1, 1, 1]} : vector<10x18x8xf32> to vector<10x16x8xf32>
    %127 = arith.truncf %126 : vector<10x16x8xf32> to vector<10x16x8xbf16>
    %128 = tpu.concatenate %123, %125, %127 in 2 : vector<10x16x8xbf16>, vector<10x16x8xbf16>, vector<10x16x8xbf16> -> vector<10x16x24xbf16>
    %129 = vector.shape_cast %128 : vector<10x16x24xbf16> to vector<160x24xbf16>
    %c0_103 = arith.constant 0 : index
    %c0_104 = arith.constant 0 : index
    %c0_105 = arith.constant 0 : index
    %130 = vector.load %arg11[%c0_103, %c0_104, %c0_105] : memref<3x24x4xbf16, #tpu.memory_space<vmem>>, vector<1x24x4xbf16>
    %131 = vector.shape_cast %130 : vector<1x24x4xbf16> to vector<24x4xbf16>
    %cst_106 = arith.constant dense<0.000000e+00> : vector<160x4xf32>
    %132 = tpu.matmul %129, %131, %cst_106 {dimension_numbers = #tpu.dot_dimension_numbers<[1], [0], [0], [1], [0, 0, 1, 1], [], []>} : vector<160x24xbf16>, vector<24x4xbf16>, vector<160x4xf32> -> vector<160x4xf32>
    %133 = arith.addf %120, %132 : vector<160x4xf32>
    %c1_107 = arith.constant 1 : index
    %c0_108 = arith.constant 0 : index
    %c0_109 = arith.constant 0 : index
    %134 = vector.load %arg17[%c1_107, %c0_108, %c0_109] : memref<12x18x8xf32, #tpu.memory_space<vmem>>, vector<10x18x8xf32>
    %135 = vector.extract_strided_slice %134 {offsets = [0, 0, 0], sizes = [10, 16, 8], strides = [1, 1, 1]} : vector<10x18x8xf32> to vector<10x16x8xf32>
    %136 = arith.truncf %135 : vector<10x16x8xf32> to vector<10x16x8xbf16>
    %137 = vector.extract_strided_slice %134 {offsets = [0, 1, 0], sizes = [10, 16, 8], strides = [1, 1, 1]} : vector<10x18x8xf32> to vector<10x16x8xf32>
    %138 = arith.truncf %137 : vector<10x16x8xf32> to vector<10x16x8xbf16>
    %139 = vector.extract_strided_slice %134 {offsets = [0, 2, 0], sizes = [10, 16, 8], strides = [1, 1, 1]} : vector<10x18x8xf32> to vector<10x16x8xf32>
    %140 = arith.truncf %139 : vector<10x16x8xf32> to vector<10x16x8xbf16>
    %141 = tpu.concatenate %136, %138, %140 in 2 : vector<10x16x8xbf16>, vector<10x16x8xbf16>, vector<10x16x8xbf16> -> vector<10x16x24xbf16>
    %142 = vector.shape_cast %141 : vector<10x16x24xbf16> to vector<160x24xbf16>
    %c1_110 = arith.constant 1 : index
    %c0_111 = arith.constant 0 : index
    %c0_112 = arith.constant 0 : index
    %143 = vector.load %arg11[%c1_110, %c0_111, %c0_112] : memref<3x24x4xbf16, #tpu.memory_space<vmem>>, vector<1x24x4xbf16>
    %144 = vector.shape_cast %143 : vector<1x24x4xbf16> to vector<24x4xbf16>
    %cst_113 = arith.constant dense<0.000000e+00> : vector<160x4xf32>
    %145 = tpu.matmul %142, %144, %cst_113 {dimension_numbers = #tpu.dot_dimension_numbers<[1], [0], [0], [1], [0, 0, 1, 1], [], []>} : vector<160x24xbf16>, vector<24x4xbf16>, vector<160x4xf32> -> vector<160x4xf32>
    %146 = arith.addf %133, %145 : vector<160x4xf32>
    %c2_114 = arith.constant 2 : index
    %c0_115 = arith.constant 0 : index
    %c0_116 = arith.constant 0 : index
    %147 = vector.load %arg17[%c2_114, %c0_115, %c0_116] : memref<12x18x8xf32, #tpu.memory_space<vmem>>, vector<10x18x8xf32>
    %148 = vector.extract_strided_slice %147 {offsets = [0, 0, 0], sizes = [10, 16, 8], strides = [1, 1, 1]} : vector<10x18x8xf32> to vector<10x16x8xf32>
    %149 = arith.truncf %148 : vector<10x16x8xf32> to vector<10x16x8xbf16>
    %150 = vector.extract_strided_slice %147 {offsets = [0, 1, 0], sizes = [10, 16, 8], strides = [1, 1, 1]} : vector<10x18x8xf32> to vector<10x16x8xf32>
    %151 = arith.truncf %150 : vector<10x16x8xf32> to vector<10x16x8xbf16>
    %152 = vector.extract_strided_slice %147 {offsets = [0, 2, 0], sizes = [10, 16, 8], strides = [1, 1, 1]} : vector<10x18x8xf32> to vector<10x16x8xf32>
    %153 = arith.truncf %152 : vector<10x16x8xf32> to vector<10x16x8xbf16>
    %154 = tpu.concatenate %149, %151, %153 in 2 : vector<10x16x8xbf16>, vector<10x16x8xbf16>, vector<10x16x8xbf16> -> vector<10x16x24xbf16>
    %155 = vector.shape_cast %154 : vector<10x16x24xbf16> to vector<160x24xbf16>
    %c2_117 = arith.constant 2 : index
    %c0_118 = arith.constant 0 : index
    %c0_119 = arith.constant 0 : index
    %156 = vector.load %arg11[%c2_117, %c0_118, %c0_119] : memref<3x24x4xbf16, #tpu.memory_space<vmem>>, vector<1x24x4xbf16>
    %157 = vector.shape_cast %156 : vector<1x24x4xbf16> to vector<24x4xbf16>
    %cst_120 = arith.constant dense<0.000000e+00> : vector<160x4xf32>
    %158 = tpu.matmul %155, %157, %cst_120 {dimension_numbers = #tpu.dot_dimension_numbers<[1], [0], [0], [1], [0, 0, 1, 1], [], []>} : vector<160x24xbf16>, vector<24x4xbf16>, vector<160x4xf32> -> vector<160x4xf32>
    %159 = arith.addf %146, %158 : vector<160x4xf32>
    %cst_121 = arith.constant 0.000000e+00 : f32
    %160 = vector.broadcast %cst_121 : f32 to vector<160x4xf32>
    %161 = arith.maximumf %159, %160 : vector<160x4xf32>
    %162 = vector.shape_cast %161 : vector<160x4xf32> to vector<10x16x4xf32>
    %c0_122 = arith.constant 0 : index
    %c1_123 = arith.constant 1 : index
    %c0_124 = arith.constant 0 : index
    %163 = vector.load %arg18[%c0_122, %c1_123, %c0_124] : memref<10x18x4xf32, #tpu.memory_space<vmem>>, vector<10x16x4xf32>
    tpu.vector_store %arg18[%c0_122, %c1_123, %c0_124], %162 {strides = array<i32>} : memref<10x18x4xf32, #tpu.memory_space<vmem>>, vector<10x16x4xf32>,
    %c0_i32_125 = arith.constant 0 : i32
    %164 = arith.cmpi eq, %arg1, %c0_i32_125 : i32
    %165 = arith.extui %164 : i1 to i32
    %c0_i32_126 = arith.constant 0 : i32
    %166 = arith.cmpi ne, %165, %c0_i32_126 : i32
    scf.if %166 {
      %cst_156 = arith.constant 0.000000e+00 : f32
      %218 = vector.broadcast %cst_156 : f32 to vector<1x18x4xf32>
      %c0_157 = arith.constant 0 : index
      %c0_158 = arith.constant 0 : index
      %c0_159 = arith.constant 0 : index
      %219 = vector.load %arg18[%c0_157, %c0_158, %c0_159] : memref<10x18x4xf32, #tpu.memory_space<vmem>>, vector<1x18x4xf32>
      tpu.vector_store %arg18[%c0_157, %c0_158, %c0_159], %218 {strides = array<i32>} : memref<10x18x4xf32, #tpu.memory_space<vmem>>, vector<1x18x4xf32>,
    } else {
    }
    %c3_i32_127 = arith.constant 3 : i32
    %167 = arith.cmpi eq, %arg1, %c3_i32_127 : i32
    %168 = arith.extui %167 : i1 to i32
    %c0_i32_128 = arith.constant 0 : i32
    %169 = arith.cmpi ne, %168, %c0_i32_128 : i32
    scf.if %169 {
      %cst_156 = arith.constant 0.000000e+00 : f32
      %218 = vector.broadcast %cst_156 : f32 to vector<1x18x4xf32>
      %c9 = arith.constant 9 : index
      %c0_157 = arith.constant 0 : index
      %c0_158 = arith.constant 0 : index
      %219 = vector.load %arg18[%c9, %c0_157, %c0_158] : memref<10x18x4xf32, #tpu.memory_space<vmem>>, vector<1x18x4xf32>
      tpu.vector_store %arg18[%c9, %c0_157, %c0_158], %218 {strides = array<i32>} : memref<10x18x4xf32, #tpu.memory_space<vmem>>, vector<1x18x4xf32>,
    } else {
    }
    %c0_129 = arith.constant 0 : index
    %c0_130 = arith.constant 0 : index
    %170 = vector.load %arg14[%c0_129, %c0_130] : memref<1x4xf32, #tpu.memory_space<vmem>>, vector<1x4xf32>
    %171 = vector.shape_cast %170 : vector<1x4xf32> to vector<1x4xf32>
    %172 = vector.broadcast %171 : vector<1x4xf32> to vector<128x4xf32>
    %c0_131 = arith.constant 0 : index
    %c0_132 = arith.constant 0 : index
    %c0_133 = arith.constant 0 : index
    %173 = vector.load %arg18[%c0_131, %c0_132, %c0_133] : memref<10x18x4xf32, #tpu.memory_space<vmem>>, vector<8x18x4xf32>
    %174 = vector.extract_strided_slice %173 {offsets = [0, 0, 0], sizes = [8, 16, 4], strides = [1, 1, 1]} : vector<8x18x4xf32> to vector<8x16x4xf32>
    %175 = arith.truncf %174 : vector<8x16x4xf32> to vector<8x16x4xbf16>
    %176 = vector.extract_strided_slice %173 {offsets = [0, 1, 0], sizes = [8, 16, 4], strides = [1, 1, 1]} : vector<8x18x4xf32> to vector<8x16x4xf32>
    %177 = arith.truncf %176 : vector<8x16x4xf32> to vector<8x16x4xbf16>
    %178 = vector.extract_strided_slice %173 {offsets = [0, 2, 0], sizes = [8, 16, 4], strides = [1, 1, 1]} : vector<8x18x4xf32> to vector<8x16x4xf32>
    %179 = arith.truncf %178 : vector<8x16x4xf32> to vector<8x16x4xbf16>
    %180 = tpu.concatenate %175, %177, %179 in 2 : vector<8x16x4xbf16>, vector<8x16x4xbf16>, vector<8x16x4xbf16> -> vector<8x16x12xbf16>
    %181 = vector.shape_cast %180 : vector<8x16x12xbf16> to vector<128x12xbf16>
    %c0_134 = arith.constant 0 : index
    %c0_135 = arith.constant 0 : index
    %c0_136 = arith.constant 0 : index
    %182 = vector.load %arg13[%c0_134, %c0_135, %c0_136] : memref<3x12x4xbf16, #tpu.memory_space<vmem>>, vector<1x12x4xbf16>
    %183 = vector.shape_cast %182 : vector<1x12x4xbf16> to vector<12x4xbf16>
    %cst_137 = arith.constant dense<0.000000e+00> : vector<128x4xf32>
    %184 = tpu.matmul %181, %183, %cst_137 {dimension_numbers = #tpu.dot_dimension_numbers<[1], [0], [0], [1], [0, 0, 1, 1], [], []>} : vector<128x12xbf16>, vector<12x4xbf16>, vector<128x4xf32> -> vector<128x4xf32>
    %185 = arith.addf %172, %184 : vector<128x4xf32>
    %c1_138 = arith.constant 1 : index
    %c0_139 = arith.constant 0 : index
    %c0_140 = arith.constant 0 : index
    %186 = vector.load %arg18[%c1_138, %c0_139, %c0_140] : memref<10x18x4xf32, #tpu.memory_space<vmem>>, vector<8x18x4xf32>
    %187 = vector.extract_strided_slice %186 {offsets = [0, 0, 0], sizes = [8, 16, 4], strides = [1, 1, 1]} : vector<8x18x4xf32> to vector<8x16x4xf32>
    %188 = arith.truncf %187 : vector<8x16x4xf32> to vector<8x16x4xbf16>
    %189 = vector.extract_strided_slice %186 {offsets = [0, 1, 0], sizes = [8, 16, 4], strides = [1, 1, 1]} : vector<8x18x4xf32> to vector<8x16x4xf32>
    %190 = arith.truncf %189 : vector<8x16x4xf32> to vector<8x16x4xbf16>
    %191 = vector.extract_strided_slice %186 {offsets = [0, 2, 0], sizes = [8, 16, 4], strides = [1, 1, 1]} : vector<8x18x4xf32> to vector<8x16x4xf32>
    %192 = arith.truncf %191 : vector<8x16x4xf32> to vector<8x16x4xbf16>
    %193 = tpu.concatenate %188, %190, %192 in 2 : vector<8x16x4xbf16>, vector<8x16x4xbf16>, vector<8x16x4xbf16> -> vector<8x16x12xbf16>
    %194 = vector.shape_cast %193 : vector<8x16x12xbf16> to vector<128x12xbf16>
    %c1_141 = arith.constant 1 : index
    %c0_142 = arith.constant 0 : index
    %c0_143 = arith.constant 0 : index
    %195 = vector.load %arg13[%c1_141, %c0_142, %c0_143] : memref<3x12x4xbf16, #tpu.memory_space<vmem>>, vector<1x12x4xbf16>
    %196 = vector.shape_cast %195 : vector<1x12x4xbf16> to vector<12x4xbf16>
    %cst_144 = arith.constant dense<0.000000e+00> : vector<128x4xf32>
    %197 = tpu.matmul %194, %196, %cst_144 {dimension_numbers = #tpu.dot_dimension_numbers<[1], [0], [0], [1], [0, 0, 1, 1], [], []>} : vector<128x12xbf16>, vector<12x4xbf16>, vector<128x4xf32> -> vector<128x4xf32>
    %198 = arith.addf %185, %197 : vector<128x4xf32>
    %c2_145 = arith.constant 2 : index
    %c0_146 = arith.constant 0 : index
    %c0_147 = arith.constant 0 : index
    %199 = vector.load %arg18[%c2_145, %c0_146, %c0_147] : memref<10x18x4xf32, #tpu.memory_space<vmem>>, vector<8x18x4xf32>
    %200 = vector.extract_strided_slice %199 {offsets = [0, 0, 0], sizes = [8, 16, 4], strides = [1, 1, 1]} : vector<8x18x4xf32> to vector<8x16x4xf32>
    %201 = arith.truncf %200 : vector<8x16x4xf32> to vector<8x16x4xbf16>
    %202 = vector.extract_strided_slice %199 {offsets = [0, 1, 0], sizes = [8, 16, 4], strides = [1, 1, 1]} : vector<8x18x4xf32> to vector<8x16x4xf32>
    %203 = arith.truncf %202 : vector<8x16x4xf32> to vector<8x16x4xbf16>
    %204 = vector.extract_strided_slice %199 {offsets = [0, 2, 0], sizes = [8, 16, 4], strides = [1, 1, 1]} : vector<8x18x4xf32> to vector<8x16x4xf32>
    %205 = arith.truncf %204 : vector<8x16x4xf32> to vector<8x16x4xbf16>
    %206 = tpu.concatenate %201, %203, %205 in 2 : vector<8x16x4xbf16>, vector<8x16x4xbf16>, vector<8x16x4xbf16> -> vector<8x16x12xbf16>
    %207 = vector.shape_cast %206 : vector<8x16x12xbf16> to vector<128x12xbf16>
    %c2_148 = arith.constant 2 : index
    %c0_149 = arith.constant 0 : index
    %c0_150 = arith.constant 0 : index
    %208 = vector.load %arg13[%c2_148, %c0_149, %c0_150] : memref<3x12x4xbf16, #tpu.memory_space<vmem>>, vector<1x12x4xbf16>
    %209 = vector.shape_cast %208 : vector<1x12x4xbf16> to vector<12x4xbf16>
    %cst_151 = arith.constant dense<0.000000e+00> : vector<128x4xf32>
    %210 = tpu.matmul %207, %209, %cst_151 {dimension_numbers = #tpu.dot_dimension_numbers<[1], [0], [0], [1], [0, 0, 1, 1], [], []>} : vector<128x12xbf16>, vector<12x4xbf16>, vector<128x4xf32> -> vector<128x4xf32>
    %211 = arith.addf %198, %210 : vector<128x4xf32>
    %cst_152 = arith.constant 0.000000e+00 : f32
    %212 = vector.broadcast %cst_152 : f32 to vector<128x4xf32>
    %213 = arith.maximumf %211, %212 : vector<128x4xf32>
    %214 = tpu.transpose %213, [1, 0] : vector<128x4xf32> -> vector<4x128xf32>
    %c0_153 = arith.constant 0 : index
    %c0_154 = arith.constant 0 : index
    %c0_155 = arith.constant 0 : index
    %215 = vector.load %arg15[%c0_153, %c0_154, %c0_155] : memref<1x4x128xf32, #tpu.memory_space<vmem>>, vector<1x4x128xf32>
    %216 = vector.shape_cast %215 : vector<1x4x128xf32> to vector<4x128xf32>
    %217 = vector.shape_cast %214 : vector<4x128xf32> to vector<1x4x128xf32>
    tpu.vector_store %arg15[%c0_153, %c0_154, %c0_155], %217 {strides = array<i32>} : memref<1x4x128xf32, #tpu.memory_space<vmem>>, vector<1x4x128xf32>,
    return
  }
  func.func @transform_0(%arg0: i32, %arg1: i32) -> (i32, i32, i32, i32) {
    %c0_i32 = arith.constant 0 : i32
    %c0_i32_0 = arith.constant 0 : i32
    %c0_i32_1 = arith.constant 0 : i32
    return %arg0, %arg1, %c0_i32, %c0_i32_0 : i32, i32, i32, i32
  }
  func.func @transform_1(%arg0: i32, %arg1: i32) -> (i32, i32, i32, i32) {
    %c2_i32 = arith.constant 2 : i32
    %0 = arith.muli %arg1, %c2_i32 : i32
    %c1_i32 = arith.constant 1 : i32
    %1 = arith.subi %0, %c1_i32 : i32
    %c0_i32 = arith.constant 0 : i32
    %2 = arith.maxsi %1, %c0_i32 : i32
    %c0_i32_0 = arith.constant 0 : i32
    %c0_i32_1 = arith.constant 0 : i32
    %c0_i32_2 = arith.constant 0 : i32
    return %arg0, %2, %c0_i32_0, %c0_i32_1 : i32, i32, i32, i32
  }
  func.func @transform_2(%arg0: i32, %arg1: i32) -> (i32, i32, i32, i32) {
    %c1_i32 = arith.constant 1 : i32
    %0 = arith.addi %arg1, %c1_i32 : i32
    %c2_i32 = arith.constant 2 : i32
    %1 = arith.muli %0, %c2_i32 : i32
    %c7_i32 = arith.constant 7 : i32
    %2 = arith.minsi %1, %c7_i32 : i32
    %c0_i32 = arith.constant 0 : i32
    %c0_i32_0 = arith.constant 0 : i32
    %c0_i32_1 = arith.constant 0 : i32
    return %arg0, %2, %c0_i32, %c0_i32_0 : i32, i32, i32, i32
  }
  func.func @transform_3(%arg0: i32, %arg1: i32) -> (i32, i32, i32, i32) {
    %c0_i32 = arith.constant 0 : i32
    %c0_i32_0 = arith.constant 0 : i32
    %c0_i32_1 = arith.constant 0 : i32
    return %arg0, %arg1, %c0_i32, %c0_i32_0 : i32, i32, i32, i32
  }
  func.func @transform_4(%arg0: i32, %arg1: i32) -> (i32, i32, i32, i32) {
    %c4_i32 = arith.constant 4 : i32
    %0 = arith.muli %arg1, %c4_i32 : i32
    %c1_i32 = arith.constant 1 : i32
    %1 = arith.subi %0, %c1_i32 : i32
    %c0_i32 = arith.constant 0 : i32
    %2 = arith.maxsi %1, %c0_i32 : i32
    %c0_i32_0 = arith.constant 0 : i32
    %c0_i32_1 = arith.constant 0 : i32
    %c0_i32_2 = arith.constant 0 : i32
    return %arg0, %2, %c0_i32_0, %c0_i32_1 : i32, i32, i32, i32
  }
  func.func @transform_5(%arg0: i32, %arg1: i32) -> (i32, i32, i32, i32) {
    %c1_i32 = arith.constant 1 : i32
    %0 = arith.addi %arg1, %c1_i32 : i32
    %c4_i32 = arith.constant 4 : i32
    %1 = arith.muli %0, %c4_i32 : i32
    %c15_i32 = arith.constant 15 : i32
    %2 = arith.minsi %1, %c15_i32 : i32
    %c0_i32 = arith.constant 0 : i32
    %c0_i32_0 = arith.constant 0 : i32
    %c0_i32_1 = arith.constant 0 : i32
    return %arg0, %2, %c0_i32, %c0_i32_0 : i32, i32, i32, i32
  }
  func.func @transform_6(%arg0: i32, %arg1: i32) -> (i32, i32) {
    %c0_i32 = arith.constant 0 : i32
    %c0_i32_0 = arith.constant 0 : i32
    %c0_i32_1 = arith.constant 0 : i32
    return %c0_i32, %c0_i32_0 : i32, i32
  }
  func.func @transform_7(%arg0: i32, %arg1: i32) -> (i32, i32, i32) {
    %c0_i32 = arith.constant 0 : i32
    %c0_i32_0 = arith.constant 0 : i32
    %c0_i32_1 = arith.constant 0 : i32
    %c0_i32_2 = arith.constant 0 : i32
    return %c0_i32, %c0_i32_0, %c0_i32_1 : i32, i32, i32
  }
  func.func @transform_8(%arg0: i32, %arg1: i32) -> (i32, i32) {
    %c0_i32 = arith.constant 0 : i32
    %c0_i32_0 = arith.constant 0 : i32
    %c0_i32_1 = arith.constant 0 : i32
    return %c0_i32, %c0_i32_0 : i32, i32
  }
  func.func @transform_9(%arg0: i32, %arg1: i32) -> (i32, i32, i32) {
    %c0_i32 = arith.constant 0 : i32
    %c0_i32_0 = arith.constant 0 : i32
    %c0_i32_1 = arith.constant 0 : i32
    %c0_i32_2 = arith.constant 0 : i32
    return %c0_i32, %c0_i32_0, %c0_i32_1 : i32, i32, i32
  }
  func.func @transform_10(%arg0: i32, %arg1: i32) -> (i32, i32) {
    %c0_i32 = arith.constant 0 : i32
    %c0_i32_0 = arith.constant 0 : i32
    %c0_i32_1 = arith.constant 0 : i32
    return %c0_i32, %c0_i32_0 : i32, i32
  }
  func.func @transform_11(%arg0: i32, %arg1: i32) -> (i32, i32, i32) {
    %c0_i32 = arith.constant 0 : i32
    %c0_i32_0 = arith.constant 0 : i32
    %c0_i32_1 = arith.constant 0 : i32
    %c0_i32_2 = arith.constant 0 : i32
    return %c0_i32, %c0_i32_0, %c0_i32_1 : i32, i32, i32
  }
  func.func @transform_12(%arg0: i32, %arg1: i32) -> (i32, i32) {
    %c0_i32 = arith.constant 0 : i32
    %c0_i32_0 = arith.constant 0 : i32
    %c0_i32_1 = arith.constant 0 : i32
    return %c0_i32, %c0_i32_0 : i32, i32
  }
  func.func @transform_13(%arg0: i32, %arg1: i32) -> (i32, i32, i32) {
    %c0_i32 = arith.constant 0 : i32
    %c0_i32_0 = arith.constant 0 : i32
    return %arg0, %c0_i32, %arg1 : i32, i32, i32
  }
}

</mosaic_0001>

<llo_original>
// kernel: unet_up_forward.1
$region0: #{unet_up_forward.1}
  #allocation0 [shape = 'u32[]', space=smem, size = 0x4, offset = 0x4, fixed_abs, tag = 'smem constant byte address 0x4 - core index']
  #allocation1 [shape = 'u32[144,128]{1,0:T(1,128)}', space=vmem, size = 0x12000, scoped, tag = 'internal scratch']
  #allocation2 [shape = 'f32[14,18,8]{2,1,0:T(8,128)}', space=vmem, size = 0x2a000, scoped, tag = 'scratch operand']
  #allocation3 [shape = 'f32[12,18,8]{2,1,0:T(8,128)}', space=vmem, size = 0x24000, scoped, tag = 'scratch operand']
  #allocation4 [shape = 'f32[10,18,4]{2,1,0:T(8,128)}', space=vmem, size = 0x1e000, scoped, tag = 'scratch operand']
  %s0 = inlined_call_operand.vmem [shape: f32[2,16,8,8], index: 0, kind: input, shape index: {}, may-alias: {0,1,2}]
  %s1 = inlined_call_operand.vmem [shape: f32[2,16,8,8], index: 1, kind: input, shape index: {}, may-alias: {0,1,2}]
  %s2 = inlined_call_operand.vmem [shape: f32[2,16,8,8], index: 2, kind: input, shape index: {}, may-alias: {0,1,2}]
  %s3 = inlined_call_operand.vmem [shape: f32[2,32,16,4], index: 3, kind: input, shape index: {}, may-alias: {3,4,5}]
  %s4 = inlined_call_operand.vmem [shape: f32[2,32,16,4], index: 4, kind: input, shape index: {}, may-alias: {3,4,5}]
  %s5 = inlined_call_operand.vmem [shape: f32[2,32,16,4], index: 5, kind: input, shape index: {}, may-alias: {3,4,5}]
  %s6 = inlined_call_operand.vmem [shape: f32[8,16], index: 6, kind: input, shape index: {}]
  %s7 = inlined_call_operand.vmem [shape: bf16[3,24,4], index: 7, kind: input, shape index: {}]
  %s8 = inlined_call_operand.vmem [shape: f32[1,4], index: 8, kind: input, shape index: {}]
  %s9 = inlined_call_operand.vmem [shape: bf16[3,24,4], index: 9, kind: input, shape index: {}]
  %s10 = inlined_call_operand.vmem [shape: f32[1,4], index: 10, kind: input, shape index: {}]
  %s11 = inlined_call_operand.vmem [shape: bf16[3,12,4], index: 11, kind: input, shape index: {}]
  %s12 = inlined_call_operand.vmem [shape: f32[1,4], index: 12, kind: input, shape index: {}]
  %s13 = inlined_call_operand.vmem [shape: f32[2,4,512], index: 13, kind: output, shape index: {}]
  %s14 = sld [smem:[#allocation0]]
  $region109: #{unet_up_forward.1} parent=0
    _
  %s16 = ssub.s32 1, %s14
  %s17 = scalar_select 0, %s16, %s14
  loop: start=0, step=1, limit=10
  $region2: #{unet_up_forward.1} parent=0 // loop_pre_header
    _
  $region3: #{unet_up_forward.1} parent=0 // loop_header
    %s19 = sphi 0, %s23
    %p20 = scmp.ge.s32.totalorder %s19, 10
    %s26 = sphi 0, %s38
    %s27 = sphi 0, %s34
    %s28 = sphi 0, %s26
    %s29 = sphi 0, %s27
    %s30 = sphi 0, %s28
    %s31 = sphi 0, %s29
    %s43 = sphi 0, %s45
    %s46 = sphi 0, %s43
    %s47 = sphi 0, %s46
    %s63 = sphi 0, %s47
    %s79 = sphi 0, %s81
    %s82 = sphi 0, %s79
    %s83 = sphi 0, %s82
    %s99 = sphi 0, %s83
    %s115 = sphi 0, %s117
    %s118 = sphi 0, %s115
    %s119 = sphi 0, %s118
    %s135 = sphi 0, %s119
    %s143 = sphi 0, %s145
    %s146 = sphi 0, %s143
    %s147 = sphi 0, %s146
    %s163 = sphi 0, %s147
    %s179 = sphi 0, %s181
    %s182 = sphi 0, %s179
    %s183 = sphi 0, %s182
    %s199 = sphi 0, %s183
    %s215 = sphi 0, %s217
    %s218 = sphi 0, %s215
    %s219 = sphi 0, %s218
    %s235 = sphi 0, %s219
    %s239 = sphi 0, %s239
    %s241 = sphi 0, %s239
    %s242 = sphi 0, %s241
    %s256 = sphi 0, %s242
    %s260 = sphi 0, %s260
    %s262 = sphi 0, %s260
    %s263 = sphi 0, %s262
    %s277 = sphi 0, %s263
    %s281 = sphi 0, %s281
    %s283 = sphi 0, %s281
    %s284 = sphi 0, %s283
    %s298 = sphi 0, %s284
    %s302 = sphi 0, %s302
    %s304 = sphi 0, %s302
    %s305 = sphi 0, %s304
    %s319 = sphi 0, %s305
    %s323 = sphi 0, %s323
    %s325 = sphi 0, %s323
    %s326 = sphi 0, %s325
    %s340 = sphi 0, %s326
    %s344 = sphi 0, %s344
    %s346 = sphi 0, %s344
    %s347 = sphi 0, %s346
    %s361 = sphi 0, %s347
    %s365 = sphi 0, %s365
    %s367 = sphi 0, %s365
    %s368 = sphi 0, %s367
    %s382 = sphi 0, %s368
    %s390 = sphi 0, %s392
    %s393 = sphi 0, %s390
    %s394 = sphi 0, %s393
    %s410 = sphi 0, %s394
  $region4: #{unet_up_forward.1} parent=0 // loop_header_branch
    %22 = sbr.rel (%p20) target = $region8
  $region5: #{unet_up_forward.1} parent=0 // loop_body
    %s24 = ssub.s32 %s19, 1
    %s25 = ssub.s32 %s19, 2
    %s32 = sadd.s32 1, %s27
    %p33 = scmp.ge.s32.totalorder %s32, 4
    %s34 = scalar_select %p33, 0, %s32
    %s35 = sadd.s32 1, %s26
    %s36 = scalar_select %p33, %s35, %s26
    %p37 = scmp.ge.s32.totalorder %s36, 2
    %s38 = scalar_select %p37, 0, %s36
    %s39 = ssub.s32 %s26, %s38
    %s40 = ssub.s32 %s27, %s34
    %s41 = sor.u32 %s39, %s40
    %p42 = scmp.eq.s32.totalorder %s41, 0
    %s44 = sadd.s32 %s43, 1
    %s45 = scalar_select %p42, %s43, %s44
    %p48 = pneg %p42
    %p49 = scmp.eq.s32.totalorder %s19, 7
    %p50 = por %p48, %p49
    %p51 = scmp.ne.s32.totalorder %s43, %s46
    %p52 = scmp.eq.s32.totalorder %s19, 0
    %p53 = por %p51, %p52
    %p54 = scmp.ne.s32.totalorder %s43, %s46
    %p55 = scmp.eq.s32.totalorder %s24, 7
    %p56 = por %p54, %p55
    %p57 = scmp.ne.s32.totalorder %s46, %s47
    %p58 = scmp.eq.s32.totalorder %s24, 0
    %p59 = por %p57, %p58
    %p60 = scmp.ne.s32.totalorder %s46, %s47
    %p61 = scmp.eq.s32.totalorder %s25, 7
    %p62 = por %p60, %p61
    %p64 = scmp.ne.s32.totalorder %s47, %s63
    %p65 = scmp.eq.s32.totalorder %s25, 0
    %p66 = por %p64, %p65
    %s67 = smul.u32 %s27, 2
    %s68 = ssub.s32 %s67, 1
    %p69 = scmp.gt.s32.totalorder %s68, 0
    %s70 = scalar_select %p69, %s68, 0
    %s71 = smul.u32 %s34, 2
    %s72 = ssub.s32 %s71, 1
    %p73 = scmp.gt.s32.totalorder %s72, 0
    %s74 = scalar_select %p73, %s72, 0
    %s75 = ssub.s32 %s26, %s38
    %s76 = ssub.s32 %s70, %s74
    %s77 = sor.u32 %s75, %s76
    %p78 = scmp.eq.s32.totalorder %s77, 0
    %s80 = sadd.s32 %s79, 1
    %s81 = scalar_select %p78, %s79, %s80
    %p84 = pneg %p78
    %p85 = scmp.eq.s32.totalorder %s19, 7
    %p86 = por %p84, %p85
    %p87 = scmp.ne.s32.totalorder %s79, %s82
    %p88 = scmp.eq.s32.totalorder %s19, 0
    %p89 = por %p87, %p88
    %p90 = scmp.ne.s32.totalorder %s79, %s82
    %p91 = scmp.eq.s32.totalorder %s24, 7
    %p92 = por %p90, %p91
    %p93 = scmp.ne.s32.totalorder %s82, %s83
    %p94 = scmp.eq.s32.totalorder %s24, 0
    %p95 = por %p93, %p94
    %p96 = scmp.ne.s32.totalorder %s82, %s83
    %p97 = scmp.eq.s32.totalorder %s25, 7
    %p98 = por %p96, %p97
    %p100 = scmp.ne.s32.totalorder %s83, %s99
    %p101 = scmp.eq.s32.totalorder %s25, 0
    %p102 = por %p100, %p101
    %s103 = sadd.s32 %s27, 1
    %s104 = smul.u32 %s103, 2
    %p105 = scmp.lt.s32.totalorder %s104, 7
    %s106 = scalar_select %p105, %s104, 7
    %s107 = sadd.s32 %s34, 1
    %s108 = smul.u32 %s107, 2
    %p109 = scmp.lt.s32.totalorder %s108, 7
    %s110 = scalar_select %p109, %s108, 7
    %s111 = ssub.s32 %s26, %s38
    %s112 = ssub.s32 %s106, %s110
    %s113 = sor.u32 %s111, %s112
    %p114 = scmp.eq.s32.totalorder %s113, 0
    %s116 = sadd.s32 %s115, 1
    %s117 = scalar_select %p114, %s115, %s116
    %p120 = pneg %p114
    %p121 = scmp.eq.s32.totalorder %s19, 7
    %p122 = por %p120, %p121
    %p123 = scmp.ne.s32.totalorder %s115, %s118
    %p124 = scmp.eq.s32.totalorder %s19, 0
    %p125 = por %p123, %p124
    %p126 = scmp.ne.s32.totalorder %s115, %s118
    %p127 = scmp.eq.s32.totalorder %s24, 7
    %p128 = por %p126, %p127
    %p129 = scmp.ne.s32.totalorder %s118, %s119
    %p130 = scmp.eq.s32.totalorder %s24, 0
    %p131 = por %p129, %p130
    %p132 = scmp.ne.s32.totalorder %s118, %s119
    %p133 = scmp.eq.s32.totalorder %s25, 7
    %p134 = por %p132, %p133
    %p136 = scmp.ne.s32.totalorder %s119, %s135
    %p137 = scmp.eq.s32.totalorder %s25, 0
    %p138 = por %p136, %p137
    %s139 = ssub.s32 %s26, %s38
    %s140 = ssub.s32 %s27, %s34
    %s141 = sor.u32 %s139, %s140
    %p142 = scmp.eq.s32.totalorder %s141, 0
    %s144 = sadd.s32 %s143, 1
    %s145 = scalar_select %p142, %s143, %s144
    %p148 = pneg %p142
    %p149 = scmp.eq.s32.totalorder %s19, 7
    %p150 = por %p148, %p149
    %p151 = scmp.ne.s32.totalorder %s143, %s146
    %p152 = scmp.eq.s32.totalorder %s19, 0
    %p153 = por %p151, %p152
    %p154 = scmp.ne.s32.totalorder %s143, %s146
    %p155 = scmp.eq.s32.totalorder %s24, 7
    %p156 = por %p154, %p155
    %p157 = scmp.ne.s32.totalorder %s146, %s147
    %p158 = scmp.eq.s32.totalorder %s24, 0
    %p159 = por %p157, %p158
    %p160 = scmp.ne.s32.totalorder %s146, %s147
    %p161 = scmp.eq.s32.totalorder %s25, 7
    %p162 = por %p160, %p161
    %p164 = scmp.ne.s32.totalorder %s147, %s163
    %p165 = scmp.eq.s32.totalorder %s25, 0
    %p166 = por %p164, %p165
    %s167 = smul.u32 %s27, 4
    %s168 = ssub.s32 %s167, 1
    %p169 = scmp.gt.s32.totalorder %s168, 0
    %s170 = scalar_select %p169, %s168, 0
    %s171 = smul.u32 %s34, 4
    %s172 = ssub.s32 %s171, 1
    %p173 = scmp.gt.s32.totalorder %s172, 0
    %s174 = scalar_select %p173, %s172, 0
    %s175 = ssub.s32 %s26, %s38
    %s176 = ssub.s32 %s170, %s174
    %s177 = sor.u32 %s175, %s176
    %p178 = scmp.eq.s32.totalorder %s177, 0
    %s180 = sadd.s32 %s179, 1
    %s181 = scalar_select %p178, %s179, %s180
    %p184 = pneg %p178
    %p185 = scmp.eq.s32.totalorder %s19, 7
    %p186 = por %p184, %p185
    %p187 = scmp.ne.s32.totalorder %s179, %s182
    %p188 = scmp.eq.s32.totalorder %s19, 0
    %p189 = por %p187, %p188
    %p190 = scmp.ne.s32.totalorder %s179, %s182
    %p191 = scmp.eq.s32.totalorder %s24, 7
    %p192 = por %p190, %p191
    %p193 = scmp.ne.s32.totalorder %s182, %s183
    %p194 = scmp.eq.s32.totalorder %s24, 0
    %p195 = por %p193, %p194
    %p196 = scmp.ne.s32.totalorder %s182, %s183
    %p197 = scmp.eq.s32.totalorder %s25, 7
    %p198 = por %p196, %p197
    %p200 = scmp.ne.s32.totalorder %s183, %s199
    %p201 = scmp.eq.s32.totalorder %s25, 0
    %p202 = por %p200, %p201
    %s203 = sadd.s32 %s27, 1
    %s204 = smul.u32 %s203, 4
    %p205 = scmp.lt.s32.totalorder %s204, 15
    %s206 = scalar_select %p205, %s204, 15
    %s207 = sadd.s32 %s34, 1
    %s208 = smul.u32 %s207, 4
    %p209 = scmp.lt.s32.totalorder %s208, 15
    %s210 = scalar_select %p209, %s208, 15
    %s211 = ssub.s32 %s26, %s38
    %s212 = ssub.s32 %s206, %s210
    %s213 = sor.u32 %s211, %s212
    %p214 = scmp.eq.s32.totalorder %s213, 0
    %s216 = sadd.s32 %s215, 1
    %s217 = scalar_select %p214, %s215, %s216
    %p220 = pneg %p214
    %p221 = scmp.eq.s32.totalorder %s19, 7
    %p222 = por %p220, %p221
    %p223 = scmp.ne.s32.totalorder %s215, %s218
    %p224 = scmp.eq.s32.totalorder %s19, 0
    %p225 = por %p223, %p224
    %p226 = scmp.ne.s32.totalorder %s215, %s218
    %p227 = scmp.eq.s32.totalorder %s24, 7
    %p228 = por %p226, %p227
    %p229 = scmp.ne.s32.totalorder %s218, %s219
    %p230 = scmp.eq.s32.totalorder %s24, 0
    %p231 = por %p229, %p230
    %p232 = scmp.ne.s32.totalorder %s218, %s219
    %p233 = scmp.eq.s32.totalorder %s25, 7
    %p234 = por %p232, %p233
    %p236 = scmp.ne.s32.totalorder %s219, %s235
    %p237 = scmp.eq.s32.totalorder %s25, 0
    %p238 = por %p236, %p237
    %s240 = sadd.s32 %s239, 1
    %p243 = scmp.eq.s32.totalorder %s19, 7
    %p244 = scmp.ne.s32.totalorder %s239, %s241
    %p245 = scmp.eq.s32.totalorder %s19, 0
    %p246 = por %p244, %p245
    %p247 = scmp.ne.s32.totalorder %s239, %s241
    %p248 = scmp.eq.s32.totalorder %s24, 7
    %p249 = por %p247, %p248
    %p250 = scmp.ne.s32.totalorder %s241, %s242
    %p251 = scmp.eq.s32.totalorder %s24, 0
    %p252 = por %p250, %p251
    %p253 = scmp.ne.s32.totalorder %s241, %s242
    %p254 = scmp.eq.s32.totalorder %s25, 7
    %p255 = por %p253, %p254
    %p257 = scmp.ne.s32.totalorder %s242, %s256
    %p258 = scmp.eq.s32.totalorder %s25, 0
    %p259 = por %p257, %p258
    %s261 = sadd.s32 %s260, 1
    %p264 = scmp.eq.s32.totalorder %s19, 7
    %p265 = scmp.ne.s32.totalorder %s260, %s262
    %p266 = scmp.eq.s32.totalorder %s19, 0
    %p267 = por %p265, %p266
    %p268 = scmp.ne.s32.totalorder %s260, %s262
    %p269 = scmp.eq.s32.totalorder %s24, 7
    %p270 = por %p268, %p269
    %p271 = scmp.ne.s32.totalorder %s262, %s263
    %p272 = scmp.eq.s32.totalorder %s24, 0
    %p273 = por %p271, %p272
    %p274 = scmp.ne.s32.totalorder %s262, %s263
    %p275 = scmp.eq.s32.totalorder %s25, 7
    %p276 = por %p274, %p275
    %p278 = scmp.ne.s32.totalorder %s263, %s277
    %p279 = scmp.eq.s32.totalorder %s25, 0
    %p280 = por %p278, %p279
    %s282 = sadd.s32 %s281, 1
    %p285 = scmp.eq.s32.totalorder %s19, 7
    %p286 = scmp.ne.s32.totalorder %s281, %s283
    %p287 = scmp.eq.s32.totalorder %s19, 0
    %p288 = por %p286, %p287
    %p289 = scmp.ne.s32.totalorder %s281, %s283
    %p290 = scmp.eq.s32.totalorder %s24, 7
    %p291 = por %p289, %p290
    %p292 = scmp.ne.s32.totalorder %s283, %s284
    %p293 = scmp.eq.s32.totalorder %s24, 0
    %p294 = por %p292, %p293
    %p295 = scmp.ne.s32.totalorder %s283, %s284
    %p296 = scmp.eq.s32.totalorder %s25, 7
    %p297 = por %p295, %p296
    %p299 = scmp.ne.s32.totalorder %s284, %s298
    %p300 = scmp.eq.s32.totalorder %s25, 0
    %p301 = por %p299, %p300
    %s303 = sadd.s32 %s302, 1
    %p306 = scmp.eq.s32.totalorder %s19, 7
    %p307 = scmp.ne.s32.totalorder %s302, %s304
    %p308 = scmp.eq.s32.totalorder %s19, 0
    %p309 = por %p307, %p308
    %p310 = scmp.ne.s32.totalorder %s302, %s304
    %p311 = scmp.eq.s32.totalorder %s24, 7
    %p312 = por %p310, %p311
    %p313 = scmp.ne.s32.totalorder %s304, %s305
    %p314 = scmp.eq.s32.totalorder %s24, 0
    %p315 = por %p313, %p314
    %p316 = scmp.ne.s32.totalorder %s304, %s305
    %p317 = scmp.eq.s32.totalorder %s25, 7
    %p318 = por %p316, %p317
    %p320 = scmp.ne.s32.totalorder %s305, %s319
    %p321 = scmp.eq.s32.totalorder %s25, 0
    %p322 = por %p320, %p321
    %s324 = sadd.s32 %s323, 1
    %p327 = scmp.eq.s32.totalorder %s19, 7
    %p328 = scmp.ne.s32.totalorder %s323, %s325
    %p329 = scmp.eq.s32.totalorder %s19, 0
    %p330 = por %p328, %p329
    %p331 = scmp.ne.s32.totalorder %s323, %s325
    %p332 = scmp.eq.s32.totalorder %s24, 7
    %p333 = por %p331, %p332
    %p334 = scmp.ne.s32.totalorder %s325, %s326
    %p335 = scmp.eq.s32.totalorder %s24, 0
    %p336 = por %p334, %p335
    %p337 = scmp.ne.s32.totalorder %s325, %s326
    %p338 = scmp.eq.s32.totalorder %s25, 7
    %p339 = por %p337, %p338
    %p341 = scmp.ne.s32.totalorder %s326, %s340
    %p342 = scmp.eq.s32.totalorder %s25, 0
    %p343 = por %p341, %p342
    %s345 = sadd.s32 %s344, 1
    %p348 = scmp.eq.s32.totalorder %s19, 7
    %p349 = scmp.ne.s32.totalorder %s344, %s346
    %p350 = scmp.eq.s32.totalorder %s19, 0
    %p351 = por %p349, %p350
    %p352 = scmp.ne.s32.totalorder %s344, %s346
    %p353 = scmp.eq.s32.totalorder %s24, 7
    %p354 = por %p352, %p353
    %p355 = scmp.ne.s32.totalorder %s346, %s347
    %p356 = scmp.eq.s32.totalorder %s24, 0
    %p357 = por %p355, %p356
    %p358 = scmp.ne.s32.totalorder %s346, %s347
    %p359 = scmp.eq.s32.totalorder %s25, 7
    %p360 = por %p358, %p359
    %p362 = scmp.ne.s32.totalorder %s347, %s361
    %p363 = scmp.eq.s32.totalorder %s25, 0
    %p364 = por %p362, %p363
    %s366 = sadd.s32 %s365, 1
    %p369 = scmp.eq.s32.totalorder %s19, 7
    %p370 = scmp.ne.s32.totalorder %s365, %s367
    %p371 = scmp.eq.s32.totalorder %s19, 0
    %p372 = por %p370, %p371
    %p373 = scmp.ne.s32.totalorder %s365, %s367
    %p374 = scmp.eq.s32.totalorder %s24, 7
    %p375 = por %p373, %p374
    %p376 = scmp.ne.s32.totalorder %s367, %s368
    %p377 = scmp.eq.s32.totalorder %s24, 0
    %p378 = por %p376, %p377
    %p379 = scmp.ne.s32.totalorder %s367, %s368
    %p380 = scmp.eq.s32.totalorder %s25, 7
    %p381 = por %p379, %p380
    %p383 = scmp.ne.s32.totalorder %s368, %s382
    %p384 = scmp.eq.s32.totalorder %s25, 0
    %p385 = por %p383, %p384
    %s386 = ssub.s32 %s26, %s38
    %s387 = ssub.s32 %s27, %s34
    %s388 = sor.u32 %s386, %s387
    %p389 = scmp.eq.s32.totalorder %s388, 0
    %s391 = sadd.s32 %s390, 1
    %s392 = scalar_select %p389, %s390, %s391
    %p395 = pneg %p389
    %p396 = scmp.eq.s32.totalorder %s19, 7
    %p397 = por %p395, %p396
    %p398 = scmp.ne.s32.totalorder %s390, %s393
    %p399 = scmp.eq.s32.totalorder %s19, 0
    %p400 = por %p398, %p399
    %p401 = scmp.ne.s32.totalorder %s390, %s393
    %p402 = scmp.eq.s32.totalorder %s24, 7
    %p403 = por %p401, %p402
    %p404 = scmp.ne.s32.totalorder %s393, %s394
    %p405 = scmp.eq.s32.totalorder %s24, 0
    %p406 = por %p404, %p405
    %p407 = scmp.ne.s32.totalorder %s393, %s394
    %p408 = scmp.eq.s32.totalorder %s25, 7
    %p409 = por %p407, %p408
    %p411 = scmp.ne.s32.totalorder %s394, %s410
    %p412 = scmp.eq.s32.totalorder %s25, 0
    %p413 = por %p411, %p412
    %p414 = scmp.le.s32.totalorder 1, %s19
    %p415 = scmp.lt.s32.totalorder %s19, 9
    %p416 = pnand %p414, %p415
    %p417 = pneg %p416
    // Predicated region
    $region9: #{unet_up_forward.1} parent=5 // pred_check
      _
    $region10: #{unet_up_forward.1} parent=5 // pred_check_branch
      %419 = sbr.rel (%p416) target = $region12
    $region11: #{unet_up_forward.1} parent=5 // pred_region
      %s420 = ssub.s32 %s19, 1
      // Predicated region
      $region13: #{unet_up_forward.1} parent=11 // pred_check
        %p421 = pneg %p252
      $region14: #{unet_up_forward.1} parent=11 // pred_check_branch
        %423 = sbr.rel (%p421) target = $region16
      $region15: #{unet_up_forward.1} parent=11 // pred_region
        _
      $region16: #{unet_up_forward.1} parent=11 // pred_fallthru
        _
      // Predicated region
      $region17: #{unet_up_forward.1} parent=11 // pred_check
        %p424 = pneg %p273
      $region18: #{unet_up_forward.1} parent=11 // pred_check_branch
        %426 = sbr.rel (%p424) target = $region20
      $region19: #{unet_up_forward.1} parent=11 // pred_region
        _
      $region20: #{unet_up_forward.1} parent=11 // pred_fallthru
        _
      // Predicated region
      $region21: #{unet_up_forward.1} parent=11 // pred_check
        %p427 = pneg %p294
      $region22: #{unet_up_forward.1} parent=11 // pred_check_branch
        %429 = sbr.rel (%p427) target = $region24
      $region23: #{unet_up_forward.1} parent=11 // pred_region
        _
      $region24: #{unet_up_forward.1} parent=11 // pred_fallthru
        _
      // Predicated region
      $region25: #{unet_up_forward.1} parent=11 // pred_check
        %p430 = pneg %p315
      $region26: #{unet_up_forward.1} parent=11 // pred_check_branch
        %432 = sbr.rel (%p430) target = $region28
      $region27: #{unet_up_forward.1} parent=11 // pred_region
        _
      $region28: #{unet_up_forward.1} parent=11 // pred_fallthru
        _
      // Predicated region
      $region29: #{unet_up_forward.1} parent=11 // pred_check
        %p433 = pneg %p336
      $region30: #{unet_up_forward.1} parent=11 // pred_check_branch
        %435 = sbr.rel (%p433) target = $region32
      $region31: #{unet_up_forward.1} parent=11 // pred_region
        _
      $region32: #{unet_up_forward.1} parent=11 // pred_fallthru
        _
      // Predicated region
      $region33: #{unet_up_forward.1} parent=11 // pred_check
        %p436 = pneg %p357
      $region34: #{unet_up_forward.1} parent=11 // pred_check_branch
        %438 = sbr.rel (%p436) target = $region36
      $region35: #{unet_up_forward.1} parent=11 // pred_region
        _
      $region36: #{unet_up_forward.1} parent=11 // pred_fallthru
        _
      // Predicated region
      $region37: #{unet_up_forward.1} parent=11 // pred_check
        %p439 = pneg %p378
      $region38: #{unet_up_forward.1} parent=11 // pred_check_branch
        %441 = sbr.rel (%p439) target = $region40
      $region39: #{unet_up_forward.1} parent=11 // pred_region
        _
      $region40: #{unet_up_forward.1} parent=11 // pred_fallthru
        _
    $region12: #{unet_up_forward.1} parent=5 // pred_fallthru
      _
    %p442 = scmp.lt.s32.totalorder %s19, 8
    // Predicated region
    $region41: #{unet_up_forward.1} parent=5 // pred_check
      %p443 = pneg %p442
    $region42: #{unet_up_forward.1} parent=5 // pred_check_branch
      %445 = sbr.rel (%p443) target = $region44
    $region43: #{unet_up_forward.1} parent=5 // pred_region
      // Predicated region
      $region45: #{unet_up_forward.1} parent=43 // pred_check
        %p446 = pneg %p53
      $region46: #{unet_up_forward.1} parent=43 // pred_check_branch
        %448 = sbr.rel (%p446) target = $region48
      $region47: #{unet_up_forward.1} parent=43 // pred_region
        %s449 = smul.u32 4, %s27
        %p450 = scmp.lt.s32.totalorder %s26, 1
        %s451 = scalar_select %p450, %s26, 1
        %p452 = scmp.lt.s32.totalorder %s449, 15
        %s453 = scalar_select %p452, %s449, 15
        %s454 = smul.addr %s451, 16
        %s455 = sadd.s32 %s453, %s454
        %s456 = smul.addr %s455, 8
        %s457 = scalar_lea.vmem %s0, %s456
        %s458 = smul.u32 4, %s27
      $region48: #{unet_up_forward.1} parent=43 // pred_fallthru
        _
      // Predicated region
      $region49: #{unet_up_forward.1} parent=43 // pred_check
        %p459 = pneg %p89
      $region50: #{unet_up_forward.1} parent=43 // pred_check_branch
        %461 = sbr.rel (%p459) target = $region52
      $region51: #{unet_up_forward.1} parent=43 // pred_region
        %s462 = smul.u32 %s27, 2
        %s463 = ssub.s32 %s462, 1
        %p464 = scmp.gt.s32.totalorder %s463, 0
        %s465 = scalar_select %p464, %s463, 0
        %s466 = smul.u32 2, %s465
        %p467 = scmp.lt.s32.totalorder %s26, 1
        %s468 = scalar_select %p467, %s26, 1
        %p469 = scmp.lt.s32.totalorder %s466, 15
        %s470 = scalar_select %p469, %s466, 15
        %s471 = smul.addr %s468, 16
        %s472 = sadd.s32 %s470, %s471
        %s473 = smul.addr %s472, 8
        %s474 = scalar_lea.vmem %s1, %s473
        %s475 = smul.u32 %s27, 2
        %s476 = ssub.s32 %s475, 1
        %p477 = scmp.gt.s32.totalorder %s476, 0
        %s478 = scalar_select %p477, %s476, 0
        %s479 = smul.u32 2, %s478
      $region52: #{unet_up_forward.1} parent=43 // pred_fallthru
        _
      // Predicated region
      $region53: #{unet_up_forward.1} parent=43 // pred_check
        %p480 = pneg %p125
      $region54: #{unet_up_forward.1} parent=43 // pred_check_branch
        %482 = sbr.rel (%p480) target = $region56
      $region55: #{unet_up_forward.1} parent=43 // pred_region
        %s483 = sadd.s32 %s27, 1
        %s484 = smul.u32 %s483, 2
        %p485 = scmp.lt.s32.totalorder %s484, 7
        %s486 = scalar_select %p485, %s484, 7
        %s487 = smul.u32 2, %s486
        %p488 = scmp.lt.s32.totalorder %s26, 1
        %s489 = scalar_select %p488, %s26, 1
        %p490 = scmp.lt.s32.totalorder %s487, 15
        %s491 = scalar_select %p490, %s487, 15
        %s492 = smul.addr %s489, 16
        %s493 = sadd.s32 %s491, %s492
        %s494 = smul.addr %s493, 8
        %s495 = scalar_lea.vmem %s2, %s494
        %s496 = sadd.s32 %s27, 1
        %s497 = smul.u32 %s496, 2
        %p498 = scmp.lt.s32.totalorder %s497, 7
        %s499 = scalar_select %p498, %s497, 7
        %s500 = smul.u32 2, %s499
      $region56: #{unet_up_forward.1} parent=43 // pred_fallthru
        _
      // Predicated region
      $region57: #{unet_up_forward.1} parent=43 // pred_check
        %p501 = pneg %p153
      $region58: #{unet_up_forward.1} parent=43 // pred_check_branch
        %503 = sbr.rel (%p501) target = $region60
      $region59: #{unet_up_forward.1} parent=43 // pred_region
        %s504 = smul.u32 8, %s27
        %p505 = scmp.lt.s32.totalorder %s26, 1
        %s506 = scalar_select %p505, %s26, 1
        %p507 = scmp.lt.s32.totalorder %s504, 31
        %s508 = scalar_select %p507, %s504, 31
        %s509 = smul.addr %s508, 2
        %s510 = smul.addr %s506, 64
        %s511 = sadd.s32 %s509, %s510
        %s512 = smul.addr %s511, 8
        %s513 = scalar_lea.vmem %s3, %s512
        %s514 = smul.u32 8, %s27
      $region60: #{unet_up_forward.1} parent=43 // pred_fallthru
        _
      // Predicated region
      $region61: #{unet_up_forward.1} parent=43 // pred_check
        %p515 = pneg %p189
      $region62: #{unet_up_forward.1} parent=43 // pred_check_branch
        %517 = sbr.rel (%p515) target = $region64
      $region63: #{unet_up_forward.1} parent=43 // pred_region
        %s518 = smul.u32 %s27, 4
        %s519 = ssub.s32 %s518, 1
        %p520 = scmp.gt.s32.totalorder %s519, 0
        %s521 = scalar_select %p520, %s519, 0
        %s522 = smul.u32 2, %s521
        %p523 = scmp.lt.s32.totalorder %s26, 1
        %s524 = scalar_select %p523, %s26, 1
        %p525 = scmp.lt.s32.totalorder %s522, 31
        %s526 = scalar_select %p525, %s522, 31
        %s527 = smul.addr %s526, 2
        %s528 = smul.addr %s524, 64
        %s529 = sadd.s32 %s527, %s528
        %s530 = smul.addr %s529, 8
        %s531 = scalar_lea.vmem %s4, %s530
        %s532 = smul.u32 %s27, 4
        %s533 = ssub.s32 %s532, 1
        %p534 = scmp.gt.s32.totalorder %s533, 0
        %s535 = scalar_select %p534, %s533, 0
        %s536 = smul.u32 2, %s535
      $region64: #{unet_up_forward.1} parent=43 // pred_fallthru
        _
      // Predicated region
      $region65: #{unet_up_forward.1} parent=43 // pred_check
        %p537 = pneg %p225
      $region66: #{unet_up_forward.1} parent=43 // pred_check_branch
        %539 = sbr.rel (%p537) target = $region68
      $region67: #{unet_up_forward.1} parent=43 // pred_region
        %s540 = sadd.s32 %s27, 1
        %s541 = smul.u32 %s540, 4
        %p542 = scmp.lt.s32.totalorder %s541, 15
        %s543 = scalar_select %p542, %s541, 15
        %s544 = smul.u32 2, %s543
        %p545 = scmp.lt.s32.totalorder %s26, 1
        %s546 = scalar_select %p545, %s26, 1
        %p547 = scmp.lt.s32.totalorder %s544, 31
        %s548 = scalar_select %p547, %s544, 31
        %s549 = smul.addr %s548, 2
        %s550 = smul.addr %s546, 64
        %s551 = sadd.s32 %s549, %s550
        %s552 = smul.addr %s551, 8
        %s553 = scalar_lea.vmem %s5, %s552
        %s554 = sadd.s32 %s27, 1
        %s555 = smul.u32 %s554, 4
        %p556 = scmp.lt.s32.totalorder %s555, 15
        %s557 = scalar_select %p556, %s555, 15
        %s558 = smul.u32 2, %s557
      $region68: #{unet_up_forward.1} parent=43 // pred_fallthru
        _
    $region44: #{unet_up_forward.1} parent=5 // pred_fallthru
      _
    %p559 = scmp.le.s32.totalorder 1, %s19
    %p560 = scmp.lt.s32.totalorder %s19, 9
    %p561 = pnand %p559, %p560
    %p562 = pneg %p561
    // Predicated region
    $region69: #{unet_up_forward.1} parent=5 // pred_check
      _
    $region70: #{unet_up_forward.1} parent=5 // pred_check_branch
      %564 = sbr.rel (%p561) target = $region72
    $region71: #{unet_up_forward.1} parent=5 // pred_region
      %s565 = ssub.s32 %s19, 1
      %s566 = smul.u32 4, %s29
      %p567 = scmp.lt.s32.totalorder %s28, 1
      %s568 = scalar_select %p567, %s28, 1
      %p569 = scmp.lt.s32.totalorder %s566, 15
      %s570 = scalar_select %p569, %s566, 15
      %s571 = smul.addr %s568, 16
      %s572 = sadd.s32 %s570, %s571
      %s573 = smul.addr %s572, 8
      %s574 = scalar_lea.vmem %s0, %s573
      %p575 = pneg %p59
      %p576 = pneg %p56
      %s577 = smul.u32 %s29, 2
      %s578 = ssub.s32 %s577, 1
      %p579 = scmp.gt.s32.totalorder %s578, 0
      %s580 = scalar_select %p579, %s578, 0
      %s581 = smul.u32 2, %s580
      %p582 = scmp.lt.s32.totalorder %s28, 1
      %s583 = scalar_select %p582, %s28, 1
      %p584 = scmp.lt.s32.totalorder %s581, 15
      %s585 = scalar_select %p584, %s581, 15
      %s586 = smul.addr %s583, 16
      %s587 = sadd.s32 %s585, %s586
      %s588 = smul.addr %s587, 8
      %s589 = scalar_lea.vmem %s1, %s588
      %p590 = pneg %p95
      %p591 = pneg %p92
      %s592 = sadd.s32 %s29, 1
      %s593 = smul.u32 %s592, 2
      %p594 = scmp.lt.s32.totalorder %s593, 7
      %s595 = scalar_select %p594, %s593, 7
      %s596 = smul.u32 2, %s595
      %p597 = scmp.lt.s32.totalorder %s28, 1
      %s598 = scalar_select %p597, %s28, 1
      %p599 = scmp.lt.s32.totalorder %s596, 15
      %s600 = scalar_select %p599, %s596, 15
      %s601 = smul.addr %s598, 16
      %s602 = sadd.s32 %s600, %s601
      %s603 = smul.addr %s602, 8
      %s604 = scalar_lea.vmem %s2, %s603
      %p605 = pneg %p131
      %p606 = pneg %p128
      %s607 = smul.u32 8, %s29
      %p608 = scmp.lt.s32.totalorder %s28, 1
      %s609 = scalar_select %p608, %s28, 1
      %p610 = scmp.lt.s32.totalorder %s607, 31
      %s611 = scalar_select %p610, %s607, 31
      %s612 = smul.addr %s611, 2
      %s613 = smul.addr %s609, 64
      %s614 = sadd.s32 %s612, %s613
      %s615 = smul.addr %s614, 8
      %s616 = scalar_lea.vmem %s3, %s615
      %p617 = pneg %p159
      %p618 = pneg %p156
      %s619 = smul.u32 %s29, 4
      %s620 = ssub.s32 %s619, 1
      %p621 = scmp.gt.s32.totalorder %s620, 0
      %s622 = scalar_select %p621, %s620, 0
      %s623 = smul.u32 2, %s622
      %p624 = scmp.lt.s32.totalorder %s28, 1
      %s625 = scalar_select %p624, %s28, 1
      %p626 = scmp.lt.s32.totalorder %s623, 31
      %s627 = scalar_select %p626, %s623, 31
      %s628 = smul.addr %s627, 2
      %s629 = smul.addr %s625, 64
      %s630 = sadd.s32 %s628, %s629
      %s631 = smul.addr %s630, 8
      %s632 = scalar_lea.vmem %s4, %s631
      %p633 = pneg %p195
      %p634 = pneg %p192
      %s635 = sadd.s32 %s29, 1
      %s636 = smul.u32 %s635, 4
      %p637 = scmp.lt.s32.totalorder %s636, 15
      %s638 = scalar_select %p637, %s636, 15
      %s639 = smul.u32 2, %s638
      %p640 = scmp.lt.s32.totalorder %s28, 1
      %s641 = scalar_select %p640, %s28, 1
      %p642 = scmp.lt.s32.totalorder %s639, 31
      %s643 = scalar_select %p642, %s639, 31
      %s644 = smul.addr %s643, 2
      %s645 = smul.addr %s641, 64
      %s646 = sadd.s32 %s644, %s645
      %s647 = smul.addr %s646, 8
      %s648 = scalar_lea.vmem %s5, %s647
      %p649 = pneg %p231
      %p650 = pneg %p228
      %p651 = pneg %p252
      %p652 = pneg %p249
      %p653 = pneg %p273
      %p654 = pneg %p270
      %p655 = pneg %p294
      %p656 = pneg %p291
      %p657 = pneg %p315
      %p658 = pneg %p312
      %p659 = pneg %p336
      %p660 = pneg %p333
      %p661 = pneg %p357
      %p662 = pneg %p354
      %p663 = pneg %p378
      %p664 = pneg %p375
      %p665 = pneg %p406
      %p666 = pneg %p403
      %p667 = scmp.lt.s32.totalorder %s28, 1
      %s668 = scalar_select %p667, %s28, 1
      %p669 = scmp.lt.s32.totalorder %s29, 3
      %s670 = scalar_select %p669, %s29, 3
      %s671 = smul.addr %s668, 4
      %s672 = sadd.s32 %s670, %s671
      %s673 = smul.addr %s672, 4
      %s674 = scalar_lea.vmem %s13, %s673
      %s675 = smul.u32 4, %s29
      %p676 = scmp.lt.s32.totalorder %s28, 1
      %s677 = scalar_select %p676, %s28, 1
      %p678 = scmp.lt.s32.totalorder %s675, 15
      %s679 = scalar_select %p678, %s675, 15
      %s680 = smul.addr %s677, 16
      %s681 = sadd.s32 %s679, %s680
      %s682 = smul.addr %s681, 8
      %s683 = scalar_lea.vmem %s0, %s682
      %s684 = smul.u32 4, %s29
      %s685 = smul.u32 %s29, 2
      %s686 = ssub.s32 %s685, 1
      %p687 = scmp.gt.s32.totalorder %s686, 0
      %s688 = scalar_select %p687, %s686, 0
      %s689 = smul.u32 2, %s688
      %p690 = scmp.lt.s32.totalorder %s28, 1
      %s691 = scalar_select %p690, %s28, 1
      %p692 = scmp.lt.s32.totalorder %s689, 15
      %s693 = scalar_select %p692, %s689, 15
      %s694 = smul.addr %s691, 16
      %s695 = sadd.s32 %s693, %s694
      %s696 = smul.addr %s695, 8
      %s697 = scalar_lea.vmem %s1, %s696
      %s698 = smul.u32 %s29, 2
      %s699 = ssub.s32 %s698, 1
      %p700 = scmp.gt.s32.totalorder %s699, 0
      %s701 = scalar_select %p700, %s699, 0
      %s702 = smul.u32 2, %s701
      %s703 = sadd.s32 %s29, 1
      %s704 = smul.u32 %s703, 2
      %p705 = scmp.lt.s32.totalorder %s704, 7
      %s706 = scalar_select %p705, %s704, 7
      %s707 = smul.u32 2, %s706
      %p708 = scmp.lt.s32.totalorder %s28, 1
      %s709 = scalar_select %p708, %s28, 1
      %p710 = scmp.lt.s32.totalorder %s707, 15
      %s711 = scalar_select %p710, %s707, 15
      %s712 = smul.addr %s709, 16
      %s713 = sadd.s32 %s711, %s712
      %s714 = smul.addr %s713, 8
      %s715 = scalar_lea.vmem %s2, %s714
      %s716 = sadd.s32 %s29, 1
      %s717 = smul.u32 %s716, 2
      %p718 = scmp.lt.s32.totalorder %s717, 7
      %s719 = scalar_select %p718, %s717, 7
      %s720 = smul.u32 2, %s719
      %s721 = smul.u32 8, %s29
      %p722 = scmp.lt.s32.totalorder %s28, 1
      %s723 = scalar_select %p722, %s28, 1
      %p724 = scmp.lt.s32.totalorder %s721, 31
      %s725 = scalar_select %p724, %s721, 31
      %s726 = smul.addr %s725, 2
      %s727 = smul.addr %s723, 64
      %s728 = sadd.s32 %s726, %s727
      %s729 = smul.addr %s728, 8
      %s730 = scalar_lea.vmem %s3, %s729
      %s731 = smul.u32 8, %s29
      %s732 = smul.u32 %s29, 4
      %s733 = ssub.s32 %s732, 1
      %p734 = scmp.gt.s32.totalorder %s733, 0
      %s735 = scalar_select %p734, %s733, 0
      %s736 = smul.u32 2, %s735
      %p737 = scmp.lt.s32.totalorder %s28, 1
      %s738 = scalar_select %p737, %s28, 1
      %p739 = scmp.lt.s32.totalorder %s736, 31
      %s740 = scalar_select %p739, %s736, 31
      %s741 = smul.addr %s740, 2
      %s742 = smul.addr %s738, 64
      %s743 = sadd.s32 %s741, %s742
      %s744 = smul.addr %s743, 8
      %s745 = scalar_lea.vmem %s4, %s744
      %s746 = smul.u32 %s29, 4
      %s747 = ssub.s32 %s746, 1
      %p748 = scmp.gt.s32.totalorder %s747, 0
      %s749 = scalar_select %p748, %s747, 0
      %s750 = smul.u32 2, %s749
      %s751 = sadd.s32 %s29, 1
      %s752 = smul.u32 %s751, 4
      %p753 = scmp.lt.s32.totalorder %s752, 15
      %s754 = scalar_select %p753, %s752, 15
      %s755 = smul.u32 2, %s754
      %p756 = scmp.lt.s32.totalorder %s28, 1
      %s757 = scalar_select %p756, %s28, 1
      %p758 = scmp.lt.s32.totalorder %s755, 31
      %s759 = scalar_select %p758, %s755, 31
      %s760 = smul.addr %s759, 2
      %s761 = smul.addr %s757, 64
      %s762 = sadd.s32 %s760, %s761
      %s763 = smul.addr %s762, 8
      %s764 = scalar_lea.vmem %s5, %s763
      %s765 = sadd.s32 %s29, 1
      %s766 = smul.u32 %s765, 4
      %p767 = scmp.lt.s32.totalorder %s766, 15
      %s768 = scalar_select %p767, %s766, 15
      %s769 = smul.u32 2, %s768
      %p770 = scmp.lt.s32.totalorder %s28, 1
      %s771 = scalar_select %p770, %s28, 1
      %p772 = scmp.lt.s32.totalorder %s29, 3
      %s773 = scalar_select %p772, %s29, 3
      %s774 = smul.addr %s771, 4
      %s775 = sadd.s32 %s773, %s774
      %s776 = smul.addr %s775, 4
      %s777 = scalar_lea.vmem %s13, %s776
      %vm779 = vcmask 57344
      %780 = vst.msk [vmem:[#allocation2] sm:$0x1] %vm779, 0.0
      %781 = vst.msk [vmem:[#allocation2 + $0x18] sm:$0x1] %vm779, 0.0
      %782 = vst.msk [vmem:[#allocation2 + $0x30] sm:$0x1] %vm779, 0.0
      %783 = vst.msk [vmem:[#allocation2 + $0x48] sm:$0x1] %vm779, 0.0
      %784 = vst.msk [vmem:[#allocation2 + $0x60] sm:$0x1] %vm779, 0.0
      %785 = vst.msk [vmem:[#allocation2 + $0x78] sm:$0x1] %vm779, 0.0
      %786 = vst.msk [vmem:[#allocation2 + $0x90] sm:$0x1] %vm779, 0.0
      %787 = vst.msk [vmem:[#allocation2 + $0xa8] sm:$0x1] %vm779, 0.0
      %788 = vst.msk [vmem:[#allocation2 + $0xc0] sm:$0x1] %vm779, 0.0
      %789 = vst.msk [vmem:[#allocation2 + $0xd8] sm:$0x1] %vm779, 0.0
      %790 = vst.msk [vmem:[#allocation2 + $0xf0] sm:$0x1] %vm779, 0.0
      %791 = vst.msk [vmem:[#allocation2 + $0x108] sm:$0x1] %vm779, 0.0
      %792 = vst.msk [vmem:[#allocation2 + $0x120] sm:$0x1] %vm779, 0.0
      %793 = vst.msk [vmem:[#allocation2 + $0x138] sm:$0x1] %vm779, 0.0
      %794 = vst.msk [vmem:[#allocation2 + $0x11] sm:$0x1] %vm779, 0.0
      %795 = vst.msk [vmem:[#allocation2 + $0x29] sm:$0x1] %vm779, 0.0
      %796 = vst.msk [vmem:[#allocation2 + $0x41] sm:$0x1] %vm779, 0.0
      %797 = vst.msk [vmem:[#allocation2 + $0x59] sm:$0x1] %vm779, 0.0
      %798 = vst.msk [vmem:[#allocation2 + $0x71] sm:$0x1] %vm779, 0.0
      %799 = vst.msk [vmem:[#allocation2 + $0x89] sm:$0x1] %vm779, 0.0
      %800 = vst.msk [vmem:[#allocation2 + $0xa1] sm:$0x1] %vm779, 0.0
      %801 = vst.msk [vmem:[#allocation2 + $0xb9] sm:$0x1] %vm779, 0.0
      %802 = vst.msk [vmem:[#allocation2 + $0xd1] sm:$0x1] %vm779, 0.0
      %803 = vst.msk [vmem:[#allocation2 + $0xe9] sm:$0x1] %vm779, 0.0
      %804 = vst.msk [vmem:[#allocation2 + $0x101] sm:$0x1] %vm779, 0.0
      %805 = vst.msk [vmem:[#allocation2 + $0x119] sm:$0x1] %vm779, 0.0
      %806 = vst.msk [vmem:[#allocation2 + $0x131] sm:$0x1] %vm779, 0.0
      %807 = vst.msk [vmem:[#allocation2 + $0x149] sm:$0x1] %vm779, 0.0
      %v808 = vld [vmem:[%s683] sm:$0xff]
      %v809 = vld [vmem:[%s683 + $0x8] sm:$0xff]
      %v810 = vld [vmem:[%s683 + $0x10] sm:$0xff]
      %v811 = vld [vmem:[%s683 + $0x18] sm:$0xff]
      %812 = vxpose.xlu0.b32.start [1/16] %v808, 128
      %813 = vxpose.xlu0.b32.cont [2/16] 0.0, 128
      %814 = vxpose.xlu0.b32.cont [3/16] 0.0, 128
      %815 = vxpose.xlu0.b32.cont [4/16] 0.0, 128
      %816 = vxpose.xlu0.b32.cont [5/16] 0.0, 128
      %817 = vxpose.xlu0.b32.cont [6/16] 0.0, 128
      %818 = vxpose.xlu0.b32.cont [7/16] 0.0, 128
      %819 = vxpose.xlu0.b32.cont [8/16] 0.0, 128
      %820 = vxpose.xlu0.b32.cont [9/16] 0.0, 128
      %821 = vxpose.xlu0.b32.cont [10/16] 0.0, 128
      %822 = vxpose.xlu0.b32.cont [11/16] 0.0, 128
      %823 = vxpose.xlu0.b32.cont [12/16] 0.0, 128
      %824 = vxpose.xlu0.b32.cont [13/16] 0.0, 128
      %825 = vxpose.xlu0.b32.cont [14/16] 0.0, 128
      %826 = vxpose.xlu0.b32.cont [15/16] 0.0, 128
      %827 = vxpose.xlu0.b32.end [16/16] 0.0, 128
      %v828 = vpop.trf.xlu0
      %v829 = vpop.trf.xlu0
      %v830 = vpop.trf.xlu0
      %v831 = vpop.trf.xlu0
      %v832 = vpop.trf.xlu0
      %v833 = vpop.trf.xlu0
      %v834 = vpop.trf.xlu0
      %v835 = vpop.trf.xlu0
      %v836 = vpop.trf.xlu0
      %v837 = vpop.trf.xlu0
      %v838 = vpop.trf.xlu0
      %v839 = vpop.trf.xlu0
      %v840 = vpop.trf.xlu0
      %v841 = vpop.trf.xlu0
      %v842 = vpop.trf.xlu0
      %v843 = vpop.trf.xlu0
      %844 = vxpose.xlu0.b32.start [1/16] %v809, 128
      %845 = vxpose.xlu0.b32.cont [2/16] 0.0, 128
      %846 = vxpose.xlu0.b32.cont [3/16] 0.0, 128
      %847 = vxpose.xlu0.b32.cont [4/16] 0.0, 128
      %848 = vxpose.xlu0.b32.cont [5/16] 0.0, 128
      %849 = vxpose.xlu0.b32.cont [6/16] 0.0, 128
      %850 = vxpose.xlu0.b32.cont [7/16] 0.0, 128
      %851 = vxpose.xlu0.b32.cont [8/16] 0.0, 128
      %852 = vxpose.xlu0.b32.cont [9/16] 0.0, 128
      %853 = vxpose.xlu0.b32.cont [10/16] 0.0, 128
      %854 = vxpose.xlu0.b32.cont [11/16] 0.0, 128
      %855 = vxpose.xlu0.b32.cont [12/16] 0.0, 128
      %856 = vxpose.xlu0.b32.cont [13/16] 0.0, 128
      %857 = vxpose.xlu0.b32.cont [14/16] 0.0, 128
      %858 = vxpose.xlu0.b32.cont [15/16] 0.0, 128
      %859 = vxpose.xlu0.b32.end [16/16] 0.0, 128
      %v860 = vpop.trf.xlu0
      %v861 = vpop.trf.xlu0
      %v862 = vpop.trf.xlu0
      %v863 = vpop.trf.xlu0
      %v864 = vpop.trf.xlu0
      %v865 = vpop.trf.xlu0
      %v866 = vpop.trf.xlu0
      %v867 = vpop.trf.xlu0
      %v868 = vpop.trf.xlu0
      %v869 = vpop.trf.xlu0
      %v870 = vpop.trf.xlu0
      %v871 = vpop.trf.xlu0
      %v872 = vpop.trf.xlu0
      %v873 = vpop.trf.xlu0
      %v874 = vpop.trf.xlu0
      %v875 = vpop.trf.xlu0
      %876 = vxpose.xlu0.b32.start [1/16] %v810, 128
      %877 = vxpose.xlu0.b32.cont [2/16] 0.0, 128
      %878 = vxpose.xlu0.b32.cont [3/16] 0.0, 128
      %879 = vxpose.xlu0.b32.cont [4/16] 0.0, 128
      %880 = vxpose.xlu0.b32.cont [5/16] 0.0, 128
      %881 = vxpose.xlu0.b32.cont [6/16] 0.0, 128
      %882 = vxpose.xlu0.b32.cont [7/16] 0.0, 128
      %883 = vxpose.xlu0.b32.cont [8/16] 0.0, 128
      %884 = vxpose.xlu0.b32.cont [9/16] 0.0, 128
      %885 = vxpose.xlu0.b32.cont [10/16] 0.0, 128
      %886 = vxpose.xlu0.b32.cont [11/16] 0.0, 128
      %887 = vxpose.xlu0.b32.cont [12/16] 0.0, 128
      %888 = vxpose.xlu0.b32.cont [13/16] 0.0, 128
      %889 = vxpose.xlu0.b32.cont [14/16] 0.0, 128
      %890 = vxpose.xlu0.b32.cont [15/16] 0.0, 128
      %891 = vxpose.xlu0.b32.end [16/16] 0.0, 128
      %v892 = vpop.trf.xlu0
      %v893 = vpop.trf.xlu0
      %v894 = vpop.trf.xlu0
      %v895 = vpop.trf.xlu0
      %v896 = vpop.trf.xlu0
      %v897 = vpop.trf.xlu0
      %v898 = vpop.trf.xlu0
      %v899 = vpop.trf.xlu0
      %v900 = vpop.trf.xlu0
      %v901 = vpop.trf.xlu0
      %v902 = vpop.trf.xlu0
      %v903 = vpop.trf.xlu0
      %v904 = vpop.trf.xlu0
      %v905 = vpop.trf.xlu0
      %v906 = vpop.trf.xlu0
      %v907 = vpop.trf.xlu0
      %908 = vxpose.xlu0.b32.start [1/16] %v811, 128
      %909 = vxpose.xlu0.b32.cont [2/16] 0.0, 128
      %910 = vxpose.xlu0.b32.cont [3/16] 0.0, 128
      %911 = vxpose.xlu0.b32.cont [4/16] 0.0, 128
      %912 = vxpose.xlu0.b32.cont [5/16] 0.0, 128
      %913 = vxpose.xlu0.b32.cont [6/16] 0.0, 128
      %914 = vxpose.xlu0.b32.cont [7/16] 0.0, 128
      %915 = vxpose.xlu0.b32.cont [8/16] 0.0, 128
      %916 = vxpose.xlu0.b32.cont [9/16] 0.0, 128
      %917 = vxpose.xlu0.b32.cont [10/16] 0.0, 128
      %918 = vxpose.xlu0.b32.cont [11/16] 0.0, 128
      %919 = vxpose.xlu0.b32.cont [12/16] 0.0, 128
      %920 = vxpose.xlu0.b32.cont [13/16] 0.0, 128
      %921 = vxpose.xlu0.b32.cont [14/16] 0.0, 128
      %922 = vxpose.xlu0.b32.cont [15/16] 0.0, 128
      %923 = vxpose.xlu0.b32.end [16/16] 0.0, 128
      %v924 = vpop.trf.xlu0
      %v925 = vpop.trf.xlu0
      %v926 = vpop.trf.xlu0
      %v927 = vpop.trf.xlu0
      %v928 = vpop.trf.xlu0
      %v929 = vpop.trf.xlu0
      %v930 = vpop.trf.xlu0
      %v931 = vpop.trf.xlu0
      %v932 = vpop.trf.xlu0
      %v933 = vpop.trf.xlu0
      %v934 = vpop.trf.xlu0
      %v935 = vpop.trf.xlu0
      %v936 = vpop.trf.xlu0
      %v937 = vpop.trf.xlu0
      %v938 = vpop.trf.xlu0
      %v939 = vpop.trf.xlu0
      %v940 = vld [vmem:[%s6] sm:$0xff]
      %vm941 = vcmask 64512
      %v943 = vsel %vm941, %v828, 0
      %v946 = vsel %vm941, %v860, 0
      %v949 = vsel %vm941, %v892, 0
      %v952 = vsel %vm941, %v924, 0
      %954 = vmatprep.subr.mxu0 0.0
      %v955 = vand.u32 %v940, 4294901760
      %956 = vmatpush1.msra.mxu0 %v955
      %957 = vmatprep.subr.mxu0 0.0
      %958 = vmatpush1.msra.mxu0 0.0
      %959 = vmatprep.subr.mxu0 0.0
      %960 = vmatpush1.msra.mxu0 0.0
      %961 = vmatprep.subr.mxu0 0.0
      %962 = vmatpush1.msra.mxu0 0.0
      %963 = vmatprep.subr.mxu0 0.0
      %964 = vmatpush1.msra.mxu0 0.0
      %965 = vmatprep.subr.mxu0 0.0
      %966 = vmatpush1.msra.mxu0 0.0
      %967 = vmatprep.subr.mxu0 0.0
      %968 = vmatpush1.msra.mxu0 0.0
      %969 = vmatprep.subr.mxu0 0.0
      %970 = vmatpush1.msra.mxu0 0.0
      %971 = vmatprep.subr.mxu0 0.0
      %972 = vmatpush1.msra.mxu0 0.0
      %973 = vmatprep.subr.mxu0 0.0
      %974 = vmatpush1.msra.mxu0 0.0
      %975 = vmatprep.subr.mxu0 0.0
      %976 = vmatpush1.msra.mxu0 0.0
      %977 = vmatprep.subr.mxu0 0.0
      %978 = vmatpush1.msra.mxu0 0.0
      %979 = vmatprep.subr.mxu0 0.0
      %980 = vmatpush1.msra.mxu0 0.0
      %981 = vmatprep.subr.mxu0 0.0
      %982 = vmatpush1.msra.mxu0 0.0
      %983 = vmatprep.subr.mxu0 0.0
      %984 = vmatpush1.msra.mxu0 0.0
      %985 = vmatprep.subr.mxu0 0.0
      %986 = vmatpush1.msra.mxu0 0.0
      %987 = vmatprep.subr.mxu0 0.0
      %988 = vmatpush1.msra.mxu0 0.0
      %989 = vmatprep.subr.mxu0 0.0
      %990 = vmatpush1.msra.mxu0 0.0
      %991 = vmatprep.subr.mxu0 0.0
      %992 = vmatpush1.msra.mxu0 0.0
      %993 = vmatprep.subr.mxu0 0.0
      %994 = vmatpush1.msra.mxu0 0.0
      %995 = vmatprep.subr.mxu0 0.0
      %996 = vmatpush1.msra.mxu0 0.0
      %997 = vmatprep.subr.mxu0 0.0
      %998 = vmatpush1.msra.mxu0 0.0
      %999 = vmatprep.subr.mxu0 0.0
      %1000 = vmatpush1.msra.mxu0 0.0
      %1001 = vmatprep.subr.mxu0 0.0
      %1002 = vmatpush1.msra.mxu0 0.0
      %1003 = vmatprep.subr.mxu0 0.0
      %1004 = vmatpush1.msra.mxu0 0.0
      %1005 = vmatprep.subr.mxu0 0.0
      %1006 = vmatpush1.msra.mxu0 0.0
      %1007 = vmatprep.subr.mxu0 0.0
      %1008 = vmatpush1.msra.mxu0 0.0
      %1009 = vmatprep.subr.mxu0 0.0
      %1010 = vmatpush1.msra.mxu0 0.0
      %1011 = vmatprep.subr.mxu0 0.0
      %1012 = vmatpush1.msra.mxu0 0.0
      %1013 = vmatprep.subr.mxu0 0.0
      %1014 = vmatpush1.msra.mxu0 0.0
      %1015 = vmatprep.subr.mxu0 0.0
      %1016 = vmatpush1.msra.mxu0 0.0
      %1017 = vmatprep.subr.mxu0 0.0
      %1018 = vmatpush1.msra.mxu0 0.0
      %1019 = vmatprep.mubr.f32.mxu0 0.0
      %v1020 = vand.u32 %v943, 4294901760
      %v1021 = vsub.f32 %v943, %v1020
      %v1022 = vand.u32 %v1021, 4294901760
      %v1023 = vsub.f32 %v1021, %v1022
      %v1024 = vand.u32 %v1023, 4294901760
      %1025 = vmatmul.mubr.f32.gmra.mrb[0].mxu0 %v1024
      %v1026 = vpop.f32.mrb[0].mxu0
      %v1027 = vadd.f32 0.0, %v1026
      %v1028 = vpop.f32.mrb[0].mxu0
      %1029 = vmatprep.mubr.f32.mxu0 0.0
      %v1030 = vand.u32 %v946, 4294901760
      %v1031 = vsub.f32 %v946, %v1030
      %v1032 = vand.u32 %v1031, 4294901760
      %v1033 = vsub.f32 %v1031, %v1032
      %v1034 = vand.u32 %v1033, 4294901760
      %1035 = vmatmul.mubr.f32.gmra.mrb[0].mxu0 %v1034
      %v1036 = vpop.f32.mrb[0].mxu0
      %v1037 = vadd.f32 0.0, %v1036
      %v1038 = vpop.f32.mrb[0].mxu0
      %1039 = vmatprep.mubr.f32.mxu0 0.0
      %v1040 = vand.u32 %v949, 4294901760
      %v1041 = vsub.f32 %v949, %v1040
      %v1042 = vand.u32 %v1041, 4294901760
      %v1043 = vsub.f32 %v1041, %v1042
      %v1044 = vand.u32 %v1043, 4294901760
      %1045 = vmatmul.mubr.f32.gmra.mrb[0].mxu0 %v1044
      %v1046 = vpop.f32.mrb[0].mxu0
      %v1047 = vadd.f32 0.0, %v1046
      %v1048 = vpop.f32.mrb[0].mxu0
      %1049 = vmatprep.mubr.f32.mxu0 0.0
      %v1050 = vand.u32 %v952, 4294901760
      %v1051 = vsub.f32 %v952, %v1050
      %v1052 = vand.u32 %v1051, 4294901760
      %v1053 = vsub.f32 %v1051, %v1052
      %v1054 = vand.u32 %v1053, 4294901760
      %1055 = vmatmul.mubr.f32.gmra.mrb[0].mxu0 %v1054
      %v1056 = vpop.f32.mrb[0].mxu0
      %v1057 = vadd.f32 0.0, %v1056
      %v1058 = vpop.f32.mrb[0].mxu0
      %1059 = vdwg.mxu0
      %1060 = vmatprep.subr.mxu0 0.0
      %v1061 = vand.u32 %v940, 4294901760
      %v1062 = vsub.f32 %v940, %v1061
      %v1063 = vand.u32 %v1062, 4294901760
      %v1064 = vsub.f32 %v1062, %v1063
      %v1065 = vand.u32 %v1064, 4294901760
      %1066 = vmatpush1.msra.mxu0 %v1065
      %1067 = vmatprep.subr.mxu0 0.0
      %1068 = vmatpush1.msra.mxu0 0.0
      %1069 = vmatprep.subr.mxu0 0.0
      %1070 = vmatpush1.msra.mxu0 0.0
      %1071 = vmatprep.subr.mxu0 0.0
      %1072 = vmatpush1.msra.mxu0 0.0
      %1073 = vmatprep.subr.mxu0 0.0
      %1074 = vmatpush1.msra.mxu0 0.0
      %1075 = vmatprep.subr.mxu0 0.0
      %1076 = vmatpush1.msra.mxu0 0.0
      %1077 = vmatprep.subr.mxu0 0.0
      %1078 = vmatpush1.msra.mxu0 0.0
      %1079 = vmatprep.subr.mxu0 0.0
      %1080 = vmatpush1.msra.mxu0 0.0
      %1081 = vmatprep.subr.mxu0 0.0
      %1082 = vmatpush1.msra.mxu0 0.0
      %1083 = vmatprep.subr.mxu0 0.0
      %1084 = vmatpush1.msra.mxu0 0.0
      %1085 = vmatprep.subr.mxu0 0.0
      %1086 = vmatpush1.msra.mxu0 0.0
      %1087 = vmatprep.subr.mxu0 0.0
      %1088 = vmatpush1.msra.mxu0 0.0
      %1089 = vmatprep.subr.mxu0 0.0
      %1090 = vmatpush1.msra.mxu0 0.0
      %1091 = vmatprep.subr.mxu0 0.0
      %1092 = vmatpush1.msra.mxu0 0.0
      %1093 = vmatprep.subr.mxu0 0.0
      %1094 = vmatpush1.msra.mxu0 0.0
      %1095 = vmatprep.subr.mxu0 0.0
      %1096 = vmatpush1.msra.mxu0 0.0
      %1097 = vmatprep.subr.mxu0 0.0
      %1098 = vmatpush1.msra.mxu0 0.0
      %1099 = vmatprep.subr.mxu0 0.0
      %1100 = vmatpush1.msra.mxu0 0.0
      %1101 = vmatprep.subr.mxu0 0.0
      %1102 = vmatpush1.msra.mxu0 0.0
      %1103 = vmatprep.subr.mxu0 0.0
      %1104 = vmatpush1.msra.mxu0 0.0
      %1105 = vmatprep.subr.mxu0 0.0
      %1106 = vmatpush1.msra.mxu0 0.0
      %1107 = vmatprep.subr.mxu0 0.0
      %1108 = vmatpush1.msra.mxu0 0.0
      %1109 = vmatprep.subr.mxu0 0.0
      %1110 = vmatpush1.msra.mxu0 0.0
      %1111 = vmatprep.subr.mxu0 0.0
      %1112 = vmatpush1.msra.mxu0 0.0
      %1113 = vmatprep.subr.mxu0 0.0
      %1114 = vmatpush1.msra.mxu0 0.0
      %1115 = vmatprep.subr.mxu0 0.0
      %1116 = vmatpush1.msra.mxu0 0.0
      %1117 = vmatprep.subr.mxu0 0.0
      %1118 = vmatpush1.msra.mxu0 0.0
      %1119 = vmatprep.subr.mxu0 0.0
      %1120 = vmatpush1.msra.mxu0 0.0
      %1121 = vmatprep.subr.mxu0 0.0
      %1122 = vmatpush1.msra.mxu0 0.0
      %1123 = vmatprep.subr.mxu0 0.0
      %1124 = vmatpush1.msra.mxu0 0.0
      %1125 = vmatprep.subr.mxu0 0.0
      %1126 = vmatpush1.msra.mxu0 0.0
      %1127 = vmatprep.subr.mxu0 0.0
      %1128 = vmatpush1.msra.mxu0 0.0
      %1129 = vmatprep.mubr.f32.mxu0 0.0
      %v1130 = vand.u32 %v943, 4294901760
      %1131 = vmatmul.mubr.f32.gmra.mrb[0].mxu0 %v1130
      %v1132 = vpop.f32.mrb[0].mxu0
      %v1133 = vadd.f32 %v1027, %v1132
      %v1134 = vpop.f32.mrb[0].mxu0
      %1135 = vmatprep.mubr.f32.mxu0 0.0
      %v1136 = vand.u32 %v946, 4294901760
      %1137 = vmatmul.mubr.f32.gmra.mrb[0].mxu0 %v1136
      %v1138 = vpop.f32.mrb[0].mxu0
      %v1139 = vadd.f32 %v1037, %v1138
      %v1140 = vpop.f32.mrb[0].mxu0
      %1141 = vmatprep.mubr.f32.mxu0 0.0
      %v1142 = vand.u32 %v949, 4294901760
      %1143 = vmatmul.mubr.f32.gmra.mrb[0].mxu0 %v1142
      %v1144 = vpop.f32.mrb[0].mxu0
      %v1145 = vadd.f32 %v1047, %v1144
      %v1146 = vpop.f32.mrb[0].mxu0
      %1147 = vmatprep.mubr.f32.mxu0 0.0
      %v1148 = vand.u32 %v952, 4294901760
      %1149 = vmatmul.mubr.f32.gmra.mrb[0].mxu0 %v1148
      %v1150 = vpop.f32.mrb[0].mxu0
      %v1151 = vadd.f32 %v1057, %v1150
      %v1152 = vpop.f32.mrb[0].mxu0
      %1153 = vdwg.mxu0
      %1154 = vmatprep.subr.mxu0 0.0
      %v1155 = vand.u32 %v940, 4294901760
      %v1156 = vsub.f32 %v940, %v1155
      %1157 = vmatpush1.msra.mxu0 %v1156
      %1158 = vmatprep.subr.mxu0 0.0
      %1159 = vmatpush1.msra.mxu0 0.0
      %1160 = vmatprep.subr.mxu0 0.0
      %1161 = vmatpush1.msra.mxu0 0.0
      %1162 = vmatprep.subr.mxu0 0.0
      %1163 = vmatpush1.msra.mxu0 0.0
      %1164 = vmatprep.subr.mxu0 0.0
      %1165 = vmatpush1.msra.mxu0 0.0
      %1166 = vmatprep.subr.mxu0 0.0
      %1167 = vmatpush1.msra.mxu0 0.0
      %1168 = vmatprep.subr.mxu0 0.0
      %1169 = vmatpush1.msra.mxu0 0.0
      %1170 = vmatprep.subr.mxu0 0.0
      %1171 = vmatpush1.msra.mxu0 0.0
      %1172 = vmatprep.subr.mxu0 0.0
      %1173 = vmatpush1.msra.mxu0 0.0
      %1174 = vmatprep.subr.mxu0 0.0
      %1175 = vmatpush1.msra.mxu0 0.0
      %1176 = vmatprep.subr.mxu0 0.0
      %1177 = vmatpush1.msra.mxu0 0.0
      %1178 = vmatprep.subr.mxu0 0.0
      %1179 = vmatpush1.msra.mxu0 0.0
      %1180 = vmatprep.subr.mxu0 0.0
      %1181 = vmatpush1.msra.mxu0 0.0
      %1182 = vmatprep.subr.mxu0 0.0
      %1183 = vmatpush1.msra.mxu0 0.0
      %1184 = vmatprep.subr.mxu0 0.0
      %1185 = vmatpush1.msra.mxu0 0.0
      %1186 = vmatprep.subr.mxu0 0.0
      %1187 = vmatpush1.msra.mxu0 0.0
      %1188 = vmatprep.subr.mxu0 0.0
      %1189 = vmatpush1.msra.mxu0 0.0
      %1190 = vmatprep.subr.mxu0 0.0
      %1191 = vmatpush1.msra.mxu0 0.0
      %1192 = vmatprep.subr.mxu0 0.0
      %1193 = vmatpush1.msra.mxu0 0.0
      %1194 = vmatprep.subr.mxu0 0.0
      %1195 = vmatpush1.msra.mxu0 0.0
      %1196 = vmatprep.subr.mxu0 0.0
      %1197 = vmatpush1.msra.mxu0 0.0
      %1198 = vmatprep.subr.mxu0 0.0
      %1199 = vmatpush1.msra.mxu0 0.0
      %1200 = vmatprep.subr.mxu0 0.0
      %1201 = vmatpush1.msra.mxu0 0.0
      %1202 = vmatprep.subr.mxu0 0.0
      %1203 = vmatpush1.msra.mxu0 0.0
      %1204 = vmatprep.subr.mxu0 0.0
      %1205 = vmatpush1.msra.mxu0 0.0
      %1206 = vmatprep.subr.mxu0 0.0
      %1207 = vmatpush1.msra.mxu0 0.0
      %1208 = vmatprep.subr.mxu0 0.0
      %1209 = vmatpush1.msra.mxu0 0.0
      %1210 = vmatprep.subr.mxu0 0.0
      %1211 = vmatpush1.msra.mxu0 0.0
      %1212 = vmatprep.subr.mxu0 0.0
      %1213 = vmatpush1.msra.mxu0 0.0
      %1214 = vmatprep.subr.mxu0 0.0
      %1215 = vmatpush1.msra.mxu0 0.0
      %1216 = vmatprep.subr.mxu0 0.0
      %1217 = vmatpush1.msra.mxu0 0.0
      %1218 = vmatprep.subr.mxu0 0.0
      %1219 = vmatpush1.msra.mxu0 0.0
      %1220 = vmatprep.mubr.f32.mxu0 0.0
      %v1221 = vand.u32 %v943, 4294901760
      %v1222 = vsub.f32 %v943, %v1221
      %1223 = vmatmul.mubr.f32.gmra.mrb[0].mxu0 %v1222
      %v1224 = vpop.f32.mrb[0].mxu0
      %v1225 = vadd.f32 %v1133, %v1224
      %v1226 = vpop.f32.mrb[0].mxu0
      %1227 = vmatprep.mubr.f32.mxu0 0.0
      %v1228 = vand.u32 %v946, 4294901760
      %v1229 = vsub.f32 %v946, %v1228
      %1230 = vmatmul.mubr.f32.gmra.mrb[0].mxu0 %v1229
      %v1231 = vpop.f32.mrb[0].mxu0
      %v1232 = vadd.f32 %v1139, %v1231
      %v1233 = vpop.f32.mrb[0].mxu0
      %1234 = vmatprep.mubr.f32.mxu0 0.0
      %v1235 = vand.u32 %v949, 4294901760
      %v1236 = vsub.f32 %v949, %v1235
      %1237 = vmatmul.mubr.f32.gmra.mrb[0].mxu0 %v1236
      %v1238 = vpop.f32.mrb[0].mxu0
      %v1239 = vadd.f32 %v1145, %v1238
      %v1240 = vpop.f32.mrb[0].mxu0
      %1241 = vmatprep.mubr.f32.mxu0 0.0
      %v1242 = vand.u32 %v952, 4294901760
      %v1243 = vsub.f32 %v952, %v1242
      %1244 = vmatmul.mubr.f32.gmra.mrb[0].mxu0 %v1243
      %v1245 = vpop.f32.mrb[0].mxu0
      %v1246 = vadd.f32 %v1151, %v1245
      %v1247 = vpop.f32.mrb[0].mxu0
      %1248 = vdwg.mxu0
      %1249 = vmatprep.subr.mxu0 0.0
      %v1250 = vand.u32 %v940, 4294901760
      %1251 = vmatpush1.msra.mxu0 %v1250
      %1252 = vmatprep.subr.mxu0 0.0
      %1253 = vmatpush1.msra.mxu0 0.0
      %1254 = vmatprep.subr.mxu0 0.0
      %1255 = vmatpush1.msra.mxu0 0.0
      %1256 = vmatprep.subr.mxu0 0.0
      %1257 = vmatpush1.msra.mxu0 0.0
      %1258 = vmatprep.subr.mxu0 0.0
      %1259 = vmatpush1.msra.mxu0 0.0
      %1260 = vmatprep.subr.mxu0 0.0
      %1261 = vmatpush1.msra.mxu0 0.0
      %1262 = vmatprep.subr.mxu0 0.0
      %1263 = vmatpush1.msra.mxu0 0.0
      %1264 = vmatprep.subr.mxu0 0.0
      %1265 = vmatpush1.msra.mxu0 0.0
      %1266 = vmatprep.subr.mxu0 0.0
      %1267 = vmatpush1.msra.mxu0 0.0
      %1268 = vmatprep.subr.mxu0 0.0
      %1269 = vmatpush1.msra.mxu0 0.0
      %1270 = vmatprep.subr.mxu0 0.0
      %1271 = vmatpush1.msra.mxu0 0.0
      %1272 = vmatprep.subr.mxu0 0.0
      %1273 = vmatpush1.msra.mxu0 0.0
      %1274 = vmatprep.subr.mxu0 0.0
      %1275 = vmatpush1.msra.mxu0 0.0
      %1276 = vmatprep.subr.mxu0 0.0
      %1277 = vmatpush1.msra.mxu0 0.0
      %1278 = vmatprep.subr.mxu0 0.0
      %1279 = vmatpush1.msra.mxu0 0.0
      %1280 = vmatprep.subr.mxu0 0.0
      %1281 = vmatpush1.msra.mxu0 0.0
      %1282 = vmatprep.subr.mxu0 0.0
      %1283 = vmatpush1.msra.mxu0 0.0
      %1284 = vmatprep.subr.mxu0 0.0
      %1285 = vmatpush1.msra.mxu0 0.0
      %1286 = vmatprep.subr.mxu0 0.0
      %1287 = vmatpush1.msra.mxu0 0.0
      %1288 = vmatprep.subr.mxu0 0.0
      %1289 = vmatpush1.msra.mxu0 0.0
      %1290 = vmatprep.subr.mxu0 0.0
      %1291 = vmatpush1.msra.mxu0 0.0
      %1292 = vmatprep.subr.mxu0 0.0
      %1293 = vmatpush1.msra.mxu0 0.0
      %1294 = vmatprep.subr.mxu0 0.0
      %1295 = vmatpush1.msra.mxu0 0.0
      %1296 = vmatprep.subr.mxu0 0.0
      %1297 = vmatpush1.msra.mxu0 0.0
      %1298 = vmatprep.subr.mxu0 0.0
      %1299 = vmatpush1.msra.mxu0 0.0
      %1300 = vmatprep.subr.mxu0 0.0
      %1301 = vmatpush1.msra.mxu0 0.0
      %1302 = vmatprep.subr.mxu0 0.0
      %1303 = vmatpush1.msra.mxu0 0.0
      %1304 = vmatprep.subr.mxu0 0.0
      %1305 = vmatpush1.msra.mxu0 0.0
      %1306 = vmatprep.subr.mxu0 0.0
      %1307 = vmatpush1.msra.mxu0 0.0
      %1308 = vmatprep.subr.mxu0 0.0
      %1309 = vmatpush1.msra.mxu0 0.0
      %1310 = vmatprep.subr.mxu0 0.0
      %1311 = vmatpush1.msra.mxu0 0.0
      %1312 = vmatprep.subr.mxu0 0.0
      %1313 = vmatpush1.msra.mxu0 0.0
      %1314 = vmatprep.mubr.f32.mxu0 0.0
      %v1315 = vand.u32 %v943, 4294901760
      %v1316 = vsub.f32 %v943, %v1315
      %v1317 = vand.u32 %v1316, 4294901760
      %1318 = vmatmul.mubr.f32.gmra.mrb[0].mxu0 %v1317
      %v1319 = vpop.f32.mrb[0].mxu0
      %v1320 = vadd.f32 %v1225, %v1319
      %v1321 = vpop.f32.mrb[0].mxu0
      %1322 = vmatprep.mubr.f32.mxu0 0.0
      %v1323 = vand.u32 %v946, 4294901760
      %v1324 = vsub.f32 %v946, %v1323
      %v1325 = vand.u32 %v1324, 4294901760
      %1326 = vmatmul.mubr.f32.gmra.mrb[0].mxu0 %v1325
      %v1327 = vpop.f32.mrb[0].mxu0
      %v1328 = vadd.f32 %v1232, %v1327
      %v1329 = vpop.f32.mrb[0].mxu0
      %1330 = vmatprep.mubr.f32.mxu0 0.0
      %v1331 = vand.u32 %v949, 4294901760
      %v1332 = vsub.f32 %v949, %v1331
      %v1333 = vand.u32 %v1332, 4294901760
      %1334 = vmatmul.mubr.f32.gmra.mrb[0].mxu0 %v1333
      %v1335 = vpop.f32.mrb[0].mxu0
      %v1336 = vadd.f32 %v1239, %v1335
      %v1337 = vpop.f32.mrb[0].mxu0
      %1338 = vmatprep.mubr.f32.mxu0 0.0
      %v1339 = vand.u32 %v952, 4294901760
      %v1340 = vsub.f32 %v952, %v1339
      %v1341 = vand.u32 %v1340, 4294901760
      %1342 = vmatmul.mubr.f32.gmra.mrb[0].mxu0 %v1341
      %v1343 = vpop.f32.mrb[0].mxu0
      %v1344 = vadd.f32 %v1246, %v1343
      %v1345 = vpop.f32.mrb[0].mxu0
      %1346 = vdwg.mxu0
      %1347 = vmatprep.subr.mxu0 0.0
      %v1348 = vand.u32 %v940, 4294901760
      %v1349 = vsub.f32 %v940, %v1348
      %v1350 = vand.u32 %v1349, 4294901760
      %1351 = vmatpush1.msra.mxu0 %v1350
      %1352 = vmatprep.subr.mxu0 0.0
      %1353 = vmatpush1.msra.mxu0 0.0
      %1354 = vmatprep.subr.mxu0 0.0
      %1355 = vmatpush1.msra.mxu0 0.0
      %1356 = vmatprep.subr.mxu0 0.0
      %1357 = vmatpush1.msra.mxu0 0.0
      %1358 = vmatprep.subr.mxu0 0.0
      %1359 = vmatpush1.msra.mxu0 0.0
      %1360 = vmatprep.subr.mxu0 0.0
      %1361 = vmatpush1.msra.mxu0 0.0
      %1362 = vmatprep.subr.mxu0 0.0
      %1363 = vmatpush1.msra.mxu0 0.0
      %1364 = vmatprep.subr.mxu0 0.0
      %1365 = vmatpush1.msra.mxu0 0.0
      %1366 = vmatprep.subr.mxu0 0.0
      %1367 = vmatpush1.msra.mxu0 0.0
      %1368 = vmatprep.subr.mxu0 0.0
      %1369 = vmatpush1.msra.mxu0 0.0
      %1370 = vmatprep.subr.mxu0 0.0
      %1371 = vmatpush1.msra.mxu0 0.0
      %1372 = vmatprep.subr.mxu0 0.0
      %1373 = vmatpush1.msra.mxu0 0.0
      %1374 = vmatprep.subr.mxu0 0.0
      %1375 = vmatpush1.msra.mxu0 0.0
      %1376 = vmatprep.subr.mxu0 0.0
      %1377 = vmatpush1.msra.mxu0 0.0
      %1378 = vmatprep.subr.mxu0 0.0
      %1379 = vmatpush1.msra.mxu0 0.0
      %1380 = vmatprep.subr.mxu0 0.0
      %1381 = vmatpush1.msra.mxu0 0.0
      %1382 = vmatprep.subr.mxu0 0.0
      %1383 = vmatpush1.msra.mxu0 0.0
      %1384 = vmatprep.subr.mxu0 0.0
      %1385 = vmatpush1.msra.mxu0 0.0
      %1386 = vmatprep.subr.mxu0 0.0
      %1387 = vmatpush1.msra.mxu0 0.0
      %1388 = vmatprep.subr.mxu0 0.0
      %1389 = vmatpush1.msra.mxu0 0.0
      %1390 = vmatprep.subr.mxu0 0.0
      %1391 = vmatpush1.msra.mxu0 0.0
      %1392 = vmatprep.subr.mxu0 0.0
      %1393 = vmatpush1.msra.mxu0 0.0
      %1394 = vmatprep.subr.mxu0 0.0
      %1395 = vmatpush1.msra.mxu0 0.0
      %1396 = vmatprep.subr.mxu0 0.0
      %1397 = vmatpush1.msra.mxu0 0.0
      %1398 = vmatprep.subr.mxu0 0.0
      %1399 = vmatpush1.msra.mxu0 0.0
      %1400 = vmatprep.subr.mxu0 0.0
      %1401 = vmatpush1.msra.mxu0 0.0
      %1402 = vmatprep.subr.mxu0 0.0
      %1403 = vmatpush1.msra.mxu0 0.0
      %1404 = vmatprep.subr.mxu0 0.0
      %1405 = vmatpush1.msra.mxu0 0.0
      %1406 = vmatprep.subr.mxu0 0.0
      %1407 = vmatpush1.msra.mxu0 0.0
      %1408 = vmatprep.subr.mxu0 0.0
      %1409 = vmatpush1.msra.mxu0 0.0
      %1410 = vmatprep.subr.mxu0 0.0
      %1411 = vmatpush1.msra.mxu0 0.0
      %1412 = vmatprep.subr.mxu0 0.0
      %1413 = vmatpush1.msra.mxu0 0.0
      %1414 = vmatprep.mubr.f32.mxu0 0.0
      %v1415 = vand.u32 %v943, 4294901760
      %1416 = vmatmul.mubr.f32.gmra.mrb[0].mxu0 %v1415
      %v1417 = vpop.f32.mrb[0].mxu0
      %v1418 = vadd.f32 %v1320, %v1417
      %v1419 = vpop.f32.mrb[0].mxu0
      %1420 = vmatprep.mubr.f32.mxu0 0.0
      %v1421 = vand.u32 %v946, 4294901760
      %1422 = vmatmul.mubr.f32.gmra.mrb[0].mxu0 %v1421
      %v1423 = vpop.f32.mrb[0].mxu0
      %v1424 = vadd.f32 %v1328, %v1423
      %v1425 = vpop.f32.mrb[0].mxu0
      %1426 = vmatprep.mubr.f32.mxu0 0.0
      %v1427 = vand.u32 %v949, 4294901760
      %1428 = vmatmul.mubr.f32.gmra.mrb[0].mxu0 %v1427
      %v1429 = vpop.f32.mrb[0].mxu0
      %v1430 = vadd.f32 %v1336, %v1429
      %v1431 = vpop.f32.mrb[0].mxu0
      %1432 = vmatprep.mubr.f32.mxu0 0.0
      %v1433 = vand.u32 %v952, 4294901760
      %1434 = vmatmul.mubr.f32.gmra.mrb[0].mxu0 %v1433
      %v1435 = vpop.f32.mrb[0].mxu0
      %v1436 = vadd.f32 %v1344, %v1435
      %v1437 = vpop.f32.mrb[0].mxu0
      %1438 = vdwg.mxu0
      %1439 = vmatprep.subr.mxu0 0.0
      %v1440 = vand.u32 %v940, 4294901760
      %1441 = vmatpush1.msra.mxu0 %v1440
      %1442 = vmatprep.subr.mxu0 0.0
      %1443 = vmatpush1.msra.mxu0 0.0
      %1444 = vmatprep.subr.mxu0 0.0
      %1445 = vmatpush1.msra.mxu0 0.0
      %1446 = vmatprep.subr.mxu0 0.0
      %1447 = vmatpush1.msra.mxu0 0.0
      %1448 = vmatprep.subr.mxu0 0.0
      %1449 = vmatpush1.msra.mxu0 0.0
      %1450 = vmatprep.subr.mxu0 0.0
      %1451 = vmatpush1.msra.mxu0 0.0
      %1452 = vmatprep.subr.mxu0 0.0
      %1453 = vmatpush1.msra.mxu0 0.0
      %1454 = vmatprep.subr.mxu0 0.0
      %1455 = vmatpush1.msra.mxu0 0.0
      %1456 = vmatprep.subr.mxu0 0.0
      %1457 = vmatpush1.msra.mxu0 0.0
      %1458 = vmatprep.subr.mxu0 0.0
      %1459 = vmatpush1.msra.mxu0 0.0
      %1460 = vmatprep.subr.mxu0 0.0
      %1461 = vmatpush1.msra.mxu0 0.0
      %1462 = vmatprep.subr.mxu0 0.0
      %1463 = vmatpush1.msra.mxu0 0.0
      %1464 = vmatprep.subr.mxu0 0.0
      %1465 = vmatpush1.msra.mxu0 0.0
      %1466 = vmatprep.subr.mxu0 0.0
      %1467 = vmatpush1.msra.mxu0 0.0
      %1468 = vmatprep.subr.mxu0 0.0
      %1469 = vmatpush1.msra.mxu0 0.0
      %1470 = vmatprep.subr.mxu0 0.0
      %1471 = vmatpush1.msra.mxu0 0.0
      %1472 = vmatprep.subr.mxu0 0.0
      %1473 = vmatpush1.msra.mxu0 0.0
      %1474 = vmatprep.subr.mxu0 0.0
      %1475 = vmatpush1.msra.mxu0 0.0
      %1476 = vmatprep.subr.mxu0 0.0
      %1477 = vmatpush1.msra.mxu0 0.0
      %1478 = vmatprep.subr.mxu0 0.0
      %1479 = vmatpush1.msra.mxu0 0.0
      %1480 = vmatprep.subr.mxu0 0.0
      %1481 = vmatpush1.msra.mxu0 0.0
      %1482 = vmatprep.subr.mxu0 0.0
      %1483 = vmatpush1.msra.mxu0 0.0
      %1484 = vmatprep.subr.mxu0 0.0
      %1485 = vmatpush1.msra.mxu0 0.0
      %1486 = vmatprep.subr.mxu0 0.0
      %1487 = vmatpush1.msra.mxu0 0.0
      %1488 = vmatprep.subr.mxu0 0.0
      %1489 = vmatpush1.msra.mxu0 0.0
      %1490 = vmatprep.subr.mxu0 0.0
      %1491 = vmatpush1.msra.mxu0 0.0
      %1492 = vmatprep.subr.mxu0 0.0
      %1493 = vmatpush1.msra.mxu0 0.0
      %1494 = vmatprep.subr.mxu0 0.0
      %1495 = vmatpush1.msra.mxu0 0.0
      %1496 = vmatprep.subr.mxu0 0.0
      %1497 = vmatpush1.msra.mxu0 0.0
      %1498 = vmatprep.subr.mxu0 0.0
      %1499 = vmatpush1.msra.mxu0 0.0
      %1500 = vmatprep.subr.mxu0 0.0
      %1501 = vmatpush1.msra.mxu0 0.0
      %1502 = vmatprep.subr.mxu0 0.0
      %1503 = vmatpush1.msra.mxu0 0.0
      %1504 = vmatprep.mubr.f32.mxu0 0.0
      %v1505 = vand.u32 %v943, 4294901760
      %1506 = vmatmul.mubr.f32.gmra.mrb[0].mxu0 %v1505
      %v1507 = vpop.f32.mrb[0].mxu0
      %v1508 = vadd.f32 %v1418, %v1507
      %v1509 = vpop.f32.mrb[0].mxu0
      %1510 = vmatprep.mubr.f32.mxu0 0.0
      %v1511 = vand.u32 %v946, 4294901760
      %1512 = vmatmul.mubr.f32.gmra.mrb[0].mxu0 %v1511
      %v1513 = vpop.f32.mrb[0].mxu0
      %v1514 = vadd.f32 %v1424, %v1513
      %v1515 = vpop.f32.mrb[0].mxu0
      %1516 = vmatprep.mubr.f32.mxu0 0.0
      %v1517 = vand.u32 %v949, 4294901760
      %1518 = vmatmul.mubr.f32.gmra.mrb[0].mxu0 %v1517
      %v1519 = vpop.f32.mrb[0].mxu0
      %v1520 = vadd.f32 %v1430, %v1519
      %v1521 = vpop.f32.mrb[0].mxu0
      %1522 = vmatprep.mubr.f32.mxu0 0.0
      %v1523 = vand.u32 %v952, 4294901760
      %1524 = vmatmul.mubr.f32.gmra.mrb[0].mxu0 %v1523
      %v1525 = vpop.f32.mrb[0].mxu0
      %v1526 = vadd.f32 %v1436, %v1525
      %v1527 = vpop.f32.mrb[0].mxu0
      %1528 = vdwg.mxu0
      %1529 = vxpose.xlu0.b32.start [1/16] %v1508, 128
      %1530 = vxpose.xlu0.b32.cont [2/16] 0.0, 128
      %1531 = vxpose.xlu0.b32.cont [3/16] 0.0, 128
      %1532 = vxpose.xlu0.b32.cont [4/16] 0.0, 128
      %1533 = vxpose.xlu0.b32.cont [5/16] 0.0, 128
      %1534 = vxpose.xlu0.b32.cont [6/16] 0.0, 128
      %1535 = vxpose.xlu0.b32.cont [7/16] 0.0, 128
      %1536 = vxpose.xlu0.b32.cont [8/16] 0.0, 128
      %1537 = vxpose.xlu0.b32.cont [9/16] 0.0, 128
      %1538 = vxpose.xlu0.b32.cont [10/16] 0.0, 128
      %1539 = vxpose.xlu0.b32.cont [11/16] 0.0, 128
      %1540 = vxpose.xlu0.b32.cont [12/16] 0.0, 128
      %1541 = vxpose.xlu0.b32.cont [13/16] 0.0, 128
      %1542 = vxpose.xlu0.b32.cont [14/16] 0.0, 128
      %1543 = vxpose.xlu0.b32.cont [15/16] 0.0, 128
      %1544 = vxpose.xlu0.b32.end [16/16] 0.0, 128
      %v1545 = vpop.trf.xlu0
      %v1546 = vpop.trf.xlu0
      %v1547 = vpop.trf.xlu0
      %v1548 = vpop.trf.xlu0
      %v1549 = vpop.trf.xlu0
      %v1550 = vpop.trf.xlu0
      %v1551 = vpop.trf.xlu0
      %v1552 = vpop.trf.xlu0
      %v1553 = vpop.trf.xlu0
      %v1554 = vpop.trf.xlu0
      %v1555 = vpop.trf.xlu0
      %v1556 = vpop.trf.xlu0
      %v1557 = vpop.trf.xlu0
      %v1558 = vpop.trf.xlu0
      %v1559 = vpop.trf.xlu0
      %v1560 = vpop.trf.xlu0
      %1561 = vxpose.xlu0.b32.start [1/16] %v1514, 128
      %1562 = vxpose.xlu0.b32.cont [2/16] 0.0, 128
      %1563 = vxpose.xlu0.b32.cont [3/16] 0.0, 128
      %1564 = vxpose.xlu0.b32.cont [4/16] 0.0, 128
      %1565 = vxpose.xlu0.b32.cont [5/16] 0.0, 128
      %1566 = vxpose.xlu0.b32.cont [6/16] 0.0, 128
      %1567 = vxpose.xlu0.b32.cont [7/16] 0.0, 128
      %1568 = vxpose.xlu0.b32.cont [8/16] 0.0, 128
      %1569 = vxpose.xlu0.b32.cont [9/16] 0.0, 128
      %1570 = vxpose.xlu0.b32.cont [10/16] 0.0, 128
      %1571 = vxpose.xlu0.b32.cont [11/16] 0.0, 128
      %1572 = vxpose.xlu0.b32.cont [12/16] 0.0, 128
      %1573 = vxpose.xlu0.b32.cont [13/16] 0.0, 128
      %1574 = vxpose.xlu0.b32.cont [14/16] 0.0, 128
      %1575 = vxpose.xlu0.b32.cont [15/16] 0.0, 128
      %1576 = vxpose.xlu0.b32.end [16/16] 0.0, 128
      %v1577 = vpop.trf.xlu0
      %v1578 = vpop.trf.xlu0
      %v1579 = vpop.trf.xlu0
      %v1580 = vpop.trf.xlu0
      %v1581 = vpop.trf.xlu0
      %v1582 = vpop.trf.xlu0
      %v1583 = vpop.trf.xlu0
      %v1584 = vpop.trf.xlu0
      %v1585 = vpop.trf.xlu0
      %v1586 = vpop.trf.xlu0
      %v1587 = vpop.trf.xlu0
      %v1588 = vpop.trf.xlu0
      %v1589 = vpop.trf.xlu0
      %v1590 = vpop.trf.xlu0
      %v1591 = vpop.trf.xlu0
      %v1592 = vpop.trf.xlu0
      %1593 = vxpose.xlu0.b32.start [1/16] %v1520, 128
      %1594 = vxpose.xlu0.b32.cont [2/16] 0.0, 128
      %1595 = vxpose.xlu0.b32.cont [3/16] 0.0, 128
      %1596 = vxpose.xlu0.b32.cont [4/16] 0.0, 128
      %1597 = vxpose.xlu0.b32.cont [5/16] 0.0, 128
      %1598 = vxpose.xlu0.b32.cont [6/16] 0.0, 128
      %1599 = vxpose.xlu0.b32.cont [7/16] 0.0, 128
      %1600 = vxpose.xlu0.b32.cont [8/16] 0.0, 128
      %1601 = vxpose.xlu0.b32.cont [9/16] 0.0, 128
      %1602 = vxpose.xlu0.b32.cont [10/16] 0.0, 128
      %1603 = vxpose.xlu0.b32.cont [11/16] 0.0, 128
      %1604 = vxpose.xlu0.b32.cont [12/16] 0.0, 128
      %1605 = vxpose.xlu0.b32.cont [13/16] 0.0, 128
      %1606 = vxpose.xlu0.b32.cont [14/16] 0.0, 128
      %1607 = vxpose.xlu0.b32.cont [15/16] 0.0, 128
      %1608 = vxpose.xlu0.b32.end [16/16] 0.0, 128
      %v1609 = vpop.trf.xlu0
      %v1610 = vpop.trf.xlu0
      %v1611 = vpop.trf.xlu0
      %v1612 = vpop.trf.xlu0
      %v1613 = vpop.trf.xlu0
      %v1614 = vpop.trf.xlu0
      %v1615 = vpop.trf.xlu0
      %v1616 = vpop.trf.xlu0
      %v1617 = vpop.trf.xlu0
      %v1618 = vpop.trf.xlu0
      %v1619 = vpop.trf.xlu0
      %v1620 = vpop.trf.xlu0
      %v1621 = vpop.trf.xlu0
      %v1622 = vpop.trf.xlu0
      %v1623 = vpop.trf.xlu0
      %v1624 = vpop.trf.xlu0
      %1625 = vxpose.xlu0.b32.start [1/16] %v1526, 128
      %1626 = vxpose.xlu0.b32.cont [2/16] 0.0, 128
      %1627 = vxpose.xlu0.b32.cont [3/16] 0.0, 128
      %1628 = vxpose.xlu0.b32.cont [4/16] 0.0, 128
      %1629 = vxpose.xlu0.b32.cont [5/16] 0.0, 128
      %1630 = vxpose.xlu0.b32.cont [6/16] 0.0, 128
      %1631 = vxpose.xlu0.b32.cont [7/16] 0.0, 128
      %1632 = vxpose.xlu0.b32.cont [8/16] 0.0, 128
      %1633 = vxpose.xlu0.b32.cont [9/16] 0.0, 128
      %1634 = vxpose.xlu0.b32.cont [10/16] 0.0, 128
      %1635 = vxpose.xlu0.b32.cont [11/16] 0.0, 128
      %1636 = vxpose.xlu0.b32.cont [12/16] 0.0, 128
      %1637 = vxpose.xlu0.b32.cont [13/16] 0.0, 128
      %1638 = vxpose.xlu0.b32.cont [14/16] 0.0, 128
      %1639 = vxpose.xlu0.b32.cont [15/16] 0.0, 128
      %1640 = vxpose.xlu0.b32.end [16/16] 0.0, 128
      %v1641 = vpop.trf.xlu0
      %v1642 = vpop.trf.xlu0
      %v1643 = vpop.trf.xlu0
      %v1644 = vpop.trf.xlu0
      %v1645 = vpop.trf.xlu0
      %v1646 = vpop.trf.xlu0
      %v1647 = vpop.trf.xlu0
      %v1648 = vpop.trf.xlu0
      %v1649 = vpop.trf.xlu0
      %v1650 = vpop.trf.xlu0
      %v1651 = vpop.trf.xlu0
      %v1652 = vpop.trf.xlu0
      %v1653 = vpop.trf.xlu0
      %v1654 = vpop.trf.xlu0
      %v1655 = vpop.trf.xlu0
      %v1656 = vpop.trf.xlu0
      %s1657 = scalar_lea.vmem [#allocation2], 72
      %1658 = vst.msk [vmem:[%s1657 + $0x1] sm:$0xff] %vm941, %v1545
      %1659 = vst.msk [vmem:[%s1657 + $0x9] sm:$0xff] %vm941, %v1546
      %1660 = vst.msk [vmem:[%s1657 + $0x19] sm:$0xff] %vm941, %v1545
      %1661 = vst.msk [vmem:[%s1657 + $0x21] sm:$0xff] %vm941, %v1546
      %1662 = vst.msk [vmem:[%s1657 + $0x31] sm:$0xff] %vm941, %v1577
      %1663 = vst.msk [vmem:[%s1657 + $0x39] sm:$0xff] %vm941, %v1578
      %1664 = vst.msk [vmem:[%s1657 + $0x49] sm:$0xff] %vm941, %v1577
      %1665 = vst.msk [vmem:[%s1657 + $0x51] sm:$0xff] %vm941, %v1578
      %1666 = vst.msk [vmem:[%s1657 + $0x61] sm:$0xff] %vm941, %v1609
      %1667 = vst.msk [vmem:[%s1657 + $0x69] sm:$0xff] %vm941, %v1610
      %1668 = vst.msk [vmem:[%s1657 + $0x79] sm:$0xff] %vm941, %v1609
      %1669 = vst.msk [vmem:[%s1657 + $0x81] sm:$0xff] %vm941, %v1610
      %1670 = vst.msk [vmem:[%s1657 + $0x91] sm:$0xff] %vm941, %v1641
      %1671 = vst.msk [vmem:[%s1657 + $0x99] sm:$0xff] %vm941, %v1642
      %1672 = vst.msk [vmem:[%s1657 + $0xa9] sm:$0xff] %vm941, %v1641
      %1673 = vst.msk [vmem:[%s1657 + $0xb1] sm:$0xff] %vm941, %v1642
      %v1674 = vld [vmem:[%s697] sm:$0xff]
      %v1675 = vld [vmem:[%s697 + $0x8] sm:$0xff]
      %1676 = vxpose.xlu0.b32.start [1/16] %v1674, 128
      %1677 = vxpose.xlu0.b32.cont [2/16] 0.0, 128
      %1678 = vxpose.xlu0.b32.cont [3/16] 0.0, 128
      %1679 = vxpose.xlu0.b32.cont [4/16] 0.0, 128
      %1680 = vxpose.xlu0.b32.cont [5/16] 0.0, 128
      %1681 = vxpose.xlu0.b32.cont [6/16] 0.0, 128
      %1682 = vxpose.xlu0.b32.cont [7/16] 0.0, 128
      %1683 = vxpose.xlu0.b32.cont [8/16] 0.0, 128
      %1684 = vxpose.xlu0.b32.cont [9/16] 0.0, 128
      %1685 = vxpose.xlu0.b32.cont [10/16] 0.0, 128
      %1686 = vxpose.xlu0.b32.cont [11/16] 0.0, 128
      %1687 = vxpose.xlu0.b32.cont [12/16] 0.0, 128
      %1688 = vxpose.xlu0.b32.cont [13/16] 0.0, 128
      %1689 = vxpose.xlu0.b32.cont [14/16] 0.0, 128
      %1690 = vxpose.xlu0.b32.cont [15/16] 0.0, 128
      %1691 = vxpose.xlu0.b32.end [16/16] 0.0, 128
      %v1692 = vpop.trf.xlu0
      %v1693 = vpop.trf.xlu0
      %v1694 = vpop.trf.xlu0
      %v1695 = vpop.trf.xlu0
      %v1696 = vpop.trf.xlu0
      %v1697 = vpop.trf.xlu0
      %v1698 = vpop.trf.xlu0
      %v1699 = vpop.trf.xlu0
      %v1700 = vpop.trf.xlu0
      %v1701 = vpop.trf.xlu0
      %v1702 = vpop.trf.xlu0
      %v1703 = vpop.trf.xlu0
      %v1704 = vpop.trf.xlu0
      %v1705 = vpop.trf.xlu0
      %v1706 = vpop.trf.xlu0
      %v1707 = vpop.trf.xlu0
      %1708 = vxpose.xlu0.b32.start [1/16] %v1675, 128
      %1709 = vxpose.xlu0.b32.cont [2/16] 0.0, 128
      %1710 = vxpose.xlu0.b32.cont [3/16] 0.0, 128
      %1711 = vxpose.xlu0.b32.cont [4/16] 0.0, 128
      %1712 = vxpose.xlu0.b32.cont [5/16] 0.0, 128
      %1713 = vxpose.xlu0.b32.cont [6/16] 0.0, 128
      %1714 = vxpose.xlu0.b32.cont [7/16] 0.0, 128
      %1715 = vxpose.xlu0.b32.cont [8/16] 0.0, 128
      %1716 = vxpose.xlu0.b32.cont [9/16] 0.0, 128
      %1717 = vxpose.xlu0.b32.cont [10/16] 0.0, 128
      %1718 = vxpose.xlu0.b32.cont [11/16] 0.0, 128
      %1719 = vxpose.xlu0.b32.cont [12/16] 0.0, 128
      %1720 = vxpose.xlu0.b32.cont [13/16] 0.0, 128
      %1721 = vxpose.xlu0.b32.cont [14/16] 0.0, 128
      %1722 = vxpose.xlu0.b32.cont [15/16] 0.0, 128
      %1723 = vxpose.xlu0.b32.end [16/16] 0.0, 128
      %v1724 = vpop.trf.xlu0
      %v1725 = vpop.trf.xlu0
      %v1726 = vpop.trf.xlu0
      %v1727 = vpop.trf.xlu0
      %v1728 = vpop.trf.xlu0
      %v1729 = vpop.trf.xlu0
      %v1730 = vpop.trf.xlu0
      %v1731 = vpop.trf.xlu0
      %v1732 = vpop.trf.xlu0
      %v1733 = vpop.trf.xlu0
      %v1734 = vpop.trf.xlu0
      %v1735 = vpop.trf.xlu0
      %v1736 = vpop.trf.xlu0
      %v1737 = vpop.trf.xlu0
      %v1738 = vpop.trf.xlu0
      %v1739 = vpop.trf.xlu0
      %v1740 = vld [vmem:[%s6] sm:$0xff]
      %v1742 = vsel %vm941, %v1692, 0
      %v1745 = vsel %vm941, %v1724, 0
      %1747 = vmatprep.subr.mxu0 0.0
      %v1748 = vand.u32 %v1740, 4294901760
      %1749 = vmatpush1.msra.mxu0 %v1748
      %1750 = vmatprep.subr.mxu0 0.0
      %1751 = vmatpush1.msra.mxu0 0.0
      %1752 = vmatprep.subr.mxu0 0.0
      %1753 = vmatpush1.msra.mxu0 0.0
      %1754 = vmatprep.subr.mxu0 0.0
      %1755 = vmatpush1.msra.mxu0 0.0
      %1756 = vmatprep.subr.mxu0 0.0
      %1757 = vmatpush1.msra.mxu0 0.0
      %1758 = vmatprep.subr.mxu0 0.0
      %1759 = vmatpush1.msra.mxu0 0.0
      %1760 = vmatprep.subr.mxu0 0.0
      %1761 = vmatpush1.msra.mxu0 0.0
      %1762 = vmatprep.subr.mxu0 0.0
      %1763 = vmatpush1.msra.mxu0 0.0
      %1764 = vmatprep.subr.mxu0 0.0
      %1765 = vmatpush1.msra.mxu0 0.0
      %1766 = vmatprep.subr.mxu0 0.0
      %1767 = vmatpush1.msra.mxu0 0.0
      %1768 = vmatprep.subr.mxu0 0.0
      %1769 = vmatpush1.msra.mxu0 0.0
      %1770 = vmatprep.subr.mxu0 0.0
      %1771 = vmatpush1.msra.mxu0 0.0
      %1772 = vmatprep.subr.mxu0 0.0
      %1773 = vmatpush1.msra.mxu0 0.0
      %1774 = vmatprep.subr.mxu0 0.0
      %1775 = vmatpush1.msra.mxu0 0.0
      %1776 = vmatprep.subr.mxu0 0.0
      %1777 = vmatpush1.msra.mxu0 0.0
      %1778 = vmatprep.subr.mxu0 0.0
      %1779 = vmatpush1.msra.mxu0 0.0
      %1780 = vmatprep.subr.mxu0 0.0
      %1781 = vmatpush1.msra.mxu0 0.0
      %1782 = vmatprep.subr.mxu0 0.0
      %1783 = vmatpush1.msra.mxu0 0.0
      %1784 = vmatprep.subr.mxu0 0.0
      %1785 = vmatpush1.msra.mxu0 0.0
      %1786 = vmatprep.subr.mxu0 0.0
      %1787 = vmatpush1.msra.mxu0 0.0
      %1788 = vmatprep.subr.mxu0 0.0
      %1789 = vmatpush1.msra.mxu0 0.0
      %1790 = vmatprep.subr.mxu0 0.0
      %1791 = vmatpush1.msra.mxu0 0.0
      %1792 = vmatprep.subr.mxu0 0.0
      %1793 = vmatpush1.msra.mxu0 0.0
      %1794 = vmatprep.subr.mxu0 0.0
      %1795 = vmatpush1.msra.mxu0 0.0
      %1796 = vmatprep.subr.mxu0 0.0
      %1797 = vmatpush1.msra.mxu0 0.0
      %1798 = vmatprep.subr.mxu0 0.0
      %1799 = vmatpush1.msra.mxu0 0.0
      %1800 = vmatprep.subr.mxu0 0.0
      %1801 = vmatpush1.msra.mxu0 0.0
      %1802 = vmatprep.subr.mxu0 0.0
      %1803 = vmatpush1.msra.mxu0 0.0
      %1804 = vmatprep.subr.mxu0 0.0
      %1805 = vmatpush1.msra.mxu0 0.0
      %1806 = vmatprep.subr.mxu0 0.0
      %1807 = vmatpush1.msra.mxu0 0.0
      %1808 = vmatprep.subr.mxu0 0.0
      %1809 = vmatpush1.msra.mxu0 0.0
      %1810 = vmatprep.subr.mxu0 0.0
      %1811 = vmatpush1.msra.mxu0 0.0
      %1812 = vmatprep.mubr.f32.mxu0 0.0
      %v1813 = vand.u32 %v1742, 4294901760
      %v1814 = vsub.f32 %v1742, %v1813
      %v1815 = vand.u32 %v1814, 4294901760
      %v1816 = vsub.f32 %v1814, %v1815
      %v1817 = vand.u32 %v1816, 4294901760
      %1818 = vmatmul.mubr.f32.gmra.mrb[0].mxu0 %v1817
      %v1819 = vpop.f32.mrb[0].mxu0
      %v1820 = vadd.f32 0.0, %v1819
      %v1821 = vpop.f32.mrb[0].mxu0
      %1822 = vmatprep.mubr.f32.mxu0 0.0
      %v1823 = vand.u32 %v1745, 4294901760
      %v1824 = vsub.f32 %v1745, %v1823
      %v1825 = vand.u32 %v1824, 4294901760
      %v1826 = vsub.f32 %v1824, %v1825
      %v1827 = vand.u32 %v1826, 4294901760
      %1828 = vmatmul.mubr.f32.gmra.mrb[0].mxu0 %v1827
      %v1829 = vpop.f32.mrb[0].mxu0
      %v1830 = vadd.f32 0.0, %v1829
      %v1831 = vpop.f32.mrb[0].mxu0
      %1832 = vdwg.mxu0
      %1833 = vmatprep.subr.mxu0 0.0
      %v1834 = vand.u32 %v1740, 4294901760
      %v1835 = vsub.f32 %v1740, %v1834
      %v1836 = vand.u32 %v1835, 4294901760
      %v1837 = vsub.f32 %v1835, %v1836
      %v1838 = vand.u32 %v1837, 4294901760
      %1839 = vmatpush1.msra.mxu0 %v1838
      %1840 = vmatprep.subr.mxu0 0.0
      %1841 = vmatpush1.msra.mxu0 0.0
      %1842 = vmatprep.subr.mxu0 0.0
      %1843 = vmatpush1.msra.mxu0 0.0
      %1844 = vmatprep.subr.mxu0 0.0
      %1845 = vmatpush1.msra.mxu0 0.0
      %1846 = vmatprep.subr.mxu0 0.0
      %1847 = vmatpush1.msra.mxu0 0.0
      %1848 = vmatprep.subr.mxu0 0.0
      %1849 = vmatpush1.msra.mxu0 0.0
      %1850 = vmatprep.subr.mxu0 0.0
      %1851 = vmatpush1.msra.mxu0 0.0
      %1852 = vmatprep.subr.mxu0 0.0
      %1853 = vmatpush1.msra.mxu0 0.0
      %1854 = vmatprep.subr.mxu0 0.0
      %1855 = vmatpush1.msra.mxu0 0.0
      %1856 = vmatprep.subr.mxu0 0.0
      %1857 = vmatpush1.msra.mxu0 0.0
      %1858 = vmatprep.subr.mxu0 0.0
      %1859 = vmatpush1.msra.mxu0 0.0
      %1860 = vmatprep.subr.mxu0 0.0
      %1861 = vmatpush1.msra.mxu0 0.0
      %1862 = vmatprep.subr.mxu0 0.0
      %1863 = vmatpush1.msra.mxu0 0.0
      %1864 = vmatprep.subr.mxu0 0.0
      %1865 = vmatpush1.msra.mxu0 0.0
      %1866 = vmatprep.subr.mxu0 0.0
      %1867 = vmatpush1.msra.mxu0 0.0
      %1868 = vmatprep.subr.mxu0 0.0
      %1869 = vmatpush1.msra.mxu0 0.0
      %1870 = vmatprep.subr.mxu0 0.0
      %1871 = vmatpush1.msra.mxu0 0.0
      %1872 = vmatprep.subr.mxu0 0.0
      %1873 = vmatpush1.msra.mxu0 0.0
      %1874 = vmatprep.subr.mxu0 0.0
      %1875 = vmatpush1.msra.mxu0 0.0
      %1876 = vmatprep.subr.mxu0 0.0
      %1877 = vmatpush1.msra.mxu0 0.0
      %1878 = vmatprep.subr.mxu0 0.0
      %1879 = vmatpush1.msra.mxu0 0.0
      %1880 = vmatprep.subr.mxu0 0.0
      %1881 = vmatpush1.msra.mxu0 0.0
      %1882 = vmatprep.subr.mxu0 0.0
      %1883 = vmatpush1.msra.mxu0 0.0
      %1884 = vmatprep.subr.mxu0 0.0
      %1885 = vmatpush1.msra.mxu0 0.0
      %1886 = vmatprep.subr.mxu0 0.0
      %1887 = vmatpush1.msra.mxu0 0.0
      %1888 = vmatprep.subr.mxu0 0.0
      %1889 = vmatpush1.msra.mxu0 0.0
      %1890 = vmatprep.subr.mxu0 0.0
      %1891 = vmatpush1.msra.mxu0 0.0
      %1892 = vmatprep.subr.mxu0 0.0
      %1893 = vmatpush1.msra.mxu0 0.0
      %1894 = vmatprep.subr.mxu0 0.0
      %1895 = vmatpush1.msra.mxu0 0.0
      %1896 = vmatprep.subr.mxu0 0.0
      %1897 = vmatpush1.msra.mxu0 0.0
      %1898 = vmatprep.subr.mxu0 0.0
      %1899 = vmatpush1.msra.mxu0 0.0
      %1900 = vmatprep.subr.mxu0 0.0
      %1901 = vmatpush1.msra.mxu0 0.0
      %1902 = vmatprep.mubr.f32.mxu0 0.0
      %v1903 = vand.u32 %v1742, 4294901760
      %1904 = vmatmul.mubr.f32.gmra.mrb[0].mxu0 %v1903
      %v1905 = vpop.f32.mrb[0].mxu0
      %v1906 = vadd.f32 %v1820, %v1905
      %v1907 = vpop.f32.mrb[0].mxu0
      %1908 = vmatprep.mubr.f32.mxu0 0.0
      %v1909 = vand.u32 %v1745, 4294901760
      %1910 = vmatmul.mubr.f32.gmra.mrb[0].mxu0 %v1909
      %v1911 = vpop.f32.mrb[0].mxu0
      %v1912 = vadd.f32 %v1830, %v1911
      %v1913 = vpop.f32.mrb[0].mxu0
      %1914 = vdwg.mxu0
      %1915 = vmatprep.subr.mxu0 0.0
      %v1916 = vand.u32 %v1740, 4294901760
      %v1917 = vsub.f32 %v1740, %v1916
      %1918 = vmatpush1.msra.mxu0 %v1917
      %1919 = vmatprep.subr.mxu0 0.0
      %1920 = vmatpush1.msra.mxu0 0.0
      %1921 = vmatprep.subr.mxu0 0.0
      %1922 = vmatpush1.msra.mxu0 0.0
      %1923 = vmatprep.subr.mxu0 0.0
      %1924 = vmatpush1.msra.mxu0 0.0
      %1925 = vmatprep.subr.mxu0 0.0
      %1926 = vmatpush1.msra.mxu0 0.0
      %1927 = vmatprep.subr.mxu0 0.0
      %1928 = vmatpush1.msra.mxu0 0.0
      %1929 = vmatprep.subr.mxu0 0.0
      %1930 = vmatpush1.msra.mxu0 0.0
      %1931 = vmatprep.subr.mxu0 0.0
      %1932 = vmatpush1.msra.mxu0 0.0
      %1933 = vmatprep.subr.mxu0 0.0
      %1934 = vmatpush1.msra.mxu0 0.0
      %1935 = vmatprep.subr.mxu0 0.0
      %1936 = vmatpush1.msra.mxu0 0.0
      %1937 = vmatprep.subr.mxu0 0.0
      %1938 = vmatpush1.msra.mxu0 0.0
      %1939 = vmatprep.subr.mxu0 0.0
      %1940 = vmatpush1.msra.mxu0 0.0
      %1941 = vmatprep.subr.mxu0 0.0
      %1942 = vmatpush1.msra.mxu0 0.0
      %1943 = vmatprep.subr.mxu0 0.0
      %1944 = vmatpush1.msra.mxu0 0.0
      %1945 = vmatprep.subr.mxu0 0.0
      %1946 = vmatpush1.msra.mxu0 0.0
      %1947 = vmatprep.subr.mxu0 0.0
      %1948 = vmatpush1.msra.mxu0 0.0
      %1949 = vmatprep.subr.mxu0 0.0
      %1950 = vmatpush1.msra.mxu0 0.0
      %1951 = vmatprep.subr.mxu0 0.0
      %1952 = vmatpush1.msra.mxu0 0.0
      %1953 = vmatprep.subr.mxu0 0.0
      %1954 = vmatpush1.msra.mxu0 0.0
      %1955 = vmatprep.subr.mxu0 0.0
      %1956 = vmatpush1.msra.mxu0 0.0
      %1957 = vmatprep.subr.mxu0 0.0
      %1958 = vmatpush1.msra.mxu0 0.0
      %1959 = vmatprep.subr.mxu0 0.0
      %1960 = vmatpush1.msra.mxu0 0.0
      %1961 = vmatprep.subr.mxu0 0.0
      %1962 = vmatpush1.msra.mxu0 0.0
      %1963 = vmatprep.subr.mxu0 0.0
      %1964 = vmatpush1.msra.mxu0 0.0
      %1965 = vmatprep.subr.mxu0 0.0
      %1966 = vmatpush1.msra.mxu0 0.0
      %1967 = vmatprep.subr.mxu0 0.0
      %1968 = vmatpush1.msra.mxu0 0.0
      %1969 = vmatprep.subr.mxu0 0.0
      %1970 = vmatpush1.msra.mxu0 0.0
      %1971 = vmatprep.subr.mxu0 0.0
      %1972 = vmatpush1.msra.mxu0 0.0
      %1973 = vmatprep.subr.mxu0 0.0
      %1974 = vmatpush1.msra.mxu0 0.0
      %1975 = vmatprep.subr.mxu0 0.0
      %1976 = vmatpush1.msra.mxu0 0.0
      %1977 = vmatprep.subr.mxu0 0.0
      %1978 = vmatpush1.msra.mxu0 0.0
      %1979 = vmatprep.subr.mxu0 0.0
      %1980 = vmatpush1.msra.mxu0 0.0
      %1981 = vmatprep.mubr.f32.mxu0 0.0
      %v1982 = vand.u32 %v1742, 4294901760
      %v1983 = vsub.f32 %v1742, %v1982
      %1984 = vmatmul.mubr.f32.gmra.mrb[0].mxu0 %v1983
      %v1985 = vpop.f32.mrb[0].mxu0
      %v1986 = vadd.f32 %v1906, %v1985
      %v1987 = vpop.f32.mrb[0].mxu0
      %1988 = vmatprep.mubr.f32.mxu0 0.0
      %v1989 = vand.u32 %v1745, 4294901760
      %v1990 = vsub.f32 %v1745, %v1989
      %1991 = vmatmul.mubr.f32.gmra.mrb[0].mxu0 %v1990
      %v1992 = vpop.f32.mrb[0].mxu0
      %v1993 = vadd.f32 %v1912, %v1992
      %v1994 = vpop.f32.mrb[0].mxu0
      %1995 = vdwg.mxu0
      %1996 = vmatprep.subr.mxu0 0.0
      %v1997 = vand.u32 %v1740, 4294901760
      %1998 = vmatpush1.msra.mxu0 %v1997
      %1999 = vmatprep.subr.mxu0 0.0
      %2000 = vmatpush1.msra.mxu0 0.0
      %2001 = vmatprep.subr.mxu0 0.0
      %2002 = vmatpush1.msra.mxu0 0.0
      %2003 = vmatprep.subr.mxu0 0.0
      %2004 = vmatpush1.msra.mxu0 0.0
      %2005 = vmatprep.subr.mxu0 0.0
      %2006 = vmatpush1.msra.mxu0 0.0
      %2007 = vmatprep.subr.mxu0 0.0
      %2008 = vmatpush1.msra.mxu0 0.0
      %2009 = vmatprep.subr.mxu0 0.0
      %2010 = vmatpush1.msra.mxu0 0.0
      %2011 = vmatprep.subr.mxu0 0.0
      %2012 = vmatpush1.msra.mxu0 0.0
      %2013 = vmatprep.subr.mxu0 0.0
      %2014 = vmatpush1.msra.mxu0 0.0
      %2015 = vmatprep.subr.mxu0 0.0
      %2016 = vmatpush1.msra.mxu0 0.0
      %2017 = vmatprep.subr.mxu0 0.0
      %2018 = vmatpush1.msra.mxu0 0.0
      %2019 = vmatprep.subr.mxu0 0.0
      %2020 = vmatpush1.msra.mxu0 0.0
      %2021 = vmatprep.subr.mxu0 0.0
      %2022 = vmatpush1.msra.mxu0 0.0
      %2023 = vmatprep.subr.mxu0 0.0
      %2024 = vmatpush1.msra.mxu0 0.0
      %2025 = vmatprep.subr.mxu0 0.0
      %2026 = vmatpush1.msra.mxu0 0.0
      %2027 = vmatprep.subr.mxu0 0.0
      %2028 = vmatpush1.msra.mxu0 0.0
      %2029 = vmatprep.subr.mxu0 0.0
      %2030 = vmatpush1.msra.mxu0 0.0
      %2031 = vmatprep.subr.mxu0 0.0
      %2032 = vmatpush1.msra.mxu0 0.0
      %2033 = vmatprep.subr.mxu0 0.0
      %2034 = vmatpush1.msra.mxu0 0.0
      %2035 = vmatprep.subr.mxu0 0.0
      %2036 = vmatpush1.msra.mxu0 0.0
      %2037 = vmatprep.subr.mxu0 0.0
      %2038 = vmatpush1.msra.mxu0 0.0
      %2039 = vmatprep.subr.mxu0 0.0
      %2040 = vmatpush1.msra.mxu0 0.0
      %2041 = vmatprep.subr.mxu0 0.0
      %2042 = vmatpush1.msra.mxu0 0.0
      %2043 = vmatprep.subr.mxu0 0.0
      %2044 = vmatpush1.msra.mxu0 0.0
      %2045 = vmatprep.subr.mxu0 0.0
      %2046 = vmatpush1.msra.mxu0 0.0
      %2047 = vmatprep.subr.mxu0 0.0
      %2048 = vmatpush1.msra.mxu0 0.0
      %2049 = vmatprep.subr.mxu0 0.0
      %2050 = vmatpush1.msra.mxu0 0.0
      %2051 = vmatprep.subr.mxu0 0.0
      %2052 = vmatpush1.msra.mxu0 0.0
      %2053 = vmatprep.subr.mxu0 0.0
      %2054 = vmatpush1.msra.mxu0 0.0
      %2055 = vmatprep.subr.mxu0 0.0
      %2056 = vmatpush1.msra.mxu0 0.0
      %2057 = vmatprep.subr.mxu0 0.0
      %2058 = vmatpush1.msra.mxu0 0.0
      %2059 = vmatprep.subr.mxu0 0.0
      %2060 = vmatpush1.msra.mxu0 0.0
      %2061 = vmatprep.mubr.f32.mxu0 0.0
      %v2062 = vand.u32 %v1742, 4294901760
      %v2063 = vsub.f32 %v1742, %v2062
      %v2064 = vand.u32 %v2063, 4294901760
      %2065 = vmatmul.mubr.f32.gmra.mrb[0].mxu0 %v2064
      %v2066 = vpop.f32.mrb[0].mxu0
      %v2067 = vadd.f32 %v1986, %v2066
      %v2068 = vpop.f32.mrb[0].mxu0
      %2069 = vmatprep.mubr.f32.mxu0 0.0
      %v2070 = vand.u32 %v1745, 4294901760
      %v2071 = vsub.f32 %v1745, %v2070
      %v2072 = vand.u32 %v2071, 4294901760
      %2073 = vmatmul.mubr.f32.gmra.mrb[0].mxu0 %v2072
      %v2074 = vpop.f32.mrb[0].mxu0
      %v2075 = vadd.f32 %v1993, %v2074
      %v2076 = vpop.f32.mrb[0].mxu0
      %2077 = vdwg.mxu0
      %2078 = vmatprep.subr.mxu0 0.0
      %v2079 = vand.u32 %v1740, 4294901760
      %v2080 = vsub.f32 %v1740, %v2079
      %v2081 = vand.u32 %v2080, 4294901760
      %2082 = vmatpush1.msra.mxu0 %v2081
      %2083 = vmatprep.subr.mxu0 0.0
      %2084 = vmatpush1.msra.mxu0 0.0
      %2085 = vmatprep.subr.mxu0 0.0
      %2086 = vmatpush1.msra.mxu0 0.0
      %2087 = vmatprep.subr.mxu0 0.0
      %2088 = vmatpush1.msra.mxu0 0.0
      %2089 = vmatprep.subr.mxu0 0.0
      %2090 = vmatpush1.msra.mxu0 0.0
      %2091 = vmatprep.subr.mxu0 0.0
      %2092 = vmatpush1.msra.mxu0 0.0
      %2093 = vmatprep.subr.mxu0 0.0
      %2094 = vmatpush1.msra.mxu0 0.0
      %2095 = vmatprep.subr.mxu0 0.0
      %2096 = vmatpush1.msra.mxu0 0.0
      %2097 = vmatprep.subr.mxu0 0.0
      %2098 = vmatpush1.msra.mxu0 0.0
      %2099 = vmatprep.subr.mxu0 0.0
      %2100 = vmatpush1.msra.mxu0 0.0
      %2101 = vmatprep.subr.mxu0 0.0
      %2102 = vmatpush1.msra.mxu0 0.0
      %2103 = vmatprep.subr.mxu0 0.0
      %2104 = vmatpush1.msra.mxu0 0.0
      %2105 = vmatprep.subr.mxu0 0.0
      %2106 = vmatpush1.msra.mxu0 0.0
      %2107 = vmatprep.subr.mxu0 0.0
      %2108 = vmatpush1.msra.mxu0 0.0
      %2109 = vmatprep.subr.mxu0 0.0
      %2110 = vmatpush1.msra.mxu0 0.0
      %2111 = vmatprep.subr.mxu0 0.0
      %2112 = vmatpush1.msra.mxu0 0.0
      %2113 = vmatprep.subr.mxu0 0.0
      %2114 = vmatpush1.msra.mxu0 0.0
      %2115 = vmatprep.subr.mxu0 0.0
      %2116 = vmatpush1.msra.mxu0 0.0
      %2117 = vmatprep.subr.mxu0 0.0
      %2118 = vmatpush1.msra.mxu0 0.0
      %2119 = vmatprep.subr.mxu0 0.0
      %2120 = vmatpush1.msra.mxu0 0.0
      %2121 = vmatprep.subr.mxu0 0.0
      %2122 = vmatpush1.msra.mxu0 0.0
      %2123 = vmatprep.subr.mxu0 0.0
      %2124 = vmatpush1.msra.mxu0 0.0
      %2125 = vmatprep.subr.mxu0 0.0
      %2126 = vmatpush1.msra.mxu0 0.0
      %2127 = vmatprep.subr.mxu0 0.0
      %2128 = vmatpush1.msra.mxu0 0.0
      %2129 = vmatprep.subr.mxu0 0.0
      %2130 = vmatpush1.msra.mxu0 0.0
      %2131 = vmatprep.subr.mxu0 0.0
      %2132 = vmatpush1.msra.mxu0 0.0
      %2133 = vmatprep.subr.mxu0 0.0
      %2134 = vmatpush1.msra.mxu0 0.0
      %2135 = vmatprep.subr.mxu0 0.0
      %2136 = vmatpush1.msra.mxu0 0.0
      %2137 = vmatprep.subr.mxu0 0.0
      %2138 = vmatpush1.msra.mxu0 0.0
      %2139 = vmatprep.subr.mxu0 0.0
      %2140 = vmatpush1.msra.mxu0 0.0
      %2141 = vmatprep.subr.mxu0 0.0
      %2142 = vmatpush1.msra.mxu0 0.0
      %2143 = vmatprep.subr.mxu0 0.0
      %2144 = vmatpush1.msra.mxu0 0.0
      %2145 = vmatprep.mubr.f32.mxu0 0.0
      %v2146 = vand.u32 %v1742, 4294901760
      %2147 = vmatmul.mubr.f32.gmra.mrb[0].mxu0 %v2146
      %v2148 = vpop.f32.mrb[0].mxu0
      %v2149 = vadd.f32 %v2067, %v2148
      %v2150 = vpop.f32.mrb[0].mxu0
      %2151 = vmatprep.mubr.f32.mxu0 0.0
      %v2152 = vand.u32 %v1745, 4294901760
      %2153 = vmatmul.mubr.f32.gmra.mrb[0].mxu0 %v2152
      %v2154 = vpop.f32.mrb[0].mxu0
      %v2155 = vadd.f32 %v2075, %v2154
      %v2156 = vpop.f32.mrb[0].mxu0
      %2157 = vdwg.mxu0
      %2158 = vmatprep.subr.mxu0 0.0
      %v2159 = vand.u32 %v1740, 4294901760
      %2160 = vmatpush1.msra.mxu0 %v2159
      %2161 = vmatprep.subr.mxu0 0.0
      %2162 = vmatpush1.msra.mxu0 0.0
      %2163 = vmatprep.subr.mxu0 0.0
      %2164 = vmatpush1.msra.mxu0 0.0
      %2165 = vmatprep.subr.mxu0 0.0
      %2166 = vmatpush1.msra.mxu0 0.0
      %2167 = vmatprep.subr.mxu0 0.0
      %2168 = vmatpush1.msra.mxu0 0.0
      %2169 = vmatprep.subr.mxu0 0.0
      %2170 = vmatpush1.msra.mxu0 0.0
      %2171 = vmatprep.subr.mxu0 0.0
      %2172 = vmatpush1.msra.mxu0 0.0
      %2173 = vmatprep.subr.mxu0 0.0
      %2174 = vmatpush1.msra.mxu0 0.0
      %2175 = vmatprep.subr.mxu0 0.0
      %2176 = vmatpush1.msra.mxu0 0.0
      %2177 = vmatprep.subr.mxu0 0.0
      %2178 = vmatpush1.msra.mxu0 0.0
      %2179 = vmatprep.subr.mxu0 0.0
      %2180 = vmatpush1.msra.mxu0 0.0
      %2181 = vmatprep.subr.mxu0 0.0
      %2182 = vmatpush1.msra.mxu0 0.0
      %2183 = vmatprep.subr.mxu0 0.0
      %2184 = vmatpush1.msra.mxu0 0.0
      %2185 = vmatprep.subr.mxu0 0.0
      %2186 = vmatpush1.msra.mxu0 0.0
      %2187 = vmatprep.subr.mxu0 0.0
      %2188 = vmatpush1.msra.mxu0 0.0
      %2189 = vmatprep.subr.mxu0 0.0
      %2190 = vmatpush1.msra.mxu0 0.0
      %2191 = vmatprep.subr.mxu0 0.0
      %2192 = vmatpush1.msra.mxu0 0.0
      %2193 = vmatprep.subr.mxu0 0.0
      %2194 = vmatpush1.msra.mxu0 0.0
      %2195 = vmatprep.subr.mxu0 0.0
      %2196 = vmatpush1.msra.mxu0 0.0
      %2197 = vmatprep.subr.mxu0 0.0
      %2198 = vmatpush1.msra.mxu0 0.0
      %2199 = vmatprep.subr.mxu0 0.0
      %2200 = vmatpush1.msra.mxu0 0.0
      %2201 = vmatprep.subr.mxu0 0.0
      %2202 = vmatpush1.msra.mxu0 0.0
      %2203 = vmatprep.subr.mxu0 0.0
      %2204 = vmatpush1.msra.mxu0 0.0
      %2205 = vmatprep.subr.mxu0 0.0
      %2206 = vmatpush1.msra.mxu0 0.0
      %2207 = vmatprep.subr.mxu0 0.0
      %2208 = vmatpush1.msra.mxu0 0.0
      %2209 = vmatprep.subr.mxu0 0.0
      %2210 = vmatpush1.msra.mxu0 0.0
      %2211 = vmatprep.subr.mxu0 0.0
      %2212 = vmatpush1.msra.mxu0 0.0
      %2213 = vmatprep.subr.mxu0 0.0
      %2214 = vmatpush1.msra.mxu0 0.0
      %2215 = vmatprep.subr.mxu0 0.0
      %2216 = vmatpush1.msra.mxu0 0.0
      %2217 = vmatprep.subr.mxu0 0.0
      %2218 = vmatpush1.msra.mxu0 0.0
      %2219 = vmatprep.subr.mxu0 0.0
      %2220 = vmatpush1.msra.mxu0 0.0
      %2221 = vmatprep.subr.mxu0 0.0
      %2222 = vmatpush1.msra.mxu0 0.0
      %2223 = vmatprep.mubr.f32.mxu0 0.0
      %v2224 = vand.u32 %v1742, 4294901760
      %2225 = vmatmul.mubr.f32.gmra.mrb[0].mxu0 %v2224
      %v2226 = vpop.f32.mrb[0].mxu0
      %v2227 = vadd.f32 %v2149, %v2226
      %v2228 = vpop.f32.mrb[0].mxu0
      %2229 = vmatprep.mubr.f32.mxu0 0.0
      %v2230 = vand.u32 %v1745, 4294901760
      %2231 = vmatmul.mubr.f32.gmra.mrb[0].mxu0 %v2230
      %v2232 = vpop.f32.mrb[0].mxu0
      %v2233 = vadd.f32 %v2155, %v2232
      %v2234 = vpop.f32.mrb[0].mxu0
      %2235 = vdwg.mxu0
      %2236 = vxpose.xlu0.b32.start [1/16] %v2227, 128
      %2237 = vxpose.xlu0.b32.cont [2/16] 0.0, 128
      %2238 = vxpose.xlu0.b32.cont [3/16] 0.0, 128
      %2239 = vxpose.xlu0.b32.cont [4/16] 0.0, 128
      %2240 = vxpose.xlu0.b32.cont [5/16] 0.0, 128
      %2241 = vxpose.xlu0.b32.cont [6/16] 0.0, 128
      %2242 = vxpose.xlu0.b32.cont [7/16] 0.0, 128
      %2243 = vxpose.xlu0.b32.cont [8/16] 0.0, 128
      %2244 = vxpose.xlu0.b32.cont [9/16] 0.0, 128
      %2245 = vxpose.xlu0.b32.cont [10/16] 0.0, 128
      %2246 = vxpose.xlu0.b32.cont [11/16] 0.0, 128
      %2247 = vxpose.xlu0.b32.cont [12/16] 0.0, 128
      %2248 = vxpose.xlu0.b32.cont [13/16] 0.0, 128
      %2249 = vxpose.xlu0.b32.cont [14/16] 0.0, 128
      %2250 = vxpose.xlu0.b32.cont [15/16] 0.0, 128
      %2251 = vxpose.xlu0.b32.end [16/16] 0.0, 128
      %v2252 = vpop.trf.xlu0
      %v2253 = vpop.trf.xlu0
      %v2254 = vpop.trf.xlu0
      %v2255 = vpop.trf.xlu0
      %v2256 = vpop.trf.xlu0
      %v2257 = vpop.trf.xlu0
      %v2258 = vpop.trf.xlu0
      %v2259 = vpop.trf.xlu0
      %v2260 = vpop.trf.xlu0
      %v2261 = vpop.trf.xlu0
      %v2262 = vpop.trf.xlu0
      %v2263 = vpop.trf.xlu0
      %v2264 = vpop.trf.xlu0
      %v2265 = vpop.trf.xlu0
      %v2266 = vpop.trf.xlu0
      %v2267 = vpop.trf.xlu0
      %2268 = vxpose.xlu0.b32.start [1/16] %v2233, 128
      %2269 = vxpose.xlu0.b32.cont [2/16] 0.0, 128
      %2270 = vxpose.xlu0.b32.cont [3/16] 0.0, 128
      %2271 = vxpose.xlu0.b32.cont [4/16] 0.0, 128
      %2272 = vxpose.xlu0.b32.cont [5/16] 0.0, 128
      %2273 = vxpose.xlu0.b32.cont [6/16] 0.0, 128
      %2274 = vxpose.xlu0.b32.cont [7/16] 0.0, 128
      %2275 = vxpose.xlu0.b32.cont [8/16] 0.0, 128
      %2276 = vxpose.xlu0.b32.cont [9/16] 0.0, 128
      %2277 = vxpose.xlu0.b32.cont [10/16] 0.0, 128
      %2278 = vxpose.xlu0.b32.cont [11/16] 0.0, 128
      %2279 = vxpose.xlu0.b32.cont [12/16] 0.0, 128
      %2280 = vxpose.xlu0.b32.cont [13/16] 0.0, 128
      %2281 = vxpose.xlu0.b32.cont [14/16] 0.0, 128
      %2282 = vxpose.xlu0.b32.cont [15/16] 0.0, 128
      %2283 = vxpose.xlu0.b32.end [16/16] 0.0, 128
      %v2284 = vpop.trf.xlu0
      %v2285 = vpop.trf.xlu0
      %v2286 = vpop.trf.xlu0
      %v2287 = vpop.trf.xlu0
      %v2288 = vpop.trf.xlu0
      %v2289 = vpop.trf.xlu0
      %v2290 = vpop.trf.xlu0
      %v2291 = vpop.trf.xlu0
      %v2292 = vpop.trf.xlu0
      %v2293 = vpop.trf.xlu0
      %v2294 = vpop.trf.xlu0
      %v2295 = vpop.trf.xlu0
      %v2296 = vpop.trf.xlu0
      %v2297 = vpop.trf.xlu0
      %v2298 = vpop.trf.xlu0
      %v2299 = vpop.trf.xlu0
      %2300 = vst.msk [vmem:[#allocation2 + $0x1] sm:$0xff] %vm941, %v2252
      %2301 = vst.msk [vmem:[#allocation2 + $0x9] sm:$0xff] %vm941, %v2253
      %2302 = vst.msk [vmem:[#allocation2 + $0x19] sm:$0xff] %vm941, %v2284
      %2303 = vst.msk [vmem:[#allocation2 + $0x21] sm:$0xff] %vm941, %v2285
      %2304 = vst.msk [vmem:[#allocation2 + $0x31] sm:$0xff] %vm941, %v2284
      %2305 = vst.msk [vmem:[#allocation2 + $0x39] sm:$0xff] %vm941, %v2285
      %v2306 = vld [vmem:[%s715] sm:$0xff]
      %v2307 = vld [vmem:[%s715 + $0x8] sm:$0xff]
      %2308 = vxpose.xlu0.b32.start [1/16] %v2306, 128
      %2309 = vxpose.xlu0.b32.cont [2/16] 0.0, 128
      %2310 = vxpose.xlu0.b32.cont [3/16] 0.0, 128
      %2311 = vxpose.xlu0.b32.cont [4/16] 0.0, 128
      %2312 = vxpose.xlu0.b32.cont [5/16] 0.0, 128
      %2313 = vxpose.xlu0.b32.cont [6/16] 0.0, 128
      %2314 = vxpose.xlu0.b32.cont [7/16] 0.0, 128
      %2315 = vxpose.xlu0.b32.cont [8/16] 0.0, 128
      %2316 = vxpose.xlu0.b32.cont [9/16] 0.0, 128
      %2317 = vxpose.xlu0.b32.cont [10/16] 0.0, 128
      %2318 = vxpose.xlu0.b32.cont [11/16] 0.0, 128
      %2319 = vxpose.xlu0.b32.cont [12/16] 0.0, 128
      %2320 = vxpose.xlu0.b32.cont [13/16] 0.0, 128
      %2321 = vxpose.xlu0.b32.cont [14/16] 0.0, 128
      %2322 = vxpose.xlu0.b32.cont [15/16] 0.0, 128
      %2323 = vxpose.xlu0.b32.end [16/16] 0.0, 128
      %v2324 = vpop.trf.xlu0
      %v2325 = vpop.trf.xlu0
      %v2326 = vpop.trf.xlu0
      %v2327 = vpop.trf.xlu0
      %v2328 = vpop.trf.xlu0
      %v2329 = vpop.trf.xlu0
      %v2330 = vpop.trf.xlu0
      %v2331 = vpop.trf.xlu0
      %v2332 = vpop.trf.xlu0
      %v2333 = vpop.trf.xlu0
      %v2334 = vpop.trf.xlu0
      %v2335 = vpop.trf.xlu0
      %v2336 = vpop.trf.xlu0
      %v2337 = vpop.trf.xlu0
      %v2338 = vpop.trf.xlu0
      %v2339 = vpop.trf.xlu0
      %2340 = vxpose.xlu0.b32.start [1/16] %v2307, 128
      %2341 = vxpose.xlu0.b32.cont [2/16] 0.0, 128
      %2342 = vxpose.xlu0.b32.cont [3/16] 0.0, 128
      %2343 = vxpose.xlu0.b32.cont [4/16] 0.0, 128
      %2344 = vxpose.xlu0.b32.cont [5/16] 0.0, 128
      %2345 = vxpose.xlu0.b32.cont [6/16] 0.0, 128
      %2346 = vxpose.xlu0.b32.cont [7/16] 0.0, 128
      %2347 = vxpose.xlu0.b32.cont [8/16] 0.0, 128
      %2348 = vxpose.xlu0.b32.cont [9/16] 0.0, 128
      %2349 = vxpose.xlu0.b32.cont [10/16] 0.0, 128
      %2350 = vxpose.xlu0.b32.cont [11/16] 0.0, 128
      %2351 = vxpose.xlu0.b32.cont [12/16] 0.0, 128
      %2352 = vxpose.xlu0.b32.cont [13/16] 0.0, 128
      %2353 = vxpose.xlu0.b32.cont [14/16] 0.0, 128
      %2354 = vxpose.xlu0.b32.cont [15/16] 0.0, 128
      %2355 = vxpose.xlu0.b32.end [16/16] 0.0, 128
      %v2356 = vpop.trf.xlu0
      %v2357 = vpop.trf.xlu0
      %v2358 = vpop.trf.xlu0
      %v2359 = vpop.trf.xlu0
      %v2360 = vpop.trf.xlu0
      %v2361 = vpop.trf.xlu0
      %v2362 = vpop.trf.xlu0
      %v2363 = vpop.trf.xlu0
      %v2364 = vpop.trf.xlu0
      %v2365 = vpop.trf.xlu0
      %v2366 = vpop.trf.xlu0
      %v2367 = vpop.trf.xlu0
      %v2368 = vpop.trf.xlu0
      %v2369 = vpop.trf.xlu0
      %v2370 = vpop.trf.xlu0
      %v2371 = vpop.trf.xlu0
      %v2372 = vld [vmem:[%s6] sm:$0xff]
      %v2374 = vsel %vm941, %v2324, 0
      %v2377 = vsel %vm941, %v2356, 0
      %2379 = vmatprep.subr.mxu0 0.0
      %v2380 = vand.u32 %v2372, 4294901760
      %2381 = vmatpush1.msra.mxu0 %v2380
      %2382 = vmatprep.subr.mxu0 0.0
      %2383 = vmatpush1.msra.mxu0 0.0
      %2384 = vmatprep.subr.mxu0 0.0
      %2385 = vmatpush1.msra.mxu0 0.0
      %2386 = vmatprep.subr.mxu0 0.0
      %2387 = vmatpush1.msra.mxu0 0.0
      %2388 = vmatprep.subr.mxu0 0.0
      %2389 = vmatpush1.msra.mxu0 0.0
      %2390 = vmatprep.subr.mxu0 0.0
      %2391 = vmatpush1.msra.mxu0 0.0
      %2392 = vmatprep.subr.mxu0 0.0
      %2393 = vmatpush1.msra.mxu0 0.0
      %2394 = vmatprep.subr.mxu0 0.0
      %2395 = vmatpush1.msra.mxu0 0.0
      %2396 = vmatprep.subr.mxu0 0.0
      %2397 = vmatpush1.msra.mxu0 0.0
      %2398 = vmatprep.subr.mxu0 0.0
      %2399 = vmatpush1.msra.mxu0 0.0
      %2400 = vmatprep.subr.mxu0 0.0
      %2401 = vmatpush1.msra.mxu0 0.0
      %2402 = vmatprep.subr.mxu0 0.0
      %2403 = vmatpush1.msra.mxu0 0.0
      %2404 = vmatprep.subr.mxu0 0.0
      %2405 = vmatpush1.msra.mxu0 0.0
      %2406 = vmatprep.subr.mxu0 0.0
      %2407 = vmatpush1.msra.mxu0 0.0
      %2408 = vmatprep.subr.mxu0 0.0
      %2409 = vmatpush1.msra.mxu0 0.0
      %2410 = vmatprep.subr.mxu0 0.0
      %2411 = vmatpush1.msra.mxu0 0.0
      %2412 = vmatprep.subr.mxu0 0.0
      %2413 = vmatpush1.msra.mxu0 0.0
      %2414 = vmatprep.subr.mxu0 0.0
      %2415 = vmatpush1.msra.mxu0 0.0
      %2416 = vmatprep.subr.mxu0 0.0
      %2417 = vmatpush1.msra.mxu0 0.0
      %2418 = vmatprep.subr.mxu0 0.0
      %2419 = vmatpush1.msra.mxu0 0.0
      %2420 = vmatprep.subr.mxu0 0.0
      %2421 = vmatpush1.msra.mxu0 0.0
      %2422 = vmatprep.subr.mxu0 0.0
      %2423 = vmatpush1.msra.mxu0 0.0
      %2424 = vmatprep.subr.mxu0 0.0
      %2425 = vmatpush1.msra.mxu0 0.0
      %2426 = vmatprep.subr.mxu0 0.0
      %2427 = vmatpush1.msra.mxu0 0.0
      %2428 = vmatprep.subr.mxu0 0.0
      %2429 = vmatpush1.msra.mxu0 0.0
      %2430 = vmatprep.subr.mxu0 0.0
      %2431 = vmatpush1.msra.mxu0 0.0
      %2432 = vmatprep.subr.mxu0 0.0
      %2433 = vmatpush1.msra.mxu0 0.0
      %2434 = vmatprep.subr.mxu0 0.0
      %2435 = vmatpush1.msra.mxu0 0.0
      %2436 = vmatprep.subr.mxu0 0.0
      %2437 = vmatpush1.msra.mxu0 0.0
      %2438 = vmatprep.subr.mxu0 0.0
      %2439 = vmatpush1.msra.mxu0 0.0
      %2440 = vmatprep.subr.mxu0 0.0
      %2441 = vmatpush1.msra.mxu0 0.0
      %2442 = vmatprep.subr.mxu0 0.0
      %2443 = vmatpush1.msra.mxu0 0.0
      %2444 = vmatprep.mubr.f32.mxu0 0.0
      %v2445 = vand.u32 %v2374, 4294901760
      %v2446 = vsub.f32 %v2374, %v2445
      %v2447 = vand.u32 %v2446, 4294901760
      %v2448 = vsub.f32 %v2446, %v2447
      %v2449 = vand.u32 %v2448, 4294901760
      %2450 = vmatmul.mubr.f32.gmra.mrb[0].mxu0 %v2449
      %v2451 = vpop.f32.mrb[0].mxu0
      %v2452 = vadd.f32 0.0, %v2451
      %v2453 = vpop.f32.mrb[0].mxu0
      %2454 = vmatprep.mubr.f32.mxu0 0.0
      %v2455 = vand.u32 %v2377, 4294901760
      %v2456 = vsub.f32 %v2377, %v2455
      %v2457 = vand.u32 %v2456, 4294901760
      %v2458 = vsub.f32 %v2456, %v2457
      %v2459 = vand.u32 %v2458, 4294901760
      %2460 = vmatmul.mubr.f32.gmra.mrb[0].mxu0 %v2459
      %v2461 = vpop.f32.mrb[0].mxu0
      %v2462 = vadd.f32 0.0, %v2461
      %v2463 = vpop.f32.mrb[0].mxu0
      %2464 = vdwg.mxu0
      %2465 = vmatprep.subr.mxu0 0.0
      %v2466 = vand.u32 %v2372, 4294901760
      %v2467 = vsub.f32 %v2372, %v2466
      %v2468 = vand.u32 %v2467, 4294901760
      %v2469 = vsub.f32 %v2467, %v2468
      %v2470 = vand.u32 %v2469, 4294901760
      %2471 = vmatpush1.msra.mxu0 %v2470
      %2472 = vmatprep.subr.mxu0 0.0
      %2473 = vmatpush1.msra.mxu0 0.0
      %2474 = vmatprep.subr.mxu0 0.0
      %2475 = vmatpush1.msra.mxu0 0.0
      %2476 = vmatprep.subr.mxu0 0.0
      %2477 = vmatpush1.msra.mxu0 0.0
      %2478 = vmatprep.subr.mxu0 0.0
      %2479 = vmatpush1.msra.mxu0 0.0
      %2480 = vmatprep.subr.mxu0 0.0
      %2481 = vmatpush1.msra.mxu0 0.0
      %2482 = vmatprep.subr.mxu0 0.0
      %2483 = vmatpush1.msra.mxu0 0.0
      %2484 = vmatprep.subr.mxu0 0.0
      %2485 = vmatpush1.msra.mxu0 0.0
      %2486 = vmatprep.subr.mxu0 0.0
      %2487 = vmatpush1.msra.mxu0 0.0
      %2488 = vmatprep.subr.mxu0 0.0
      %2489 = vmatpush1.msra.mxu0 0.0
      %2490 = vmatprep.subr.mxu0 0.0
      %2491 = vmatpush1.msra.mxu0 0.0
      %2492 = vmatprep.subr.mxu0 0.0
      %2493 = vmatpush1.msra.mxu0 0.0
      %2494 = vmatprep.subr.mxu0 0.0
      %2495 = vmatpush1.msra.mxu0 0.0
      %2496 = vmatprep.subr.mxu0 0.0
      %2497 = vmatpush1.msra.mxu0 0.0
      %2498 = vmatprep.subr.mxu0 0.0
      %2499 = vmatpush1.msra.mxu0 0.0
      %2500 = vmatprep.subr.mxu0 0.0
      %2501 = vmatpush1.msra.mxu0 0.0
      %2502 = vmatprep.subr.mxu0 0.0
      %2503 = vmatpush1.msra.mxu0 0.0
      %2504 = vmatprep.subr.mxu0 0.0
      %2505 = vmatpush1.msra.mxu0 0.0
      %2506 = vmatprep.subr.mxu0 0.0
      %2507 = vmatpush1.msra.mxu0 0.0
      %2508 = vmatprep.subr.mxu0 0.0
      %2509 = vmatpush1.msra.mxu0 0.0
      %2510 = vmatprep.subr.mxu0 0.0
      %2511 = vmatpush1.msra.mxu0 0.0
      %2512 = vmatprep.subr.mxu0 0.0
      %2513 = vmatpush1.msra.mxu0 0.0
      %2514 = vmatprep.subr.mxu0 0.0
      %2515 = vmatpush1.msra.mxu0 0.0
      %2516 = vmatprep.subr.mxu0 0.0
      %2517 = vmatpush1.msra.mxu0 0.0
      %2518 = vmatprep.subr.mxu0 0.0
      %2519 = vmatpush1.msra.mxu0 0.0
      %2520 = vmatprep.subr.mxu0 0.0
      %2521 = vmatpush1.msra.mxu0 0.0
      %2522 = vmatprep.subr.mxu0 0.0
      %2523 = vmatpush1.msra.mxu0 0.0
      %2524 = vmatprep.subr.mxu0 0.0
      %2525 = vmatpush1.msra.mxu0 0.0
      %2526 = vmatprep.subr.mxu0 0.0
      %2527 = vmatpush1.msra.mxu0 0.0
      %2528 = vmatprep.subr.mxu0 0.0
      %2529 = vmatpush1.msra.mxu0 0.0
      %2530 = vmatprep.subr.mxu0 0.0
      %2531 = vmatpush1.msra.mxu0 0.0
      %2532 = vmatprep.subr.mxu0 0.0
      %2533 = vmatpush1.msra.mxu0 0.0
      %2534 = vmatprep.mubr.f32.mxu0 0.0
      %v2535 = vand.u32 %v2374, 4294901760
      %2536 = vmatmul.mubr.f32.gmra.mrb[0].mxu0 %v2535
      %v2537 = vpop.f32.mrb[0].mxu0
      %v2538 = vadd.f32 %v2452, %v2537
      %v2539 = vpop.f32.mrb[0].mxu0
      %2540 = vmatprep.mubr.f32.mxu0 0.0
      %v2541 = vand.u32 %v2377, 4294901760
      %2542 = vmatmul.mubr.f32.gmra.mrb[0].mxu0 %v2541
      %v2543 = vpop.f32.mrb[0].mxu0
      %v2544 = vadd.f32 %v2462, %v2543
      %v2545 = vpop.f32.mrb[0].mxu0
      %2546 = vdwg.mxu0
      %2547 = vmatprep.subr.mxu0 0.0
      %v2548 = vand.u32 %v2372, 4294901760
      %v2549 = vsub.f32 %v2372, %v2548
      %2550 = vmatpush1.msra.mxu0 %v2549
      %2551 = vmatprep.subr.mxu0 0.0
      %2552 = vmatpush1.msra.mxu0 0.0
      %2553 = vmatprep.subr.mxu0 0.0
      %2554 = vmatpush1.msra.mxu0 0.0
      %2555 = vmatprep.subr.mxu0 0.0
      %2556 = vmatpush1.msra.mxu0 0.0
      %2557 = vmatprep.subr.mxu0 0.0
      %2558 = vmatpush1.msra.mxu0 0.0
      %2559 = vmatprep.subr.mxu0 0.0
      %2560 = vmatpush1.msra.mxu0 0.0
      %2561 = vmatprep.subr.mxu0 0.0
      %2562 = vmatpush1.msra.mxu0 0.0
      %2563 = vmatprep.subr.mxu0 0.0
      %2564 = vmatpush1.msra.mxu0 0.0
      %2565 = vmatprep.subr.mxu0 0.0
      %2566 = vmatpush1.msra.mxu0 0.0
      %2567 = vmatprep.subr.mxu0 0.0
      %2568 = vmatpush1.msra.mxu0 0.0
      %2569 = vmatprep.subr.mxu0 0.0
      %2570 = vmatpush1.msra.mxu0 0.0
      %2571 = vmatprep.subr.mxu0 0.0
      %2572 = vmatpush1.msra.mxu0 0.0
      %2573 = vmatprep.subr.mxu0 0.0
      %2574 = vmatpush1.msra.mxu0 0.0
      %2575 = vmatprep.subr.mxu0 0.0
      %2576 = vmatpush1.msra.mxu0 0.0
      %2577 = vmatprep.subr.mxu0 0.0
      %2578 = vmatpush1.msra.mxu0 0.0
      %2579 = vmatprep.subr.mxu0 0.0
      %2580 = vmatpush1.msra.mxu0 0.0
      %2581 = vmatprep.subr.mxu0 0.0
      %2582 = vmatpush1.msra.mxu0 0.0
      %2583 = vmatprep.subr.mxu0 0.0
      %2584 = vmatpush1.msra.mxu0 0.0
      %2585 = vmatprep.subr.mxu0 0.0
      %2586 = vmatpush1.msra.mxu0 0.0
      %2587 = vmatprep.subr.mxu0 0.0
      %2588 = vmatpush1.msra.mxu0 0.0
      %2589 = vmatprep.subr.mxu0 0.0
      %2590 = vmatpush1.msra.mxu0 0.0
      %2591 = vmatprep.subr.mxu0 0.0
      %2592 = vmatpush1.msra.mxu0 0.0
      %2593 = vmatprep.subr.mxu0 0.0
      %2594 = vmatpush1.msra.mxu0 0.0
      %2595 = vmatprep.subr.mxu0 0.0
      %2596 = vmatpush1.msra.mxu0 0.0
      %2597 = vmatprep.subr.mxu0 0.0
      %2598 = vmatpush1.msra.mxu0 0.0
      %2599 = vmatprep.subr.mxu0 0.0
      %2600 = vmatpush1.msra.mxu0 0.0
      %2601 = vmatprep.subr.mxu0 0.0
      %2602 = vmatpush1.msra.mxu0 0.0
      %2603 = vmatprep.subr.mxu0 0.0
      %2604 = vmatpush1.msra.mxu0 0.0
      %2605 = vmatprep.subr.mxu0 0.0
      %2606 = vmatpush1.msra.mxu0 0.0
      %2607 = vmatprep.subr.mxu0 0.0
      %2608 = vmatpush1.msra.mxu0 0.0
      %2609 = vmatprep.subr.mxu0 0.0
      %2610 = vmatpush1.msra.mxu0 0.0
      %2611 = vmatprep.subr.mxu0 0.0
      %2612 = vmatpush1.msra.mxu0 0.0
      %2613 = vmatprep.mubr.f32.mxu0 0.0
      %v2614 = vand.u32 %v2374, 4294901760
      %v2615 = vsub.f32 %v2374, %v2614
      %2616 = vmatmul.mubr.f32.gmra.mrb[0].mxu0 %v2615
      %v2617 = vpop.f32.mrb[0].mxu0
      %v2618 = vadd.f32 %v2538, %v2617
      %v2619 = vpop.f32.mrb[0].mxu0
      %2620 = vmatprep.mubr.f32.mxu0 0.0
      %v2621 = vand.u32 %v2377, 4294901760
      %v2622 = vsub.f32 %v2377, %v2621
      %2623 = vmatmul.mubr.f32.gmra.mrb[0].mxu0 %v2622
      %v2624 = vpop.f32.mrb[0].mxu0
      %v2625 = vadd.f32 %v2544, %v2624
      %v2626 = vpop.f32.mrb[0].mxu0
      %2627 = vdwg.mxu0
      %2628 = vmatprep.subr.mxu0 0.0
      %v2629 = vand.u32 %v2372, 4294901760
      %2630 = vmatpush1.msra.mxu0 %v2629
      %2631 = vmatprep.subr.mxu0 0.0
      %2632 = vmatpush1.msra.mxu0 0.0
      %2633 = vmatprep.subr.mxu0 0.0
      %2634 = vmatpush1.msra.mxu0 0.0
      %2635 = vmatprep.subr.mxu0 0.0
      %2636 = vmatpush1.msra.mxu0 0.0
      %2637 = vmatprep.subr.mxu0 0.0
      %2638 = vmatpush1.msra.mxu0 0.0
      %2639 = vmatprep.subr.mxu0 0.0
      %2640 = vmatpush1.msra.mxu0 0.0
      %2641 = vmatprep.subr.mxu0 0.0
      %2642 = vmatpush1.msra.mxu0 0.0
      %2643 = vmatprep.subr.mxu0 0.0
      %2644 = vmatpush1.msra.mxu0 0.0
      %2645 = vmatprep.subr.mxu0 0.0
      %2646 = vmatpush1.msra.mxu0 0.0
      %2647 = vmatprep.subr.mxu0 0.0
      %2648 = vmatpush1.msra.mxu0 0.0
      %2649 = vmatprep.subr.mxu0 0.0
      %2650 = vmatpush1.msra.mxu0 0.0
      %2651 = vmatprep.subr.mxu0 0.0
      %2652 = vmatpush1.msra.mxu0 0.0
      %2653 = vmatprep.subr.mxu0 0.0
      %2654 = vmatpush1.msra.mxu0 0.0
      %2655 = vmatprep.subr.mxu0 0.0
      %2656 = vmatpush1.msra.mxu0 0.0
      %2657 = vmatprep.subr.mxu0 0.0
      %2658 = vmatpush1.msra.mxu0 0.0
      %2659 = vmatprep.subr.mxu0 0.0
      %2660 = vmatpush1.msra.mxu0 0.0
      %2661 = vmatprep.subr.mxu0 0.0
      %2662 = vmatpush1.msra.mxu0 0.0
      %2663 = vmatprep.subr.mxu0 0.0
      %2664 = vmatpush1.msra.mxu0 0.0
      %2665 = vmatprep.subr.mxu0 0.0
      %2666 = vmatpush1.msra.mxu0 0.0
      %2667 = vmatprep.subr.mxu0 0.0
      %2668 = vmatpush1.msra.mxu0 0.0
      %2669 = vmatprep.subr.mxu0 0.0
      %2670 = vmatpush1.msra.mxu0 0.0
      %2671 = vmatprep.subr.mxu0 0.0
      %2672 = vmatpush1.msra.mxu0 0.0
      %2673 = vmatprep.subr.mxu0 0.0
      %2674 = vmatpush1.msra.mxu0 0.0
      %2675 = vmatprep.subr.mxu0 0.0
      %2676 = vmatpush1.msra.mxu0 0.0
      %2677 = vmatprep.subr.mxu0 0.0
      %2678 = vmatpush1.msra.mxu0 0.0
      %2679 = vmatprep.subr.mxu0 0.0
      %2680 = vmatpush1.msra.mxu0 0.0
      %2681 = vmatprep.subr.mxu0 0.0
      %2682 = vmatpush1.msra.mxu0 0.0
      %2683 = vmatprep.subr.mxu0 0.0
      %2684 = vmatpush1.msra.mxu0 0.0
      %2685 = vmatprep.subr.mxu0 0.0
      %2686 = vmatpush1.msra.mxu0 0.0
      %2687 = vmatprep.subr.mxu0 0.0
      %2688 = vmatpush1.msra.mxu0 0.0
      %2689 = vmatprep.subr.mxu0 0.0
      %2690 = vmatpush1.msra.mxu0 0.0
      %2691 = vmatprep.subr.mxu0 0.0
      %2692 = vmatpush1.msra.mxu0 0.0
      %2693 = vmatprep.mubr.f32.mxu0 0.0
      %v2694 = vand.u32 %v2374, 4294901760
      %v2695 = vsub.f32 %v2374, %v2694
      %v2696 = vand.u32 %v2695, 4294901760
      %2697 = vmatmul.mubr.f32.gmra.mrb[0].mxu0 %v2696
      %v2698 = vpop.f32.mrb[0].mxu0
      %v2699 = vadd.f32 %v2618, %v2698
      %v2700 = vpop.f32.mrb[0].mxu0
      %2701 = vmatprep.mubr.f32.mxu0 0.0
      %v2702 = vand.u32 %v2377, 4294901760
      %v2703 = vsub.f32 %v2377, %v2702
      %v2704 = vand.u32 %v2703, 4294901760
      %2705 = vmatmul.mubr.f32.gmra.mrb[0].mxu0 %v2704
      %v2706 = vpop.f32.mrb[0].mxu0
      %v2707 = vadd.f32 %v2625, %v2706
      %v2708 = vpop.f32.mrb[0].mxu0
      %2709 = vdwg.mxu0
      %2710 = vmatprep.subr.mxu0 0.0
      %v2711 = vand.u32 %v2372, 4294901760
      %v2712 = vsub.f32 %v2372, %v2711
      %v2713 = vand.u32 %v2712, 4294901760
      %2714 = vmatpush1.msra.mxu0 %v2713
      %2715 = vmatprep.subr.mxu0 0.0
      %2716 = vmatpush1.msra.mxu0 0.0
      %2717 = vmatprep.subr.mxu0 0.0
      %2718 = vmatpush1.msra.mxu0 0.0
      %2719 = vmatprep.subr.mxu0 0.0
      %2720 = vmatpush1.msra.mxu0 0.0
      %2721 = vmatprep.subr.mxu0 0.0
      %2722 = vmatpush1.msra.mxu0 0.0
      %2723 = vmatprep.subr.mxu0 0.0
      %2724 = vmatpush1.msra.mxu0 0.0
      %2725 = vmatprep.subr.mxu0 0.0
      %2726 = vmatpush1.msra.mxu0 0.0
      %2727 = vmatprep.subr.mxu0 0.0
      %2728 = vmatpush1.msra.mxu0 0.0
      %2729 = vmatprep.subr.mxu0 0.0
      %2730 = vmatpush1.msra.mxu0 0.0
      %2731 = vmatprep.subr.mxu0 0.0
      %2732 = vmatpush1.msra.mxu0 0.0
      %2733 = vmatprep.subr.mxu0 0.0
      %2734 = vmatpush1.msra.mxu0 0.0
      %2735 = vmatprep.subr.mxu0 0.0
      %2736 = vmatpush1.msra.mxu0 0.0
      %2737 = vmatprep.subr.mxu0 0.0
      %2738 = vmatpush1.msra.mxu0 0.0
      %2739 = vmatprep.subr.mxu0 0.0
      %2740 = vmatpush1.msra.mxu0 0.0
      %2741 = vmatprep.subr.mxu0 0.0
      %2742 = vmatpush1.msra.mxu0 0.0
      %2743 = vmatprep.subr.mxu0 0.0
      %2744 = vmatpush1.msra.mxu0 0.0
      %2745 = vmatprep.subr.mxu0 0.0
      %2746 = vmatpush1.msra.mxu0 0.0
      %2747 = vmatprep.subr.mxu0 0.0
      %2748 = vmatpush1.msra.mxu0 0.0
      %2749 = vmatprep.subr.mxu0 0.0
      %2750 = vmatpush1.msra.mxu0 0.0
      %2751 = vmatprep.subr.mxu0 0.0
      %2752 = vmatpush1.msra.mxu0 0.0
      %2753 = vmatprep.subr.mxu0 0.0
      %2754 = vmatpush1.msra.mxu0 0.0
      %2755 = vmatprep.subr.mxu0 0.0
      %2756 = vmatpush1.msra.mxu0 0.0
      %2757 = vmatprep.subr.mxu0 0.0
      %2758 = vmatpush1.msra.mxu0 0.0
      %2759 = vmatprep.subr.mxu0 0.0
      %2760 = vmatpush1.msra.mxu0 0.0
      %2761 = vmatprep.subr.mxu0 0.0
      %2762 = vmatpush1.msra.mxu0 0.0
      %2763 = vmatprep.subr.mxu0 0.0
      %2764 = vmatpush1.msra.mxu0 0.0
      %2765 = vmatprep.subr.mxu0 0.0
      %2766 = vmatpush1.msra.mxu0 0.0
      %2767 = vmatprep.subr.mxu0 0.0
      %2768 = vmatpush1.msra.mxu0 0.0
      %2769 = vmatprep.subr.mxu0 0.0
      %2770 = vmatpush1.msra.mxu0 0.0
      %2771 = vmatprep.subr.mxu0 0.0
      %2772 = vmatpush1.msra.mxu0 0.0
      %2773 = vmatprep.subr.mxu0 0.0
      %2774 = vmatpush1.msra.mxu0 0.0
      %2775 = vmatprep.subr.mxu0 0.0
      %2776 = vmatpush1.msra.mxu0 0.0
      %2777 = vmatprep.mubr.f32.mxu0 0.0
      %v2778 = vand.u32 %v2374, 4294901760
      %2779 = vmatmul.mubr.f32.gmra.mrb[0].mxu0 %v2778
      %v2780 = vpop.f32.mrb[0].mxu0
      %v2781 = vadd.f32 %v2699, %v2780
      %v2782 = vpop.f32.mrb[0].mxu0
      %2783 = vmatprep.mubr.f32.mxu0 0.0
      %v2784 = vand.u32 %v2377, 4294901760
      %2785 = vmatmul.mubr.f32.gmra.mrb[0].mxu0 %v2784
      %v2786 = vpop.f32.mrb[0].mxu0
      %v2787 = vadd.f32 %v2707, %v2786
      %v2788 = vpop.f32.mrb[0].mxu0
      %2789 = vdwg.mxu0
      %2790 = vmatprep.subr.mxu0 0.0
      %v2791 = vand.u32 %v2372, 4294901760
      %2792 = vmatpush1.msra.mxu0 %v2791
      %2793 = vmatprep.subr.mxu0 0.0
      %2794 = vmatpush1.msra.mxu0 0.0
      %2795 = vmatprep.subr.mxu0 0.0
      %2796 = vmatpush1.msra.mxu0 0.0
      %2797 = vmatprep.subr.mxu0 0.0
      %2798 = vmatpush1.msra.mxu0 0.0
      %2799 = vmatprep.subr.mxu0 0.0
      %2800 = vmatpush1.msra.mxu0 0.0
      %2801 = vmatprep.subr.mxu0 0.0
      %2802 = vmatpush1.msra.mxu0 0.0
      %2803 = vmatprep.subr.mxu0 0.0
      %2804 = vmatpush1.msra.mxu0 0.0
      %2805 = vmatprep.subr.mxu0 0.0
      %2806 = vmatpush1.msra.mxu0 0.0
      %2807 = vmatprep.subr.mxu0 0.0
      %2808 = vmatpush1.msra.mxu0 0.0
      %2809 = vmatprep.subr.mxu0 0.0
      %2810 = vmatpush1.msra.mxu0 0.0
      %2811 = vmatprep.subr.mxu0 0.0
      %2812 = vmatpush1.msra.mxu0 0.0
      %2813 = vmatprep.subr.mxu0 0.0
      %2814 = vmatpush1.msra.mxu0 0.0
      %2815 = vmatprep.subr.mxu0 0.0
      %2816 = vmatpush1.msra.mxu0 0.0
      %2817 = vmatprep.subr.mxu0 0.0
      %2818 = vmatpush1.msra.mxu0 0.0
      %2819 = vmatprep.subr.mxu0 0.0
      %2820 = vmatpush1.msra.mxu0 0.0
      %2821 = vmatprep.subr.mxu0 0.0
      %2822 = vmatpush1.msra.mxu0 0.0
      %2823 = vmatprep.subr.mxu0 0.0
      %2824 = vmatpush1.msra.mxu0 0.0
      %2825 = vmatprep.subr.mxu0 0.0
      %2826 = vmatpush1.msra.mxu0 0.0
      %2827 = vmatprep.subr.mxu0 0.0
      %2828 = vmatpush1.msra.mxu0 0.0
      %2829 = vmatprep.subr.mxu0 0.0
      %2830 = vmatpush1.msra.mxu0 0.0
      %2831 = vmatprep.subr.mxu0 0.0
      %2832 = vmatpush1.msra.mxu0 0.0
      %2833 = vmatprep.subr.mxu0 0.0
      %2834 = vmatpush1.msra.mxu0 0.0
      %2835 = vmatprep.subr.mxu0 0.0
      %2836 = vmatpush1.msra.mxu0 0.0
      %2837 = vmatprep.subr.mxu0 0.0
      %2838 = vmatpush1.msra.mxu0 0.0
      %2839 = vmatprep.subr.mxu0 0.0
      %2840 = vmatpush1.msra.mxu0 0.0
      %2841 = vmatprep.subr.mxu0 0.0
      %2842 = vmatpush1.msra.mxu0 0.0
      %2843 = vmatprep.subr.mxu0 0.0
      %2844 = vmatpush1.msra.mxu0 0.0
      %2845 = vmatprep.subr.mxu0 0.0
      %2846 = vmatpush1.msra.mxu0 0.0
      %2847 = vmatprep.subr.mxu0 0.0
      %2848 = vmatpush1.msra.mxu0 0.0
      %2849 = vmatprep.subr.mxu0 0.0
      %2850 = vmatpush1.msra.mxu0 0.0
      %2851 = vmatprep.subr.mxu0 0.0
      %2852 = vmatpush1.msra.mxu0 0.0
      %2853 = vmatprep.subr.mxu0 0.0
      %2854 = vmatpush1.msra.mxu0 0.0
      %2855 = vmatprep.mubr.f32.mxu0 0.0
      %v2856 = vand.u32 %v2374, 4294901760
      %2857 = vmatmul.mubr.f32.gmra.mrb[0].mxu0 %v2856
      %v2858 = vpop.f32.mrb[0].mxu0
      %v2859 = vadd.f32 %v2781, %v2858
      %v2860 = vpop.f32.mrb[0].mxu0
      %2861 = vmatprep.mubr.f32.mxu0 0.0
      %v2862 = vand.u32 %v2377, 4294901760
      %2863 = vmatmul.mubr.f32.gmra.mrb[0].mxu0 %v2862
      %v2864 = vpop.f32.mrb[0].mxu0
      %v2865 = vadd.f32 %v2787, %v2864
      %v2866 = vpop.f32.mrb[0].mxu0
      %2867 = vdwg.mxu0
      %2868 = vxpose.xlu0.b32.start [1/16] %v2859, 128
      %2869 = vxpose.xlu0.b32.cont [2/16] 0.0, 128
      %2870 = vxpose.xlu0.b32.cont [3/16] 0.0, 128
      %2871 = vxpose.xlu0.b32.cont [4/16] 0.0, 128
      %2872 = vxpose.xlu0.b32.cont [5/16] 0.0, 128
      %2873 = vxpose.xlu0.b32.cont [6/16] 0.0, 128
      %2874 = vxpose.xlu0.b32.cont [7/16] 0.0, 128
      %2875 = vxpose.xlu0.b32.cont [8/16] 0.0, 128
      %2876 = vxpose.xlu0.b32.cont [9/16] 0.0, 128
      %2877 = vxpose.xlu0.b32.cont [10/16] 0.0, 128
      %2878 = vxpose.xlu0.b32.cont [11/16] 0.0, 128
      %2879 = vxpose.xlu0.b32.cont [12/16] 0.0, 128
      %2880 = vxpose.xlu0.b32.cont [13/16] 0.0, 128
      %2881 = vxpose.xlu0.b32.cont [14/16] 0.0, 128
      %2882 = vxpose.xlu0.b32.cont [15/16] 0.0, 128
      %2883 = vxpose.xlu0.b32.end [16/16] 0.0, 128
      %v2884 = vpop.trf.xlu0
      %v2885 = vpop.trf.xlu0
      %v2886 = vpop.trf.xlu0
      %v2887 = vpop.trf.xlu0
      %v2888 = vpop.trf.xlu0
      %v2889 = vpop.trf.xlu0
      %v2890 = vpop.trf.xlu0
      %v2891 = vpop.trf.xlu0
      %v2892 = vpop.trf.xlu0
      %v2893 = vpop.trf.xlu0
      %v2894 = vpop.trf.xlu0
      %v2895 = vpop.trf.xlu0
      %v2896 = vpop.trf.xlu0
      %v2897 = vpop.trf.xlu0
      %v2898 = vpop.trf.xlu0
      %v2899 = vpop.trf.xlu0
      %2900 = vxpose.xlu0.b32.start [1/16] %v2865, 128
      %2901 = vxpose.xlu0.b32.cont [2/16] 0.0, 128
      %2902 = vxpose.xlu0.b32.cont [3/16] 0.0, 128
      %2903 = vxpose.xlu0.b32.cont [4/16] 0.0, 128
      %2904 = vxpose.xlu0.b32.cont [5/16] 0.0, 128
      %2905 = vxpose.xlu0.b32.cont [6/16] 0.0, 128
      %2906 = vxpose.xlu0.b32.cont [7/16] 0.0, 128
      %2907 = vxpose.xlu0.b32.cont [8/16] 0.0, 128
      %2908 = vxpose.xlu0.b32.cont [9/16] 0.0, 128
      %2909 = vxpose.xlu0.b32.cont [10/16] 0.0, 128
      %2910 = vxpose.xlu0.b32.cont [11/16] 0.0, 128
      %2911 = vxpose.xlu0.b32.cont [12/16] 0.0, 128
      %2912 = vxpose.xlu0.b32.cont [13/16] 0.0, 128
      %2913 = vxpose.xlu0.b32.cont [14/16] 0.0, 128
      %2914 = vxpose.xlu0.b32.cont [15/16] 0.0, 128
      %2915 = vxpose.xlu0.b32.end [16/16] 0.0, 128
      %v2916 = vpop.trf.xlu0
      %v2917 = vpop.trf.xlu0
      %v2918 = vpop.trf.xlu0
      %v2919 = vpop.trf.xlu0
      %v2920 = vpop.trf.xlu0
      %v2921 = vpop.trf.xlu0
      %v2922 = vpop.trf.xlu0
      %v2923 = vpop.trf.xlu0
      %v2924 = vpop.trf.xlu0
      %v2925 = vpop.trf.xlu0
      %v2926 = vpop.trf.xlu0
      %v2927 = vpop.trf.xlu0
      %v2928 = vpop.trf.xlu0
      %v2929 = vpop.trf.xlu0
      %v2930 = vpop.trf.xlu0
      %v2931 = vpop.trf.xlu0
      %s2932 = scalar_lea.vmem [#allocation2], 264
      %2933 = vst.msk [vmem:[%s2932 + $0x1] sm:$0xff] %vm941, %v2884
      %2934 = vst.msk [vmem:[%s2932 + $0x9] sm:$0xff] %vm941, %v2885
      %2935 = vst.msk [vmem:[%s2932 + $0x19] sm:$0xff] %vm941, %v2884
      %2936 = vst.msk [vmem:[%s2932 + $0x21] sm:$0xff] %vm941, %v2885
      %2937 = vst.msk [vmem:[%s2932 + $0x31] sm:$0xff] %vm941, %v2916
      %2938 = vst.msk [vmem:[%s2932 + $0x39] sm:$0xff] %vm941, %v2917
      %p2939 = scmp.eq.s32.totalorder %s29, 0
      // Predicated region
      $region73: #{unet_up_forward.1} parent=71 // pred_check
        %p2940 = pneg %p2939
      $region74: #{unet_up_forward.1} parent=71 // pred_check_branch
        %2942 = sbr.rel (%p2940) target = $region76
      $region75: #{unet_up_forward.1} parent=71 // pred_region
        %2943 = vst.msk [vmem:[#allocation2] sm:$0xff] %vm941, 0.0
        %2944 = vst.msk [vmem:[#allocation2 + $0x8] sm:$0xff] %vm941, 0.0
        %vm2945 = vcmask 58368
        %2946 = vst.msk [vmem:[#allocation2 + $0x10] sm:$0x3] %vm2945, 0.0
        %2947 = vst.msk [vmem:[#allocation2 + $0x18] sm:$0xff] %vm941, 0.0
        %2948 = vst.msk [vmem:[#allocation2 + $0x20] sm:$0xff] %vm941, 0.0
        %2949 = vst.msk [vmem:[#allocation2 + $0x28] sm:$0x3] %vm2945, 0.0
        %2950 = vst.msk [vmem:[#allocation2 + $0x30] sm:$0xff] %vm941, 0.0
        %2951 = vst.msk [vmem:[#allocation2 + $0x38] sm:$0xff] %vm941, 0.0
        %2952 = vst.msk [vmem:[#allocation2 + $0x40] sm:$0x3] %vm2945, 0.0
      $region76: #{unet_up_forward.1} parent=71 // pred_fallthru
        _
      %p2953 = scmp.eq.s32.totalorder %s29, 3
      // Predicated region
      $region77: #{unet_up_forward.1} parent=71 // pred_check
        %p2954 = pneg %p2953
      $region78: #{unet_up_forward.1} parent=71 // pred_check_branch
        %2956 = sbr.rel (%p2954) target = $region80
      $region79: #{unet_up_forward.1} parent=71 // pred_region
        %2957 = vst.msk [vmem:[%s2932] sm:$0xff] %vm941, 0.0
        %2958 = vst.msk [vmem:[%s2932 + $0x8] sm:$0xff] %vm941, 0.0
        %vm2959 = vcmask 58368
        %2960 = vst.msk [vmem:[%s2932 + $0x10] sm:$0x3] %vm2959, 0.0
        %2961 = vst.msk [vmem:[%s2932 + $0x18] sm:$0xff] %vm941, 0.0
        %2962 = vst.msk [vmem:[%s2932 + $0x20] sm:$0xff] %vm941, 0.0
        %2963 = vst.msk [vmem:[%s2932 + $0x28] sm:$0x3] %vm2959, 0.0
        %2964 = vst.msk [vmem:[%s2932 + $0x30] sm:$0xff] %vm941, 0.0
        %2965 = vst.msk [vmem:[%s2932 + $0x38] sm:$0xff] %vm941, 0.0
        %2966 = vst.msk [vmem:[%s2932 + $0x40] sm:$0x3] %vm2959, 0.0
      $region80: #{unet_up_forward.1} parent=71 // pred_fallthru
        _
      %2967 = vst.msk [vmem:[#allocation3] sm:$0x1] %vm779, 0.0
      %2968 = vst.msk [vmem:[#allocation3 + $0x18] sm:$0x1] %vm779, 0.0
      %2969 = vst.msk [vmem:[#allocation3 + $0x30] sm:$0x1] %vm779, 0.0
      %2970 = vst.msk [vmem:[#allocation3 + $0x48] sm:$0x1] %vm779, 0.0
      %2971 = vst.msk [vmem:[#allocation3 + $0x60] sm:$0x1] %vm779, 0.0
      %2972 = vst.msk [vmem:[#allocation3 + $0x78] sm:$0x1] %vm779, 0.0
      %2973 = vst.msk [vmem:[#allocation3 + $0x90] sm:$0x1] %vm779, 0.0
      %2974 = vst.msk [vmem:[#allocation3 + $0xa8] sm:$0x1] %vm779, 0.0
      %2975 = vst.msk [vmem:[#allocation3 + $0xc0] sm:$0x1] %vm779, 0.0
      %2976 = vst.msk [vmem:[#allocation3 + $0xd8] sm:$0x1] %vm779, 0.0
      %2977 = vst.msk [vmem:[#allocation3 + $0xf0] sm:$0x1] %vm779, 0.0
      %2978 = vst.msk [vmem:[#allocation3 + $0x108] sm:$0x1] %vm779, 0.0
      %2979 = vst.msk [vmem:[#allocation3 + $0x11] sm:$0x1] %vm779, 0.0
      %2980 = vst.msk [vmem:[#allocation3 + $0x29] sm:$0x1] %vm779, 0.0
      %2981 = vst.msk [vmem:[#allocation3 + $0x41] sm:$0x1] %vm779, 0.0
      %2982 = vst.msk [vmem:[#allocation3 + $0x59] sm:$0x1] %vm779, 0.0
      %2983 = vst.msk [vmem:[#allocation3 + $0x71] sm:$0x1] %vm779, 0.0
      %2984 = vst.msk [vmem:[#allocation3 + $0x89] sm:$0x1] %vm779, 0.0
      %2985 = vst.msk [vmem:[#allocation3 + $0xa1] sm:$0x1] %vm779, 0.0
      %2986 = vst.msk [vmem:[#allocation3 + $0xb9] sm:$0x1] %vm779, 0.0
      %2987 = vst.msk [vmem:[#allocation3 + $0xd1] sm:$0x1] %vm779, 0.0
      %2988 = vst.msk [vmem:[#allocation3 + $0xe9] sm:$0x1] %vm779, 0.0
      %2989 = vst.msk [vmem:[#allocation3 + $0x101] sm:$0x1] %vm779, 0.0
      %2990 = vst.msk [vmem:[#allocation3 + $0x119] sm:$0x1] %vm779, 0.0
      %v2991 = vld [vmem:[%s8] sm:$0x1]
      %v2993 = vlaneseq
      %v2994 = vshrl.u32 %v2993, 7
      %v2995 = vsub.s32 0, %v2994
      %v2996 = vrot.slane %v2991, %v2995
      %v2998 = vld [vmem:[#allocation2] sm:$0xff]
      %v2999 = vld [vmem:[#allocation2 + $0x8] sm:$0xff]
      %v3000 = vld [vmem:[#allocation2 + $0x10] sm:$0x3]
      %v3001 = vld [vmem:[#allocation2 + $0x18] sm:$0xff]
      %v3002 = vld [vmem:[#allocation2 + $0x20] sm:$0xff]
      %v3003 = vld [vmem:[#allocation2 + $0x28] sm:$0x3]
      %v3004 = vld [vmem:[#allocation2 + $0x30] sm:$0xff]
      %v3005 = vld [vmem:[#allocation2 + $0x38] sm:$0xff]
      %v3006 = vld [vmem:[#allocation2 + $0x40] sm:$0x3]
      %v3007 = vld [vmem:[#allocation2 + $0x48] sm:$0xff]
      %v3008 = vld [vmem:[#allocation2 + $0x50] sm:$0xff]
      %v3009 = vld [vmem:[#allocation2 + $0x58] sm:$0x3]
      %v3010 = vld [vmem:[#allocation2 + $0x60] sm:$0xff]
      %v3011 = vld [vmem:[#allocation2 + $0x68] sm:$0xff]
      %v3012 = vld [vmem:[#allocation2 + $0x70] sm:$0x3]
      %v3013 = vld [vmem:[#allocation2 + $0x78] sm:$0xff]
      %v3014 = vld [vmem:[#allocation2 + $0x80] sm:$0xff]
      %v3015 = vld [vmem:[#allocation2 + $0x88] sm:$0x3]
      %v3016 = vld [vmem:[#allocation2 + $0x90] sm:$0xff]
      %v3017 = vld [vmem:[#allocation2 + $0x98] sm:$0xff]
      %v3018 = vld [vmem:[#allocation2 + $0xa0] sm:$0x3]
      %v3019 = vld [vmem:[#allocation2 + $0xa8] sm:$0xff]
      %v3020 = vld [vmem:[#allocation2 + $0xb0] sm:$0xff]
      %v3021 = vld [vmem:[#allocation2 + $0xb8] sm:$0x3]
      %v3022 = vld [vmem:[#allocation2 + $0xc0] sm:$0xff]
      %v3023 = vld [vmem:[#allocation2 + $0xc8] sm:$0xff]
      %v3024 = vld [vmem:[#allocation2 + $0xd0] sm:$0x3]
      %v3025 = vld [vmem:[#allocation2 + $0xd8] sm:$0xff]
      %v3026 = vld [vmem:[#allocation2 + $0xe0] sm:$0xff]
      %v3027 = vld [vmem:[#allocation2 + $0xe8] sm:$0x3]
      %v3028 = vld [vmem:[#allocation2 + $0xf0] sm:$0xff]
      %v3029 = vld [vmem:[#allocation2 + $0xf8] sm:$0xff]
      %v3030 = vld [vmem:[#allocation2 + $0x100] sm:$0x3]
      %v3031 = vld [vmem:[#allocation2 + $0x108] sm:$0xff]
      %v3032 = vld [vmem:[#allocation2 + $0x110] sm:$0xff]
      %v3033 = vld [vmem:[#allocation2 + $0x118] sm:$0x3]
      %v3034 = vpack.c.bf16 %v2999, %v2998
      %v3035 = vpack.c.bf16 %v3002, %v3001
      %v3036 = vpack.c.bf16 %v3005, %v3004
      %v3037 = vpack.c.bf16 %v3008, %v3007
      %v3038 = vpack.c.bf16 %v3011, %v3010
      %v3039 = vpack.c.bf16 %v3014, %v3013
      %v3040 = vpack.c.bf16 %v3017, %v3016
      %v3041 = vpack.c.bf16 %v3020, %v3019
      %v3042 = vpack.c.bf16 %v3023, %v3022
      %v3043 = vpack.c.bf16 %v3026, %v3025
      %v3044 = vpack.c.bf16 %v3029, %v3028
      %v3045 = vpack.c.bf16 %v3032, %v3031
      %v3046 = vpack.c.bf16 %v3000, %v3000
      %v3047 = vpack.c.bf16 %v3003, %v3003
      %v3048 = vpack.c.bf16 %v3006, %v3006
      %v3049 = vpack.c.bf16 %v3009, %v3009
      %v3050 = vpack.c.bf16 %v3012, %v3012
      %v3051 = vpack.c.bf16 %v3015, %v3015
      %v3052 = vpack.c.bf16 %v3018, %v3018
      %v3053 = vpack.c.bf16 %v3021, %v3021
      %v3054 = vpack.c.bf16 %v3024, %v3024
      %v3055 = vpack.c.bf16 %v3027, %v3027
      %v3056 = vpack.c.bf16 %v3030, %v3030
      %v3057 = vpack.c.bf16 %v3033, %v3033
      %vm3058 = vsmask.f32 7424
      %v3060 = vshrl.u32 %v3034, 16
      %v3062 = vshll.u32 %v3034, 16
      %v3064 = vrot.slane %v3062, 1
      %v3065 = vor.u32 %v3060, %v3064
      %v3067 = vshll.u32 %v3046, 16
      %v3069 = vrot.slane %v3067, 1
      %v3070 = vsel %vm3058, %v3065, %v3069
      %v3072 = vshrl.u32 %v3035, 16
      %v3074 = vshll.u32 %v3035, 16
      %v3076 = vrot.slane %v3074, 1
      %v3077 = vor.u32 %v3072, %v3076
      %v3079 = vshll.u32 %v3047, 16
      %v3081 = vrot.slane %v3079, 1
      %v3082 = vsel %vm3058, %v3077, %v3081
      %v3084 = vshrl.u32 %v3036, 16
      %v3086 = vshll.u32 %v3036, 16
      %v3088 = vrot.slane %v3086, 1
      %v3089 = vor.u32 %v3084, %v3088
      %v3091 = vshll.u32 %v3048, 16
      %v3093 = vrot.slane %v3091, 1
      %v3094 = vsel %vm3058, %v3089, %v3093
      %v3096 = vshrl.u32 %v3037, 16
      %v3098 = vshll.u32 %v3037, 16
      %v3100 = vrot.slane %v3098, 1
      %v3101 = vor.u32 %v3096, %v3100
      %v3103 = vshll.u32 %v3049, 16
      %v3105 = vrot.slane %v3103, 1
      %v3106 = vsel %vm3058, %v3101, %v3105
      %v3108 = vshrl.u32 %v3038, 16
      %v3110 = vshll.u32 %v3038, 16
      %v3112 = vrot.slane %v3110, 1
      %v3113 = vor.u32 %v3108, %v3112
      %v3115 = vshll.u32 %v3050, 16
      %v3117 = vrot.slane %v3115, 1
      %v3118 = vsel %vm3058, %v3113, %v3117
      %v3120 = vshrl.u32 %v3039, 16
      %v3122 = vshll.u32 %v3039, 16
      %v3124 = vrot.slane %v3122, 1
      %v3125 = vor.u32 %v3120, %v3124
      %v3127 = vshll.u32 %v3051, 16
      %v3129 = vrot.slane %v3127, 1
      %v3130 = vsel %vm3058, %v3125, %v3129
      %v3132 = vshrl.u32 %v3040, 16
      %v3134 = vshll.u32 %v3040, 16
      %v3136 = vrot.slane %v3134, 1
      %v3137 = vor.u32 %v3132, %v3136
      %v3139 = vshll.u32 %v3052, 16
      %v3141 = vrot.slane %v3139, 1
      %v3142 = vsel %vm3058, %v3137, %v3141
      %v3144 = vshrl.u32 %v3041, 16
      %v3146 = vshll.u32 %v3041, 16
      %v3148 = vrot.slane %v3146, 1
      %v3149 = vor.u32 %v3144, %v3148
      %v3151 = vshll.u32 %v3053, 16
      %v3153 = vrot.slane %v3151, 1
      %v3154 = vsel %vm3058, %v3149, %v3153
      %v3156 = vshrl.u32 %v3042, 16
      %v3158 = vshll.u32 %v3042, 16
      %v3160 = vrot.slane %v3158, 1
      %v3161 = vor.u32 %v3156, %v3160
      %v3163 = vshll.u32 %v3054, 16
      %v3165 = vrot.slane %v3163, 1
      %v3166 = vsel %vm3058, %v3161, %v3165
      %v3168 = vshrl.u32 %v3043, 16
      %v3170 = vshll.u32 %v3043, 16
      %v3172 = vrot.slane %v3170, 1
      %v3173 = vor.u32 %v3168, %v3172
      %v3175 = vshll.u32 %v3055, 16
      %v3177 = vrot.slane %v3175, 1
      %v3178 = vsel %vm3058, %v3173, %v3177
      %v3180 = vshrl.u32 %v3044, 16
      %v3182 = vshll.u32 %v3044, 16
      %v3184 = vrot.slane %v3182, 1
      %v3185 = vor.u32 %v3180, %v3184
      %v3187 = vshll.u32 %v3056, 16
      %v3189 = vrot.slane %v3187, 1
      %v3190 = vsel %vm3058, %v3185, %v3189
      %v3192 = vshrl.u32 %v3045, 16
      %v3194 = vshll.u32 %v3045, 16
      %v3196 = vrot.slane %v3194, 1
      %v3197 = vor.u32 %v3192, %v3196
      %v3199 = vshll.u32 %v3057, 16
      %v3201 = vrot.slane %v3199, 1
      %v3202 = vsel %vm3058, %v3197, %v3201
      %3203 = vrot.lane.b32.xlu0 %v3070, 8
      %v3204 = vpop.permute.xlu0 %3203
      %3205 = vrot.lane.b32.xlu0 %v3082, 8
      %v3206 = vpop.permute.xlu0 %3205
      %3207 = vrot.lane.b32.xlu0 %v3094, 8
      %v3208 = vpop.permute.xlu0 %3207
      %3209 = vrot.lane.b32.xlu0 %v3106, 8
      %v3210 = vpop.permute.xlu0 %3209
      %3211 = vrot.lane.b32.xlu0 %v3118, 8
      %v3212 = vpop.permute.xlu0 %3211
      %3213 = vrot.lane.b32.xlu0 %v3130, 8
      %v3214 = vpop.permute.xlu0 %3213
      %3215 = vrot.lane.b32.xlu0 %v3142, 8
      %v3216 = vpop.permute.xlu0 %3215
      %3217 = vrot.lane.b32.xlu0 %v3154, 8
      %v3218 = vpop.permute.xlu0 %3217
      %3219 = vrot.lane.b32.xlu0 %v3166, 8
      %v3220 = vpop.permute.xlu0 %3219
      %3221 = vrot.lane.b32.xlu0 %v3178, 8
      %v3222 = vpop.permute.xlu0 %3221
      %3223 = vrot.lane.b32.xlu0 %v3190, 8
      %v3224 = vpop.permute.xlu0 %3223
      %3225 = vrot.lane.b32.xlu0 %v3202, 8
      %v3226 = vpop.permute.xlu0 %3225
      %vm3251 = vcmask 1046528
      %v3252 = vrot.slane %v3034, 1
      %v3253 = vrot.slane %v3046, 1
      %v3254 = vsel %vm3251, %v3252, %v3253
      %v3255 = vrot.slane %v3035, 1
      %v3256 = vrot.slane %v3047, 1
      %v3257 = vsel %vm3251, %v3255, %v3256
      %v3258 = vrot.slane %v3036, 1
      %v3259 = vrot.slane %v3048, 1
      %v3260 = vsel %vm3251, %v3258, %v3259
      %v3261 = vrot.slane %v3037, 1
      %v3262 = vrot.slane %v3049, 1
      %v3263 = vsel %vm3251, %v3261, %v3262
      %v3264 = vrot.slane %v3038, 1
      %v3265 = vrot.slane %v3050, 1
      %v3266 = vsel %vm3251, %v3264, %v3265
      %v3267 = vrot.slane %v3039, 1
      %v3268 = vrot.slane %v3051, 1
      %v3269 = vsel %vm3251, %v3267, %v3268
      %v3270 = vrot.slane %v3040, 1
      %v3271 = vrot.slane %v3052, 1
      %v3272 = vsel %vm3251, %v3270, %v3271
      %v3273 = vrot.slane %v3041, 1
      %v3274 = vrot.slane %v3053, 1
      %v3275 = vsel %vm3251, %v3273, %v3274
      %v3276 = vrot.slane %v3042, 1
      %v3277 = vrot.slane %v3054, 1
      %v3278 = vsel %vm3251, %v3276, %v3277
      %v3279 = vrot.slane %v3043, 1
      %v3280 = vrot.slane %v3055, 1
      %v3281 = vsel %vm3251, %v3279, %v3280
      %v3282 = vrot.slane %v3044, 1
      %v3283 = vrot.slane %v3056, 1
      %v3284 = vsel %vm3251, %v3282, %v3283
      %v3285 = vrot.slane %v3045, 1
      %v3286 = vrot.slane %v3057, 1
      %v3287 = vsel %vm3251, %v3285, %v3286
      %3288 = vrot.lane.b32.xlu0 %v3254, 16
      %v3289 = vpop.permute.xlu0 %3288
      %3290 = vrot.lane.b32.xlu0 %v3257, 16
      %v3291 = vpop.permute.xlu0 %3290
      %3292 = vrot.lane.b32.xlu0 %v3260, 16
      %v3293 = vpop.permute.xlu0 %3292
      %3294 = vrot.lane.b32.xlu0 %v3263, 16
      %v3295 = vpop.permute.xlu0 %3294
      %3296 = vrot.lane.b32.xlu0 %v3266, 16
      %v3297 = vpop.permute.xlu0 %3296
      %3298 = vrot.lane.b32.xlu0 %v3269, 16
      %v3299 = vpop.permute.xlu0 %3298
      %3300 = vrot.lane.b32.xlu0 %v3272, 16
      %v3301 = vpop.permute.xlu0 %3300
      %3302 = vrot.lane.b32.xlu0 %v3275, 16
      %v3303 = vpop.permute.xlu0 %3302
      %3304 = vrot.lane.b32.xlu0 %v3278, 16
      %v3305 = vpop.permute.xlu0 %3304
      %3306 = vrot.lane.b32.xlu0 %v3281, 16
      %v3307 = vpop.permute.xlu0 %3306
      %3308 = vrot.lane.b32.xlu0 %v3284, 16
      %v3309 = vpop.permute.xlu0 %3308
      %3310 = vrot.lane.b32.xlu0 %v3287, 16
      %v3311 = vpop.permute.xlu0 %3310
      %v3313 = vsel %vm941, %v3034, %v3204
      %v3315 = vsel %vm941, %v3035, %v3206
      %v3317 = vsel %vm941, %v3036, %v3208
      %v3319 = vsel %vm941, %v3037, %v3210
      %v3321 = vsel %vm941, %v3038, %v3212
      %v3323 = vsel %vm941, %v3039, %v3214
      %v3325 = vsel %vm941, %v3040, %v3216
      %v3327 = vsel %vm941, %v3041, %v3218
      %v3329 = vsel %vm941, %v3042, %v3220
      %v3331 = vsel %vm941, %v3043, %v3222
      %v3333 = vsel %vm941, %v3044, %v3224
      %v3335 = vsel %vm941, %v3045, %v3226
      %vm3336 = vcmask 130048
      %v3338 = vsel %vm3336, %v3313, %v3289
      %v3340 = vsel %vm3336, %v3315, %v3291
      %v3342 = vsel %vm3336, %v3317, %v3293
      %v3344 = vsel %vm3336, %v3319, %v3295
      %v3346 = vsel %vm3336, %v3321, %v3297
      %v3348 = vsel %vm3336, %v3323, %v3299
      %v3350 = vsel %vm3336, %v3325, %v3301
      %v3352 = vsel %vm3336, %v3327, %v3303
      %v3354 = vsel %vm3336, %v3329, %v3305
      %v3356 = vsel %vm3336, %v3331, %v3307
      %v3358 = vsel %vm3336, %v3333, %v3309
      %v3360 = vsel %vm3336, %v3335, %v3311
      %v3361 = vld [vmem:[%s7] sm:$0xf]
      %v3362 = vld [vmem:[%s7 + $0x4] sm:$0xf]
      %v3363 = vld [vmem:[%s7 + $0x8] sm:$0xf]
      %v3367 = vunpack.c.l.b16 %v3361
      %v3368 = vunpack.c.l.b16 %v3362
      %v3369 = vunpack.c.l.b16 %v3363
      %v3370 = vpack.c.b16 %v3368, %v3367
      %v3371 = vpack.c.b16 %v3369, %v3369
      %vm3373 = vcmask 195584
      %v3374 = vsel %vm3373, %v3338, 0
      %v3376 = vsel %vm3373, %v3340, 0
      %v3378 = vsel %vm3373, %v3342, 0
      %v3380 = vsel %vm3373, %v3344, 0
      %v3382 = vsel %vm3373, %v3346, 0
      %v3384 = vsel %vm3373, %v3348, 0
      %v3386 = vsel %vm3373, %v3350, 0
      %v3388 = vsel %vm3373, %v3352, 0
      %v3390 = vsel %vm3373, %v3354, 0
      %v3392 = vsel %vm3373, %v3356, 0
      %v3394 = vsel %vm3373, %v3358, 0
      %v3396 = vsel %vm3373, %v3360, 0
      %vm3398 = vcmask 1043456
      %v3400 = vsel %vm3398, %v3371, 0
      %3402 = vmatprep.subr.bf16.mxu0 0
      %3403 = vmatpush1.bf16.msra.mxu0 %v3370
      %3404 = vmatprep.subr.bf16.mxu0 0
      %3405 = vmatpush1.bf16.msra.mxu0 %v3400
      %3406 = vmatprep.subr.bf16.mxu0 0
      %3407 = vmatpush1.bf16.msra.mxu0 0
      %3408 = vmatprep.subr.bf16.mxu0 0
      %3409 = vmatpush1.bf16.msra.mxu0 0
      %3410 = vmatprep.subr.bf16.mxu0 0
      %3411 = vmatpush1.bf16.msra.mxu0 0
      %3412 = vmatprep.subr.bf16.mxu0 0
      %3413 = vmatpush1.bf16.msra.mxu0 0
      %3414 = vmatprep.subr.bf16.mxu0 0
      %3415 = vmatpush1.bf16.msra.mxu0 0
      %3416 = vmatprep.subr.bf16.mxu0 0
      %3417 = vmatpush1.bf16.msra.mxu0 0
      %3418 = vmatprep.subr.bf16.mxu0 0
      %3419 = vmatpush1.bf16.msra.mxu0 0
      %3420 = vmatprep.subr.bf16.mxu0 0
      %3421 = vmatpush1.bf16.msra.mxu0 0
      %3422 = vmatprep.subr.bf16.mxu0 0
      %3423 = vmatpush1.bf16.msra.mxu0 0
      %3424 = vmatprep.subr.bf16.mxu0 0
      %3425 = vmatpush1.bf16.msra.mxu0 0
      %3426 = vmatprep.subr.bf16.mxu0 0
      %3427 = vmatpush1.bf16.msra.mxu0 0
      %3428 = vmatprep.subr.bf16.mxu0 0
      %3429 = vmatpush1.bf16.msra.mxu0 0
      %3430 = vmatprep.subr.bf16.mxu0 0
      %3431 = vmatpush1.bf16.msra.mxu0 0
      %3432 = vmatprep.subr.bf16.mxu0 0
      %3433 = vmatpush1.bf16.msra.mxu0 0
      %3434 = vmatprep.mubr.bf16.mxu0 0
      %3435 = vmatmul.mubr.bf16.gmra.mrb[0].mxu0 %v3374
      %v3436 = vpop.f32.mrb[0].mxu0
      %v3437 = vadd.f32 0.0, %v3436
      %v3438 = vpop.f32.mrb[0].mxu0
      %v3439 = vpop.f32.mrb[0].mxu0
      %v3440 = vadd.f32 0.0, %v3439
      %v3441 = vpop.f32.mrb[0].mxu0
      %3442 = vmatprep.mubr.bf16.mxu0 0
      %3443 = vmatmul.mubr.bf16.gmra.mrb[0].mxu0 %v3376
      %v3444 = vpop.f32.mrb[0].mxu0
      %v3445 = vadd.f32 0.0, %v3444
      %v3446 = vpop.f32.mrb[0].mxu0
      %v3447 = vpop.f32.mrb[0].mxu0
      %v3448 = vadd.f32 0.0, %v3447
      %v3449 = vpop.f32.mrb[0].mxu0
      %3450 = vmatprep.mubr.bf16.mxu0 0
      %3451 = vmatmul.mubr.bf16.gmra.mrb[0].mxu0 %v3378
      %v3452 = vpop.f32.mrb[0].mxu0
      %v3453 = vadd.f32 0.0, %v3452
      %v3454 = vpop.f32.mrb[0].mxu0
      %v3455 = vpop.f32.mrb[0].mxu0
      %v3456 = vadd.f32 0.0, %v3455
      %v3457 = vpop.f32.mrb[0].mxu0
      %3458 = vmatprep.mubr.bf16.mxu0 0
      %3459 = vmatmul.mubr.bf16.gmra.mrb[0].mxu0 %v3380
      %v3460 = vpop.f32.mrb[0].mxu0
      %v3461 = vadd.f32 0.0, %v3460
      %v3462 = vpop.f32.mrb[0].mxu0
      %v3463 = vpop.f32.mrb[0].mxu0
      %v3464 = vadd.f32 0.0, %v3463
      %v3465 = vpop.f32.mrb[0].mxu0
      %3466 = vmatprep.mubr.bf16.mxu0 0
      %3467 = vmatmul.mubr.bf16.gmra.mrb[0].mxu0 %v3382
      %v3468 = vpop.f32.mrb[0].mxu0
      %v3469 = vadd.f32 0.0, %v3468
      %v3470 = vpop.f32.mrb[0].mxu0
      %v3471 = vpop.f32.mrb[0].mxu0
      %v3472 = vadd.f32 0.0, %v3471
      %v3473 = vpop.f32.mrb[0].mxu0
      %3474 = vmatprep.mubr.bf16.mxu0 0
      %3475 = vmatmul.mubr.bf16.gmra.mrb[0].mxu0 %v3384
      %v3476 = vpop.f32.mrb[0].mxu0
      %v3477 = vadd.f32 0.0, %v3476
      %v3478 = vpop.f32.mrb[0].mxu0
      %v3479 = vpop.f32.mrb[0].mxu0
      %v3480 = vadd.f32 0.0, %v3479
      %v3481 = vpop.f32.mrb[0].mxu0
      %3482 = vmatprep.mubr.bf16.mxu0 0
      %3483 = vmatmul.mubr.bf16.gmra.mrb[0].mxu0 %v3386
      %v3484 = vpop.f32.mrb[0].mxu0
      %v3485 = vadd.f32 0.0, %v3484
      %v3486 = vpop.f32.mrb[0].mxu0
      %v3487 = vpop.f32.mrb[0].mxu0
      %v3488 = vadd.f32 0.0, %v3487
      %v3489 = vpop.f32.mrb[0].mxu0
      %3490 = vmatprep.mubr.bf16.mxu0 0
      %3491 = vmatmul.mubr.bf16.gmra.mrb[0].mxu0 %v3388
      %v3492 = vpop.f32.mrb[0].mxu0
      %v3493 = vadd.f32 0.0, %v3492
      %v3494 = vpop.f32.mrb[0].mxu0
      %v3495 = vpop.f32.mrb[0].mxu0
      %v3496 = vadd.f32 0.0, %v3495
      %v3497 = vpop.f32.mrb[0].mxu0
      %3498 = vmatprep.mubr.bf16.mxu0 0
      %3499 = vmatmul.mubr.bf16.gmra.mrb[0].mxu0 %v3390
      %v3500 = vpop.f32.mrb[0].mxu0
      %v3501 = vadd.f32 0.0, %v3500
      %v3502 = vpop.f32.mrb[0].mxu0
      %v3503 = vpop.f32.mrb[0].mxu0
      %v3504 = vadd.f32 0.0, %v3503
      %v3505 = vpop.f32.mrb[0].mxu0
      %3506 = vmatprep.mubr.bf16.mxu0 0
      %3507 = vmatmul.mubr.bf16.gmra.mrb[0].mxu0 %v3392
      %v3508 = vpop.f32.mrb[0].mxu0
      %v3509 = vadd.f32 0.0, %v3508
      %v3510 = vpop.f32.mrb[0].mxu0
      %v3511 = vpop.f32.mrb[0].mxu0
      %v3512 = vadd.f32 0.0, %v3511
      %v3513 = vpop.f32.mrb[0].mxu0
      %3514 = vmatprep.mubr.bf16.mxu0 0
      %3515 = vmatmul.mubr.bf16.gmra.mrb[0].mxu0 %v3394
      %v3516 = vpop.f32.mrb[0].mxu0
      %v3517 = vadd.f32 0.0, %v3516
      %v3518 = vpop.f32.mrb[0].mxu0
      %v3519 = vpop.f32.mrb[0].mxu0
      %v3520 = vadd.f32 0.0, %v3519
      %v3521 = vpop.f32.mrb[0].mxu0
      %3522 = vmatprep.mubr.bf16.mxu0 0
      %3523 = vmatmul.mubr.bf16.gmra.mrb[0].mxu0 %v3396
      %v3524 = vpop.f32.mrb[0].mxu0
      %v3525 = vadd.f32 0.0, %v3524
      %v3526 = vpop.f32.mrb[0].mxu0
      %v3527 = vpop.f32.mrb[0].mxu0
      %v3528 = vadd.f32 0.0, %v3527
      %v3529 = vpop.f32.mrb[0].mxu0
      %3530 = vdwg.mxu0
      %v3531 = vadd.f32 %v2996, %v3437
      %v3532 = vadd.f32 %v2996, %v3440
      %v3533 = vadd.f32 %v2996, %v3445
      %v3534 = vadd.f32 %v2996, %v3448
      %v3535 = vadd.f32 %v2996, %v3453
      %v3536 = vadd.f32 %v2996, %v3456
      %v3537 = vadd.f32 %v2996, %v3461
      %v3538 = vadd.f32 %v2996, %v3464
      %v3539 = vadd.f32 %v2996, %v3469
      %v3540 = vadd.f32 %v2996, %v3472
      %v3541 = vadd.f32 %v2996, %v3477
      %v3542 = vadd.f32 %v2996, %v3480
      %v3543 = vadd.f32 %v2996, %v3485
      %v3544 = vadd.f32 %v2996, %v3488
      %v3545 = vadd.f32 %v2996, %v3493
      %v3546 = vadd.f32 %v2996, %v3496
      %v3547 = vadd.f32 %v2996, %v3501
      %v3548 = vadd.f32 %v2996, %v3504
      %v3549 = vadd.f32 %v2996, %v3509
      %v3550 = vadd.f32 %v2996, %v3512
      %v3551 = vadd.f32 %v2996, %v3517
      %v3552 = vadd.f32 %v2996, %v3520
      %v3553 = vadd.f32 %v2996, %v3525
      %v3554 = vadd.f32 %v2996, %v3528
      %s3555 = scalar_lea.vmem [#allocation2], 24
      %v3556 = vld [vmem:[%s3555] sm:$0xff]
      %v3557 = vld [vmem:[%s3555 + $0x8] sm:$0xff]
      %v3558 = vld [vmem:[%s3555 + $0x10] sm:$0x3]
      %v3559 = vld [vmem:[%s3555 + $0x18] sm:$0xff]
      %v3560 = vld [vmem:[%s3555 + $0x20] sm:$0xff]
      %v3561 = vld [vmem:[%s3555 + $0x28] sm:$0x3]
      %v3562 = vld [vmem:[%s3555 + $0x30] sm:$0xff]
      %v3563 = vld [vmem:[%s3555 + $0x38] sm:$0xff]
      %v3564 = vld [vmem:[%s3555 + $0x40] sm:$0x3]
      %v3565 = vld [vmem:[%s3555 + $0x48] sm:$0xff]
      %v3566 = vld [vmem:[%s3555 + $0x50] sm:$0xff]
      %v3567 = vld [vmem:[%s3555 + $0x58] sm:$0x3]
      %v3568 = vld [vmem:[%s3555 + $0x60] sm:$0xff]
      %v3569 = vld [vmem:[%s3555 + $0x68] sm:$0xff]
      %v3570 = vld [vmem:[%s3555 + $0x70] sm:$0x3]
      %v3571 = vld [vmem:[%s3555 + $0x78] sm:$0xff]
      %v3572 = vld [vmem:[%s3555 + $0x80] sm:$0xff]
      %v3573 = vld [vmem:[%s3555 + $0x88] sm:$0x3]
      %v3574 = vld [vmem:[%s3555 + $0x90] sm:$0xff]
      %v3575 = vld [vmem:[%s3555 + $0x98] sm:$0xff]
      %v3576 = vld [vmem:[%s3555 + $0xa0] sm:$0x3]
      %v3577 = vld [vmem:[%s3555 + $0xa8] sm:$0xff]
      %v3578 = vld [vmem:[%s3555 + $0xb0] sm:$0xff]
      %v3579 = vld [vmem:[%s3555 + $0xb8] sm:$0x3]
      %v3580 = vld [vmem:[%s3555 + $0xc0] sm:$0xff]
      %v3581 = vld [vmem:[%s3555 + $0xc8] sm:$0xff]
      %v3582 = vld [vmem:[%s3555 + $0xd0] sm:$0x3]
      %v3583 = vld [vmem:[%s3555 + $0xd8] sm:$0xff]
      %v3584 = vld [vmem:[%s3555 + $0xe0] sm:$0xff]
      %v3585 = vld [vmem:[%s3555 + $0xe8] sm:$0x3]
      %v3586 = vld [vmem:[%s3555 + $0xf0] sm:$0xff]
      %v3587 = vld [vmem:[%s3555 + $0xf8] sm:$0xff]
      %v3588 = vld [vmem:[%s3555 + $0x100] sm:$0x3]
      %v3589 = vld [vmem:[%s3555 + $0x108] sm:$0xff]
      %v3590 = vld [vmem:[%s3555 + $0x110] sm:$0xff]
      %v3591 = vld [vmem:[%s3555 + $0x118] sm:$0x3]
      %v3592 = vpack.c.bf16 %v3557, %v3556
      %v3593 = vpack.c.bf16 %v3560, %v3559
      %v3594 = vpack.c.bf16 %v3563, %v3562
      %v3595 = vpack.c.bf16 %v3566, %v3565
      %v3596 = vpack.c.bf16 %v3569, %v3568
      %v3597 = vpack.c.bf16 %v3572, %v3571
      %v3598 = vpack.c.bf16 %v3575, %v3574
      %v3599 = vpack.c.bf16 %v3578, %v3577
      %v3600 = vpack.c.bf16 %v3581, %v3580
      %v3601 = vpack.c.bf16 %v3584, %v3583
      %v3602 = vpack.c.bf16 %v3587, %v3586
      %v3603 = vpack.c.bf16 %v3590, %v3589
      %v3604 = vpack.c.bf16 %v3558, %v3558
      %v3605 = vpack.c.bf16 %v3561, %v3561
      %v3606 = vpack.c.bf16 %v3564, %v3564
      %v3607 = vpack.c.bf16 %v3567, %v3567
      %v3608 = vpack.c.bf16 %v3570, %v3570
      %v3609 = vpack.c.bf16 %v3573, %v3573
      %v3610 = vpack.c.bf16 %v3576, %v3576
      %v3611 = vpack.c.bf16 %v3579, %v3579
      %v3612 = vpack.c.bf16 %v3582, %v3582
      %v3613 = vpack.c.bf16 %v3585, %v3585
      %v3614 = vpack.c.bf16 %v3588, %v3588
      %v3615 = vpack.c.bf16 %v3591, %v3591
      %v3617 = vshrl.u32 %v3592, 16
      %v3619 = vshll.u32 %v3592, 16
      %v3621 = vrot.slane %v3619, 1
      %v3622 = vor.u32 %v3617, %v3621
      %v3624 = vshll.u32 %v3604, 16
      %v3626 = vrot.slane %v3624, 1
      %v3627 = vsel %vm3058, %v3622, %v3626
      %v3629 = vshrl.u32 %v3593, 16
      %v3631 = vshll.u32 %v3593, 16
      %v3633 = vrot.slane %v3631, 1
      %v3634 = vor.u32 %v3629, %v3633
      %v3636 = vshll.u32 %v3605, 16
      %v3638 = vrot.slane %v3636, 1
      %v3639 = vsel %vm3058, %v3634, %v3638
      %v3641 = vshrl.u32 %v3594, 16
      %v3643 = vshll.u32 %v3594, 16
      %v3645 = vrot.slane %v3643, 1
      %v3646 = vor.u32 %v3641, %v3645
      %v3648 = vshll.u32 %v3606, 16
      %v3650 = vrot.slane %v3648, 1
      %v3651 = vsel %vm3058, %v3646, %v3650
      %v3653 = vshrl.u32 %v3595, 16
      %v3655 = vshll.u32 %v3595, 16
      %v3657 = vrot.slane %v3655, 1
      %v3658 = vor.u32 %v3653, %v3657
      %v3660 = vshll.u32 %v3607, 16
      %v3662 = vrot.slane %v3660, 1
      %v3663 = vsel %vm3058, %v3658, %v3662
      %v3665 = vshrl.u32 %v3596, 16
      %v3667 = vshll.u32 %v3596, 16
      %v3669 = vrot.slane %v3667, 1
      %v3670 = vor.u32 %v3665, %v3669
      %v3672 = vshll.u32 %v3608, 16
      %v3674 = vrot.slane %v3672, 1
      %v3675 = vsel %vm3058, %v3670, %v3674
      %v3677 = vshrl.u32 %v3597, 16
      %v3679 = vshll.u32 %v3597, 16
      %v3681 = vrot.slane %v3679, 1
      %v3682 = vor.u32 %v3677, %v3681
      %v3684 = vshll.u32 %v3609, 16
      %v3686 = vrot.slane %v3684, 1
      %v3687 = vsel %vm3058, %v3682, %v3686
      %v3689 = vshrl.u32 %v3598, 16
      %v3691 = vshll.u32 %v3598, 16
      %v3693 = vrot.slane %v3691, 1
      %v3694 = vor.u32 %v3689, %v3693
      %v3696 = vshll.u32 %v3610, 16
      %v3698 = vrot.slane %v3696, 1
      %v3699 = vsel %vm3058, %v3694, %v3698
      %v3701 = vshrl.u32 %v3599, 16
      %v3703 = vshll.u32 %v3599, 16
      %v3705 = vrot.slane %v3703, 1
      %v3706 = vor.u32 %v3701, %v3705
      %v3708 = vshll.u32 %v3611, 16
      %v3710 = vrot.slane %v3708, 1
      %v3711 = vsel %vm3058, %v3706, %v3710
      %v3713 = vshrl.u32 %v3600, 16
      %v3715 = vshll.u32 %v3600, 16
      %v3717 = vrot.slane %v3715, 1
      %v3718 = vor.u32 %v3713, %v3717
      %v3720 = vshll.u32 %v3612, 16
      %v3722 = vrot.slane %v3720, 1
      %v3723 = vsel %vm3058, %v3718, %v3722
      %v3725 = vshrl.u32 %v3601, 16
      %v3727 = vshll.u32 %v3601, 16
      %v3729 = vrot.slane %v3727, 1
      %v3730 = vor.u32 %v3725, %v3729
      %v3732 = vshll.u32 %v3613, 16
      %v3734 = vrot.slane %v3732, 1
      %v3735 = vsel %vm3058, %v3730, %v3734
      %v3737 = vshrl.u32 %v3602, 16
      %v3739 = vshll.u32 %v3602, 16
      %v3741 = vrot.slane %v3739, 1
      %v3742 = vor.u32 %v3737, %v3741
      %v3744 = vshll.u32 %v3614, 16
      %v3746 = vrot.slane %v3744, 1
      %v3747 = vsel %vm3058, %v3742, %v3746
      %v3749 = vshrl.u32 %v3603, 16
      %v3751 = vshll.u32 %v3603, 16
      %v3753 = vrot.slane %v3751, 1
      %v3754 = vor.u32 %v3749, %v3753
      %v3756 = vshll.u32 %v3615, 16
      %v3758 = vrot.slane %v3756, 1
      %v3759 = vsel %vm3058, %v3754, %v3758
      %3760 = vrot.lane.b32.xlu0 %v3627, 8
      %v3761 = vpop.permute.xlu0 %3760
      %3762 = vrot.lane.b32.xlu0 %v3639, 8
      %v3763 = vpop.permute.xlu0 %3762
      %3764 = vrot.lane.b32.xlu0 %v3651, 8
      %v3765 = vpop.permute.xlu0 %3764
      %3766 = vrot.lane.b32.xlu0 %v3663, 8
      %v3767 = vpop.permute.xlu0 %3766
      %3768 = vrot.lane.b32.xlu0 %v3675, 8
      %v3769 = vpop.permute.xlu0 %3768
      %3770 = vrot.lane.b32.xlu0 %v3687, 8
      %v3771 = vpop.permute.xlu0 %3770
      %3772 = vrot.lane.b32.xlu0 %v3699, 8
      %v3773 = vpop.permute.xlu0 %3772
      %3774 = vrot.lane.b32.xlu0 %v3711, 8
      %v3775 = vpop.permute.xlu0 %3774
      %3776 = vrot.lane.b32.xlu0 %v3723, 8
      %v3777 = vpop.permute.xlu0 %3776
      %3778 = vrot.lane.b32.xlu0 %v3735, 8
      %v3779 = vpop.permute.xlu0 %3778
      %3780 = vrot.lane.b32.xlu0 %v3747, 8
      %v3781 = vpop.permute.xlu0 %3780
      %3782 = vrot.lane.b32.xlu0 %v3759, 8
      %v3783 = vpop.permute.xlu0 %3782
      %v3808 = vrot.slane %v3592, 1
      %v3809 = vrot.slane %v3604, 1
      %v3810 = vsel %vm3251, %v3808, %v3809
      %v3811 = vrot.slane %v3593, 1
      %v3812 = vrot.slane %v3605, 1
      %v3813 = vsel %vm3251, %v3811, %v3812
      %v3814 = vrot.slane %v3594, 1
      %v3815 = vrot.slane %v3606, 1
      %v3816 = vsel %vm3251, %v3814, %v3815
      %v3817 = vrot.slane %v3595, 1
      %v3818 = vrot.slane %v3607, 1
      %v3819 = vsel %vm3251, %v3817, %v3818
      %v3820 = vrot.slane %v3596, 1
      %v3821 = vrot.slane %v3608, 1
      %v3822 = vsel %vm3251, %v3820, %v3821
      %v3823 = vrot.slane %v3597, 1
      %v3824 = vrot.slane %v3609, 1
      %v3825 = vsel %vm3251, %v3823, %v3824
      %v3826 = vrot.slane %v3598, 1
      %v3827 = vrot.slane %v3610, 1
      %v3828 = vsel %vm3251, %v3826, %v3827
      %v3829 = vrot.slane %v3599, 1
      %v3830 = vrot.slane %v3611, 1
      %v3831 = vsel %vm3251, %v3829, %v3830
      %v3832 = vrot.slane %v3600, 1
      %v3833 = vrot.slane %v3612, 1
      %v3834 = vsel %vm3251, %v3832, %v3833
      %v3835 = vrot.slane %v3601, 1
      %v3836 = vrot.slane %v3613, 1
      %v3837 = vsel %vm3251, %v3835, %v3836
      %v3838 = vrot.slane %v3602, 1
      %v3839 = vrot.slane %v3614, 1
      %v3840 = vsel %vm3251, %v3838, %v3839
      %v3841 = vrot.slane %v3603, 1
      %v3842 = vrot.slane %v3615, 1
      %v3843 = vsel %vm3251, %v3841, %v3842
      %3844 = vrot.lane.b32.xlu0 %v3810, 16
      %v3845 = vpop.permute.xlu0 %3844
      %3846 = vrot.lane.b32.xlu0 %v3813, 16
      %v3847 = vpop.permute.xlu0 %3846
      %3848 = vrot.lane.b32.xlu0 %v3816, 16
      %v3849 = vpop.permute.xlu0 %3848
      %3850 = vrot.lane.b32.xlu0 %v3819, 16
      %v3851 = vpop.permute.xlu0 %3850
      %3852 = vrot.lane.b32.xlu0 %v3822, 16
      %v3853 = vpop.permute.xlu0 %3852
      %3854 = vrot.lane.b32.xlu0 %v3825, 16
      %v3855 = vpop.permute.xlu0 %3854
      %3856 = vrot.lane.b32.xlu0 %v3828, 16
      %v3857 = vpop.permute.xlu0 %3856
      %3858 = vrot.lane.b32.xlu0 %v3831, 16
      %v3859 = vpop.permute.xlu0 %3858
      %3860 = vrot.lane.b32.xlu0 %v3834, 16
      %v3861 = vpop.permute.xlu0 %3860
      %3862 = vrot.lane.b32.xlu0 %v3837, 16
      %v3863 = vpop.permute.xlu0 %3862
      %3864 = vrot.lane.b32.xlu0 %v3840, 16
      %v3865 = vpop.permute.xlu0 %3864
      %3866 = vrot.lane.b32.xlu0 %v3843, 16
      %v3867 = vpop.permute.xlu0 %3866
      %v3869 = vsel %vm941, %v3592, %v3761
      %v3871 = vsel %vm941, %v3593, %v3763
      %v3873 = vsel %vm941, %v3594, %v3765
      %v3875 = vsel %vm941, %v3595, %v3767
      %v3877 = vsel %vm941, %v3596, %v3769
      %v3879 = vsel %vm941, %v3597, %v3771
      %v3881 = vsel %vm941, %v3598, %v3773
      %v3883 = vsel %vm941, %v3599, %v3775
      %v3885 = vsel %vm941, %v3600, %v3777
      %v3887 = vsel %vm941, %v3601, %v3779
      %v3889 = vsel %vm941, %v3602, %v3781
      %v3891 = vsel %vm941, %v3603, %v3783
      %v3893 = vsel %vm3336, %v3869, %v3845
      %v3895 = vsel %vm3336, %v3871, %v3847
      %v3897 = vsel %vm3336, %v3873, %v3849
      %v3899 = vsel %vm3336, %v3875, %v3851
      %v3901 = vsel %vm3336, %v3877, %v3853
      %v3903 = vsel %vm3336, %v3879, %v3855
      %v3905 = vsel %vm3336, %v3881, %v3857
      %v3907 = vsel %vm3336, %v3883, %v3859
      %v3909 = vsel %vm3336, %v3885, %v3861
      %v3911 = vsel %vm3336, %v3887, %v3863
      %v3913 = vsel %vm3336, %v3889, %v3865
      %v3915 = vsel %vm3336, %v3891, %v3867
      %s3916 = scalar_lea.vmem %s7, 12
      %v3917 = vld [vmem:[%s3916] sm:$0xf]
      %v3918 = vld [vmem:[%s3916 + $0x4] sm:$0xf]
      %v3919 = vld [vmem:[%s3916 + $0x8] sm:$0xf]
      %v3923 = vunpack.c.l.b16 %v3917
      %v3924 = vunpack.c.l.b16 %v3918
      %v3925 = vunpack.c.l.b16 %v3919
      %v3926 = vpack.c.b16 %v3924, %v3923
      %v3927 = vpack.c.b16 %v3925, %v3925
      %v3929 = vsel %vm3373, %v3893, 0
      %v3931 = vsel %vm3373, %v3895, 0
      %v3933 = vsel %vm3373, %v3897, 0
      %v3935 = vsel %vm3373, %v3899, 0
      %v3937 = vsel %vm3373, %v3901, 0
      %v3939 = vsel %vm3373, %v3903, 0
      %v3941 = vsel %vm3373, %v3905, 0
      %v3943 = vsel %vm3373, %v3907, 0
      %v3945 = vsel %vm3373, %v3909, 0
      %v3947 = vsel %vm3373, %v3911, 0
      %v3949 = vsel %vm3373, %v3913, 0
      %v3951 = vsel %vm3373, %v3915, 0
      %v3954 = vsel %vm3398, %v3927, 0
      %3956 = vmatprep.subr.bf16.mxu0 0
      %3957 = vmatpush1.bf16.msra.mxu0 %v3926
      %3958 = vmatprep.subr.bf16.mxu0 0
      %3959 = vmatpush1.bf16.msra.mxu0 %v3954
      %3960 = vmatprep.subr.bf16.mxu0 0
      %3961 = vmatpush1.bf16.msra.mxu0 0
      %3962 = vmatprep.subr.bf16.mxu0 0
      %3963 = vmatpush1.bf16.msra.mxu0 0
      %3964 = vmatprep.subr.bf16.mxu0 0
      %3965 = vmatpush1.bf16.msra.mxu0 0
      %3966 = vmatprep.subr.bf16.mxu0 0
      %3967 = vmatpush1.bf16.msra.mxu0 0
      %3968 = vmatprep.subr.bf16.mxu0 0
      %3969 = vmatpush1.bf16.msra.mxu0 0
      %3970 = vmatprep.subr.bf16.mxu0 0
      %3971 = vmatpush1.bf16.msra.mxu0 0
      %3972 = vmatprep.subr.bf16.mxu0 0
      %3973 = vmatpush1.bf16.msra.mxu0 0
      %3974 = vmatprep.subr.bf16.mxu0 0
      %3975 = vmatpush1.bf16.msra.mxu0 0
      %3976 = vmatprep.subr.bf16.mxu0 0
      %3977 = vmatpush1.bf16.msra.mxu0 0
      %3978 = vmatprep.subr.bf16.mxu0 0
      %3979 = vmatpush1.bf16.msra.mxu0 0
      %3980 = vmatprep.subr.bf16.mxu0 0
      %3981 = vmatpush1.bf16.msra.mxu0 0
      %3982 = vmatprep.subr.bf16.mxu0 0
      %3983 = vmatpush1.bf16.msra.mxu0 0
      %3984 = vmatprep.subr.bf16.mxu0 0
      %3985 = vmatpush1.bf16.msra.mxu0 0
      %3986 = vmatprep.subr.bf16.mxu0 0
      %3987 = vmatpush1.bf16.msra.mxu0 0
      %3988 = vmatprep.mubr.bf16.mxu0 0
      %3989 = vmatmul.mubr.bf16.gmra.mrb[0].mxu0 %v3929
      %v3990 = vpop.f32.mrb[0].mxu0
      %v3991 = vadd.f32 0.0, %v3990
      %v3992 = vpop.f32.mrb[0].mxu0
      %v3993 = vpop.f32.mrb[0].mxu0
      %v3994 = vadd.f32 0.0, %v3993
      %v3995 = vpop.f32.mrb[0].mxu0
      %3996 = vmatprep.mubr.bf16.mxu0 0
      %3997 = vmatmul.mubr.bf16.gmra.mrb[0].mxu0 %v3931
      %v3998 = vpop.f32.mrb[0].mxu0
      %v3999 = vadd.f32 0.0, %v3998
      %v4000 = vpop.f32.mrb[0].mxu0
      %v4001 = vpop.f32.mrb[0].mxu0
      %v4002 = vadd.f32 0.0, %v4001
      %v4003 = vpop.f32.mrb[0].mxu0
      %4004 = vmatprep.mubr.bf16.mxu0 0
      %4005 = vmatmul.mubr.bf16.gmra.mrb[0].mxu0 %v3933
      %v4006 = vpop.f32.mrb[0].mxu0
      %v4007 = vadd.f32 0.0, %v4006
      %v4008 = vpop.f32.mrb[0].mxu0
      %v4009 = vpop.f32.mrb[0].mxu0
      %v4010 = vadd.f32 0.0, %v4009
      %v4011 = vpop.f32.mrb[0].mxu0
      %4012 = vmatprep.mubr.bf16.mxu0 0
      %4013 = vmatmul.mubr.bf16.gmra.mrb[0].mxu0 %v3935
      %v4014 = vpop.f32.mrb[0].mxu0
      %v4015 = vadd.f32 0.0, %v4014
      %v4016 = vpop.f32.mrb[0].mxu0
      %v4017 = vpop.f32.mrb[0].mxu0
      %v4018 = vadd.f32 0.0, %v4017
      %v4019 = vpop.f32.mrb[0].mxu0
      %4020 = vmatprep.mubr.bf16.mxu0 0
      %4021 = vmatmul.mubr.bf16.gmra.mrb[0].mxu0 %v3937
      %v4022 = vpop.f32.mrb[0].mxu0
      %v4023 = vadd.f32 0.0, %v4022
      %v4024 = vpop.f32.mrb[0].mxu0
      %v4025 = vpop.f32.mrb[0].mxu0
      %v4026 = vadd.f32 0.0, %v4025
      %v4027 = vpop.f32.mrb[0].mxu0
      %4028 = vmatprep.mubr.bf16.mxu0 0
      %4029 = vmatmul.mubr.bf16.gmra.mrb[0].mxu0 %v3939
      %v4030 = vpop.f32.mrb[0].mxu0
      %v4031 = vadd.f32 0.0, %v4030
      %v4032 = vpop.f32.mrb[0].mxu0
      %v4033 = vpop.f32.mrb[0].mxu0
      %v4034 = vadd.f32 0.0, %v4033
      %v4035 = vpop.f32.mrb[0].mxu0
      %4036 = vmatprep.mubr.bf16.mxu0 0
      %4037 = vmatmul.mubr.bf16.gmra.mrb[0].mxu0 %v3941
      %v4038 = vpop.f32.mrb[0].mxu0
      %v4039 = vadd.f32 0.0, %v4038
      %v4040 = vpop.f32.mrb[0].mxu0
      %v4041 = vpop.f32.mrb[0].mxu0
      %v4042 = vadd.f32 0.0, %v4041
      %v4043 = vpop.f32.mrb[0].mxu0
      %4044 = vmatprep.mubr.bf16.mxu0 0
      %4045 = vmatmul.mubr.bf16.gmra.mrb[0].mxu0 %v3943
      %v4046 = vpop.f32.mrb[0].mxu0
      %v4047 = vadd.f32 0.0, %v4046
      %v4048 = vpop.f32.mrb[0].mxu0
      %v4049 = vpop.f32.mrb[0].mxu0
      %v4050 = vadd.f32 0.0, %v4049
      %v4051 = vpop.f32.mrb[0].mxu0
      %4052 = vmatprep.mubr.bf16.mxu0 0
      %4053 = vmatmul.mubr.bf16.gmra.mrb[0].mxu0 %v3945
      %v4054 = vpop.f32.mrb[0].mxu0
      %v4055 = vadd.f32 0.0, %v4054
      %v4056 = vpop.f32.mrb[0].mxu0
      %v4057 = vpop.f32.mrb[0].mxu0
      %v4058 = vadd.f32 0.0, %v4057
      %v4059 = vpop.f32.mrb[0].mxu0
      %4060 = vmatprep.mubr.bf16.mxu0 0
      %4061 = vmatmul.mubr.bf16.gmra.mrb[0].mxu0 %v3947
      %v4062 = vpop.f32.mrb[0].mxu0
      %v4063 = vadd.f32 0.0, %v4062
      %v4064 = vpop.f32.mrb[0].mxu0
      %v4065 = vpop.f32.mrb[0].mxu0
      %v4066 = vadd.f32 0.0, %v4065
      %v4067 = vpop.f32.mrb[0].mxu0
      %4068 = vmatprep.mubr.bf16.mxu0 0
      %4069 = vmatmul.mubr.bf16.gmra.mrb[0].mxu0 %v3949
      %v4070 = vpop.f32.mrb[0].mxu0
      %v4071 = vadd.f32 0.0, %v4070
      %v4072 = vpop.f32.mrb[0].mxu0
      %v4073 = vpop.f32.mrb[0].mxu0
      %v4074 = vadd.f32 0.0, %v4073
      %v4075 = vpop.f32.mrb[0].mxu0
      %4076 = vmatprep.mubr.bf16.mxu0 0
      %4077 = vmatmul.mubr.bf16.gmra.mrb[0].mxu0 %v3951
      %v4078 = vpop.f32.mrb[0].mxu0
      %v4079 = vadd.f32 0.0, %v4078
      %v4080 = vpop.f32.mrb[0].mxu0
      %v4081 = vpop.f32.mrb[0].mxu0
      %v4082 = vadd.f32 0.0, %v4081
      %v4083 = vpop.f32.mrb[0].mxu0
      %4084 = vdwg.mxu0
      %v4085 = vadd.f32 %v3531, %v3991
      %v4086 = vadd.f32 %v3532, %v3994
      %v4087 = vadd.f32 %v3533, %v3999
      %v4088 = vadd.f32 %v3534, %v4002
      %v4089 = vadd.f32 %v3535, %v4007
      %v4090 = vadd.f32 %v3536, %v4010
      %v4091 = vadd.f32 %v3537, %v4015
      %v4092 = vadd.f32 %v3538, %v4018
      %v4093 = vadd.f32 %v3539, %v4023
      %v4094 = vadd.f32 %v3540, %v4026
      %v4095 = vadd.f32 %v3541, %v4031
      %v4096 = vadd.f32 %v3542, %v4034
      %v4097 = vadd.f32 %v3543, %v4039
      %v4098 = vadd.f32 %v3544, %v4042
      %v4099 = vadd.f32 %v3545, %v4047
      %v4100 = vadd.f32 %v3546, %v4050
      %v4101 = vadd.f32 %v3547, %v4055
      %v4102 = vadd.f32 %v3548, %v4058
      %v4103 = vadd.f32 %v3549, %v4063
      %v4104 = vadd.f32 %v3550, %v4066
      %v4105 = vadd.f32 %v3551, %v4071
      %v4106 = vadd.f32 %v3552, %v4074
      %v4107 = vadd.f32 %v3553, %v4079
      %v4108 = vadd.f32 %v3554, %v4082
      %s4109 = scalar_lea.vmem [#allocation2], 48
      %v4110 = vld [vmem:[%s4109] sm:$0xff]
      %v4111 = vld [vmem:[%s4109 + $0x8] sm:$0xff]
      %v4112 = vld [vmem:[%s4109 + $0x10] sm:$0x3]
      %v4113 = vld [vmem:[%s4109 + $0x18] sm:$0xff]
      %v4114 = vld [vmem:[%s4109 + $0x20] sm:$0xff]
      %v4115 = vld [vmem:[%s4109 + $0x28] sm:$0x3]
      %v4116 = vld [vmem:[%s4109 + $0x30] sm:$0xff]
      %v4117 = vld [vmem:[%s4109 + $0x38] sm:$0xff]
      %v4118 = vld [vmem:[%s4109 + $0x40] sm:$0x3]
      %v4119 = vld [vmem:[%s4109 + $0x48] sm:$0xff]
      %v4120 = vld [vmem:[%s4109 + $0x50] sm:$0xff]
      %v4121 = vld [vmem:[%s4109 + $0x58] sm:$0x3]
      %v4122 = vld [vmem:[%s4109 + $0x60] sm:$0xff]
      %v4123 = vld [vmem:[%s4109 + $0x68] sm:$0xff]
      %v4124 = vld [vmem:[%s4109 + $0x70] sm:$0x3]
      %v4125 = vld [vmem:[%s4109 + $0x78] sm:$0xff]
      %v4126 = vld [vmem:[%s4109 + $0x80] sm:$0xff]
      %v4127 = vld [vmem:[%s4109 + $0x88] sm:$0x3]
      %v4128 = vld [vmem:[%s4109 + $0x90] sm:$0xff]
      %v4129 = vld [vmem:[%s4109 + $0x98] sm:$0xff]
      %v4130 = vld [vmem:[%s4109 + $0xa0] sm:$0x3]
      %v4131 = vld [vmem:[%s4109 + $0xa8] sm:$0xff]
      %v4132 = vld [vmem:[%s4109 + $0xb0] sm:$0xff]
      %v4133 = vld [vmem:[%s4109 + $0xb8] sm:$0x3]
      %v4134 = vld [vmem:[%s4109 + $0xc0] sm:$0xff]
      %v4135 = vld [vmem:[%s4109 + $0xc8] sm:$0xff]
      %v4136 = vld [vmem:[%s4109 + $0xd0] sm:$0x3]
      %v4137 = vld [vmem:[%s4109 + $0xd8] sm:$0xff]
      %v4138 = vld [vmem:[%s4109 + $0xe0] sm:$0xff]
      %v4139 = vld [vmem:[%s4109 + $0xe8] sm:$0x3]
      %v4140 = vld [vmem:[%s4109 + $0xf0] sm:$0xff]
      %v4141 = vld [vmem:[%s4109 + $0xf8] sm:$0xff]
      %v4142 = vld [vmem:[%s4109 + $0x100] sm:$0x3]
      %v4143 = vld [vmem:[%s4109 + $0x108] sm:$0xff]
      %v4144 = vld [vmem:[%s4109 + $0x110] sm:$0xff]
      %v4145 = vld [vmem:[%s4109 + $0x118] sm:$0x3]
      %v4146 = vpack.c.bf16 %v4111, %v4110
      %v4147 = vpack.c.bf16 %v4114, %v4113
      %v4148 = vpack.c.bf16 %v4117, %v4116
      %v4149 = vpack.c.bf16 %v4120, %v4119
      %v4150 = vpack.c.bf16 %v4123, %v4122
      %v4151 = vpack.c.bf16 %v4126, %v4125
      %v4152 = vpack.c.bf16 %v4129, %v4128
      %v4153 = vpack.c.bf16 %v4132, %v4131
      %v4154 = vpack.c.bf16 %v4135, %v4134
      %v4155 = vpack.c.bf16 %v4138, %v4137
      %v4156 = vpack.c.bf16 %v4141, %v4140
      %v4157 = vpack.c.bf16 %v4144, %v4143
      %v4158 = vpack.c.bf16 %v4112, %v4112
      %v4159 = vpack.c.bf16 %v4115, %v4115
      %v4160 = vpack.c.bf16 %v4118, %v4118
      %v4161 = vpack.c.bf16 %v4121, %v4121
      %v4162 = vpack.c.bf16 %v4124, %v4124
      %v4163 = vpack.c.bf16 %v4127, %v4127
      %v4164 = vpack.c.bf16 %v4130, %v4130
      %v4165 = vpack.c.bf16 %v4133, %v4133
      %v4166 = vpack.c.bf16 %v4136, %v4136
      %v4167 = vpack.c.bf16 %v4139, %v4139
      %v4168 = vpack.c.bf16 %v4142, %v4142
      %v4169 = vpack.c.bf16 %v4145, %v4145
      %v4171 = vshrl.u32 %v4146, 16
      %v4173 = vshll.u32 %v4146, 16
      %v4175 = vrot.slane %v4173, 1
      %v4176 = vor.u32 %v4171, %v4175
      %v4178 = vshll.u32 %v4158, 16
      %v4180 = vrot.slane %v4178, 1
      %v4181 = vsel %vm3058, %v4176, %v4180
      %v4183 = vshrl.u32 %v4147, 16
      %v4185 = vshll.u32 %v4147, 16
      %v4187 = vrot.slane %v4185, 1
      %v4188 = vor.u32 %v4183, %v4187
      %v4190 = vshll.u32 %v4159, 16
      %v4192 = vrot.slane %v4190, 1
      %v4193 = vsel %vm3058, %v4188, %v4192
      %v4195 = vshrl.u32 %v4148, 16
      %v4197 = vshll.u32 %v4148, 16
      %v4199 = vrot.slane %v4197, 1
      %v4200 = vor.u32 %v4195, %v4199
      %v4202 = vshll.u32 %v4160, 16
      %v4204 = vrot.slane %v4202, 1
      %v4205 = vsel %vm3058, %v4200, %v4204
      %v4207 = vshrl.u32 %v4149, 16
      %v4209 = vshll.u32 %v4149, 16
      %v4211 = vrot.slane %v4209, 1
      %v4212 = vor.u32 %v4207, %v4211
      %v4214 = vshll.u32 %v4161, 16
      %v4216 = vrot.slane %v4214, 1
      %v4217 = vsel %vm3058, %v4212, %v4216
      %v4219 = vshrl.u32 %v4150, 16
      %v4221 = vshll.u32 %v4150, 16
      %v4223 = vrot.slane %v4221, 1
      %v4224 = vor.u32 %v4219, %v4223
      %v4226 = vshll.u32 %v4162, 16
      %v4228 = vrot.slane %v4226, 1
      %v4229 = vsel %vm3058, %v4224, %v4228
      %v4231 = vshrl.u32 %v4151, 16
      %v4233 = vshll.u32 %v4151, 16
      %v4235 = vrot.slane %v4233, 1
      %v4236 = vor.u32 %v4231, %v4235
      %v4238 = vshll.u32 %v4163, 16
      %v4240 = vrot.slane %v4238, 1
      %v4241 = vsel %vm3058, %v4236, %v4240
      %v4243 = vshrl.u32 %v4152, 16
      %v4245 = vshll.u32 %v4152, 16
      %v4247 = vrot.slane %v4245, 1
      %v4248 = vor.u32 %v4243, %v4247
      %v4250 = vshll.u32 %v4164, 16
      %v4252 = vrot.slane %v4250, 1
      %v4253 = vsel %vm3058, %v4248, %v4252
      %v4255 = vshrl.u32 %v4153, 16
      %v4257 = vshll.u32 %v4153, 16
      %v4259 = vrot.slane %v4257, 1
      %v4260 = vor.u32 %v4255, %v4259
      %v4262 = vshll.u32 %v4165, 16
      %v4264 = vrot.slane %v4262, 1
      %v4265 = vsel %vm3058, %v4260, %v4264
      %v4267 = vshrl.u32 %v4154, 16
      %v4269 = vshll.u32 %v4154, 16
      %v4271 = vrot.slane %v4269, 1
      %v4272 = vor.u32 %v4267, %v4271
      %v4274 = vshll.u32 %v4166, 16
      %v4276 = vrot.slane %v4274, 1
      %v4277 = vsel %vm3058, %v4272, %v4276
      %v4279 = vshrl.u32 %v4155, 16
      %v4281 = vshll.u32 %v4155, 16
      %v4283 = vrot.slane %v4281, 1
      %v4284 = vor.u32 %v4279, %v4283
      %v4286 = vshll.u32 %v4167, 16
      %v4288 = vrot.slane %v4286, 1
      %v4289 = vsel %vm3058, %v4284, %v4288
      %v4291 = vshrl.u32 %v4156, 16
      %v4293 = vshll.u32 %v4156, 16
      %v4295 = vrot.slane %v4293, 1
      %v4296 = vor.u32 %v4291, %v4295
      %v4298 = vshll.u32 %v4168, 16
      %v4300 = vrot.slane %v4298, 1
      %v4301 = vsel %vm3058, %v4296, %v4300
      %v4303 = vshrl.u32 %v4157, 16
      %v4305 = vshll.u32 %v4157, 16
      %v4307 = vrot.slane %v4305, 1
      %v4308 = vor.u32 %v4303, %v4307
      %v4310 = vshll.u32 %v4169, 16
      %v4312 = vrot.slane %v4310, 1
      %v4313 = vsel %vm3058, %v4308, %v4312
      %4314 = vrot.lane.b32.xlu0 %v4181, 8
      %v4315 = vpop.permute.xlu0 %4314
      %4316 = vrot.lane.b32.xlu0 %v4193, 8
      %v4317 = vpop.permute.xlu0 %4316
      %4318 = vrot.lane.b32.xlu0 %v4205, 8
      %v4319 = vpop.permute.xlu0 %4318
      %4320 = vrot.lane.b32.xlu0 %v4217, 8
      %v4321 = vpop.permute.xlu0 %4320
      %4322 = vrot.lane.b32.xlu0 %v4229, 8
      %v4323 = vpop.permute.xlu0 %4322
      %4324 = vrot.lane.b32.xlu0 %v4241, 8
      %v4325 = vpop.permute.xlu0 %4324
      %4326 = vrot.lane.b32.xlu0 %v4253, 8
      %v4327 = vpop.permute.xlu0 %4326
      %4328 = vrot.lane.b32.xlu0 %v4265, 8
      %v4329 = vpop.permute.xlu0 %4328
      %4330 = vrot.lane.b32.xlu0 %v4277, 8
      %v4331 = vpop.permute.xlu0 %4330
      %4332 = vrot.lane.b32.xlu0 %v4289, 8
      %v4333 = vpop.permute.xlu0 %4332
      %4334 = vrot.lane.b32.xlu0 %v4301, 8
      %v4335 = vpop.permute.xlu0 %4334
      %4336 = vrot.lane.b32.xlu0 %v4313, 8
      %v4337 = vpop.permute.xlu0 %4336
      %v4362 = vrot.slane %v4146, 1
      %v4363 = vrot.slane %v4158, 1
      %v4364 = vsel %vm3251, %v4362, %v4363
      %v4365 = vrot.slane %v4147, 1
      %v4366 = vrot.slane %v4159, 1
      %v4367 = vsel %vm3251, %v4365, %v4366
      %v4368 = vrot.slane %v4148, 1
      %v4369 = vrot.slane %v4160, 1
      %v4370 = vsel %vm3251, %v4368, %v4369
      %v4371 = vrot.slane %v4149, 1
      %v4372 = vrot.slane %v4161, 1
      %v4373 = vsel %vm3251, %v4371, %v4372
      %v4374 = vrot.slane %v4150, 1
      %v4375 = vrot.slane %v4162, 1
      %v4376 = vsel %vm3251, %v4374, %v4375
      %v4377 = vrot.slane %v4151, 1
      %v4378 = vrot.slane %v4163, 1
      %v4379 = vsel %vm3251, %v4377, %v4378
      %v4380 = vrot.slane %v4152, 1
      %v4381 = vrot.slane %v4164, 1
      %v4382 = vsel %vm3251, %v4380, %v4381
      %v4383 = vrot.slane %v4153, 1
      %v4384 = vrot.slane %v4165, 1
      %v4385 = vsel %vm3251, %v4383, %v4384
      %v4386 = vrot.slane %v4154, 1
      %v4387 = vrot.slane %v4166, 1
      %v4388 = vsel %vm3251, %v4386, %v4387
      %v4389 = vrot.slane %v4155, 1
      %v4390 = vrot.slane %v4167, 1
      %v4391 = vsel %vm3251, %v4389, %v4390
      %v4392 = vrot.slane %v4156, 1
      %v4393 = vrot.slane %v4168, 1
      %v4394 = vsel %vm3251, %v4392, %v4393
      %v4395 = vrot.slane %v4157, 1
      %v4396 = vrot.slane %v4169, 1
      %v4397 = vsel %vm3251, %v4395, %v4396
      %4398 = vrot.lane.b32.xlu0 %v4364, 16
      %v4399 = vpop.permute.xlu0 %4398
      %4400 = vrot.lane.b32.xlu0 %v4367, 16
      %v4401 = vpop.permute.xlu0 %4400
      %4402 = vrot.lane.b32.xlu0 %v4370, 16
      %v4403 = vpop.permute.xlu0 %4402
      %4404 = vrot.lane.b32.xlu0 %v4373, 16
      %v4405 = vpop.permute.xlu0 %4404
      %4406 = vrot.lane.b32.xlu0 %v4376, 16
      %v4407 = vpop.permute.xlu0 %4406
      %4408 = vrot.lane.b32.xlu0 %v4379, 16
      %v4409 = vpop.permute.xlu0 %4408
      %4410 = vrot.lane.b32.xlu0 %v4382, 16
      %v4411 = vpop.permute.xlu0 %4410
      %4412 = vrot.lane.b32.xlu0 %v4385, 16
      %v4413 = vpop.permute.xlu0 %4412
      %4414 = vrot.lane.b32.xlu0 %v4388, 16
      %v4415 = vpop.permute.xlu0 %4414
      %4416 = vrot.lane.b32.xlu0 %v4391, 16
      %v4417 = vpop.permute.xlu0 %4416
      %4418 = vrot.lane.b32.xlu0 %v4394, 16
      %v4419 = vpop.permute.xlu0 %4418
      %4420 = vrot.lane.b32.xlu0 %v4397, 16
      %v4421 = vpop.permute.xlu0 %4420
      %v4423 = vsel %vm941, %v4146, %v4315
      %v4425 = vsel %vm941, %v4147, %v4317
      %v4427 = vsel %vm941, %v4148, %v4319
      %v4429 = vsel %vm941, %v4149, %v4321
      %v4431 = vsel %vm941, %v4150, %v4323
      %v4433 = vsel %vm941, %v4151, %v4325
      %v4435 = vsel %vm941, %v4152, %v4327
      %v4437 = vsel %vm941, %v4153, %v4329
      %v4439 = vsel %vm941, %v4154, %v4331
      %v4441 = vsel %vm941, %v4155, %v4333
      %v4443 = vsel %vm941, %v4156, %v4335
      %v4445 = vsel %vm941, %v4157, %v4337
      %v4447 = vsel %vm3336, %v4423, %v4399
      %v4449 = vsel %vm3336, %v4425, %v4401
      %v4451 = vsel %vm3336, %v4427, %v4403
      %v4453 = vsel %vm3336, %v4429, %v4405
      %v4455 = vsel %vm3336, %v4431, %v4407
      %v4457 = vsel %vm3336, %v4433, %v4409
      %v4459 = vsel %vm3336, %v4435, %v4411
      %v4461 = vsel %vm3336, %v4437, %v4413
      %v4463 = vsel %vm3336, %v4439, %v4415
      %v4465 = vsel %vm3336, %v4441, %v4417
      %v4467 = vsel %vm3336, %v4443, %v4419
      %v4469 = vsel %vm3336, %v4445, %v4421
      %s4470 = scalar_lea.vmem %s7, 24
      %v4471 = vld [vmem:[%s4470] sm:$0xf]
      %v4472 = vld [vmem:[%s4470 + $0x4] sm:$0xf]
      %v4473 = vld [vmem:[%s4470 + $0x8] sm:$0xf]
      %v4477 = vunpack.c.l.b16 %v4471
      %v4478 = vunpack.c.l.b16 %v4472
      %v4479 = vunpack.c.l.b16 %v4473
      %v4480 = vpack.c.b16 %v4478, %v4477
      %v4481 = vpack.c.b16 %v4479, %v4479
      %v4483 = vsel %vm3373, %v4447, 0
      %v4485 = vsel %vm3373, %v4449, 0
      %v4487 = vsel %vm3373, %v4451, 0
      %v4489 = vsel %vm3373, %v4453, 0
      %v4491 = vsel %vm3373, %v4455, 0
      %v4493 = vsel %vm3373, %v4457, 0
      %v4495 = vsel %vm3373, %v4459, 0
      %v4497 = vsel %vm3373, %v4461, 0
      %v4499 = vsel %vm3373, %v4463, 0
      %v4501 = vsel %vm3373, %v4465, 0
      %v4503 = vsel %vm3373, %v4467, 0
      %v4505 = vsel %vm3373, %v4469, 0
      %v4508 = vsel %vm3398, %v4481, 0
      %4510 = vmatprep.subr.bf16.mxu0 0
      %4511 = vmatpush1.bf16.msra.mxu0 %v4480
      %4512 = vmatprep.subr.bf16.mxu0 0
      %4513 = vmatpush1.bf16.msra.mxu0 %v4508
      %4514 = vmatprep.subr.bf16.mxu0 0
      %4515 = vmatpush1.bf16.msra.mxu0 0
      %4516 = vmatprep.subr.bf16.mxu0 0
      %4517 = vmatpush1.bf16.msra.mxu0 0
      %4518 = vmatprep.subr.bf16.mxu0 0
      %4519 = vmatpush1.bf16.msra.mxu0 0
      %4520 = vmatprep.subr.bf16.mxu0 0
      %4521 = vmatpush1.bf16.msra.mxu0 0
      %4522 = vmatprep.subr.bf16.mxu0 0
      %4523 = vmatpush1.bf16.msra.mxu0 0
      %4524 = vmatprep.subr.bf16.mxu0 0
      %4525 = vmatpush1.bf16.msra.mxu0 0
      %4526 = vmatprep.subr.bf16.mxu0 0
      %4527 = vmatpush1.bf16.msra.mxu0 0
      %4528 = vmatprep.subr.bf16.mxu0 0
      %4529 = vmatpush1.bf16.msra.mxu0 0
      %4530 = vmatprep.subr.bf16.mxu0 0
      %4531 = vmatpush1.bf16.msra.mxu0 0
      %4532 = vmatprep.subr.bf16.mxu0 0
      %4533 = vmatpush1.bf16.msra.mxu0 0
      %4534 = vmatprep.subr.bf16.mxu0 0
      %4535 = vmatpush1.bf16.msra.mxu0 0
      %4536 = vmatprep.subr.bf16.mxu0 0
      %4537 = vmatpush1.bf16.msra.mxu0 0
      %4538 = vmatprep.subr.bf16.mxu0 0
      %4539 = vmatpush1.bf16.msra.mxu0 0
      %4540 = vmatprep.subr.bf16.mxu0 0
      %4541 = vmatpush1.bf16.msra.mxu0 0
      %4542 = vmatprep.mubr.bf16.mxu0 0
      %4543 = vmatmul.mubr.bf16.gmra.mrb[0].mxu0 %v4483
      %v4544 = vpop.f32.mrb[0].mxu0
      %v4545 = vadd.f32 0.0, %v4544
      %v4546 = vpop.f32.mrb[0].mxu0
      %v4547 = vpop.f32.mrb[0].mxu0
      %v4548 = vadd.f32 0.0, %v4547
      %v4549 = vpop.f32.mrb[0].mxu0
      %4550 = vmatprep.mubr.bf16.mxu0 0
      %4551 = vmatmul.mubr.bf16.gmra.mrb[0].mxu0 %v4485
      %v4552 = vpop.f32.mrb[0].mxu0
      %v4553 = vadd.f32 0.0, %v4552
      %v4554 = vpop.f32.mrb[0].mxu0
      %v4555 = vpop.f32.mrb[0].mxu0
      %v4556 = vadd.f32 0.0, %v4555
      %v4557 = vpop.f32.mrb[0].mxu0
      %4558 = vmatprep.mubr.bf16.mxu0 0
      %4559 = vmatmul.mubr.bf16.gmra.mrb[0].mxu0 %v4487
      %v4560 = vpop.f32.mrb[0].mxu0
      %v4561 = vadd.f32 0.0, %v4560
      %v4562 = vpop.f32.mrb[0].mxu0
      %v4563 = vpop.f32.mrb[0].mxu0
      %v4564 = vadd.f32 0.0, %v4563
      %v4565 = vpop.f32.mrb[0].mxu0
      %4566 = vmatprep.mubr.bf16.mxu0 0
      %4567 = vmatmul.mubr.bf16.gmra.mrb[0].mxu0 %v4489
      %v4568 = vpop.f32.mrb[0].mxu0
      %v4569 = vadd.f32 0.0, %v4568
      %v4570 = vpop.f32.mrb[0].mxu0
      %v4571 = vpop.f32.mrb[0].mxu0
      %v4572 = vadd.f32 0.0, %v4571
      %v4573 = vpop.f32.mrb[0].mxu0
      %4574 = vmatprep.mubr.bf16.mxu0 0
      %4575 = vmatmul.mubr.bf16.gmra.mrb[0].mxu0 %v4491
      %v4576 = vpop.f32.mrb[0].mxu0
      %v4577 = vadd.f32 0.0, %v4576
      %v4578 = vpop.f32.mrb[0].mxu0
      %v4579 = vpop.f32.mrb[0].mxu0
      %v4580 = vadd.f32 0.0, %v4579
      %v4581 = vpop.f32.mrb[0].mxu0
      %4582 = vmatprep.mubr.bf16.mxu0 0
      %4583 = vmatmul.mubr.bf16.gmra.mrb[0].mxu0 %v4493
      %v4584 = vpop.f32.mrb[0].mxu0
      %v4585 = vadd.f32 0.0, %v4584
      %v4586 = vpop.f32.mrb[0].mxu0
      %v4587 = vpop.f32.mrb[0].mxu0
      %v4588 = vadd.f32 0.0, %v4587
      %v4589 = vpop.f32.mrb[0].mxu0
      %4590 = vmatprep.mubr.bf16.mxu0 0
      %4591 = vmatmul.mubr.bf16.gmra.mrb[0].mxu0 %v4495
      %v4592 = vpop.f32.mrb[0].mxu0
      %v4593 = vadd.f32 0.0, %v4592
      %v4594 = vpop.f32.mrb[0].mxu0
      %v4595 = vpop.f32.mrb[0].mxu0
      %v4596 = vadd.f32 0.0, %v4595
      %v4597 = vpop.f32.mrb[0].mxu0
      %4598 = vmatprep.mubr.bf16.mxu0 0
      %4599 = vmatmul.mubr.bf16.gmra.mrb[0].mxu0 %v4497
      %v4600 = vpop.f32.mrb[0].mxu0
      %v4601 = vadd.f32 0.0, %v4600
      %v4602 = vpop.f32.mrb[0].mxu0
      %v4603 = vpop.f32.mrb[0].mxu0
      %v4604 = vadd.f32 0.0, %v4603
      %v4605 = vpop.f32.mrb[0].mxu0
      %4606 = vmatprep.mubr.bf16.mxu0 0
      %4607 = vmatmul.mubr.bf16.gmra.mrb[0].mxu0 %v4499
      %v4608 = vpop.f32.mrb[0].mxu0
      %v4609 = vadd.f32 0.0, %v4608
      %v4610 = vpop.f32.mrb[0].mxu0
      %v4611 = vpop.f32.mrb[0].mxu0
      %v4612 = vadd.f32 0.0, %v4611
      %v4613 = vpop.f32.mrb[0].mxu0
      %4614 = vmatprep.mubr.bf16.mxu0 0
      %4615 = vmatmul.mubr.bf16.gmra.mrb[0].mxu0 %v4501
      %v4616 = vpop.f32.mrb[0].mxu0
      %v4617 = vadd.f32 0.0, %v4616
      %v4618 = vpop.f32.mrb[0].mxu0
      %v4619 = vpop.f32.mrb[0].mxu0
      %v4620 = vadd.f32 0.0, %v4619
      %v4621 = vpop.f32.mrb[0].mxu0
      %4622 = vmatprep.mubr.bf16.mxu0 0
      %4623 = vmatmul.mubr.bf16.gmra.mrb[0].mxu0 %v4503
      %v4624 = vpop.f32.mrb[0].mxu0
      %v4625 = vadd.f32 0.0, %v4624
      %v4626 = vpop.f32.mrb[0].mxu0
      %v4627 = vpop.f32.mrb[0].mxu0
      %v4628 = vadd.f32 0.0, %v4627
      %v4629 = vpop.f32.mrb[0].mxu0
      %4630 = vmatprep.mubr.bf16.mxu0 0
      %4631 = vmatmul.mubr.bf16.gmra.mrb[0].mxu0 %v4505
      %v4632 = vpop.f32.mrb[0].mxu0
      %v4633 = vadd.f32 0.0, %v4632
      %v4634 = vpop.f32.mrb[0].mxu0
      %v4635 = vpop.f32.mrb[0].mxu0
      %v4636 = vadd.f32 0.0, %v4635
      %v4637 = vpop.f32.mrb[0].mxu0
      %4638 = vdwg.mxu0
      %v4639 = vadd.f32 %v4085, %v4545
      %v4640 = vadd.f32 %v4086, %v4548
      %v4641 = vadd.f32 %v4087, %v4553
      %v4642 = vadd.f32 %v4088, %v4556
      %v4643 = vadd.f32 %v4089, %v4561
      %v4644 = vadd.f32 %v4090, %v4564
      %v4645 = vadd.f32 %v4091, %v4569
      %v4646 = vadd.f32 %v4092, %v4572
      %v4647 = vadd.f32 %v4093, %v4577
      %v4648 = vadd.f32 %v4094, %v4580
      %v4649 = vadd.f32 %v4095, %v4585
      %v4650 = vadd.f32 %v4096, %v4588
      %v4651 = vadd.f32 %v4097, %v4593
      %v4652 = vadd.f32 %v4098, %v4596
      %v4653 = vadd.f32 %v4099, %v4601
      %v4654 = vadd.f32 %v4100, %v4604
      %v4655 = vadd.f32 %v4101, %v4609
      %v4656 = vadd.f32 %v4102, %v4612
      %v4657 = vadd.f32 %v4103, %v4617
      %v4658 = vadd.f32 %v4104, %v4620
      %v4659 = vadd.f32 %v4105, %v4625
      %v4660 = vadd.f32 %v4106, %v4628
      %v4661 = vadd.f32 %v4107, %v4633
      %v4662 = vadd.f32 %v4108, %v4636
      %vm4663 = vcmask 31744
      %4664 = vst.msk [vmem:[#allocation3 + $0x1] sm:$0xff] %vm4663, %v4639
      %4665 = vst.msk [vmem:[#allocation3 + $0x9] sm:$0xff] %vm4663, %v4640
      %4666 = vst.msk [vmem:[#allocation3 + $0x19] sm:$0xff] %vm4663, %v4641
      %4667 = vst.msk [vmem:[#allocation3 + $0x21] sm:$0xff] %vm4663, %v4642
      %4668 = vst.msk [vmem:[#allocation3 + $0x31] sm:$0xff] %vm4663, %v4643
      %4669 = vst.msk [vmem:[#allocation3 + $0x39] sm:$0xff] %vm4663, %v4644
      %4670 = vst.msk [vmem:[#allocation3 + $0x49] sm:$0xff] %vm4663, %v4645
      %4671 = vst.msk [vmem:[#allocation3 + $0x51] sm:$0xff] %vm4663, %v4646
      %4672 = vst.msk [vmem:[#allocation3 + $0x61] sm:$0xff] %vm4663, %v4647
      %4673 = vst.msk [vmem:[#allocation3 + $0x69] sm:$0xff] %vm4663, %v4648
      %4674 = vst.msk [vmem:[#allocation3 + $0x79] sm:$0xff] %vm4663, %v4649
      %4675 = vst.msk [vmem:[#allocation3 + $0x81] sm:$0xff] %vm4663, %v4650
      %4676 = vst.msk [vmem:[#allocation3 + $0x91] sm:$0xff] %vm4663, %v4651
      %4677 = vst.msk [vmem:[#allocation3 + $0x99] sm:$0xff] %vm4663, %v4652
      %4678 = vst.msk [vmem:[#allocation3 + $0xa9] sm:$0xff] %vm4663, %v4653
      %4679 = vst.msk [vmem:[#allocation3 + $0xb1] sm:$0xff] %vm4663, %v4654
      %4680 = vst.msk [vmem:[#allocation3 + $0xc1] sm:$0xff] %vm4663, %v4655
      %4681 = vst.msk [vmem:[#allocation3 + $0xc9] sm:$0xff] %vm4663, %v4656
      %4682 = vst.msk [vmem:[#allocation3 + $0xd9] sm:$0xff] %vm4663, %v4657
      %4683 = vst.msk [vmem:[#allocation3 + $0xe1] sm:$0xff] %vm4663, %v4658
      %4684 = vst.msk [vmem:[#allocation3 + $0xf1] sm:$0xff] %vm4663, %v4659
      %4685 = vst.msk [vmem:[#allocation3 + $0xf9] sm:$0xff] %vm4663, %v4660
      %4686 = vst.msk [vmem:[#allocation3 + $0x109] sm:$0xff] %vm4663, %v4661
      %4687 = vst.msk [vmem:[#allocation3 + $0x111] sm:$0xff] %vm4663, %v4662
      %v4688 = vld [vmem:[%s730] sm:$0xff]
      %v4689 = vld [vmem:[%s730 + $0x8] sm:$0xff]
      %v4690 = vld [vmem:[%s730 + $0x10] sm:$0xff]
      %v4691 = vld [vmem:[%s730 + $0x18] sm:$0xff]
      %v4692 = vld [vmem:[%s730 + $0x20] sm:$0xff]
      %v4693 = vld [vmem:[%s730 + $0x28] sm:$0xff]
      %v4694 = vld [vmem:[%s730 + $0x30] sm:$0xff]
      %v4695 = vld [vmem:[%s730 + $0x38] sm:$0xff]
      %v4696 = vld [vmem:[%s730 + $0x40] sm:$0xff]
      %v4697 = vld [vmem:[%s730 + $0x48] sm:$0xff]
      %v4698 = vld [vmem:[%s730 + $0x50] sm:$0xff]
      %v4699 = vld [vmem:[%s730 + $0x58] sm:$0xff]
      %v4700 = vld [vmem:[%s730 + $0x60] sm:$0xff]
      %v4701 = vld [vmem:[%s730 + $0x68] sm:$0xff]
      %v4702 = vld [vmem:[%s730 + $0x70] sm:$0xff]
      %v4703 = vld [vmem:[%s730 + $0x78] sm:$0xff]
      %4720 = vrot.lane.b32.xlu0 %v4688, 4
      %v4721 = vpop.permute.xlu0 %4720
      %4722 = vrot.lane.b32.xlu0 %v4689, 4
      %v4723 = vpop.permute.xlu0 %4722
      %4724 = vrot.lane.b32.xlu0 %v4690, 4
      %v4725 = vpop.permute.xlu0 %4724
      %4726 = vrot.lane.b32.xlu0 %v4691, 4
      %v4727 = vpop.permute.xlu0 %4726
      %4728 = vrot.lane.b32.xlu0 %v4692, 4
      %v4729 = vpop.permute.xlu0 %4728
      %4730 = vrot.lane.b32.xlu0 %v4693, 4
      %v4731 = vpop.permute.xlu0 %4730
      %4732 = vrot.lane.b32.xlu0 %v4694, 4
      %v4733 = vpop.permute.xlu0 %4732
      %4734 = vrot.lane.b32.xlu0 %v4695, 4
      %v4735 = vpop.permute.xlu0 %4734
      %4736 = vrot.lane.b32.xlu0 %v4696, 4
      %v4737 = vpop.permute.xlu0 %4736
      %4738 = vrot.lane.b32.xlu0 %v4697, 4
      %v4739 = vpop.permute.xlu0 %4738
      %4740 = vrot.lane.b32.xlu0 %v4698, 4
      %v4741 = vpop.permute.xlu0 %4740
      %4742 = vrot.lane.b32.xlu0 %v4699, 4
      %v4743 = vpop.permute.xlu0 %4742
      %4744 = vrot.lane.b32.xlu0 %v4700, 4
      %v4745 = vpop.permute.xlu0 %4744
      %4746 = vrot.lane.b32.xlu0 %v4701, 4
      %v4747 = vpop.permute.xlu0 %4746
      %4748 = vrot.lane.b32.xlu0 %v4702, 4
      %v4749 = vpop.permute.xlu0 %4748
      %4750 = vrot.lane.b32.xlu0 %v4703, 4
      %v4751 = vpop.permute.xlu0 %4750
      %s4768 = scalar_lea.vmem [#allocation3], 48
      %vm4769 = vcmask 64544
      %4770 = vst.msk [vmem:[%s4768 + $0x1] sm:$0xff] %vm4769, %v4721
      %4771 = vst.msk [vmem:[%s4768 + $0x9] sm:$0xff] %vm4769, %v4723
      %4772 = vst.msk [vmem:[%s4768 + $0x19] sm:$0xff] %vm4769, %v4725
      %4773 = vst.msk [vmem:[%s4768 + $0x21] sm:$0xff] %vm4769, %v4727
      %4774 = vst.msk [vmem:[%s4768 + $0x31] sm:$0xff] %vm4769, %v4729
      %4775 = vst.msk [vmem:[%s4768 + $0x39] sm:$0xff] %vm4769, %v4731
      %4776 = vst.msk [vmem:[%s4768 + $0x49] sm:$0xff] %vm4769, %v4733
      %4777 = vst.msk [vmem:[%s4768 + $0x51] sm:$0xff] %vm4769, %v4735
      %4778 = vst.msk [vmem:[%s4768 + $0x61] sm:$0xff] %vm4769, %v4737
      %4779 = vst.msk [vmem:[%s4768 + $0x69] sm:$0xff] %vm4769, %v4739
      %4780 = vst.msk [vmem:[%s4768 + $0x79] sm:$0xff] %vm4769, %v4741
      %4781 = vst.msk [vmem:[%s4768 + $0x81] sm:$0xff] %vm4769, %v4743
      %4782 = vst.msk [vmem:[%s4768 + $0x91] sm:$0xff] %vm4769, %v4745
      %4783 = vst.msk [vmem:[%s4768 + $0x99] sm:$0xff] %vm4769, %v4747
      %4784 = vst.msk [vmem:[%s4768 + $0xa9] sm:$0xff] %vm4769, %v4749
      %4785 = vst.msk [vmem:[%s4768 + $0xb1] sm:$0xff] %vm4769, %v4751
      %v4786 = vld [vmem:[%s745] sm:$0xff]
      %v4787 = vld [vmem:[%s745 + $0x8] sm:$0xff]
      %v4788 = vld [vmem:[%s745 + $0x10] sm:$0xff]
      %v4789 = vld [vmem:[%s745 + $0x18] sm:$0xff]
      %4794 = vrot.lane.b32.xlu0 %v4786, 4
      %v4795 = vpop.permute.xlu0 %4794
      %4796 = vrot.lane.b32.xlu0 %v4787, 4
      %v4797 = vpop.permute.xlu0 %4796
      %4798 = vrot.lane.b32.xlu0 %v4788, 4
      %v4799 = vpop.permute.xlu0 %4798
      %4800 = vrot.lane.b32.xlu0 %v4789, 4
      %v4801 = vpop.permute.xlu0 %4800
      %4806 = vst.msk [vmem:[#allocation3 + $0x1] sm:$0xff] %vm4769, %v4795
      %4807 = vst.msk [vmem:[#allocation3 + $0x9] sm:$0xff] %vm4769, %v4797
      %4808 = vst.msk [vmem:[#allocation3 + $0x19] sm:$0xff] %vm4769, %v4799
      %4809 = vst.msk [vmem:[#allocation3 + $0x21] sm:$0xff] %vm4769, %v4801
      %v4810 = vld [vmem:[%s764] sm:$0xff]
      %v4811 = vld [vmem:[%s764 + $0x8] sm:$0xff]
      %v4812 = vld [vmem:[%s764 + $0x10] sm:$0xff]
      %v4813 = vld [vmem:[%s764 + $0x18] sm:$0xff]
      %4818 = vrot.lane.b32.xlu0 %v4810, 4
      %v4819 = vpop.permute.xlu0 %4818
      %4820 = vrot.lane.b32.xlu0 %v4811, 4
      %v4821 = vpop.permute.xlu0 %4820
      %4822 = vrot.lane.b32.xlu0 %v4812, 4
      %v4823 = vpop.permute.xlu0 %4822
      %4824 = vrot.lane.b32.xlu0 %v4813, 4
      %v4825 = vpop.permute.xlu0 %4824
      %s4830 = scalar_lea.vmem [#allocation3], 240
      %4831 = vst.msk [vmem:[%s4830 + $0x1] sm:$0xff] %vm4769, %v4819
      %4832 = vst.msk [vmem:[%s4830 + $0x9] sm:$0xff] %vm4769, %v4821
      %4833 = vst.msk [vmem:[%s4830 + $0x19] sm:$0xff] %vm4769, %v4823
      %4834 = vst.msk [vmem:[%s4830 + $0x21] sm:$0xff] %vm4769, %v4825
      // Predicated region
      $region81: #{unet_up_forward.1} parent=71 // pred_check
        %p4835 = pneg %p2939
      $region82: #{unet_up_forward.1} parent=71 // pred_check_branch
        %4837 = sbr.rel (%p4835) target = $region84
      $region83: #{unet_up_forward.1} parent=71 // pred_region
        %4838 = vst.msk [vmem:[#allocation3] sm:$0xff] %vm941, 0.0
        %4839 = vst.msk [vmem:[#allocation3 + $0x8] sm:$0xff] %vm941, 0.0
        %vm4840 = vcmask 58368
        %4841 = vst.msk [vmem:[#allocation3 + $0x10] sm:$0x3] %vm4840, 0.0
        %4842 = vst.msk [vmem:[#allocation3 + $0x18] sm:$0xff] %vm941, 0.0
        %4843 = vst.msk [vmem:[#allocation3 + $0x20] sm:$0xff] %vm941, 0.0
        %4844 = vst.msk [vmem:[#allocation3 + $0x28] sm:$0x3] %vm4840, 0.0
      $region84: #{unet_up_forward.1} parent=71 // pred_fallthru
        _
      // Predicated region
      $region85: #{unet_up_forward.1} parent=71 // pred_check
        %p4845 = pneg %p2953
      $region86: #{unet_up_forward.1} parent=71 // pred_check_branch
        %4847 = sbr.rel (%p4845) target = $region88
      $region87: #{unet_up_forward.1} parent=71 // pred_region
        %4848 = vst.msk [vmem:[%s4830] sm:$0xff] %vm941, 0.0
        %4849 = vst.msk [vmem:[%s4830 + $0x8] sm:$0xff] %vm941, 0.0
        %vm4850 = vcmask 58368
        %4851 = vst.msk [vmem:[%s4830 + $0x10] sm:$0x3] %vm4850, 0.0
        %4852 = vst.msk [vmem:[%s4830 + $0x18] sm:$0xff] %vm941, 0.0
        %4853 = vst.msk [vmem:[%s4830 + $0x20] sm:$0xff] %vm941, 0.0
        %4854 = vst.msk [vmem:[%s4830 + $0x28] sm:$0x3] %vm4850, 0.0
      $region88: #{unet_up_forward.1} parent=71 // pred_fallthru
        _
      %vm4855 = vcmask 24576
      %4856 = vst.msk [vmem:[#allocation4] sm:$0x1] %vm4855, 0.0
      %4857 = vst.msk [vmem:[#allocation4 + $0x18] sm:$0x1] %vm4855, 0.0
      %4858 = vst.msk [vmem:[#allocation4 + $0x30] sm:$0x1] %vm4855, 0.0
      %4859 = vst.msk [vmem:[#allocation4 + $0x48] sm:$0x1] %vm4855, 0.0
      %4860 = vst.msk [vmem:[#allocation4 + $0x60] sm:$0x1] %vm4855, 0.0
      %4861 = vst.msk [vmem:[#allocation4 + $0x78] sm:$0x1] %vm4855, 0.0
      %4862 = vst.msk [vmem:[#allocation4 + $0x90] sm:$0x1] %vm4855, 0.0
      %4863 = vst.msk [vmem:[#allocation4 + $0xa8] sm:$0x1] %vm4855, 0.0
      %4864 = vst.msk [vmem:[#allocation4 + $0xc0] sm:$0x1] %vm4855, 0.0
      %4865 = vst.msk [vmem:[#allocation4 + $0xd8] sm:$0x1] %vm4855, 0.0
      %4866 = vst.msk [vmem:[#allocation4 + $0x11] sm:$0x1] %vm4855, 0.0
      %4867 = vst.msk [vmem:[#allocation4 + $0x29] sm:$0x1] %vm4855, 0.0
      %4868 = vst.msk [vmem:[#allocation4 + $0x41] sm:$0x1] %vm4855, 0.0
      %4869 = vst.msk [vmem:[#allocation4 + $0x59] sm:$0x1] %vm4855, 0.0
      %4870 = vst.msk [vmem:[#allocation4 + $0x71] sm:$0x1] %vm4855, 0.0
      %4871 = vst.msk [vmem:[#allocation4 + $0x89] sm:$0x1] %vm4855, 0.0
      %4872 = vst.msk [vmem:[#allocation4 + $0xa1] sm:$0x1] %vm4855, 0.0
      %4873 = vst.msk [vmem:[#allocation4 + $0xb9] sm:$0x1] %vm4855, 0.0
      %4874 = vst.msk [vmem:[#allocation4 + $0xd1] sm:$0x1] %vm4855, 0.0
      %4875 = vst.msk [vmem:[#allocation4 + $0xe9] sm:$0x1] %vm4855, 0.0
      %v4876 = vld [vmem:[%s10] sm:$0x1]
      %v4878 = vlaneseq
      %v4879 = vshrl.u32 %v4878, 7
      %v4880 = vsub.s32 0, %v4879
      %v4881 = vrot.slane %v4876, %v4880
      %v4883 = vld [vmem:[#allocation3] sm:$0xff]
      %v4884 = vld [vmem:[#allocation3 + $0x8] sm:$0xff]
      %v4885 = vld [vmem:[#allocation3 + $0x10] sm:$0x3]
      %v4886 = vld [vmem:[#allocation3 + $0x18] sm:$0xff]
      %v4887 = vld [vmem:[#allocation3 + $0x20] sm:$0xff]
      %v4888 = vld [vmem:[#allocation3 + $0x28] sm:$0x3]
      %v4889 = vld [vmem:[#allocation3 + $0x30] sm:$0xff]
      %v4890 = vld [vmem:[#allocation3 + $0x38] sm:$0xff]
      %v4891 = vld [vmem:[#allocation3 + $0x40] sm:$0x3]
      %v4892 = vld [vmem:[#allocation3 + $0x48] sm:$0xff]
      %v4893 = vld [vmem:[#allocation3 + $0x50] sm:$0xff]
      %v4894 = vld [vmem:[#allocation3 + $0x58] sm:$0x3]
      %v4895 = vld [vmem:[#allocation3 + $0x60] sm:$0xff]
      %v4896 = vld [vmem:[#allocation3 + $0x68] sm:$0xff]
      %v4897 = vld [vmem:[#allocation3 + $0x70] sm:$0x3]
      %v4898 = vld [vmem:[#allocation3 + $0x78] sm:$0xff]
      %v4899 = vld [vmem:[#allocation3 + $0x80] sm:$0xff]
      %v4900 = vld [vmem:[#allocation3 + $0x88] sm:$0x3]
      %v4901 = vld [vmem:[#allocation3 + $0x90] sm:$0xff]
      %v4902 = vld [vmem:[#allocation3 + $0x98] sm:$0xff]
      %v4903 = vld [vmem:[#allocation3 + $0xa0] sm:$0x3]
      %v4904 = vld [vmem:[#allocation3 + $0xa8] sm:$0xff]
      %v4905 = vld [vmem:[#allocation3 + $0xb0] sm:$0xff]
      %v4906 = vld [vmem:[#allocation3 + $0xb8] sm:$0x3]
      %v4907 = vld [vmem:[#allocation3 + $0xc0] sm:$0xff]
      %v4908 = vld [vmem:[#allocation3 + $0xc8] sm:$0xff]
      %v4909 = vld [vmem:[#allocation3 + $0xd0] sm:$0x3]
      %v4910 = vld [vmem:[#allocation3 + $0xd8] sm:$0xff]
      %v4911 = vld [vmem:[#allocation3 + $0xe0] sm:$0xff]
      %v4912 = vld [vmem:[#allocation3 + $0xe8] sm:$0x3]
      %v4913 = vpack.c.bf16 %v4884, %v4883
      %v4914 = vpack.c.bf16 %v4887, %v4886
      %v4915 = vpack.c.bf16 %v4890, %v4889
      %v4916 = vpack.c.bf16 %v4893, %v4892
      %v4917 = vpack.c.bf16 %v4896, %v4895
      %v4918 = vpack.c.bf16 %v4899, %v4898
      %v4919 = vpack.c.bf16 %v4902, %v4901
      %v4920 = vpack.c.bf16 %v4905, %v4904
      %v4921 = vpack.c.bf16 %v4908, %v4907
      %v4922 = vpack.c.bf16 %v4911, %v4910
      %v4923 = vpack.c.bf16 %v4885, %v4885
      %v4924 = vpack.c.bf16 %v4888, %v4888
      %v4925 = vpack.c.bf16 %v4891, %v4891
      %v4926 = vpack.c.bf16 %v4894, %v4894
      %v4927 = vpack.c.bf16 %v4897, %v4897
      %v4928 = vpack.c.bf16 %v4900, %v4900
      %v4929 = vpack.c.bf16 %v4903, %v4903
      %v4930 = vpack.c.bf16 %v4906, %v4906
      %v4931 = vpack.c.bf16 %v4909, %v4909
      %v4932 = vpack.c.bf16 %v4912, %v4912
      %v4934 = vshrl.u32 %v4913, 16
      %v4936 = vshll.u32 %v4913, 16
      %v4938 = vrot.slane %v4936, 1
      %v4939 = vor.u32 %v4934, %v4938
      %v4941 = vshll.u32 %v4923, 16
      %v4943 = vrot.slane %v4941, 1
      %v4944 = vsel %vm3058, %v4939, %v4943
      %v4946 = vshrl.u32 %v4914, 16
      %v4948 = vshll.u32 %v4914, 16
      %v4950 = vrot.slane %v4948, 1
      %v4951 = vor.u32 %v4946, %v4950
      %v4953 = vshll.u32 %v4924, 16
      %v4955 = vrot.slane %v4953, 1
      %v4956 = vsel %vm3058, %v4951, %v4955
      %v4958 = vshrl.u32 %v4915, 16
      %v4960 = vshll.u32 %v4915, 16
      %v4962 = vrot.slane %v4960, 1
      %v4963 = vor.u32 %v4958, %v4962
      %v4965 = vshll.u32 %v4925, 16
      %v4967 = vrot.slane %v4965, 1
      %v4968 = vsel %vm3058, %v4963, %v4967
      %v4970 = vshrl.u32 %v4916, 16
      %v4972 = vshll.u32 %v4916, 16
      %v4974 = vrot.slane %v4972, 1
      %v4975 = vor.u32 %v4970, %v4974
      %v4977 = vshll.u32 %v4926, 16
      %v4979 = vrot.slane %v4977, 1
      %v4980 = vsel %vm3058, %v4975, %v4979
      %v4982 = vshrl.u32 %v4917, 16
      %v4984 = vshll.u32 %v4917, 16
      %v4986 = vrot.slane %v4984, 1
      %v4987 = vor.u32 %v4982, %v4986
      %v4989 = vshll.u32 %v4927, 16
      %v4991 = vrot.slane %v4989, 1
      %v4992 = vsel %vm3058, %v4987, %v4991
      %v4994 = vshrl.u32 %v4918, 16
      %v4996 = vshll.u32 %v4918, 16
      %v4998 = vrot.slane %v4996, 1
      %v4999 = vor.u32 %v4994, %v4998
      %v5001 = vshll.u32 %v4928, 16
      %v5003 = vrot.slane %v5001, 1
      %v5004 = vsel %vm3058, %v4999, %v5003
      %v5006 = vshrl.u32 %v4919, 16
      %v5008 = vshll.u32 %v4919, 16
      %v5010 = vrot.slane %v5008, 1
      %v5011 = vor.u32 %v5006, %v5010
      %v5013 = vshll.u32 %v4929, 16
      %v5015 = vrot.slane %v5013, 1
      %v5016 = vsel %vm3058, %v5011, %v5015
      %v5018 = vshrl.u32 %v4920, 16
      %v5020 = vshll.u32 %v4920, 16
      %v5022 = vrot.slane %v5020, 1
      %v5023 = vor.u32 %v5018, %v5022
      %v5025 = vshll.u32 %v4930, 16
      %v5027 = vrot.slane %v5025, 1
      %v5028 = vsel %vm3058, %v5023, %v5027
      %v5030 = vshrl.u32 %v4921, 16
      %v5032 = vshll.u32 %v4921, 16
      %v5034 = vrot.slane %v5032, 1
      %v5035 = vor.u32 %v5030, %v5034
      %v5037 = vshll.u32 %v4931, 16
      %v5039 = vrot.slane %v5037, 1
      %v5040 = vsel %vm3058, %v5035, %v5039
      %v5042 = vshrl.u32 %v4922, 16
      %v5044 = vshll.u32 %v4922, 16
      %v5046 = vrot.slane %v5044, 1
      %v5047 = vor.u32 %v5042, %v5046
      %v5049 = vshll.u32 %v4932, 16
      %v5051 = vrot.slane %v5049, 1
      %v5052 = vsel %vm3058, %v5047, %v5051
      %5053 = vrot.lane.b32.xlu0 %v4944, 8
      %v5054 = vpop.permute.xlu0 %5053
      %5055 = vrot.lane.b32.xlu0 %v4956, 8
      %v5056 = vpop.permute.xlu0 %5055
      %5057 = vrot.lane.b32.xlu0 %v4968, 8
      %v5058 = vpop.permute.xlu0 %5057
      %5059 = vrot.lane.b32.xlu0 %v4980, 8
      %v5060 = vpop.permute.xlu0 %5059
      %5061 = vrot.lane.b32.xlu0 %v4992, 8
      %v5062 = vpop.permute.xlu0 %5061
      %5063 = vrot.lane.b32.xlu0 %v5004, 8
      %v5064 = vpop.permute.xlu0 %5063
      %5065 = vrot.lane.b32.xlu0 %v5016, 8
      %v5066 = vpop.permute.xlu0 %5065
      %5067 = vrot.lane.b32.xlu0 %v5028, 8
      %v5068 = vpop.permute.xlu0 %5067
      %5069 = vrot.lane.b32.xlu0 %v5040, 8
      %v5070 = vpop.permute.xlu0 %5069
      %5071 = vrot.lane.b32.xlu0 %v5052, 8
      %v5072 = vpop.permute.xlu0 %5071
      %v5093 = vrot.slane %v4913, 1
      %v5094 = vrot.slane %v4923, 1
      %v5095 = vsel %vm3251, %v5093, %v5094
      %v5096 = vrot.slane %v4914, 1
      %v5097 = vrot.slane %v4924, 1
      %v5098 = vsel %vm3251, %v5096, %v5097
      %v5099 = vrot.slane %v4915, 1
      %v5100 = vrot.slane %v4925, 1
      %v5101 = vsel %vm3251, %v5099, %v5100
      %v5102 = vrot.slane %v4916, 1
      %v5103 = vrot.slane %v4926, 1
      %v5104 = vsel %vm3251, %v5102, %v5103
      %v5105 = vrot.slane %v4917, 1
      %v5106 = vrot.slane %v4927, 1
      %v5107 = vsel %vm3251, %v5105, %v5106
      %v5108 = vrot.slane %v4918, 1
      %v5109 = vrot.slane %v4928, 1
      %v5110 = vsel %vm3251, %v5108, %v5109
      %v5111 = vrot.slane %v4919, 1
      %v5112 = vrot.slane %v4929, 1
      %v5113 = vsel %vm3251, %v5111, %v5112
      %v5114 = vrot.slane %v4920, 1
      %v5115 = vrot.slane %v4930, 1
      %v5116 = vsel %vm3251, %v5114, %v5115
      %v5117 = vrot.slane %v4921, 1
      %v5118 = vrot.slane %v4931, 1
      %v5119 = vsel %vm3251, %v5117, %v5118
      %v5120 = vrot.slane %v4922, 1
      %v5121 = vrot.slane %v4932, 1
      %v5122 = vsel %vm3251, %v5120, %v5121
      %5123 = vrot.lane.b32.xlu0 %v5095, 16
      %v5124 = vpop.permute.xlu0 %5123
      %5125 = vrot.lane.b32.xlu0 %v5098, 16
      %v5126 = vpop.permute.xlu0 %5125
      %5127 = vrot.lane.b32.xlu0 %v5101, 16
      %v5128 = vpop.permute.xlu0 %5127
      %5129 = vrot.lane.b32.xlu0 %v5104, 16
      %v5130 = vpop.permute.xlu0 %5129
      %5131 = vrot.lane.b32.xlu0 %v5107, 16
      %v5132 = vpop.permute.xlu0 %5131
      %5133 = vrot.lane.b32.xlu0 %v5110, 16
      %v5134 = vpop.permute.xlu0 %5133
      %5135 = vrot.lane.b32.xlu0 %v5113, 16
      %v5136 = vpop.permute.xlu0 %5135
      %5137 = vrot.lane.b32.xlu0 %v5116, 16
      %v5138 = vpop.permute.xlu0 %5137
      %5139 = vrot.lane.b32.xlu0 %v5119, 16
      %v5140 = vpop.permute.xlu0 %5139
      %5141 = vrot.lane.b32.xlu0 %v5122, 16
      %v5142 = vpop.permute.xlu0 %5141
      %v5144 = vsel %vm941, %v4913, %v5054
      %v5146 = vsel %vm941, %v4914, %v5056
      %v5148 = vsel %vm941, %v4915, %v5058
      %v5150 = vsel %vm941, %v4916, %v5060
      %v5152 = vsel %vm941, %v4917, %v5062
      %v5154 = vsel %vm941, %v4918, %v5064
      %v5156 = vsel %vm941, %v4919, %v5066
      %v5158 = vsel %vm941, %v4920, %v5068
      %v5160 = vsel %vm941, %v4921, %v5070
      %v5162 = vsel %vm941, %v4922, %v5072
      %v5164 = vsel %vm3336, %v5144, %v5124
      %v5166 = vsel %vm3336, %v5146, %v5126
      %v5168 = vsel %vm3336, %v5148, %v5128
      %v5170 = vsel %vm3336, %v5150, %v5130
      %v5172 = vsel %vm3336, %v5152, %v5132
      %v5174 = vsel %vm3336, %v5154, %v5134
      %v5176 = vsel %vm3336, %v5156, %v5136
      %v5178 = vsel %vm3336, %v5158, %v5138
      %v5180 = vsel %vm3336, %v5160, %v5140
      %v5182 = vsel %vm3336, %v5162, %v5142
      %v5183 = vld [vmem:[%s9] sm:$0xf]
      %v5184 = vld [vmem:[%s9 + $0x4] sm:$0xf]
      %v5185 = vld [vmem:[%s9 + $0x8] sm:$0xf]
      %v5189 = vunpack.c.l.b16 %v5183
      %v5190 = vunpack.c.l.b16 %v5184
      %v5191 = vunpack.c.l.b16 %v5185
      %v5192 = vpack.c.b16 %v5190, %v5189
      %v5193 = vpack.c.b16 %v5191, %v5191
      %v5195 = vsel %vm3373, %v5164, 0
      %v5197 = vsel %vm3373, %v5166, 0
      %v5199 = vsel %vm3373, %v5168, 0
      %v5201 = vsel %vm3373, %v5170, 0
      %v5203 = vsel %vm3373, %v5172, 0
      %v5205 = vsel %vm3373, %v5174, 0
      %v5207 = vsel %vm3373, %v5176, 0
      %v5209 = vsel %vm3373, %v5178, 0
      %v5211 = vsel %vm3373, %v5180, 0
      %v5213 = vsel %vm3373, %v5182, 0
      %v5216 = vsel %vm3398, %v5193, 0
      %5218 = vmatprep.subr.bf16.mxu0 0
      %5219 = vmatpush1.bf16.msra.mxu0 %v5192
      %5220 = vmatprep.subr.bf16.mxu0 0
      %5221 = vmatpush1.bf16.msra.mxu0 %v5216
      %5222 = vmatprep.subr.bf16.mxu0 0
      %5223 = vmatpush1.bf16.msra.mxu0 0
      %5224 = vmatprep.subr.bf16.mxu0 0
      %5225 = vmatpush1.bf16.msra.mxu0 0
      %5226 = vmatprep.subr.bf16.mxu0 0
      %5227 = vmatpush1.bf16.msra.mxu0 0
      %5228 = vmatprep.subr.bf16.mxu0 0
      %5229 = vmatpush1.bf16.msra.mxu0 0
      %5230 = vmatprep.subr.bf16.mxu0 0
      %5231 = vmatpush1.bf16.msra.mxu0 0
      %5232 = vmatprep.subr.bf16.mxu0 0
      %5233 = vmatpush1.bf16.msra.mxu0 0
      %5234 = vmatprep.subr.bf16.mxu0 0
      %5235 = vmatpush1.bf16.msra.mxu0 0
      %5236 = vmatprep.subr.bf16.mxu0 0
      %5237 = vmatpush1.bf16.msra.mxu0 0
      %5238 = vmatprep.subr.bf16.mxu0 0
      %5239 = vmatpush1.bf16.msra.mxu0 0
      %5240 = vmatprep.subr.bf16.mxu0 0
      %5241 = vmatpush1.bf16.msra.mxu0 0
      %5242 = vmatprep.subr.bf16.mxu0 0
      %5243 = vmatpush1.bf16.msra.mxu0 0
      %5244 = vmatprep.subr.bf16.mxu0 0
      %5245 = vmatpush1.bf16.msra.mxu0 0
      %5246 = vmatprep.subr.bf16.mxu0 0
      %5247 = vmatpush1.bf16.msra.mxu0 0
      %5248 = vmatprep.subr.bf16.mxu0 0
      %5249 = vmatpush1.bf16.msra.mxu0 0
      %5250 = vmatprep.mubr.bf16.mxu0 0
      %5251 = vmatmul.mubr.bf16.gmra.mrb[0].mxu0 %v5195
      %v5252 = vpop.f32.mrb[0].mxu0
      %v5253 = vadd.f32 0.0, %v5252
      %v5254 = vpop.f32.mrb[0].mxu0
      %v5255 = vpop.f32.mrb[0].mxu0
      %v5256 = vadd.f32 0.0, %v5255
      %v5257 = vpop.f32.mrb[0].mxu0
      %5258 = vmatprep.mubr.bf16.mxu0 0
      %5259 = vmatmul.mubr.bf16.gmra.mrb[0].mxu0 %v5197
      %v5260 = vpop.f32.mrb[0].mxu0
      %v5261 = vadd.f32 0.0, %v5260
      %v5262 = vpop.f32.mrb[0].mxu0
      %v5263 = vpop.f32.mrb[0].mxu0
      %v5264 = vadd.f32 0.0, %v5263
      %v5265 = vpop.f32.mrb[0].mxu0
      %5266 = vmatprep.mubr.bf16.mxu0 0
      %5267 = vmatmul.mubr.bf16.gmra.mrb[0].mxu0 %v5199
      %v5268 = vpop.f32.mrb[0].mxu0
      %v5269 = vadd.f32 0.0, %v5268
      %v5270 = vpop.f32.mrb[0].mxu0
      %v5271 = vpop.f32.mrb[0].mxu0
      %v5272 = vadd.f32 0.0, %v5271
      %v5273 = vpop.f32.mrb[0].mxu0
      %5274 = vmatprep.mubr.bf16.mxu0 0
      %5275 = vmatmul.mubr.bf16.gmra.mrb[0].mxu0 %v5201
      %v5276 = vpop.f32.mrb[0].mxu0
      %v5277 = vadd.f32 0.0, %v5276
      %v5278 = vpop.f32.mrb[0].mxu0
      %v5279 = vpop.f32.mrb[0].mxu0
      %v5280 = vadd.f32 0.0, %v5279
      %v5281 = vpop.f32.mrb[0].mxu0
      %5282 = vmatprep.mubr.bf16.mxu0 0
      %5283 = vmatmul.mubr.bf16.gmra.mrb[0].mxu0 %v5203
      %v5284 = vpop.f32.mrb[0].mxu0
      %v5285 = vadd.f32 0.0, %v5284
      %v5286 = vpop.f32.mrb[0].mxu0
      %v5287 = vpop.f32.mrb[0].mxu0
      %v5288 = vadd.f32 0.0, %v5287
      %v5289 = vpop.f32.mrb[0].mxu0
      %5290 = vmatprep.mubr.bf16.mxu0 0
      %5291 = vmatmul.mubr.bf16.gmra.mrb[0].mxu0 %v5205
      %v5292 = vpop.f32.mrb[0].mxu0
      %v5293 = vadd.f32 0.0, %v5292
      %v5294 = vpop.f32.mrb[0].mxu0
      %v5295 = vpop.f32.mrb[0].mxu0
      %v5296 = vadd.f32 0.0, %v5295
      %v5297 = vpop.f32.mrb[0].mxu0
      %5298 = vmatprep.mubr.bf16.mxu0 0
      %5299 = vmatmul.mubr.bf16.gmra.mrb[0].mxu0 %v5207
      %v5300 = vpop.f32.mrb[0].mxu0
      %v5301 = vadd.f32 0.0, %v5300
      %v5302 = vpop.f32.mrb[0].mxu0
      %v5303 = vpop.f32.mrb[0].mxu0
      %v5304 = vadd.f32 0.0, %v5303
      %v5305 = vpop.f32.mrb[0].mxu0
      %5306 = vmatprep.mubr.bf16.mxu0 0
      %5307 = vmatmul.mubr.bf16.gmra.mrb[0].mxu0 %v5209
      %v5308 = vpop.f32.mrb[0].mxu0
      %v5309 = vadd.f32 0.0, %v5308
      %v5310 = vpop.f32.mrb[0].mxu0
      %v5311 = vpop.f32.mrb[0].mxu0
      %v5312 = vadd.f32 0.0, %v5311
      %v5313 = vpop.f32.mrb[0].mxu0
      %5314 = vmatprep.mubr.bf16.mxu0 0
      %5315 = vmatmul.mubr.bf16.gmra.mrb[0].mxu0 %v5211
      %v5316 = vpop.f32.mrb[0].mxu0
      %v5317 = vadd.f32 0.0, %v5316
      %v5318 = vpop.f32.mrb[0].mxu0
      %v5319 = vpop.f32.mrb[0].mxu0
      %v5320 = vadd.f32 0.0, %v5319
      %v5321 = vpop.f32.mrb[0].mxu0
      %5322 = vmatprep.mubr.bf16.mxu0 0
      %5323 = vmatmul.mubr.bf16.gmra.mrb[0].mxu0 %v5213
      %v5324 = vpop.f32.mrb[0].mxu0
      %v5325 = vadd.f32 0.0, %v5324
      %v5326 = vpop.f32.mrb[0].mxu0
      %v5327 = vpop.f32.mrb[0].mxu0
      %v5328 = vadd.f32 0.0, %v5327
      %v5329 = vpop.f32.mrb[0].mxu0
      %5330 = vdwg.mxu0
      %v5331 = vadd.f32 %v4881, %v5253
      %v5332 = vadd.f32 %v4881, %v5256
      %v5333 = vadd.f32 %v4881, %v5261
      %v5334 = vadd.f32 %v4881, %v5264
      %v5335 = vadd.f32 %v4881, %v5269
      %v5336 = vadd.f32 %v4881, %v5272
      %v5337 = vadd.f32 %v4881, %v5277
      %v5338 = vadd.f32 %v4881, %v5280
      %v5339 = vadd.f32 %v4881, %v5285
      %v5340 = vadd.f32 %v4881, %v5288
      %v5341 = vadd.f32 %v4881, %v5293
      %v5342 = vadd.f32 %v4881, %v5296
      %v5343 = vadd.f32 %v4881, %v5301
      %v5344 = vadd.f32 %v4881, %v5304
      %v5345 = vadd.f32 %v4881, %v5309
      %v5346 = vadd.f32 %v4881, %v5312
      %v5347 = vadd.f32 %v4881, %v5317
      %v5348 = vadd.f32 %v4881, %v5320
      %v5349 = vadd.f32 %v4881, %v5325
      %v5350 = vadd.f32 %v4881, %v5328
      %s5351 = scalar_lea.vmem [#allocation3], 24
      %v5352 = vld [vmem:[%s5351] sm:$0xff]
      %v5353 = vld [vmem:[%s5351 + $0x8] sm:$0xff]
      %v5354 = vld [vmem:[%s5351 + $0x10] sm:$0x3]
      %v5355 = vld [vmem:[%s5351 + $0x18] sm:$0xff]
      %v5356 = vld [vmem:[%s5351 + $0x20] sm:$0xff]
      %v5357 = vld [vmem:[%s5351 + $0x28] sm:$0x3]
      %v5358 = vld [vmem:[%s5351 + $0x30] sm:$0xff]
      %v5359 = vld [vmem:[%s5351 + $0x38] sm:$0xff]
      %v5360 = vld [vmem:[%s5351 + $0x40] sm:$0x3]
      %v5361 = vld [vmem:[%s5351 + $0x48] sm:$0xff]
      %v5362 = vld [vmem:[%s5351 + $0x50] sm:$0xff]
      %v5363 = vld [vmem:[%s5351 + $0x58] sm:$0x3]
      %v5364 = vld [vmem:[%s5351 + $0x60] sm:$0xff]
      %v5365 = vld [vmem:[%s5351 + $0x68] sm:$0xff]
      %v5366 = vld [vmem:[%s5351 + $0x70] sm:$0x3]
      %v5367 = vld [vmem:[%s5351 + $0x78] sm:$0xff]
      %v5368 = vld [vmem:[%s5351 + $0x80] sm:$0xff]
      %v5369 = vld [vmem:[%s5351 + $0x88] sm:$0x3]
      %v5370 = vld [vmem:[%s5351 + $0x90] sm:$0xff]
      %v5371 = vld [vmem:[%s5351 + $0x98] sm:$0xff]
      %v5372 = vld [vmem:[%s5351 + $0xa0] sm:$0x3]
      %v5373 = vld [vmem:[%s5351 + $0xa8] sm:$0xff]
      %v5374 = vld [vmem:[%s5351 + $0xb0] sm:$0xff]
      %v5375 = vld [vmem:[%s5351 + $0xb8] sm:$0x3]
      %v5376 = vld [vmem:[%s5351 + $0xc0] sm:$0xff]
      %v5377 = vld [vmem:[%s5351 + $0xc8] sm:$0xff]
      %v5378 = vld [vmem:[%s5351 + $0xd0] sm:$0x3]
      %v5379 = vld [vmem:[%s5351 + $0xd8] sm:$0xff]
      %v5380 = vld [vmem:[%s5351 + $0xe0] sm:$0xff]
      %v5381 = vld [vmem:[%s5351 + $0xe8] sm:$0x3]
      %v5382 = vpack.c.bf16 %v5353, %v5352
      %v5383 = vpack.c.bf16 %v5356, %v5355
      %v5384 = vpack.c.bf16 %v5359, %v5358
      %v5385 = vpack.c.bf16 %v5362, %v5361
      %v5386 = vpack.c.bf16 %v5365, %v5364
      %v5387 = vpack.c.bf16 %v5368, %v5367
      %v5388 = vpack.c.bf16 %v5371, %v5370
      %v5389 = vpack.c.bf16 %v5374, %v5373
      %v5390 = vpack.c.bf16 %v5377, %v5376
      %v5391 = vpack.c.bf16 %v5380, %v5379
      %v5392 = vpack.c.bf16 %v5354, %v5354
      %v5393 = vpack.c.bf16 %v5357, %v5357
      %v5394 = vpack.c.bf16 %v5360, %v5360
      %v5395 = vpack.c.bf16 %v5363, %v5363
      %v5396 = vpack.c.bf16 %v5366, %v5366
      %v5397 = vpack.c.bf16 %v5369, %v5369
      %v5398 = vpack.c.bf16 %v5372, %v5372
      %v5399 = vpack.c.bf16 %v5375, %v5375
      %v5400 = vpack.c.bf16 %v5378, %v5378
      %v5401 = vpack.c.bf16 %v5381, %v5381
      %v5403 = vshrl.u32 %v5382, 16
      %v5405 = vshll.u32 %v5382, 16
      %v5407 = vrot.slane %v5405, 1
      %v5408 = vor.u32 %v5403, %v5407
      %v5410 = vshll.u32 %v5392, 16
      %v5412 = vrot.slane %v5410, 1
      %v5413 = vsel %vm3058, %v5408, %v5412
      %v5415 = vshrl.u32 %v5383, 16
      %v5417 = vshll.u32 %v5383, 16
      %v5419 = vrot.slane %v5417, 1
      %v5420 = vor.u32 %v5415, %v5419
      %v5422 = vshll.u32 %v5393, 16
      %v5424 = vrot.slane %v5422, 1
      %v5425 = vsel %vm3058, %v5420, %v5424
      %v5427 = vshrl.u32 %v5384, 16
      %v5429 = vshll.u32 %v5384, 16
      %v5431 = vrot.slane %v5429, 1
      %v5432 = vor.u32 %v5427, %v5431
      %v5434 = vshll.u32 %v5394, 16
      %v5436 = vrot.slane %v5434, 1
      %v5437 = vsel %vm3058, %v5432, %v5436
      %v5439 = vshrl.u32 %v5385, 16
      %v5441 = vshll.u32 %v5385, 16
      %v5443 = vrot.slane %v5441, 1
      %v5444 = vor.u32 %v5439, %v5443
      %v5446 = vshll.u32 %v5395, 16
      %v5448 = vrot.slane %v5446, 1
      %v5449 = vsel %vm3058, %v5444, %v5448
      %v5451 = vshrl.u32 %v5386, 16
      %v5453 = vshll.u32 %v5386, 16
      %v5455 = vrot.slane %v5453, 1
      %v5456 = vor.u32 %v5451, %v5455
      %v5458 = vshll.u32 %v5396, 16
      %v5460 = vrot.slane %v5458, 1
      %v5461 = vsel %vm3058, %v5456, %v5460
      %v5463 = vshrl.u32 %v5387, 16
      %v5465 = vshll.u32 %v5387, 16
      %v5467 = vrot.slane %v5465, 1
      %v5468 = vor.u32 %v5463, %v5467
      %v5470 = vshll.u32 %v5397, 16
      %v5472 = vrot.slane %v5470, 1
      %v5473 = vsel %vm3058, %v5468, %v5472
      %v5475 = vshrl.u32 %v5388, 16
      %v5477 = vshll.u32 %v5388, 16
      %v5479 = vrot.slane %v5477, 1
      %v5480 = vor.u32 %v5475, %v5479
      %v5482 = vshll.u32 %v5398, 16
      %v5484 = vrot.slane %v5482, 1
      %v5485 = vsel %vm3058, %v5480, %v5484
      %v5487 = vshrl.u32 %v5389, 16
      %v5489 = vshll.u32 %v5389, 16
      %v5491 = vrot.slane %v5489, 1
      %v5492 = vor.u32 %v5487, %v5491
      %v5494 = vshll.u32 %v5399, 16
      %v5496 = vrot.slane %v5494, 1
      %v5497 = vsel %vm3058, %v5492, %v5496
      %v5499 = vshrl.u32 %v5390, 16
      %v5501 = vshll.u32 %v5390, 16
      %v5503 = vrot.slane %v5501, 1
      %v5504 = vor.u32 %v5499, %v5503
      %v5506 = vshll.u32 %v5400, 16
      %v5508 = vrot.slane %v5506, 1
      %v5509 = vsel %vm3058, %v5504, %v5508
      %v5511 = vshrl.u32 %v5391, 16
      %v5513 = vshll.u32 %v5391, 16
      %v5515 = vrot.slane %v5513, 1
      %v5516 = vor.u32 %v5511, %v5515
      %v5518 = vshll.u32 %v5401, 16
      %v5520 = vrot.slane %v5518, 1
      %v5521 = vsel %vm3058, %v5516, %v5520
      %5522 = vrot.lane.b32.xlu0 %v5413, 8
      %v5523 = vpop.permute.xlu0 %5522
      %5524 = vrot.lane.b32.xlu0 %v5425, 8
      %v5525 = vpop.permute.xlu0 %5524
      %5526 = vrot.lane.b32.xlu0 %v5437, 8
      %v5527 = vpop.permute.xlu0 %5526
      %5528 = vrot.lane.b32.xlu0 %v5449, 8
      %v5529 = vpop.permute.xlu0 %5528
      %5530 = vrot.lane.b32.xlu0 %v5461, 8
      %v5531 = vpop.permute.xlu0 %5530
      %5532 = vrot.lane.b32.xlu0 %v5473, 8
      %v5533 = vpop.permute.xlu0 %5532
      %5534 = vrot.lane.b32.xlu0 %v5485, 8
      %v5535 = vpop.permute.xlu0 %5534
      %5536 = vrot.lane.b32.xlu0 %v5497, 8
      %v5537 = vpop.permute.xlu0 %5536
      %5538 = vrot.lane.b32.xlu0 %v5509, 8
      %v5539 = vpop.permute.xlu0 %5538
      %5540 = vrot.lane.b32.xlu0 %v5521, 8
      %v5541 = vpop.permute.xlu0 %5540
      %v5562 = vrot.slane %v5382, 1
      %v5563 = vrot.slane %v5392, 1
      %v5564 = vsel %vm3251, %v5562, %v5563
      %v5565 = vrot.slane %v5383, 1
      %v5566 = vrot.slane %v5393, 1
      %v5567 = vsel %vm3251, %v5565, %v5566
      %v5568 = vrot.slane %v5384, 1
      %v5569 = vrot.slane %v5394, 1
      %v5570 = vsel %vm3251, %v5568, %v5569
      %v5571 = vrot.slane %v5385, 1
      %v5572 = vrot.slane %v5395, 1
      %v5573 = vsel %vm3251, %v5571, %v5572
      %v5574 = vrot.slane %v5386, 1
      %v5575 = vrot.slane %v5396, 1
      %v5576 = vsel %vm3251, %v5574, %v5575
      %v5577 = vrot.slane %v5387, 1
      %v5578 = vrot.slane %v5397, 1
      %v5579 = vsel %vm3251, %v5577, %v5578
      %v5580 = vrot.slane %v5388, 1
      %v5581 = vrot.slane %v5398, 1
      %v5582 = vsel %vm3251, %v5580, %v5581
      %v5583 = vrot.slane %v5389, 1
      %v5584 = vrot.slane %v5399, 1
      %v5585 = vsel %vm3251, %v5583, %v5584
      %v5586 = vrot.slane %v5390, 1
      %v5587 = vrot.slane %v5400, 1
      %v5588 = vsel %vm3251, %v5586, %v5587
      %v5589 = vrot.slane %v5391, 1
      %v5590 = vrot.slane %v5401, 1
      %v5591 = vsel %vm3251, %v5589, %v5590
      %5592 = vrot.lane.b32.xlu0 %v5564, 16
      %v5593 = vpop.permute.xlu0 %5592
      %5594 = vrot.lane.b32.xlu0 %v5567, 16
      %v5595 = vpop.permute.xlu0 %5594
      %5596 = vrot.lane.b32.xlu0 %v5570, 16
      %v5597 = vpop.permute.xlu0 %5596
      %5598 = vrot.lane.b32.xlu0 %v5573, 16
      %v5599 = vpop.permute.xlu0 %5598
      %5600 = vrot.lane.b32.xlu0 %v5576, 16
      %v5601 = vpop.permute.xlu0 %5600
      %5602 = vrot.lane.b32.xlu0 %v5579, 16
      %v5603 = vpop.permute.xlu0 %5602
      %5604 = vrot.lane.b32.xlu0 %v5582, 16
      %v5605 = vpop.permute.xlu0 %5604
      %5606 = vrot.lane.b32.xlu0 %v5585, 16
      %v5607 = vpop.permute.xlu0 %5606
      %5608 = vrot.lane.b32.xlu0 %v5588, 16
      %v5609 = vpop.permute.xlu0 %5608
      %5610 = vrot.lane.b32.xlu0 %v5591, 16
      %v5611 = vpop.permute.xlu0 %5610
      %v5613 = vsel %vm941, %v5382, %v5523
      %v5615 = vsel %vm941, %v5383, %v5525
      %v5617 = vsel %vm941, %v5384, %v5527
      %v5619 = vsel %vm941, %v5385, %v5529
      %v5621 = vsel %vm941, %v5386, %v5531
      %v5623 = vsel %vm941, %v5387, %v5533
      %v5625 = vsel %vm941, %v5388, %v5535
      %v5627 = vsel %vm941, %v5389, %v5537
      %v5629 = vsel %vm941, %v5390, %v5539
      %v5631 = vsel %vm941, %v5391, %v5541
      %v5633 = vsel %vm3336, %v5613, %v5593
      %v5635 = vsel %vm3336, %v5615, %v5595
      %v5637 = vsel %vm3336, %v5617, %v5597
      %v5639 = vsel %vm3336, %v5619, %v5599
      %v5641 = vsel %vm3336, %v5621, %v5601
      %v5643 = vsel %vm3336, %v5623, %v5603
      %v5645 = vsel %vm3336, %v5625, %v5605
      %v5647 = vsel %vm3336, %v5627, %v5607
      %v5649 = vsel %vm3336, %v5629, %v5609
      %v5651 = vsel %vm3336, %v5631, %v5611
      %s5652 = scalar_lea.vmem %s9, 12
      %v5653 = vld [vmem:[%s5652] sm:$0xf]
      %v5654 = vld [vmem:[%s5652 + $0x4] sm:$0xf]
      %v5655 = vld [vmem:[%s5652 + $0x8] sm:$0xf]
      %v5659 = vunpack.c.l.b16 %v5653
      %v5660 = vunpack.c.l.b16 %v5654
      %v5661 = vunpack.c.l.b16 %v5655
      %v5662 = vpack.c.b16 %v5660, %v5659
      %v5663 = vpack.c.b16 %v5661, %v5661
      %v5665 = vsel %vm3373, %v5633, 0
      %v5667 = vsel %vm3373, %v5635, 0
      %v5669 = vsel %vm3373, %v5637, 0
      %v5671 = vsel %vm3373, %v5639, 0
      %v5673 = vsel %vm3373, %v5641, 0
      %v5675 = vsel %vm3373, %v5643, 0
      %v5677 = vsel %vm3373, %v5645, 0
      %v5679 = vsel %vm3373, %v5647, 0
      %v5681 = vsel %vm3373, %v5649, 0
      %v5683 = vsel %vm3373, %v5651, 0
      %v5686 = vsel %vm3398, %v5663, 0
      %5688 = vmatprep.subr.bf16.mxu0 0
      %5689 = vmatpush1.bf16.msra.mxu0 %v5662
      %5690 = vmatprep.subr.bf16.mxu0 0
      %5691 = vmatpush1.bf16.msra.mxu0 %v5686
      %5692 = vmatprep.subr.bf16.mxu0 0
      %5693 = vmatpush1.bf16.msra.mxu0 0
      %5694 = vmatprep.subr.bf16.mxu0 0
      %5695 = vmatpush1.bf16.msra.mxu0 0
      %5696 = vmatprep.subr.bf16.mxu0 0
      %5697 = vmatpush1.bf16.msra.mxu0 0
      %5698 = vmatprep.subr.bf16.mxu0 0
      %5699 = vmatpush1.bf16.msra.mxu0 0
      %5700 = vmatprep.subr.bf16.mxu0 0
      %5701 = vmatpush1.bf16.msra.mxu0 0
      %5702 = vmatprep.subr.bf16.mxu0 0
      %5703 = vmatpush1.bf16.msra.mxu0 0
      %5704 = vmatprep.subr.bf16.mxu0 0
      %5705 = vmatpush1.bf16.msra.mxu0 0
      %5706 = vmatprep.subr.bf16.mxu0 0
      %5707 = vmatpush1.bf16.msra.mxu0 0
      %5708 = vmatprep.subr.bf16.mxu0 0
      %5709 = vmatpush1.bf16.msra.mxu0 0
      %5710 = vmatprep.subr.bf16.mxu0 0
      %5711 = vmatpush1.bf16.msra.mxu0 0
      %5712 = vmatprep.subr.bf16.mxu0 0
      %5713 = vmatpush1.bf16.msra.mxu0 0
      %5714 = vmatprep.subr.bf16.mxu0 0
      %5715 = vmatpush1.bf16.msra.mxu0 0
      %5716 = vmatprep.subr.bf16.mxu0 0
      %5717 = vmatpush1.bf16.msra.mxu0 0
      %5718 = vmatprep.subr.bf16.mxu0 0
      %5719 = vmatpush1.bf16.msra.mxu0 0
      %5720 = vmatprep.mubr.bf16.mxu0 0
      %5721 = vmatmul.mubr.bf16.gmra.mrb[0].mxu0 %v5665
      %v5722 = vpop.f32.mrb[0].mxu0
      %v5723 = vadd.f32 0.0, %v5722
      %v5724 = vpop.f32.mrb[0].mxu0
      %v5725 = vpop.f32.mrb[0].mxu0
      %v5726 = vadd.f32 0.0, %v5725
      %v5727 = vpop.f32.mrb[0].mxu0
      %5728 = vmatprep.mubr.bf16.mxu0 0
      %5729 = vmatmul.mubr.bf16.gmra.mrb[0].mxu0 %v5667
      %v5730 = vpop.f32.mrb[0].mxu0
      %v5731 = vadd.f32 0.0, %v5730
      %v5732 = vpop.f32.mrb[0].mxu0
      %v5733 = vpop.f32.mrb[0].mxu0
      %v5734 = vadd.f32 0.0, %v5733
      %v5735 = vpop.f32.mrb[0].mxu0
      %5736 = vmatprep.mubr.bf16.mxu0 0
      %5737 = vmatmul.mubr.bf16.gmra.mrb[0].mxu0 %v5669
      %v5738 = vpop.f32.mrb[0].mxu0
      %v5739 = vadd.f32 0.0, %v5738
      %v5740 = vpop.f32.mrb[0].mxu0
      %v5741 = vpop.f32.mrb[0].mxu0
      %v5742 = vadd.f32 0.0, %v5741
      %v5743 = vpop.f32.mrb[0].mxu0
      %5744 = vmatprep.mubr.bf16.mxu0 0
      %5745 = vmatmul.mubr.bf16.gmra.mrb[0].mxu0 %v5671
      %v5746 = vpop.f32.mrb[0].mxu0
      %v5747 = vadd.f32 0.0, %v5746
      %v5748 = vpop.f32.mrb[0].mxu0
      %v5749 = vpop.f32.mrb[0].mxu0
      %v5750 = vadd.f32 0.0, %v5749
      %v5751 = vpop.f32.mrb[0].mxu0
      %5752 = vmatprep.mubr.bf16.mxu0 0
      %5753 = vmatmul.mubr.bf16.gmra.mrb[0].mxu0 %v5673
      %v5754 = vpop.f32.mrb[0].mxu0
      %v5755 = vadd.f32 0.0, %v5754
      %v5756 = vpop.f32.mrb[0].mxu0
      %v5757 = vpop.f32.mrb[0].mxu0
      %v5758 = vadd.f32 0.0, %v5757
      %v5759 = vpop.f32.mrb[0].mxu0
      %5760 = vmatprep.mubr.bf16.mxu0 0
      %5761 = vmatmul.mubr.bf16.gmra.mrb[0].mxu0 %v5675
      %v5762 = vpop.f32.mrb[0].mxu0
      %v5763 = vadd.f32 0.0, %v5762
      %v5764 = vpop.f32.mrb[0].mxu0
      %v5765 = vpop.f32.mrb[0].mxu0
      %v5766 = vadd.f32 0.0, %v5765
      %v5767 = vpop.f32.mrb[0].mxu0
      %5768 = vmatprep.mubr.bf16.mxu0 0
      %5769 = vmatmul.mubr.bf16.gmra.mrb[0].mxu0 %v5677
      %v5770 = vpop.f32.mrb[0].mxu0
      %v5771 = vadd.f32 0.0, %v5770
      %v5772 = vpop.f32.mrb[0].mxu0
      %v5773 = vpop.f32.mrb[0].mxu0
      %v5774 = vadd.f32 0.0, %v5773
      %v5775 = vpop.f32.mrb[0].mxu0
      %5776 = vmatprep.mubr.bf16.mxu0 0
      %5777 = vmatmul.mubr.bf16.gmra.mrb[0].mxu0 %v5679
      %v5778 = vpop.f32.mrb[0].mxu0
      %v5779 = vadd.f32 0.0, %v5778
      %v5780 = vpop.f32.mrb[0].mxu0
      %v5781 = vpop.f32.mrb[0].mxu0
      %v5782 = vadd.f32 0.0, %v5781
      %v5783 = vpop.f32.mrb[0].mxu0
      %5784 = vmatprep.mubr.bf16.mxu0 0
      %5785 = vmatmul.mubr.bf16.gmra.mrb[0].mxu0 %v5681
      %v5786 = vpop.f32.mrb[0].mxu0
      %v5787 = vadd.f32 0.0, %v5786
      %v5788 = vpop.f32.mrb[0].mxu0
      %v5789 = vpop.f32.mrb[0].mxu0
      %v5790 = vadd.f32 0.0, %v5789
      %v5791 = vpop.f32.mrb[0].mxu0
      %5792 = vmatprep.mubr.bf16.mxu0 0
      %5793 = vmatmul.mubr.bf16.gmra.mrb[0].mxu0 %v5683
      %v5794 = vpop.f32.mrb[0].mxu0
      %v5795 = vadd.f32 0.0, %v5794
      %v5796 = vpop.f32.mrb[0].mxu0
      %v5797 = vpop.f32.mrb[0].mxu0
      %v5798 = vadd.f32 0.0, %v5797
      %v5799 = vpop.f32.mrb[0].mxu0
      %5800 = vdwg.mxu0
      %v5801 = vadd.f32 %v5331, %v5723
      %v5802 = vadd.f32 %v5332, %v5726
      %v5803 = vadd.f32 %v5333, %v5731
      %v5804 = vadd.f32 %v5334, %v5734
      %v5805 = vadd.f32 %v5335, %v5739
      %v5806 = vadd.f32 %v5336, %v5742
      %v5807 = vadd.f32 %v5337, %v5747
      %v5808 = vadd.f32 %v5338, %v5750
      %v5809 = vadd.f32 %v5339, %v5755
      %v5810 = vadd.f32 %v5340, %v5758
      %v5811 = vadd.f32 %v5341, %v5763
      %v5812 = vadd.f32 %v5342, %v5766
      %v5813 = vadd.f32 %v5343, %v5771
      %v5814 = vadd.f32 %v5344, %v5774
      %v5815 = vadd.f32 %v5345, %v5779
      %v5816 = vadd.f32 %v5346, %v5782
      %v5817 = vadd.f32 %v5347, %v5787
      %v5818 = vadd.f32 %v5348, %v5790
      %v5819 = vadd.f32 %v5349, %v5795
      %v5820 = vadd.f32 %v5350, %v5798
      %v5821 = vld [vmem:[%s4768] sm:$0xff]
      %v5822 = vld [vmem:[%s4768 + $0x8] sm:$0xff]
      %v5823 = vld [vmem:[%s4768 + $0x10] sm:$0x3]
      %v5824 = vld [vmem:[%s4768 + $0x18] sm:$0xff]
      %v5825 = vld [vmem:[%s4768 + $0x20] sm:$0xff]
      %v5826 = vld [vmem:[%s4768 + $0x28] sm:$0x3]
      %v5827 = vld [vmem:[%s4768 + $0x30] sm:$0xff]
      %v5828 = vld [vmem:[%s4768 + $0x38] sm:$0xff]
      %v5829 = vld [vmem:[%s4768 + $0x40] sm:$0x3]
      %v5830 = vld [vmem:[%s4768 + $0x48] sm:$0xff]
      %v5831 = vld [vmem:[%s4768 + $0x50] sm:$0xff]
      %v5832 = vld [vmem:[%s4768 + $0x58] sm:$0x3]
      %v5833 = vld [vmem:[%s4768 + $0x60] sm:$0xff]
      %v5834 = vld [vmem:[%s4768 + $0x68] sm:$0xff]
      %v5835 = vld [vmem:[%s4768 + $0x70] sm:$0x3]
      %v5836 = vld [vmem:[%s4768 + $0x78] sm:$0xff]
      %v5837 = vld [vmem:[%s4768 + $0x80] sm:$0xff]
      %v5838 = vld [vmem:[%s4768 + $0x88] sm:$0x3]
      %v5839 = vld [vmem:[%s4768 + $0x90] sm:$0xff]
      %v5840 = vld [vmem:[%s4768 + $0x98] sm:$0xff]
      %v5841 = vld [vmem:[%s4768 + $0xa0] sm:$0x3]
      %v5842 = vld [vmem:[%s4768 + $0xa8] sm:$0xff]
      %v5843 = vld [vmem:[%s4768 + $0xb0] sm:$0xff]
      %v5844 = vld [vmem:[%s4768 + $0xb8] sm:$0x3]
      %v5845 = vld [vmem:[%s4768 + $0xc0] sm:$0xff]
      %v5846 = vld [vmem:[%s4768 + $0xc8] sm:$0xff]
      %v5847 = vld [vmem:[%s4768 + $0xd0] sm:$0x3]
      %v5848 = vld [vmem:[%s4768 + $0xd8] sm:$0xff]
      %v5849 = vld [vmem:[%s4768 + $0xe0] sm:$0xff]
      %v5850 = vld [vmem:[%s4768 + $0xe8] sm:$0x3]
      %v5851 = vpack.c.bf16 %v5822, %v5821
      %v5852 = vpack.c.bf16 %v5825, %v5824
      %v5853 = vpack.c.bf16 %v5828, %v5827
      %v5854 = vpack.c.bf16 %v5831, %v5830
      %v5855 = vpack.c.bf16 %v5834, %v5833
      %v5856 = vpack.c.bf16 %v5837, %v5836
      %v5857 = vpack.c.bf16 %v5840, %v5839
      %v5858 = vpack.c.bf16 %v5843, %v5842
      %v5859 = vpack.c.bf16 %v5846, %v5845
      %v5860 = vpack.c.bf16 %v5849, %v5848
      %v5861 = vpack.c.bf16 %v5823, %v5823
      %v5862 = vpack.c.bf16 %v5826, %v5826
      %v5863 = vpack.c.bf16 %v5829, %v5829
      %v5864 = vpack.c.bf16 %v5832, %v5832
      %v5865 = vpack.c.bf16 %v5835, %v5835
      %v5866 = vpack.c.bf16 %v5838, %v5838
      %v5867 = vpack.c.bf16 %v5841, %v5841
      %v5868 = vpack.c.bf16 %v5844, %v5844
      %v5869 = vpack.c.bf16 %v5847, %v5847
      %v5870 = vpack.c.bf16 %v5850, %v5850
      %v5872 = vshrl.u32 %v5851, 16
      %v5874 = vshll.u32 %v5851, 16
      %v5876 = vrot.slane %v5874, 1
      %v5877 = vor.u32 %v5872, %v5876
      %v5879 = vshll.u32 %v5861, 16
      %v5881 = vrot.slane %v5879, 1
      %v5882 = vsel %vm3058, %v5877, %v5881
      %v5884 = vshrl.u32 %v5852, 16
      %v5886 = vshll.u32 %v5852, 16
      %v5888 = vrot.slane %v5886, 1
      %v5889 = vor.u32 %v5884, %v5888
      %v5891 = vshll.u32 %v5862, 16
      %v5893 = vrot.slane %v5891, 1
      %v5894 = vsel %vm3058, %v5889, %v5893
      %v5896 = vshrl.u32 %v5853, 16
      %v5898 = vshll.u32 %v5853, 16
      %v5900 = vrot.slane %v5898, 1
      %v5901 = vor.u32 %v5896, %v5900
      %v5903 = vshll.u32 %v5863, 16
      %v5905 = vrot.slane %v5903, 1
      %v5906 = vsel %vm3058, %v5901, %v5905
      %v5908 = vshrl.u32 %v5854, 16
      %v5910 = vshll.u32 %v5854, 16
      %v5912 = vrot.slane %v5910, 1
      %v5913 = vor.u32 %v5908, %v5912
      %v5915 = vshll.u32 %v5864, 16
      %v5917 = vrot.slane %v5915, 1
      %v5918 = vsel %vm3058, %v5913, %v5917
      %v5920 = vshrl.u32 %v5855, 16
      %v5922 = vshll.u32 %v5855, 16
      %v5924 = vrot.slane %v5922, 1
      %v5925 = vor.u32 %v5920, %v5924
      %v5927 = vshll.u32 %v5865, 16
      %v5929 = vrot.slane %v5927, 1
      %v5930 = vsel %vm3058, %v5925, %v5929
      %v5932 = vshrl.u32 %v5856, 16
      %v5934 = vshll.u32 %v5856, 16
      %v5936 = vrot.slane %v5934, 1
      %v5937 = vor.u32 %v5932, %v5936
      %v5939 = vshll.u32 %v5866, 16
      %v5941 = vrot.slane %v5939, 1
      %v5942 = vsel %vm3058, %v5937, %v5941
      %v5944 = vshrl.u32 %v5857, 16
      %v5946 = vshll.u32 %v5857, 16
      %v5948 = vrot.slane %v5946, 1
      %v5949 = vor.u32 %v5944, %v5948
      %v5951 = vshll.u32 %v5867, 16
      %v5953 = vrot.slane %v5951, 1
      %v5954 = vsel %vm3058, %v5949, %v5953
      %v5956 = vshrl.u32 %v5858, 16
      %v5958 = vshll.u32 %v5858, 16
      %v5960 = vrot.slane %v5958, 1
      %v5961 = vor.u32 %v5956, %v5960
      %v5963 = vshll.u32 %v5868, 16
      %v5965 = vrot.slane %v5963, 1
      %v5966 = vsel %vm3058, %v5961, %v5965
      %v5968 = vshrl.u32 %v5859, 16
      %v5970 = vshll.u32 %v5859, 16
      %v5972 = vrot.slane %v5970, 1
      %v5973 = vor.u32 %v5968, %v5972
      %v5975 = vshll.u32 %v5869, 16
      %v5977 = vrot.slane %v5975, 1
      %v5978 = vsel %vm3058, %v5973, %v5977
      %v5980 = vshrl.u32 %v5860, 16
      %v5982 = vshll.u32 %v5860, 16
      %v5984 = vrot.slane %v5982, 1
      %v5985 = vor.u32 %v5980, %v5984
      %v5987 = vshll.u32 %v5870, 16
      %v5989 = vrot.slane %v5987, 1
      %v5990 = vsel %vm3058, %v5985, %v5989
      %5991 = vrot.lane.b32.xlu0 %v5882, 8
      %v5992 = vpop.permute.xlu0 %5991
      %5993 = vrot.lane.b32.xlu0 %v5894, 8
      %v5994 = vpop.permute.xlu0 %5993
      %5995 = vrot.lane.b32.xlu0 %v5906, 8
      %v5996 = vpop.permute.xlu0 %5995
      %5997 = vrot.lane.b32.xlu0 %v5918, 8
      %v5998 = vpop.permute.xlu0 %5997
      %5999 = vrot.lane.b32.xlu0 %v5930, 8
      %v6000 = vpop.permute.xlu0 %5999
      %6001 = vrot.lane.b32.xlu0 %v5942, 8
      %v6002 = vpop.permute.xlu0 %6001
      %6003 = vrot.lane.b32.xlu0 %v5954, 8
      %v6004 = vpop.permute.xlu0 %6003
      %6005 = vrot.lane.b32.xlu0 %v5966, 8
      %v6006 = vpop.permute.xlu0 %6005
      %6007 = vrot.lane.b32.xlu0 %v5978, 8
      %v6008 = vpop.permute.xlu0 %6007
      %6009 = vrot.lane.b32.xlu0 %v5990, 8
      %v6010 = vpop.permute.xlu0 %6009
      %v6031 = vrot.slane %v5851, 1
      %v6032 = vrot.slane %v5861, 1
      %v6033 = vsel %vm3251, %v6031, %v6032
      %v6034 = vrot.slane %v5852, 1
      %v6035 = vrot.slane %v5862, 1
      %v6036 = vsel %vm3251, %v6034, %v6035
      %v6037 = vrot.slane %v5853, 1
      %v6038 = vrot.slane %v5863, 1
      %v6039 = vsel %vm3251, %v6037, %v6038
      %v6040 = vrot.slane %v5854, 1
      %v6041 = vrot.slane %v5864, 1
      %v6042 = vsel %vm3251, %v6040, %v6041
      %v6043 = vrot.slane %v5855, 1
      %v6044 = vrot.slane %v5865, 1
      %v6045 = vsel %vm3251, %v6043, %v6044
      %v6046 = vrot.slane %v5856, 1
      %v6047 = vrot.slane %v5866, 1
      %v6048 = vsel %vm3251, %v6046, %v6047
      %v6049 = vrot.slane %v5857, 1
      %v6050 = vrot.slane %v5867, 1
      %v6051 = vsel %vm3251, %v6049, %v6050
      %v6052 = vrot.slane %v5858, 1
      %v6053 = vrot.slane %v5868, 1
      %v6054 = vsel %vm3251, %v6052, %v6053
      %v6055 = vrot.slane %v5859, 1
      %v6056 = vrot.slane %v5869, 1
      %v6057 = vsel %vm3251, %v6055, %v6056
      %v6058 = vrot.slane %v5860, 1
      %v6059 = vrot.slane %v5870, 1
      %v6060 = vsel %vm3251, %v6058, %v6059
      %6061 = vrot.lane.b32.xlu0 %v6033, 16
      %v6062 = vpop.permute.xlu0 %6061
      %6063 = vrot.lane.b32.xlu0 %v6036, 16
      %v6064 = vpop.permute.xlu0 %6063
      %6065 = vrot.lane.b32.xlu0 %v6039, 16
      %v6066 = vpop.permute.xlu0 %6065
      %6067 = vrot.lane.b32.xlu0 %v6042, 16
      %v6068 = vpop.permute.xlu0 %6067
      %6069 = vrot.lane.b32.xlu0 %v6045, 16
      %v6070 = vpop.permute.xlu0 %6069
      %6071 = vrot.lane.b32.xlu0 %v6048, 16
      %v6072 = vpop.permute.xlu0 %6071
      %6073 = vrot.lane.b32.xlu0 %v6051, 16
      %v6074 = vpop.permute.xlu0 %6073
      %6075 = vrot.lane.b32.xlu0 %v6054, 16
      %v6076 = vpop.permute.xlu0 %6075
      %6077 = vrot.lane.b32.xlu0 %v6057, 16
      %v6078 = vpop.permute.xlu0 %6077
      %6079 = vrot.lane.b32.xlu0 %v6060, 16
      %v6080 = vpop.permute.xlu0 %6079
      %v6082 = vsel %vm941, %v5851, %v5992
      %v6084 = vsel %vm941, %v5852, %v5994
      %v6086 = vsel %vm941, %v5853, %v5996
      %v6088 = vsel %vm941, %v5854, %v5998
      %v6090 = vsel %vm941, %v5855, %v6000
      %v6092 = vsel %vm941, %v5856, %v6002
      %v6094 = vsel %vm941, %v5857, %v6004
      %v6096 = vsel %vm941, %v5858, %v6006
      %v6098 = vsel %vm941, %v5859, %v6008
      %v6100 = vsel %vm941, %v5860, %v6010
      %v6102 = vsel %vm3336, %v6082, %v6062
      %v6104 = vsel %vm3336, %v6084, %v6064
      %v6106 = vsel %vm3336, %v6086, %v6066
      %v6108 = vsel %vm3336, %v6088, %v6068
      %v6110 = vsel %vm3336, %v6090, %v6070
      %v6112 = vsel %vm3336, %v6092, %v6072
      %v6114 = vsel %vm3336, %v6094, %v6074
      %v6116 = vsel %vm3336, %v6096, %v6076
      %v6118 = vsel %vm3336, %v6098, %v6078
      %v6120 = vsel %vm3336, %v6100, %v6080
      %s6121 = scalar_lea.vmem %s9, 24
      %v6122 = vld [vmem:[%s6121] sm:$0xf]
      %v6123 = vld [vmem:[%s6121 + $0x4] sm:$0xf]
      %v6124 = vld [vmem:[%s6121 + $0x8] sm:$0xf]
      %v6128 = vunpack.c.l.b16 %v6122
      %v6129 = vunpack.c.l.b16 %v6123
      %v6130 = vunpack.c.l.b16 %v6124
      %v6131 = vpack.c.b16 %v6129, %v6128
      %v6132 = vpack.c.b16 %v6130, %v6130
      %v6134 = vsel %vm3373, %v6102, 0
      %v6136 = vsel %vm3373, %v6104, 0
      %v6138 = vsel %vm3373, %v6106, 0
      %v6140 = vsel %vm3373, %v6108, 0
      %v6142 = vsel %vm3373, %v6110, 0
      %v6144 = vsel %vm3373, %v6112, 0
      %v6146 = vsel %vm3373, %v6114, 0
      %v6148 = vsel %vm3373, %v6116, 0
      %v6150 = vsel %vm3373, %v6118, 0
      %v6152 = vsel %vm3373, %v6120, 0
      %v6155 = vsel %vm3398, %v6132, 0
      %6157 = vmatprep.subr.bf16.mxu0 0
      %6158 = vmatpush1.bf16.msra.mxu0 %v6131
      %6159 = vmatprep.subr.bf16.mxu0 0
      %6160 = vmatpush1.bf16.msra.mxu0 %v6155
      %6161 = vmatprep.subr.bf16.mxu0 0
      %6162 = vmatpush1.bf16.msra.mxu0 0
      %6163 = vmatprep.subr.bf16.mxu0 0
      %6164 = vmatpush1.bf16.msra.mxu0 0
      %6165 = vmatprep.subr.bf16.mxu0 0
      %6166 = vmatpush1.bf16.msra.mxu0 0
      %6167 = vmatprep.subr.bf16.mxu0 0
      %6168 = vmatpush1.bf16.msra.mxu0 0
      %6169 = vmatprep.subr.bf16.mxu0 0
      %6170 = vmatpush1.bf16.msra.mxu0 0
      %6171 = vmatprep.subr.bf16.mxu0 0
      %6172 = vmatpush1.bf16.msra.mxu0 0
      %6173 = vmatprep.subr.bf16.mxu0 0
      %6174 = vmatpush1.bf16.msra.mxu0 0
      %6175 = vmatprep.subr.bf16.mxu0 0
      %6176 = vmatpush1.bf16.msra.mxu0 0
      %6177 = vmatprep.subr.bf16.mxu0 0
      %6178 = vmatpush1.bf16.msra.mxu0 0
      %6179 = vmatprep.subr.bf16.mxu0 0
      %6180 = vmatpush1.bf16.msra.mxu0 0
      %6181 = vmatprep.subr.bf16.mxu0 0
      %6182 = vmatpush1.bf16.msra.mxu0 0
      %6183 = vmatprep.subr.bf16.mxu0 0
      %6184 = vmatpush1.bf16.msra.mxu0 0
      %6185 = vmatprep.subr.bf16.mxu0 0
      %6186 = vmatpush1.bf16.msra.mxu0 0
      %6187 = vmatprep.subr.bf16.mxu0 0
      %6188 = vmatpush1.bf16.msra.mxu0 0
      %6189 = vmatprep.mubr.bf16.mxu0 0
      %6190 = vmatmul.mubr.bf16.gmra.mrb[0].mxu0 %v6134
      %v6191 = vpop.f32.mrb[0].mxu0
      %v6192 = vadd.f32 0.0, %v6191
      %v6193 = vpop.f32.mrb[0].mxu0
      %v6194 = vpop.f32.mrb[0].mxu0
      %v6195 = vadd.f32 0.0, %v6194
      %v6196 = vpop.f32.mrb[0].mxu0
      %6197 = vmatprep.mubr.bf16.mxu0 0
      %6198 = vmatmul.mubr.bf16.gmra.mrb[0].mxu0 %v6136
      %v6199 = vpop.f32.mrb[0].mxu0
      %v6200 = vadd.f32 0.0, %v6199
      %v6201 = vpop.f32.mrb[0].mxu0
      %v6202 = vpop.f32.mrb[0].mxu0
      %v6203 = vadd.f32 0.0, %v6202
      %v6204 = vpop.f32.mrb[0].mxu0
      %6205 = vmatprep.mubr.bf16.mxu0 0
      %6206 = vmatmul.mubr.bf16.gmra.mrb[0].mxu0 %v6138
      %v6207 = vpop.f32.mrb[0].mxu0
      %v6208 = vadd.f32 0.0, %v6207
      %v6209 = vpop.f32.mrb[0].mxu0
      %v6210 = vpop.f32.mrb[0].mxu0
      %v6211 = vadd.f32 0.0, %v6210
      %v6212 = vpop.f32.mrb[0].mxu0
      %6213 = vmatprep.mubr.bf16.mxu0 0
      %6214 = vmatmul.mubr.bf16.gmra.mrb[0].mxu0 %v6140
      %v6215 = vpop.f32.mrb[0].mxu0
      %v6216 = vadd.f32 0.0, %v6215
      %v6217 = vpop.f32.mrb[0].mxu0
      %v6218 = vpop.f32.mrb[0].mxu0
      %v6219 = vadd.f32 0.0, %v6218
      %v6220 = vpop.f32.mrb[0].mxu0
      %6221 = vmatprep.mubr.bf16.mxu0 0
      %6222 = vmatmul.mubr.bf16.gmra.mrb[0].mxu0 %v6142
      %v6223 = vpop.f32.mrb[0].mxu0
      %v6224 = vadd.f32 0.0, %v6223
      %v6225 = vpop.f32.mrb[0].mxu0
      %v6226 = vpop.f32.mrb[0].mxu0
      %v6227 = vadd.f32 0.0, %v6226
      %v6228 = vpop.f32.mrb[0].mxu0
      %6229 = vmatprep.mubr.bf16.mxu0 0
      %6230 = vmatmul.mubr.bf16.gmra.mrb[0].mxu0 %v6144
      %v6231 = vpop.f32.mrb[0].mxu0
      %v6232 = vadd.f32 0.0, %v6231
      %v6233 = vpop.f32.mrb[0].mxu0
      %v6234 = vpop.f32.mrb[0].mxu0
      %v6235 = vadd.f32 0.0, %v6234
      %v6236 = vpop.f32.mrb[0].mxu0
      %6237 = vmatprep.mubr.bf16.mxu0 0
      %6238 = vmatmul.mubr.bf16.gmra.mrb[0].mxu0 %v6146
      %v6239 = vpop.f32.mrb[0].mxu0
      %v6240 = vadd.f32 0.0, %v6239
      %v6241 = vpop.f32.mrb[0].mxu0
      %v6242 = vpop.f32.mrb[0].mxu0
      %v6243 = vadd.f32 0.0, %v6242
      %v6244 = vpop.f32.mrb[0].mxu0
      %6245 = vmatprep.mubr.bf16.mxu0 0
      %6246 = vmatmul.mubr.bf16.gmra.mrb[0].mxu0 %v6148
      %v6247 = vpop.f32.mrb[0].mxu0
      %v6248 = vadd.f32 0.0, %v6247
      %v6249 = vpop.f32.mrb[0].mxu0
      %v6250 = vpop.f32.mrb[0].mxu0
      %v6251 = vadd.f32 0.0, %v6250
      %v6252 = vpop.f32.mrb[0].mxu0
      %6253 = vmatprep.mubr.bf16.mxu0 0
      %6254 = vmatmul.mubr.bf16.gmra.mrb[0].mxu0 %v6150
      %v6255 = vpop.f32.mrb[0].mxu0
      %v6256 = vadd.f32 0.0, %v6255
      %v6257 = vpop.f32.mrb[0].mxu0
      %v6258 = vpop.f32.mrb[0].mxu0
      %v6259 = vadd.f32 0.0, %v6258
      %v6260 = vpop.f32.mrb[0].mxu0
      %6261 = vmatprep.mubr.bf16.mxu0 0
      %6262 = vmatmul.mubr.bf16.gmra.mrb[0].mxu0 %v6152
      %v6263 = vpop.f32.mrb[0].mxu0
      %v6264 = vadd.f32 0.0, %v6263
      %v6265 = vpop.f32.mrb[0].mxu0
      %v6266 = vpop.f32.mrb[0].mxu0
      %v6267 = vadd.f32 0.0, %v6266
      %v6268 = vpop.f32.mrb[0].mxu0
      %6269 = vdwg.mxu0
      %v6270 = vadd.f32 %v5801, %v6192
      %v6271 = vadd.f32 %v5802, %v6195
      %v6272 = vadd.f32 %v5803, %v6200
      %v6273 = vadd.f32 %v5804, %v6203
      %v6274 = vadd.f32 %v5805, %v6208
      %v6275 = vadd.f32 %v5806, %v6211
      %v6276 = vadd.f32 %v5807, %v6216
      %v6277 = vadd.f32 %v5808, %v6219
      %v6278 = vadd.f32 %v5809, %v6224
      %v6279 = vadd.f32 %v5810, %v6227
      %v6280 = vadd.f32 %v5811, %v6232
      %v6281 = vadd.f32 %v5812, %v6235
      %v6282 = vadd.f32 %v5813, %v6240
      %v6283 = vadd.f32 %v5814, %v6243
      %v6284 = vadd.f32 %v5815, %v6248
      %v6285 = vadd.f32 %v5816, %v6251
      %v6286 = vadd.f32 %v5817, %v6256
      %v6287 = vadd.f32 %v5818, %v6259
      %v6288 = vadd.f32 %v5819, %v6264
      %v6289 = vadd.f32 %v5820, %v6267
      %v6290 = vmax.f32 %v6270, 0.0
      %v6291 = vmax.f32 %v6271, 0.0
      %v6292 = vmax.f32 %v6272, 0.0
      %v6293 = vmax.f32 %v6273, 0.0
      %v6294 = vmax.f32 %v6274, 0.0
      %v6295 = vmax.f32 %v6275, 0.0
      %v6296 = vmax.f32 %v6276, 0.0
      %v6297 = vmax.f32 %v6277, 0.0
      %v6298 = vmax.f32 %v6278, 0.0
      %v6299 = vmax.f32 %v6279, 0.0
      %v6300 = vmax.f32 %v6280, 0.0
      %v6301 = vmax.f32 %v6281, 0.0
      %v6302 = vmax.f32 %v6282, 0.0
      %v6303 = vmax.f32 %v6283, 0.0
      %v6304 = vmax.f32 %v6284, 0.0
      %v6305 = vmax.f32 %v6285, 0.0
      %v6306 = vmax.f32 %v6286, 0.0
      %v6307 = vmax.f32 %v6287, 0.0
      %v6308 = vmax.f32 %v6288, 0.0
      %v6309 = vmax.f32 %v6289, 0.0
      %6310 = vst.msk [vmem:[#allocation4 + $0x1] sm:$0xff] %vm4663, %v6290
      %6311 = vst.msk [vmem:[#allocation4 + $0x9] sm:$0xff] %vm4663, %v6291
      %6312 = vst.msk [vmem:[#allocation4 + $0x19] sm:$0xff] %vm4663, %v6292
      %6313 = vst.msk [vmem:[#allocation4 + $0x21] sm:$0xff] %vm4663, %v6293
      %6314 = vst.msk [vmem:[#allocation4 + $0x31] sm:$0xff] %vm4663, %v6294
      %6315 = vst.msk [vmem:[#allocation4 + $0x39] sm:$0xff] %vm4663, %v6295
      %6316 = vst.msk [vmem:[#allocation4 + $0x49] sm:$0xff] %vm4663, %v6296
      %6317 = vst.msk [vmem:[#allocation4 + $0x51] sm:$0xff] %vm4663, %v6297
      %6318 = vst.msk [vmem:[#allocation4 + $0x61] sm:$0xff] %vm4663, %v6298
      %6319 = vst.msk [vmem:[#allocation4 + $0x69] sm:$0xff] %vm4663, %v6299
      %6320 = vst.msk [vmem:[#allocation4 + $0x79] sm:$0xff] %vm4663, %v6300
      %6321 = vst.msk [vmem:[#allocation4 + $0x81] sm:$0xff] %vm4663, %v6301
      %6322 = vst.msk [vmem:[#allocation4 + $0x91] sm:$0xff] %vm4663, %v6302
      %6323 = vst.msk [vmem:[#allocation4 + $0x99] sm:$0xff] %vm4663, %v6303
      %6324 = vst.msk [vmem:[#allocation4 + $0xa9] sm:$0xff] %vm4663, %v6304
      %6325 = vst.msk [vmem:[#allocation4 + $0xb1] sm:$0xff] %vm4663, %v6305
      %6326 = vst.msk [vmem:[#allocation4 + $0xc1] sm:$0xff] %vm4663, %v6306
      %6327 = vst.msk [vmem:[#allocation4 + $0xc9] sm:$0xff] %vm4663, %v6307
      %6328 = vst.msk [vmem:[#allocation4 + $0xd9] sm:$0xff] %vm4663, %v6308
      %6329 = vst.msk [vmem:[#allocation4 + $0xe1] sm:$0xff] %vm4663, %v6309
      // Predicated region
      $region89: #{unet_up_forward.1} parent=71 // pred_check
        %p6330 = pneg %p2939
      $region90: #{unet_up_forward.1} parent=71 // pred_check_branch
        %6332 = sbr.rel (%p6330) target = $region92
      $region91: #{unet_up_forward.1} parent=71 // pred_region
        %6333 = vst.msk [vmem:[#allocation4] sm:$0xff] %vm4663, 0.0
        %6334 = vst.msk [vmem:[#allocation4 + $0x8] sm:$0xff] %vm4663, 0.0
        %vm6335 = vcmask 25600
        %6336 = vst.msk [vmem:[#allocation4 + $0x10] sm:$0x3] %vm6335, 0.0
      $region92: #{unet_up_forward.1} parent=71 // pred_fallthru
        _
      // Predicated region
      $region93: #{unet_up_forward.1} parent=71 // pred_check
        %p6337 = pneg %p2953
      $region94: #{unet_up_forward.1} parent=71 // pred_check_branch
        %6339 = sbr.rel (%p6337) target = $region96
      $region95: #{unet_up_forward.1} parent=71 // pred_region
        %s6340 = scalar_lea.vmem [#allocation4], 216
        %6341 = vst.msk [vmem:[%s6340] sm:$0xff] %vm4663, 0.0
        %6342 = vst.msk [vmem:[%s6340 + $0x8] sm:$0xff] %vm4663, 0.0
        %vm6343 = vcmask 25600
        %6344 = vst.msk [vmem:[%s6340 + $0x10] sm:$0x3] %vm6343, 0.0
      $region96: #{unet_up_forward.1} parent=71 // pred_fallthru
        _
      %v6345 = vld [vmem:[%s12] sm:$0x1]
      %v6347 = vlaneseq
      %v6348 = vshrl.u32 %v6347, 7
      %v6349 = vsub.s32 0, %v6348
      %v6350 = vrot.slane %v6345, %v6349
      %v6352 = vld [vmem:[#allocation4] sm:$0xff]
      %v6353 = vld [vmem:[#allocation4 + $0x8] sm:$0xff]
      %v6354 = vld [vmem:[#allocation4 + $0x10] sm:$0x3]
      %v6355 = vld [vmem:[#allocation4 + $0x18] sm:$0xff]
      %v6356 = vld [vmem:[#allocation4 + $0x20] sm:$0xff]
      %v6357 = vld [vmem:[#allocation4 + $0x28] sm:$0x3]
      %v6358 = vld [vmem:[#allocation4 + $0x30] sm:$0xff]
      %v6359 = vld [vmem:[#allocation4 + $0x38] sm:$0xff]
      %v6360 = vld [vmem:[#allocation4 + $0x40] sm:$0x3]
      %v6361 = vld [vmem:[#allocation4 + $0x48] sm:$0xff]
      %v6362 = vld [vmem:[#allocation4 + $0x50] sm:$0xff]
      %v6363 = vld [vmem:[#allocation4 + $0x58] sm:$0x3]
      %v6364 = vld [vmem:[#allocation4 + $0x60] sm:$0xff]
      %v6365 = vld [vmem:[#allocation4 + $0x68] sm:$0xff]
      %v6366 = vld [vmem:[#allocation4 + $0x70] sm:$0x3]
      %v6367 = vld [vmem:[#allocation4 + $0x78] sm:$0xff]
      %v6368 = vld [vmem:[#allocation4 + $0x80] sm:$0xff]
      %v6369 = vld [vmem:[#allocation4 + $0x88] sm:$0x3]
      %v6370 = vld [vmem:[#allocation4 + $0x90] sm:$0xff]
      %v6371 = vld [vmem:[#allocation4 + $0x98] sm:$0xff]
      %v6372 = vld [vmem:[#allocation4 + $0xa0] sm:$0x3]
      %v6373 = vld [vmem:[#allocation4 + $0xa8] sm:$0xff]
      %v6374 = vld [vmem:[#allocation4 + $0xb0] sm:$0xff]
      %v6375 = vld [vmem:[#allocation4 + $0xb8] sm:$0x3]
      %v6376 = vpack.c.bf16 %v6353, %v6352
      %v6377 = vpack.c.bf16 %v6356, %v6355
      %v6378 = vpack.c.bf16 %v6359, %v6358
      %v6379 = vpack.c.bf16 %v6362, %v6361
      %v6380 = vpack.c.bf16 %v6365, %v6364
      %v6381 = vpack.c.bf16 %v6368, %v6367
      %v6382 = vpack.c.bf16 %v6371, %v6370
      %v6383 = vpack.c.bf16 %v6374, %v6373
      %v6384 = vpack.c.bf16 %v6354, %v6354
      %v6385 = vpack.c.bf16 %v6357, %v6357
      %v6386 = vpack.c.bf16 %v6360, %v6360
      %v6387 = vpack.c.bf16 %v6363, %v6363
      %v6388 = vpack.c.bf16 %v6366, %v6366
      %v6389 = vpack.c.bf16 %v6369, %v6369
      %v6390 = vpack.c.bf16 %v6372, %v6372
      %v6391 = vpack.c.bf16 %v6375, %v6375
      %v6393 = vshrl.u32 %v6376, 16
      %v6395 = vshll.u32 %v6376, 16
      %v6397 = vrot.slane %v6395, 1
      %v6398 = vor.u32 %v6393, %v6397
      %v6400 = vshll.u32 %v6384, 16
      %v6402 = vrot.slane %v6400, 1
      %v6403 = vsel %vm3058, %v6398, %v6402
      %v6405 = vshrl.u32 %v6377, 16
      %v6407 = vshll.u32 %v6377, 16
      %v6409 = vrot.slane %v6407, 1
      %v6410 = vor.u32 %v6405, %v6409
      %v6412 = vshll.u32 %v6385, 16
      %v6414 = vrot.slane %v6412, 1
      %v6415 = vsel %vm3058, %v6410, %v6414
      %v6417 = vshrl.u32 %v6378, 16
      %v6419 = vshll.u32 %v6378, 16
      %v6421 = vrot.slane %v6419, 1
      %v6422 = vor.u32 %v6417, %v6421
      %v6424 = vshll.u32 %v6386, 16
      %v6426 = vrot.slane %v6424, 1
      %v6427 = vsel %vm3058, %v6422, %v6426
      %v6429 = vshrl.u32 %v6379, 16
      %v6431 = vshll.u32 %v6379, 16
      %v6433 = vrot.slane %v6431, 1
      %v6434 = vor.u32 %v6429, %v6433
      %v6436 = vshll.u32 %v6387, 16
      %v6438 = vrot.slane %v6436, 1
      %v6439 = vsel %vm3058, %v6434, %v6438
      %v6441 = vshrl.u32 %v6380, 16
      %v6443 = vshll.u32 %v6380, 16
      %v6445 = vrot.slane %v6443, 1
      %v6446 = vor.u32 %v6441, %v6445
      %v6448 = vshll.u32 %v6388, 16
      %v6450 = vrot.slane %v6448, 1
      %v6451 = vsel %vm3058, %v6446, %v6450
      %v6453 = vshrl.u32 %v6381, 16
      %v6455 = vshll.u32 %v6381, 16
      %v6457 = vrot.slane %v6455, 1
      %v6458 = vor.u32 %v6453, %v6457
      %v6460 = vshll.u32 %v6389, 16
      %v6462 = vrot.slane %v6460, 1
      %v6463 = vsel %vm3058, %v6458, %v6462
      %v6465 = vshrl.u32 %v6382, 16
      %v6467 = vshll.u32 %v6382, 16
      %v6469 = vrot.slane %v6467, 1
      %v6470 = vor.u32 %v6465, %v6469
      %v6472 = vshll.u32 %v6390, 16
      %v6474 = vrot.slane %v6472, 1
      %v6475 = vsel %vm3058, %v6470, %v6474
      %v6477 = vshrl.u32 %v6383, 16
      %v6479 = vshll.u32 %v6383, 16
      %v6481 = vrot.slane %v6479, 1
      %v6482 = vor.u32 %v6477, %v6481
      %v6484 = vshll.u32 %v6391, 16
      %v6486 = vrot.slane %v6484, 1
      %v6487 = vsel %vm3058, %v6482, %v6486
      %6488 = vrot.lane.b32.xlu0 %v6403, 4
      %v6489 = vpop.permute.xlu0 %6488
      %6490 = vrot.lane.b32.xlu0 %v6415, 4
      %v6491 = vpop.permute.xlu0 %6490
      %6492 = vrot.lane.b32.xlu0 %v6427, 4
      %v6493 = vpop.permute.xlu0 %6492
      %6494 = vrot.lane.b32.xlu0 %v6439, 4
      %v6495 = vpop.permute.xlu0 %6494
      %6496 = vrot.lane.b32.xlu0 %v6451, 4
      %v6497 = vpop.permute.xlu0 %6496
      %6498 = vrot.lane.b32.xlu0 %v6463, 4
      %v6499 = vpop.permute.xlu0 %6498
      %6500 = vrot.lane.b32.xlu0 %v6475, 4
      %v6501 = vpop.permute.xlu0 %6500
      %6502 = vrot.lane.b32.xlu0 %v6487, 4
      %v6503 = vpop.permute.xlu0 %6502
      %v6520 = vrot.slane %v6376, 1
      %v6521 = vrot.slane %v6384, 1
      %v6522 = vsel %vm3251, %v6520, %v6521
      %v6523 = vrot.slane %v6377, 1
      %v6524 = vrot.slane %v6385, 1
      %v6525 = vsel %vm3251, %v6523, %v6524
      %v6526 = vrot.slane %v6378, 1
      %v6527 = vrot.slane %v6386, 1
      %v6528 = vsel %vm3251, %v6526, %v6527
      %v6529 = vrot.slane %v6379, 1
      %v6530 = vrot.slane %v6387, 1
      %v6531 = vsel %vm3251, %v6529, %v6530
      %v6532 = vrot.slane %v6380, 1
      %v6533 = vrot.slane %v6388, 1
      %v6534 = vsel %vm3251, %v6532, %v6533
      %v6535 = vrot.slane %v6381, 1
      %v6536 = vrot.slane %v6389, 1
      %v6537 = vsel %vm3251, %v6535, %v6536
      %v6538 = vrot.slane %v6382, 1
      %v6539 = vrot.slane %v6390, 1
      %v6540 = vsel %vm3251, %v6538, %v6539
      %v6541 = vrot.slane %v6383, 1
      %v6542 = vrot.slane %v6391, 1
      %v6543 = vsel %vm3251, %v6541, %v6542
      %6544 = vrot.lane.b32.xlu0 %v6522, 8
      %v6545 = vpop.permute.xlu0 %6544
      %6546 = vrot.lane.b32.xlu0 %v6525, 8
      %v6547 = vpop.permute.xlu0 %6546
      %6548 = vrot.lane.b32.xlu0 %v6528, 8
      %v6549 = vpop.permute.xlu0 %6548
      %6550 = vrot.lane.b32.xlu0 %v6531, 8
      %v6551 = vpop.permute.xlu0 %6550
      %6552 = vrot.lane.b32.xlu0 %v6534, 8
      %v6553 = vpop.permute.xlu0 %6552
      %6554 = vrot.lane.b32.xlu0 %v6537, 8
      %v6555 = vpop.permute.xlu0 %6554
      %6556 = vrot.lane.b32.xlu0 %v6540, 8
      %v6557 = vpop.permute.xlu0 %6556
      %6558 = vrot.lane.b32.xlu0 %v6543, 8
      %v6559 = vpop.permute.xlu0 %6558
      %v6561 = vsel %vm4663, %v6376, %v6489
      %v6563 = vsel %vm4663, %v6377, %v6491
      %v6565 = vsel %vm4663, %v6378, %v6493
      %v6567 = vsel %vm4663, %v6379, %v6495
      %v6569 = vsel %vm4663, %v6380, %v6497
      %v6571 = vsel %vm4663, %v6381, %v6499
      %v6573 = vsel %vm4663, %v6382, %v6501
      %v6575 = vsel %vm4663, %v6383, %v6503
      %v6577 = vsel %vm941, %v6561, %v6545
      %v6579 = vsel %vm941, %v6563, %v6547
      %v6581 = vsel %vm941, %v6565, %v6549
      %v6583 = vsel %vm941, %v6567, %v6551
      %v6585 = vsel %vm941, %v6569, %v6553
      %v6587 = vsel %vm941, %v6571, %v6555
      %v6589 = vsel %vm941, %v6573, %v6557
      %v6591 = vsel %vm941, %v6575, %v6559
      %v6592 = vld [vmem:[%s11] sm:$0xf]
      %v6593 = vld [vmem:[%s11 + $0x4] sm:$0x3]
      %v6596 = vunpack.c.l.b16 %v6592
      %v6597 = vunpack.c.l.b16 %v6593
      %v6598 = vpack.c.b16 %v6597, %v6596
      %vm6599 = vcmask 97280
      %v6600 = vsel %vm6599, %v6577, 0
      %v6602 = vsel %vm6599, %v6579, 0
      %v6604 = vsel %vm6599, %v6581, 0
      %v6606 = vsel %vm6599, %v6583, 0
      %v6608 = vsel %vm6599, %v6585, 0
      %v6610 = vsel %vm6599, %v6587, 0
      %v6612 = vsel %vm6599, %v6589, 0
      %v6614 = vsel %vm6599, %v6591, 0
      %vm6616 = vcmask 1045504
      %v6618 = vsel %vm6616, %v6598, 0
      %6620 = vmatprep.subr.bf16.mxu0 0
      %6621 = vmatpush1.bf16.msra.mxu0 %v6618
      %6622 = vmatprep.subr.bf16.mxu0 0
      %6623 = vmatpush1.bf16.msra.mxu0 0
      %6624 = vmatprep.subr.bf16.mxu0 0
      %6625 = vmatpush1.bf16.msra.mxu0 0
      %6626 = vmatprep.subr.bf16.mxu0 0
      %6627 = vmatpush1.bf16.msra.mxu0 0
      %6628 = vmatprep.subr.bf16.mxu0 0
      %6629 = vmatpush1.bf16.msra.mxu0 0
      %6630 = vmatprep.subr.bf16.mxu0 0
      %6631 = vmatpush1.bf16.msra.mxu0 0
      %6632 = vmatprep.subr.bf16.mxu0 0
      %6633 = vmatpush1.bf16.msra.mxu0 0
      %6634 = vmatprep.subr.bf16.mxu0 0
      %6635 = vmatpush1.bf16.msra.mxu0 0
      %6636 = vmatprep.subr.bf16.mxu0 0
      %6637 = vmatpush1.bf16.msra.mxu0 0
      %6638 = vmatprep.subr.bf16.mxu0 0
      %6639 = vmatpush1.bf16.msra.mxu0 0
      %6640 = vmatprep.subr.bf16.mxu0 0
      %6641 = vmatpush1.bf16.msra.mxu0 0
      %6642 = vmatprep.subr.bf16.mxu0 0
      %6643 = vmatpush1.bf16.msra.mxu0 0
      %6644 = vmatprep.subr.bf16.mxu0 0
      %6645 = vmatpush1.bf16.msra.mxu0 0
      %6646 = vmatprep.subr.bf16.mxu0 0
      %6647 = vmatpush1.bf16.msra.mxu0 0
      %6648 = vmatprep.subr.bf16.mxu0 0
      %6649 = vmatpush1.bf16.msra.mxu0 0
      %6650 = vmatprep.subr.bf16.mxu0 0
      %6651 = vmatpush1.bf16.msra.mxu0 0
      %6652 = vmatprep.mubr.bf16.mxu0 0
      %6653 = vmatmul.mubr.bf16.gmra.mrb[0].mxu0 %v6600
      %v6654 = vpop.f32.mrb[0].mxu0
      %v6655 = vadd.f32 0.0, %v6654
      %v6656 = vpop.f32.mrb[0].mxu0
      %v6657 = vpop.f32.mrb[0].mxu0
      %v6658 = vadd.f32 0.0, %v6657
      %v6659 = vpop.f32.mrb[0].mxu0
      %6660 = vmatprep.mubr.bf16.mxu0 0
      %6661 = vmatmul.mubr.bf16.gmra.mrb[0].mxu0 %v6602
      %v6662 = vpop.f32.mrb[0].mxu0
      %v6663 = vadd.f32 0.0, %v6662
      %v6664 = vpop.f32.mrb[0].mxu0
      %v6665 = vpop.f32.mrb[0].mxu0
      %v6666 = vadd.f32 0.0, %v6665
      %v6667 = vpop.f32.mrb[0].mxu0
      %6668 = vmatprep.mubr.bf16.mxu0 0
      %6669 = vmatmul.mubr.bf16.gmra.mrb[0].mxu0 %v6604
      %v6670 = vpop.f32.mrb[0].mxu0
      %v6671 = vadd.f32 0.0, %v6670
      %v6672 = vpop.f32.mrb[0].mxu0
      %v6673 = vpop.f32.mrb[0].mxu0
      %v6674 = vadd.f32 0.0, %v6673
      %v6675 = vpop.f32.mrb[0].mxu0
      %6676 = vmatprep.mubr.bf16.mxu0 0
      %6677 = vmatmul.mubr.bf16.gmra.mrb[0].mxu0 %v6606
      %v6678 = vpop.f32.mrb[0].mxu0
      %v6679 = vadd.f32 0.0, %v6678
      %v6680 = vpop.f32.mrb[0].mxu0
      %v6681 = vpop.f32.mrb[0].mxu0
      %v6682 = vadd.f32 0.0, %v6681
      %v6683 = vpop.f32.mrb[0].mxu0
      %6684 = vmatprep.mubr.bf16.mxu0 0
      %6685 = vmatmul.mubr.bf16.gmra.mrb[0].mxu0 %v6608
      %v6686 = vpop.f32.mrb[0].mxu0
      %v6687 = vadd.f32 0.0, %v6686
      %v6688 = vpop.f32.mrb[0].mxu0
      %v6689 = vpop.f32.mrb[0].mxu0
      %v6690 = vadd.f32 0.0, %v6689
      %v6691 = vpop.f32.mrb[0].mxu0
      %6692 = vmatprep.mubr.bf16.mxu0 0
      %6693 = vmatmul.mubr.bf16.gmra.mrb[0].mxu0 %v6610
      %v6694 = vpop.f32.mrb[0].mxu0
      %v6695 = vadd.f32 0.0, %v6694
      %v6696 = vpop.f32.mrb[0].mxu0
      %v6697 = vpop.f32.mrb[0].mxu0
      %v6698 = vadd.f32 0.0, %v6697
      %v6699 = vpop.f32.mrb[0].mxu0
      %6700 = vmatprep.mubr.bf16.mxu0 0
      %6701 = vmatmul.mubr.bf16.gmra.mrb[0].mxu0 %v6612
      %v6702 = vpop.f32.mrb[0].mxu0
      %v6703 = vadd.f32 0.0, %v6702
      %v6704 = vpop.f32.mrb[0].mxu0
      %v6705 = vpop.f32.mrb[0].mxu0
      %v6706 = vadd.f32 0.0, %v6705
      %v6707 = vpop.f32.mrb[0].mxu0
      %6708 = vmatprep.mubr.bf16.mxu0 0
      %6709 = vmatmul.mubr.bf16.gmra.mrb[0].mxu0 %v6614
      %v6710 = vpop.f32.mrb[0].mxu0
      %v6711 = vadd.f32 0.0, %v6710
      %v6712 = vpop.f32.mrb[0].mxu0
      %v6713 = vpop.f32.mrb[0].mxu0
      %v6714 = vadd.f32 0.0, %v6713
      %v6715 = vpop.f32.mrb[0].mxu0
      %6716 = vdwg.mxu0
      %v6717 = vadd.f32 %v6350, %v6655
      %v6718 = vadd.f32 %v6350, %v6658
      %v6719 = vadd.f32 %v6350, %v6663
      %v6720 = vadd.f32 %v6350, %v6666
      %v6721 = vadd.f32 %v6350, %v6671
      %v6722 = vadd.f32 %v6350, %v6674
      %v6723 = vadd.f32 %v6350, %v6679
      %v6724 = vadd.f32 %v6350, %v6682
      %v6725 = vadd.f32 %v6350, %v6687
      %v6726 = vadd.f32 %v6350, %v6690
      %v6727 = vadd.f32 %v6350, %v6695
      %v6728 = vadd.f32 %v6350, %v6698
      %v6729 = vadd.f32 %v6350, %v6703
      %v6730 = vadd.f32 %v6350, %v6706
      %v6731 = vadd.f32 %v6350, %v6711
      %v6732 = vadd.f32 %v6350, %v6714
      %s6733 = scalar_lea.vmem [#allocation4], 24
      %v6734 = vld [vmem:[%s6733] sm:$0xff]
      %v6735 = vld [vmem:[%s6733 + $0x8] sm:$0xff]
      %v6736 = vld [vmem:[%s6733 + $0x10] sm:$0x3]
      %v6737 = vld [vmem:[%s6733 + $0x18] sm:$0xff]
      %v6738 = vld [vmem:[%s6733 + $0x20] sm:$0xff]
      %v6739 = vld [vmem:[%s6733 + $0x28] sm:$0x3]
      %v6740 = vld [vmem:[%s6733 + $0x30] sm:$0xff]
      %v6741 = vld [vmem:[%s6733 + $0x38] sm:$0xff]
      %v6742 = vld [vmem:[%s6733 + $0x40] sm:$0x3]
      %v6743 = vld [vmem:[%s6733 + $0x48] sm:$0xff]
      %v6744 = vld [vmem:[%s6733 + $0x50] sm:$0xff]
      %v6745 = vld [vmem:[%s6733 + $0x58] sm:$0x3]
      %v6746 = vld [vmem:[%s6733 + $0x60] sm:$0xff]
      %v6747 = vld [vmem:[%s6733 + $0x68] sm:$0xff]
      %v6748 = vld [vmem:[%s6733 + $0x70] sm:$0x3]
      %v6749 = vld [vmem:[%s6733 + $0x78] sm:$0xff]
      %v6750 = vld [vmem:[%s6733 + $0x80] sm:$0xff]
      %v6751 = vld [vmem:[%s6733 + $0x88] sm:$0x3]
      %v6752 = vld [vmem:[%s6733 + $0x90] sm:$0xff]
      %v6753 = vld [vmem:[%s6733 + $0x98] sm:$0xff]
      %v6754 = vld [vmem:[%s6733 + $0xa0] sm:$0x3]
      %v6755 = vld [vmem:[%s6733 + $0xa8] sm:$0xff]
      %v6756 = vld [vmem:[%s6733 + $0xb0] sm:$0xff]
      %v6757 = vld [vmem:[%s6733 + $0xb8] sm:$0x3]
      %v6758 = vpack.c.bf16 %v6735, %v6734
      %v6759 = vpack.c.bf16 %v6738, %v6737
      %v6760 = vpack.c.bf16 %v6741, %v6740
      %v6761 = vpack.c.bf16 %v6744, %v6743
      %v6762 = vpack.c.bf16 %v6747, %v6746
      %v6763 = vpack.c.bf16 %v6750, %v6749
      %v6764 = vpack.c.bf16 %v6753, %v6752
      %v6765 = vpack.c.bf16 %v6756, %v6755
      %v6766 = vpack.c.bf16 %v6736, %v6736
      %v6767 = vpack.c.bf16 %v6739, %v6739
      %v6768 = vpack.c.bf16 %v6742, %v6742
      %v6769 = vpack.c.bf16 %v6745, %v6745
      %v6770 = vpack.c.bf16 %v6748, %v6748
      %v6771 = vpack.c.bf16 %v6751, %v6751
      %v6772 = vpack.c.bf16 %v6754, %v6754
      %v6773 = vpack.c.bf16 %v6757, %v6757
      %v6775 = vshrl.u32 %v6758, 16
      %v6777 = vshll.u32 %v6758, 16
      %v6779 = vrot.slane %v6777, 1
      %v6780 = vor.u32 %v6775, %v6779
      %v6782 = vshll.u32 %v6766, 16
      %v6784 = vrot.slane %v6782, 1
      %v6785 = vsel %vm3058, %v6780, %v6784
      %v6787 = vshrl.u32 %v6759, 16
      %v6789 = vshll.u32 %v6759, 16
      %v6791 = vrot.slane %v6789, 1
      %v6792 = vor.u32 %v6787, %v6791
      %v6794 = vshll.u32 %v6767, 16
      %v6796 = vrot.slane %v6794, 1
      %v6797 = vsel %vm3058, %v6792, %v6796
      %v6799 = vshrl.u32 %v6760, 16
      %v6801 = vshll.u32 %v6760, 16
      %v6803 = vrot.slane %v6801, 1
      %v6804 = vor.u32 %v6799, %v6803
      %v6806 = vshll.u32 %v6768, 16
      %v6808 = vrot.slane %v6806, 1
      %v6809 = vsel %vm3058, %v6804, %v6808
      %v6811 = vshrl.u32 %v6761, 16
      %v6813 = vshll.u32 %v6761, 16
      %v6815 = vrot.slane %v6813, 1
      %v6816 = vor.u32 %v6811, %v6815
      %v6818 = vshll.u32 %v6769, 16
      %v6820 = vrot.slane %v6818, 1
      %v6821 = vsel %vm3058, %v6816, %v6820
      %v6823 = vshrl.u32 %v6762, 16
      %v6825 = vshll.u32 %v6762, 16
      %v6827 = vrot.slane %v6825, 1
      %v6828 = vor.u32 %v6823, %v6827
      %v6830 = vshll.u32 %v6770, 16
      %v6832 = vrot.slane %v6830, 1
      %v6833 = vsel %vm3058, %v6828, %v6832
      %v6835 = vshrl.u32 %v6763, 16
      %v6837 = vshll.u32 %v6763, 16
      %v6839 = vrot.slane %v6837, 1
      %v6840 = vor.u32 %v6835, %v6839
      %v6842 = vshll.u32 %v6771, 16
      %v6844 = vrot.slane %v6842, 1
      %v6845 = vsel %vm3058, %v6840, %v6844
      %v6847 = vshrl.u32 %v6764, 16
      %v6849 = vshll.u32 %v6764, 16
      %v6851 = vrot.slane %v6849, 1
      %v6852 = vor.u32 %v6847, %v6851
      %v6854 = vshll.u32 %v6772, 16
      %v6856 = vrot.slane %v6854, 1
      %v6857 = vsel %vm3058, %v6852, %v6856
      %v6859 = vshrl.u32 %v6765, 16
      %v6861 = vshll.u32 %v6765, 16
      %v6863 = vrot.slane %v6861, 1
      %v6864 = vor.u32 %v6859, %v6863
      %v6866 = vshll.u32 %v6773, 16
      %v6868 = vrot.slane %v6866, 1
      %v6869 = vsel %vm3058, %v6864, %v6868
      %6870 = vrot.lane.b32.xlu0 %v6785, 4
      %v6871 = vpop.permute.xlu0 %6870
      %6872 = vrot.lane.b32.xlu0 %v6797, 4
      %v6873 = vpop.permute.xlu0 %6872
      %6874 = vrot.lane.b32.xlu0 %v6809, 4
      %v6875 = vpop.permute.xlu0 %6874
      %6876 = vrot.lane.b32.xlu0 %v6821, 4
      %v6877 = vpop.permute.xlu0 %6876
      %6878 = vrot.lane.b32.xlu0 %v6833, 4
      %v6879 = vpop.permute.xlu0 %6878
      %6880 = vrot.lane.b32.xlu0 %v6845, 4
      %v6881 = vpop.permute.xlu0 %6880
      %6882 = vrot.lane.b32.xlu0 %v6857, 4
      %v6883 = vpop.permute.xlu0 %6882
      %6884 = vrot.lane.b32.xlu0 %v6869, 4
      %v6885 = vpop.permute.xlu0 %6884
      %v6902 = vrot.slane %v6758, 1
      %v6903 = vrot.slane %v6766, 1
      %v6904 = vsel %vm3251, %v6902, %v6903
      %v6905 = vrot.slane %v6759, 1
      %v6906 = vrot.slane %v6767, 1
      %v6907 = vsel %vm3251, %v6905, %v6906
      %v6908 = vrot.slane %v6760, 1
      %v6909 = vrot.slane %v6768, 1
      %v6910 = vsel %vm3251, %v6908, %v6909
      %v6911 = vrot.slane %v6761, 1
      %v6912 = vrot.slane %v6769, 1
      %v6913 = vsel %vm3251, %v6911, %v6912
      %v6914 = vrot.slane %v6762, 1
      %v6915 = vrot.slane %v6770, 1
      %v6916 = vsel %vm3251, %v6914, %v6915
      %v6917 = vrot.slane %v6763, 1
      %v6918 = vrot.slane %v6771, 1
      %v6919 = vsel %vm3251, %v6917, %v6918
      %v6920 = vrot.slane %v6764, 1
      %v6921 = vrot.slane %v6772, 1
      %v6922 = vsel %vm3251, %v6920, %v6921
      %v6923 = vrot.slane %v6765, 1
      %v6924 = vrot.slane %v6773, 1
      %v6925 = vsel %vm3251, %v6923, %v6924
      %6926 = vrot.lane.b32.xlu0 %v6904, 8
      %v6927 = vpop.permute.xlu0 %6926
      %6928 = vrot.lane.b32.xlu0 %v6907, 8
      %v6929 = vpop.permute.xlu0 %6928
      %6930 = vrot.lane.b32.xlu0 %v6910, 8
      %v6931 = vpop.permute.xlu0 %6930
      %6932 = vrot.lane.b32.xlu0 %v6913, 8
      %v6933 = vpop.permute.xlu0 %6932
      %6934 = vrot.lane.b32.xlu0 %v6916, 8
      %v6935 = vpop.permute.xlu0 %6934
      %6936 = vrot.lane.b32.xlu0 %v6919, 8
      %v6937 = vpop.permute.xlu0 %6936
      %6938 = vrot.lane.b32.xlu0 %v6922, 8
      %v6939 = vpop.permute.xlu0 %6938
      %6940 = vrot.lane.b32.xlu0 %v6925, 8
      %v6941 = vpop.permute.xlu0 %6940
      %v6943 = vsel %vm4663, %v6758, %v6871
      %v6945 = vsel %vm4663, %v6759, %v6873
      %v6947 = vsel %vm4663, %v6760, %v6875
      %v6949 = vsel %vm4663, %v6761, %v6877
      %v6951 = vsel %vm4663, %v6762, %v6879
      %v6953 = vsel %vm4663, %v6763, %v6881
      %v6955 = vsel %vm4663, %v6764, %v6883
      %v6957 = vsel %vm4663, %v6765, %v6885
      %v6959 = vsel %vm941, %v6943, %v6927
      %v6961 = vsel %vm941, %v6945, %v6929
      %v6963 = vsel %vm941, %v6947, %v6931
      %v6965 = vsel %vm941, %v6949, %v6933
      %v6967 = vsel %vm941, %v6951, %v6935
      %v6969 = vsel %vm941, %v6953, %v6937
      %v6971 = vsel %vm941, %v6955, %v6939
      %v6973 = vsel %vm941, %v6957, %v6941
      %s6974 = scalar_lea.vmem %s11, 8
      %v6975 = vld [vmem:[%s6974] sm:$0xf]
      %v6976 = vld [vmem:[%s6974 + $0x4] sm:$0x3]
      %v6979 = vunpack.c.l.b16 %v6975
      %v6980 = vunpack.c.l.b16 %v6976
      %v6981 = vpack.c.b16 %v6980, %v6979
      %v6982 = vsel %vm6599, %v6959, 0
      %v6984 = vsel %vm6599, %v6961, 0
      %v6986 = vsel %vm6599, %v6963, 0
      %v6988 = vsel %vm6599, %v6965, 0
      %v6990 = vsel %vm6599, %v6967, 0
      %v6992 = vsel %vm6599, %v6969, 0
      %v6994 = vsel %vm6599, %v6971, 0
      %v6996 = vsel %vm6599, %v6973, 0
      %v6999 = vsel %vm6616, %v6981, 0
      %7001 = vmatprep.subr.bf16.mxu0 0
      %7002 = vmatpush1.bf16.msra.mxu0 %v6999
      %7003 = vmatprep.subr.bf16.mxu0 0
      %7004 = vmatpush1.bf16.msra.mxu0 0
      %7005 = vmatprep.subr.bf16.mxu0 0
      %7006 = vmatpush1.bf16.msra.mxu0 0
      %7007 = vmatprep.subr.bf16.mxu0 0
      %7008 = vmatpush1.bf16.msra.mxu0 0
      %7009 = vmatprep.subr.bf16.mxu0 0
      %7010 = vmatpush1.bf16.msra.mxu0 0
      %7011 = vmatprep.subr.bf16.mxu0 0
      %7012 = vmatpush1.bf16.msra.mxu0 0
      %7013 = vmatprep.subr.bf16.mxu0 0
      %7014 = vmatpush1.bf16.msra.mxu0 0
      %7015 = vmatprep.subr.bf16.mxu0 0
      %7016 = vmatpush1.bf16.msra.mxu0 0
      %7017 = vmatprep.subr.bf16.mxu0 0
      %7018 = vmatpush1.bf16.msra.mxu0 0
      %7019 = vmatprep.subr.bf16.mxu0 0
      %7020 = vmatpush1.bf16.msra.mxu0 0
      %7021 = vmatprep.subr.bf16.mxu0 0
      %7022 = vmatpush1.bf16.msra.mxu0 0
      %7023 = vmatprep.subr.bf16.mxu0 0
      %7024 = vmatpush1.bf16.msra.mxu0 0
      %7025 = vmatprep.subr.bf16.mxu0 0
      %7026 = vmatpush1.bf16.msra.mxu0 0
      %7027 = vmatprep.subr.bf16.mxu0 0
      %7028 = vmatpush1.bf16.msra.mxu0 0
      %7029 = vmatprep.subr.bf16.mxu0 0
      %7030 = vmatpush1.bf16.msra.mxu0 0
      %7031 = vmatprep.subr.bf16.mxu0 0
      %7032 = vmatpush1.bf16.msra.mxu0 0
      %7033 = vmatprep.mubr.bf16.mxu0 0
      %7034 = vmatmul.mubr.bf16.gmra.mrb[0].mxu0 %v6982
      %v7035 = vpop.f32.mrb[0].mxu0
      %v7036 = vadd.f32 0.0, %v7035
      %v7037 = vpop.f32.mrb[0].mxu0
      %v7038 = vpop.f32.mrb[0].mxu0
      %v7039 = vadd.f32 0.0, %v7038
      %v7040 = vpop.f32.mrb[0].mxu0
      %7041 = vmatprep.mubr.bf16.mxu0 0
      %7042 = vmatmul.mubr.bf16.gmra.mrb[0].mxu0 %v6984
      %v7043 = vpop.f32.mrb[0].mxu0
      %v7044 = vadd.f32 0.0, %v7043
      %v7045 = vpop.f32.mrb[0].mxu0
      %v7046 = vpop.f32.mrb[0].mxu0
      %v7047 = vadd.f32 0.0, %v7046
      %v7048 = vpop.f32.mrb[0].mxu0
      %7049 = vmatprep.mubr.bf16.mxu0 0
      %7050 = vmatmul.mubr.bf16.gmra.mrb[0].mxu0 %v6986
      %v7051 = vpop.f32.mrb[0].mxu0
      %v7052 = vadd.f32 0.0, %v7051
      %v7053 = vpop.f32.mrb[0].mxu0
      %v7054 = vpop.f32.mrb[0].mxu0
      %v7055 = vadd.f32 0.0, %v7054
      %v7056 = vpop.f32.mrb[0].mxu0
      %7057 = vmatprep.mubr.bf16.mxu0 0
      %7058 = vmatmul.mubr.bf16.gmra.mrb[0].mxu0 %v6988
      %v7059 = vpop.f32.mrb[0].mxu0
      %v7060 = vadd.f32 0.0, %v7059
      %v7061 = vpop.f32.mrb[0].mxu0
      %v7062 = vpop.f32.mrb[0].mxu0
      %v7063 = vadd.f32 0.0, %v7062
      %v7064 = vpop.f32.mrb[0].mxu0
      %7065 = vmatprep.mubr.bf16.mxu0 0
      %7066 = vmatmul.mubr.bf16.gmra.mrb[0].mxu0 %v6990
      %v7067 = vpop.f32.mrb[0].mxu0
      %v7068 = vadd.f32 0.0, %v7067
      %v7069 = vpop.f32.mrb[0].mxu0
      %v7070 = vpop.f32.mrb[0].mxu0
      %v7071 = vadd.f32 0.0, %v7070
      %v7072 = vpop.f32.mrb[0].mxu0
      %7073 = vmatprep.mubr.bf16.mxu0 0
      %7074 = vmatmul.mubr.bf16.gmra.mrb[0].mxu0 %v6992
      %v7075 = vpop.f32.mrb[0].mxu0
      %v7076 = vadd.f32 0.0, %v7075
      %v7077 = vpop.f32.mrb[0].mxu0
      %v7078 = vpop.f32.mrb[0].mxu0
      %v7079 = vadd.f32 0.0, %v7078
      %v7080 = vpop.f32.mrb[0].mxu0
      %7081 = vmatprep.mubr.bf16.mxu0 0
      %7082 = vmatmul.mubr.bf16.gmra.mrb[0].mxu0 %v6994
      %v7083 = vpop.f32.mrb[0].mxu0
      %v7084 = vadd.f32 0.0, %v7083
      %v7085 = vpop.f32.mrb[0].mxu0
      %v7086 = vpop.f32.mrb[0].mxu0
      %v7087 = vadd.f32 0.0, %v7086
      %v7088 = vpop.f32.mrb[0].mxu0
      %7089 = vmatprep.mubr.bf16.mxu0 0
      %7090 = vmatmul.mubr.bf16.gmra.mrb[0].mxu0 %v6996
      %v7091 = vpop.f32.mrb[0].mxu0
      %v7092 = vadd.f32 0.0, %v7091
      %v7093 = vpop.f32.mrb[0].mxu0
      %v7094 = vpop.f32.mrb[0].mxu0
      %v7095 = vadd.f32 0.0, %v7094
      %v7096 = vpop.f32.mrb[0].mxu0
      %7097 = vdwg.mxu0
      %v7098 = vadd.f32 %v6717, %v7036
      %v7099 = vadd.f32 %v6718, %v7039
      %v7100 = vadd.f32 %v6719, %v7044
      %v7101 = vadd.f32 %v6720, %v7047
      %v7102 = vadd.f32 %v6721, %v7052
      %v7103 = vadd.f32 %v6722, %v7055
      %v7104 = vadd.f32 %v6723, %v7060
      %v7105 = vadd.f32 %v6724, %v7063
      %v7106 = vadd.f32 %v6725, %v7068
      %v7107 = vadd.f32 %v6726, %v7071
      %v7108 = vadd.f32 %v6727, %v7076
      %v7109 = vadd.f32 %v6728, %v7079
      %v7110 = vadd.f32 %v6729, %v7084
      %v7111 = vadd.f32 %v6730, %v7087
      %v7112 = vadd.f32 %v6731, %v7092
      %v7113 = vadd.f32 %v6732, %v7095
      %s7114 = scalar_lea.vmem [#allocation4], 48
      %v7115 = vld [vmem:[%s7114] sm:$0xff]
      %v7116 = vld [vmem:[%s7114 + $0x8] sm:$0xff]
      %v7117 = vld [vmem:[%s7114 + $0x10] sm:$0x3]
      %v7118 = vld [vmem:[%s7114 + $0x18] sm:$0xff]
      %v7119 = vld [vmem:[%s7114 + $0x20] sm:$0xff]
      %v7120 = vld [vmem:[%s7114 + $0x28] sm:$0x3]
      %v7121 = vld [vmem:[%s7114 + $0x30] sm:$0xff]
      %v7122 = vld [vmem:[%s7114 + $0x38] sm:$0xff]
      %v7123 = vld [vmem:[%s7114 + $0x40] sm:$0x3]
      %v7124 = vld [vmem:[%s7114 + $0x48] sm:$0xff]
      %v7125 = vld [vmem:[%s7114 + $0x50] sm:$0xff]
      %v7126 = vld [vmem:[%s7114 + $0x58] sm:$0x3]
      %v7127 = vld [vmem:[%s7114 + $0x60] sm:$0xff]
      %v7128 = vld [vmem:[%s7114 + $0x68] sm:$0xff]
      %v7129 = vld [vmem:[%s7114 + $0x70] sm:$0x3]
      %v7130 = vld [vmem:[%s7114 + $0x78] sm:$0xff]
      %v7131 = vld [vmem:[%s7114 + $0x80] sm:$0xff]
      %v7132 = vld [vmem:[%s7114 + $0x88] sm:$0x3]
      %v7133 = vld [vmem:[%s7114 + $0x90] sm:$0xff]
      %v7134 = vld [vmem:[%s7114 + $0x98] sm:$0xff]
      %v7135 = vld [vmem:[%s7114 + $0xa0] sm:$0x3]
      %v7136 = vld [vmem:[%s7114 + $0xa8] sm:$0xff]
      %v7137 = vld [vmem:[%s7114 + $0xb0] sm:$0xff]
      %v7138 = vld [vmem:[%s7114 + $0xb8] sm:$0x3]
      %v7139 = vpack.c.bf16 %v7116, %v7115
      %v7140 = vpack.c.bf16 %v7119, %v7118
      %v7141 = vpack.c.bf16 %v7122, %v7121
      %v7142 = vpack.c.bf16 %v7125, %v7124
      %v7143 = vpack.c.bf16 %v7128, %v7127
      %v7144 = vpack.c.bf16 %v7131, %v7130
      %v7145 = vpack.c.bf16 %v7134, %v7133
      %v7146 = vpack.c.bf16 %v7137, %v7136
      %v7147 = vpack.c.bf16 %v7117, %v7117
      %v7148 = vpack.c.bf16 %v7120, %v7120
      %v7149 = vpack.c.bf16 %v7123, %v7123
      %v7150 = vpack.c.bf16 %v7126, %v7126
      %v7151 = vpack.c.bf16 %v7129, %v7129
      %v7152 = vpack.c.bf16 %v7132, %v7132
      %v7153 = vpack.c.bf16 %v7135, %v7135
      %v7154 = vpack.c.bf16 %v7138, %v7138
      %v7156 = vshrl.u32 %v7139, 16
      %v7158 = vshll.u32 %v7139, 16
      %v7160 = vrot.slane %v7158, 1
      %v7161 = vor.u32 %v7156, %v7160
      %v7163 = vshll.u32 %v7147, 16
      %v7165 = vrot.slane %v7163, 1
      %v7166 = vsel %vm3058, %v7161, %v7165
      %v7168 = vshrl.u32 %v7140, 16
      %v7170 = vshll.u32 %v7140, 16
      %v7172 = vrot.slane %v7170, 1
      %v7173 = vor.u32 %v7168, %v7172
      %v7175 = vshll.u32 %v7148, 16
      %v7177 = vrot.slane %v7175, 1
      %v7178 = vsel %vm3058, %v7173, %v7177
      %v7180 = vshrl.u32 %v7141, 16
      %v7182 = vshll.u32 %v7141, 16
      %v7184 = vrot.slane %v7182, 1
      %v7185 = vor.u32 %v7180, %v7184
      %v7187 = vshll.u32 %v7149, 16
      %v7189 = vrot.slane %v7187, 1
      %v7190 = vsel %vm3058, %v7185, %v7189
      %v7192 = vshrl.u32 %v7142, 16
      %v7194 = vshll.u32 %v7142, 16
      %v7196 = vrot.slane %v7194, 1
      %v7197 = vor.u32 %v7192, %v7196
      %v7199 = vshll.u32 %v7150, 16
      %v7201 = vrot.slane %v7199, 1
      %v7202 = vsel %vm3058, %v7197, %v7201
      %v7204 = vshrl.u32 %v7143, 16
      %v7206 = vshll.u32 %v7143, 16
      %v7208 = vrot.slane %v7206, 1
      %v7209 = vor.u32 %v7204, %v7208
      %v7211 = vshll.u32 %v7151, 16
      %v7213 = vrot.slane %v7211, 1
      %v7214 = vsel %vm3058, %v7209, %v7213
      %v7216 = vshrl.u32 %v7144, 16
      %v7218 = vshll.u32 %v7144, 16
      %v7220 = vrot.slane %v7218, 1
      %v7221 = vor.u32 %v7216, %v7220
      %v7223 = vshll.u32 %v7152, 16
      %v7225 = vrot.slane %v7223, 1
      %v7226 = vsel %vm3058, %v7221, %v7225
      %v7228 = vshrl.u32 %v7145, 16
      %v7230 = vshll.u32 %v7145, 16
      %v7232 = vrot.slane %v7230, 1
      %v7233 = vor.u32 %v7228, %v7232
      %v7235 = vshll.u32 %v7153, 16
      %v7237 = vrot.slane %v7235, 1
      %v7238 = vsel %vm3058, %v7233, %v7237
      %v7240 = vshrl.u32 %v7146, 16
      %v7242 = vshll.u32 %v7146, 16
      %v7244 = vrot.slane %v7242, 1
      %v7245 = vor.u32 %v7240, %v7244
      %v7247 = vshll.u32 %v7154, 16
      %v7249 = vrot.slane %v7247, 1
      %v7250 = vsel %vm3058, %v7245, %v7249
      %7251 = vrot.lane.b32.xlu0 %v7166, 4
      %v7252 = vpop.permute.xlu0 %7251
      %7253 = vrot.lane.b32.xlu0 %v7178, 4
      %v7254 = vpop.permute.xlu0 %7253
      %7255 = vrot.lane.b32.xlu0 %v7190, 4
      %v7256 = vpop.permute.xlu0 %7255
      %7257 = vrot.lane.b32.xlu0 %v7202, 4
      %v7258 = vpop.permute.xlu0 %7257
      %7259 = vrot.lane.b32.xlu0 %v7214, 4
      %v7260 = vpop.permute.xlu0 %7259
      %7261 = vrot.lane.b32.xlu0 %v7226, 4
      %v7262 = vpop.permute.xlu0 %7261
      %7263 = vrot.lane.b32.xlu0 %v7238, 4
      %v7264 = vpop.permute.xlu0 %7263
      %7265 = vrot.lane.b32.xlu0 %v7250, 4
      %v7266 = vpop.permute.xlu0 %7265
      %v7283 = vrot.slane %v7139, 1
      %v7284 = vrot.slane %v7147, 1
      %v7285 = vsel %vm3251, %v7283, %v7284
      %v7286 = vrot.slane %v7140, 1
      %v7287 = vrot.slane %v7148, 1
      %v7288 = vsel %vm3251, %v7286, %v7287
      %v7289 = vrot.slane %v7141, 1
      %v7290 = vrot.slane %v7149, 1
      %v7291 = vsel %vm3251, %v7289, %v7290
      %v7292 = vrot.slane %v7142, 1
      %v7293 = vrot.slane %v7150, 1
      %v7294 = vsel %vm3251, %v7292, %v7293
      %v7295 = vrot.slane %v7143, 1
      %v7296 = vrot.slane %v7151, 1
      %v7297 = vsel %vm3251, %v7295, %v7296
      %v7298 = vrot.slane %v7144, 1
      %v7299 = vrot.slane %v7152, 1
      %v7300 = vsel %vm3251, %v7298, %v7299
      %v7301 = vrot.slane %v7145, 1
      %v7302 = vrot.slane %v7153, 1
      %v7303 = vsel %vm3251, %v7301, %v7302
      %v7304 = vrot.slane %v7146, 1
      %v7305 = vrot.slane %v7154, 1
      %v7306 = vsel %vm3251, %v7304, %v7305
      %7307 = vrot.lane.b32.xlu0 %v7285, 8
      %v7308 = vpop.permute.xlu0 %7307
      %7309 = vrot.lane.b32.xlu0 %v7288, 8
      %v7310 = vpop.permute.xlu0 %7309
      %7311 = vrot.lane.b32.xlu0 %v7291, 8
      %v7312 = vpop.permute.xlu0 %7311
      %7313 = vrot.lane.b32.xlu0 %v7294, 8
      %v7314 = vpop.permute.xlu0 %7313
      %7315 = vrot.lane.b32.xlu0 %v7297, 8
      %v7316 = vpop.permute.xlu0 %7315
      %7317 = vrot.lane.b32.xlu0 %v7300, 8
      %v7318 = vpop.permute.xlu0 %7317
      %7319 = vrot.lane.b32.xlu0 %v7303, 8
      %v7320 = vpop.permute.xlu0 %7319
      %7321 = vrot.lane.b32.xlu0 %v7306, 8
      %v7322 = vpop.permute.xlu0 %7321
      %v7324 = vsel %vm4663, %v7139, %v7252
      %v7326 = vsel %vm4663, %v7140, %v7254
      %v7328 = vsel %vm4663, %v7141, %v7256
      %v7330 = vsel %vm4663, %v7142, %v7258
      %v7332 = vsel %vm4663, %v7143, %v7260
      %v7334 = vsel %vm4663, %v7144, %v7262
      %v7336 = vsel %vm4663, %v7145, %v7264
      %v7338 = vsel %vm4663, %v7146, %v7266
      %v7340 = vsel %vm941, %v7324, %v7308
      %v7342 = vsel %vm941, %v7326, %v7310
      %v7344 = vsel %vm941, %v7328, %v7312
      %v7346 = vsel %vm941, %v7330, %v7314
      %v7348 = vsel %vm941, %v7332, %v7316
      %v7350 = vsel %vm941, %v7334, %v7318
      %v7352 = vsel %vm941, %v7336, %v7320
      %v7354 = vsel %vm941, %v7338, %v7322
      %s7355 = scalar_lea.vmem %s11, 16
      %v7356 = vld [vmem:[%s7355] sm:$0xf]
      %v7357 = vld [vmem:[%s7355 + $0x4] sm:$0x3]
      %v7360 = vunpack.c.l.b16 %v7356
      %v7361 = vunpack.c.l.b16 %v7357
      %v7362 = vpack.c.b16 %v7361, %v7360
      %v7363 = vsel %vm6599, %v7340, 0
      %v7365 = vsel %vm6599, %v7342, 0
      %v7367 = vsel %vm6599, %v7344, 0
      %v7369 = vsel %vm6599, %v7346, 0
      %v7371 = vsel %vm6599, %v7348, 0
      %v7373 = vsel %vm6599, %v7350, 0
      %v7375 = vsel %vm6599, %v7352, 0
      %v7377 = vsel %vm6599, %v7354, 0
      %v7380 = vsel %vm6616, %v7362, 0
      %7382 = vmatprep.subr.bf16.mxu0 0
      %7383 = vmatpush1.bf16.msra.mxu0 %v7380
      %7384 = vmatprep.subr.bf16.mxu0 0
      %7385 = vmatpush1.bf16.msra.mxu0 0
      %7386 = vmatprep.subr.bf16.mxu0 0
      %7387 = vmatpush1.bf16.msra.mxu0 0
      %7388 = vmatprep.subr.bf16.mxu0 0
      %7389 = vmatpush1.bf16.msra.mxu0 0
      %7390 = vmatprep.subr.bf16.mxu0 0
      %7391 = vmatpush1.bf16.msra.mxu0 0
      %7392 = vmatprep.subr.bf16.mxu0 0
      %7393 = vmatpush1.bf16.msra.mxu0 0
      %7394 = vmatprep.subr.bf16.mxu0 0
      %7395 = vmatpush1.bf16.msra.mxu0 0
      %7396 = vmatprep.subr.bf16.mxu0 0
      %7397 = vmatpush1.bf16.msra.mxu0 0
      %7398 = vmatprep.subr.bf16.mxu0 0
      %7399 = vmatpush1.bf16.msra.mxu0 0
      %7400 = vmatprep.subr.bf16.mxu0 0
      %7401 = vmatpush1.bf16.msra.mxu0 0
      %7402 = vmatprep.subr.bf16.mxu0 0
      %7403 = vmatpush1.bf16.msra.mxu0 0
      %7404 = vmatprep.subr.bf16.mxu0 0
      %7405 = vmatpush1.bf16.msra.mxu0 0
      %7406 = vmatprep.subr.bf16.mxu0 0
      %7407 = vmatpush1.bf16.msra.mxu0 0
      %7408 = vmatprep.subr.bf16.mxu0 0
      %7409 = vmatpush1.bf16.msra.mxu0 0
      %7410 = vmatprep.subr.bf16.mxu0 0
      %7411 = vmatpush1.bf16.msra.mxu0 0
      %7412 = vmatprep.subr.bf16.mxu0 0
      %7413 = vmatpush1.bf16.msra.mxu0 0
      %7414 = vmatprep.mubr.bf16.mxu0 0
      %7415 = vmatmul.mubr.bf16.gmra.mrb[0].mxu0 %v7363
      %v7416 = vpop.f32.mrb[0].mxu0
      %v7417 = vadd.f32 0.0, %v7416
      %v7418 = vpop.f32.mrb[0].mxu0
      %v7419 = vpop.f32.mrb[0].mxu0
      %v7420 = vadd.f32 0.0, %v7419
      %v7421 = vpop.f32.mrb[0].mxu0
      %7422 = vmatprep.mubr.bf16.mxu0 0
      %7423 = vmatmul.mubr.bf16.gmra.mrb[0].mxu0 %v7365
      %v7424 = vpop.f32.mrb[0].mxu0
      %v7425 = vadd.f32 0.0, %v7424
      %v7426 = vpop.f32.mrb[0].mxu0
      %v7427 = vpop.f32.mrb[0].mxu0
      %v7428 = vadd.f32 0.0, %v7427
      %v7429 = vpop.f32.mrb[0].mxu0
      %7430 = vmatprep.mubr.bf16.mxu0 0
      %7431 = vmatmul.mubr.bf16.gmra.mrb[0].mxu0 %v7367
      %v7432 = vpop.f32.mrb[0].mxu0
      %v7433 = vadd.f32 0.0, %v7432
      %v7434 = vpop.f32.mrb[0].mxu0
      %v7435 = vpop.f32.mrb[0].mxu0
      %v7436 = vadd.f32 0.0, %v7435
      %v7437 = vpop.f32.mrb[0].mxu0
      %7438 = vmatprep.mubr.bf16.mxu0 0
      %7439 = vmatmul.mubr.bf16.gmra.mrb[0].mxu0 %v7369
      %v7440 = vpop.f32.mrb[0].mxu0
      %v7441 = vadd.f32 0.0, %v7440
      %v7442 = vpop.f32.mrb[0].mxu0
      %v7443 = vpop.f32.mrb[0].mxu0
      %v7444 = vadd.f32 0.0, %v7443
      %v7445 = vpop.f32.mrb[0].mxu0
      %7446 = vmatprep.mubr.bf16.mxu0 0
      %7447 = vmatmul.mubr.bf16.gmra.mrb[0].mxu0 %v7371
      %v7448 = vpop.f32.mrb[0].mxu0
      %v7449 = vadd.f32 0.0, %v7448
      %v7450 = vpop.f32.mrb[0].mxu0
      %v7451 = vpop.f32.mrb[0].mxu0
      %v7452 = vadd.f32 0.0, %v7451
      %v7453 = vpop.f32.mrb[0].mxu0
      %7454 = vmatprep.mubr.bf16.mxu0 0
      %7455 = vmatmul.mubr.bf16.gmra.mrb[0].mxu0 %v7373
      %v7456 = vpop.f32.mrb[0].mxu0
      %v7457 = vadd.f32 0.0, %v7456
      %v7458 = vpop.f32.mrb[0].mxu0
      %v7459 = vpop.f32.mrb[0].mxu0
      %v7460 = vadd.f32 0.0, %v7459
      %v7461 = vpop.f32.mrb[0].mxu0
      %7462 = vmatprep.mubr.bf16.mxu0 0
      %7463 = vmatmul.mubr.bf16.gmra.mrb[0].mxu0 %v7375
      %v7464 = vpop.f32.mrb[0].mxu0
      %v7465 = vadd.f32 0.0, %v7464
      %v7466 = vpop.f32.mrb[0].mxu0
      %v7467 = vpop.f32.mrb[0].mxu0
      %v7468 = vadd.f32 0.0, %v7467
      %v7469 = vpop.f32.mrb[0].mxu0
      %7470 = vmatprep.mubr.bf16.mxu0 0
      %7471 = vmatmul.mubr.bf16.gmra.mrb[0].mxu0 %v7377
      %v7472 = vpop.f32.mrb[0].mxu0
      %v7473 = vadd.f32 0.0, %v7472
      %v7474 = vpop.f32.mrb[0].mxu0
      %v7475 = vpop.f32.mrb[0].mxu0
      %v7476 = vadd.f32 0.0, %v7475
      %v7477 = vpop.f32.mrb[0].mxu0
      %7478 = vdwg.mxu0
      %v7479 = vadd.f32 %v7098, %v7417
      %v7480 = vadd.f32 %v7099, %v7420
      %v7481 = vadd.f32 %v7100, %v7425
      %v7482 = vadd.f32 %v7101, %v7428
      %v7483 = vadd.f32 %v7102, %v7433
      %v7484 = vadd.f32 %v7103, %v7436
      %v7485 = vadd.f32 %v7104, %v7441
      %v7486 = vadd.f32 %v7105, %v7444
      %v7487 = vadd.f32 %v7106, %v7449
      %v7488 = vadd.f32 %v7107, %v7452
      %v7489 = vadd.f32 %v7108, %v7457
      %v7490 = vadd.f32 %v7109, %v7460
      %v7491 = vadd.f32 %v7110, %v7465
      %v7492 = vadd.f32 %v7111, %v7468
      %v7493 = vadd.f32 %v7112, %v7473
      %v7494 = vadd.f32 %v7113, %v7476
      %v7495 = vmax.f32 %v7479, 0.0
      %v7496 = vmax.f32 %v7480, 0.0
      %v7497 = vmax.f32 %v7481, 0.0
      %v7498 = vmax.f32 %v7482, 0.0
      %v7499 = vmax.f32 %v7483, 0.0
      %v7500 = vmax.f32 %v7484, 0.0
      %v7501 = vmax.f32 %v7485, 0.0
      %v7502 = vmax.f32 %v7486, 0.0
      %v7503 = vmax.f32 %v7487, 0.0
      %v7504 = vmax.f32 %v7488, 0.0
      %v7505 = vmax.f32 %v7489, 0.0
      %v7506 = vmax.f32 %v7490, 0.0
      %v7507 = vmax.f32 %v7491, 0.0
      %v7508 = vmax.f32 %v7492, 0.0
      %v7509 = vmax.f32 %v7493, 0.0
      %v7510 = vmax.f32 %v7494, 0.0
      %7511 = vxpose.xlu0.b32.start [1/16] %v7495, 128
      %7512 = vxpose.xlu0.b32.cont [2/16] %v7496, 128
      %7513 = vxpose.xlu0.b32.cont [3/16] %v7497, 128
      %7514 = vxpose.xlu0.b32.cont [4/16] %v7498, 128
      %7515 = vxpose.xlu0.b32.cont [5/16] %v7499, 128
      %7516 = vxpose.xlu0.b32.cont [6/16] %v7500, 128
      %7517 = vxpose.xlu0.b32.cont [7/16] %v7501, 128
      %7518 = vxpose.xlu0.b32.cont [8/16] %v7502, 128
      %7519 = vxpose.xlu0.b32.cont [9/16] %v7503, 128
      %7520 = vxpose.xlu0.b32.cont [10/16] %v7504, 128
      %7521 = vxpose.xlu0.b32.cont [11/16] %v7505, 128
      %7522 = vxpose.xlu0.b32.cont [12/16] %v7506, 128
      %7523 = vxpose.xlu0.b32.cont [13/16] %v7507, 128
      %7524 = vxpose.xlu0.b32.cont [14/16] %v7508, 128
      %7525 = vxpose.xlu0.b32.cont [15/16] %v7509, 128
      %7526 = vxpose.xlu0.b32.end [16/16] %v7510, 128
      %v7527 = vpop.trf.xlu0
      %v7528 = vpop.trf.xlu0
      %v7529 = vpop.trf.xlu0
      %v7530 = vpop.trf.xlu0
      %v7531 = vpop.trf.xlu0
      %v7532 = vpop.trf.xlu0
      %v7533 = vpop.trf.xlu0
      %v7534 = vpop.trf.xlu0
      %v7535 = vpop.trf.xlu0
      %v7536 = vpop.trf.xlu0
      %v7537 = vpop.trf.xlu0
      %v7538 = vpop.trf.xlu0
      %v7539 = vpop.trf.xlu0
      %v7540 = vpop.trf.xlu0
      %v7541 = vpop.trf.xlu0
      %v7542 = vpop.trf.xlu0
      %7543 = vst [vmem:[%s777] sm:$0xf] %v7527
      %p7544 = scmp.lt.s32.totalorder %s28, 1
      %s7545 = scalar_select %p7544, %s28, 1
      %p7546 = scmp.lt.s32.totalorder %s29, 3
      %s7547 = scalar_select %p7546, %s29, 3
      %s7548 = smul.addr %s7545, 4
      %s7549 = sadd.s32 %s7547, %s7548
      %s7550 = smul.addr %s7549, 4
      %s7551 = scalar_lea.vmem %s13, %s7550
      // Predicated region
      $region97: #{unet_up_forward.1} parent=71 // pred_check
        %p7552 = pneg %p403
      $region98: #{unet_up_forward.1} parent=71 // pred_check_branch
        %7554 = sbr.rel (%p7552) target = $region100
      $region99: #{unet_up_forward.1} parent=71 // pred_region
        _
      $region100: #{unet_up_forward.1} parent=71 // pred_fallthru
        _
    $region72: #{unet_up_forward.1} parent=5 // pred_fallthru
      _
    %p7555 = scmp.le.s32.totalorder 2, %s19
    // Predicated region
    $region101: #{unet_up_forward.1} parent=5 // pred_check
      %p7556 = pneg %p7555
    $region102: #{unet_up_forward.1} parent=5 // pred_check_branch
      %7558 = sbr.rel (%p7556) target = $region104
    $region103: #{unet_up_forward.1} parent=5 // pred_region
      %s7559 = ssub.s32 %s19, 2
      // Predicated region
      $region105: #{unet_up_forward.1} parent=103 // pred_check
        %p7560 = pneg %p409
      $region106: #{unet_up_forward.1} parent=103 // pred_check_branch
        %7562 = sbr.rel (%p7560) target = $region108
      $region107: #{unet_up_forward.1} parent=103 // pred_region
        %p7563 = scmp.lt.s32.totalorder %s30, 1
        %s7564 = scalar_select %p7563, %s30, 1
        %p7565 = scmp.lt.s32.totalorder %s31, 3
        %s7566 = scalar_select %p7565, %s31, 3
        %s7567 = smul.addr %s7564, 4
        %s7568 = sadd.s32 %s7566, %s7567
        %s7569 = smul.addr %s7568, 4
        %s7570 = scalar_lea.vmem %s13, %s7569
      $region108: #{unet_up_forward.1} parent=103 // pred_fallthru
        _
    $region104: #{unet_up_forward.1} parent=5 // pred_fallthru
      _
  $region6: #{unet_up_forward.1} parent=0 // loop_footer
    %s23 = sadd.s32 1, %s19
  $region7: #{unet_up_forward.1} parent=0 // loop_footer_branch
    %18 = sbr.rel target = $region3
  $region8: #{unet_up_forward.1} parent=0 // loop_exit
    _

</llo_original>
